<compile_context>
chip_gen: v7x
topology: tpu7x:2x2x1
jax: 0.10.0
libtpu: 0.0.40
codegen_flags: <defaults>
</compile_context>

<pallas_src>
import functools

import numpy as np

import jax
import jax.numpy as jnp
from jax.experimental import pallas as pl
from jax.experimental.pallas import tpu as pltpu

BN_EPS = 1e-5
MAX_TILE_N = 1024            # row-tile target (multiple of 16 for bf16 staging)
VMEM_LIMIT = 32 * 1024 * 1024  # generous for our <8 MiB footprint, safe on v7x


def _round_up(x, m):
    return ((x + m - 1) // m) * m


def _cparams(dimension_semantics):
    return pltpu.CompilerParams(dimension_semantics=dimension_semantics,
                                vmem_limit_bytes=VMEM_LIMIT)


# ---------------------------------------------------------------------------
# Kernels
# ---------------------------------------------------------------------------
def _layer1_kernel(x_ref, w_ref, y_ref, stats_ref):
    """y = x @ W[b]  (bf16 operands, f32 acc) + per-tile channel sum / sumsq.

    Padded rows / channels of x are zero, so they are exactly neutral here."""
    y = jnp.dot(x_ref[...], w_ref[0], preferred_element_type=jnp.float32)
    y_ref[...] = y.astype(y_ref.dtype)                    # bf16 HBM staging
    stats_ref[:, 0:1, :] = jnp.sum(y, axis=0, keepdims=True)[None]
    stats_ref[:, 1:2, :] = jnp.sum(y * y, axis=0, keepdims=True)[None]


def _make_mid_kernel(n_points, tile_n):
    """x = relu(y_prev * scale + shift); y = x @ W; per-tile stats of y."""
    ragged = (n_points % tile_n) != 0

    def kernel(y_ref, sc_ref, w_ref, y2_ref, stats_ref):
        x = jnp.maximum(
            y_ref[...].astype(jnp.float32) * sc_ref[0:1, :] + sc_ref[1:2, :],
            0.0)
        if ragged:  # zero out rows past the true point count of this tile
            valid = n_points - pl.program_id(1) * tile_n
            rows = jax.lax.broadcasted_iota(jnp.int32, (tile_n, 1), 0)
            x = jnp.where(rows < valid, x, 0.0)
        y2 = jnp.dot(x.astype(jnp.bfloat16), w_ref[...],
                     preferred_element_type=jnp.float32)
        y2_ref[...] = y2.astype(y2_ref.dtype)              # bf16 HBM staging
        stats_ref[:, 0:1, :] = jnp.sum(y2, axis=0, keepdims=True)[None]
        stats_ref[:, 1:2, :] = jnp.sum(y2 * y2, axis=0, keepdims=True)[None]

    return kernel


def _make_last_kernel(n_points, tile_n):
    """x = relu(y_prev * scale + shift); y = x @ W; accumulate per-batch
    running max / min / sum / sumsq of y in a resident output block.  The
    [tile_n, 1024] activation never leaves VMEM."""
    ragged = (n_points % tile_n) != 0

    def kernel(y_ref, sc_ref, w_ref, red_ref):
        k = pl.program_id(1)
        x = jnp.maximum(
            y_ref[...].astype(jnp.float32) * sc_ref[0:1, :] + sc_ref[1:2, :],
            0.0)
        if ragged:
            valid = n_points - k * tile_n
            rows = jax.lax.broadcasted_iota(jnp.int32, (tile_n, 1), 0)
            rowmask = rows < valid
            x = jnp.where(rowmask, x, 0.0)
        y3 = jnp.dot(x.astype(jnp.bfloat16), w_ref[...],
                     preferred_element_type=jnp.float32)
        if ragged:
            big = jnp.float32(3.0e38)
            mx = jnp.max(jnp.where(rowmask, y3, -big), axis=0, keepdims=True)[None]
            mn = jnp.min(jnp.where(rowmask, y3, big), axis=0, keepdims=True)[None]
        else:
            mx = jnp.max(y3, axis=0, keepdims=True)[None]
            mn = jnp.min(y3, axis=0, keepdims=True)[None]
        s = jnp.sum(y3, axis=0, keepdims=True)[None]       # padded rows are 0
        ss = jnp.sum(y3 * y3, axis=0, keepdims=True)[None]

        @pl.when(k == 0)
        def _init():
            red_ref[:, 0:1, :] = mx
            red_ref[:, 1:2, :] = mn
            red_ref[:, 2:3, :] = s
            red_ref[:, 3:4, :] = ss

        @pl.when(k > 0)
        def _acc():
            red_ref[:, 0:1, :] = jnp.maximum(red_ref[:, 0:1, :], mx)
            red_ref[:, 1:2, :] = jnp.minimum(red_ref[:, 1:2, :], mn)
            red_ref[:, 2:3, :] = red_ref[:, 2:3, :] + s
            red_ref[:, 3:4, :] = red_ref[:, 3:4, :] + ss

    return kernel


# ---------------------------------------------------------------------------
# pallas_call wrappers
# ---------------------------------------------------------------------------
def _layer1(pts, w1, B, ntb, tile_n):
    """pts: [B*n_pad, cin_p] bf16; w1: [1 or B, cin_p, c1] bf16 (per-batch if
    the STN transform has been folded in)."""
    R, cin_p = pts.shape
    c1 = w1.shape[-1]
    w_map = (lambda b, k: (b, 0, 0)) if w1.shape[0] > 1 else (lambda b, k: (0, 0, 0))
    return pl.pallas_call(
        _layer1_kernel,
        out_shape=(jax.ShapeDtypeStruct((R, c1), jnp.bfloat16),
                   jax.ShapeDtypeStruct((B * ntb, 2, c1), jnp.float32)),
        grid=(B, ntb),
        in_specs=[pl.BlockSpec((tile_n, cin_p), lambda b, k: (b * ntb + k, 0)),
                  pl.BlockSpec((1, cin_p, c1), w_map)],
        out_specs=(pl.BlockSpec((tile_n, c1), lambda b, k: (b * ntb + k, 0)),
                   pl.BlockSpec((1, 2, c1), lambda b, k: (b * ntb + k, 0, 0))),
        compiler_params=_cparams(("parallel", "parallel")),
    )(pts, w1)


def _layer_mid(y1, sc, w, B, ntb, tile_n, n_points):
    R, c_in = y1.shape
    c_out = w.shape[-1]
    return pl.pallas_call(
        _make_mid_kernel(n_points, tile_n),
        out_shape=(jax.ShapeDtypeStruct((R, c_out), jnp.bfloat16),
                   jax.ShapeDtypeStruct((B * ntb, 2, c_out), jnp.float32)),
        grid=(B, ntb),
        in_specs=[pl.BlockSpec((tile_n, c_in), lambda b, k: (b * ntb + k, 0)),
                  pl.BlockSpec((2, c_in), lambda b, k: (0, 0)),
                  pl.BlockSpec((c_in, c_out), lambda b, k: (0, 0))],
        out_specs=(pl.BlockSpec((tile_n, c_out), lambda b, k: (b * ntb + k, 0)),
                   pl.BlockSpec((1, 2, c_out), lambda b, k: (b * ntb + k, 0, 0))),
        compiler_params=_cparams(("parallel", "parallel")),
    )(y1, sc, w)


def _layer_last(y2, sc, w, B, ntb, tile_n, n_points):
    R, c_in = y2.shape
    c_out = w.shape[-1]
    return pl.pallas_call(
        _make_last_kernel(n_points, tile_n),
        out_shape=jax.ShapeDtypeStruct((B, 4, c_out), jnp.float32),
        grid=(B, ntb),
        in_specs=[pl.BlockSpec((tile_n, c_in), lambda b, k: (b * ntb + k, 0)),
                  pl.BlockSpec((2, c_in), lambda b, k: (0, 0)),
                  pl.BlockSpec((c_in, c_out), lambda b, k: (0, 0))],
        out_specs=pl.BlockSpec((1, 4, c_out), lambda b, k: (b, 0, 0)),
        compiler_params=_cparams(("parallel", "arbitrary")),
    )(y2, sc, w)


# ---------------------------------------------------------------------------
# JAX-side glue (tiny, O(B) / O(C))
# ---------------------------------------------------------------------------
def _finish_bn(stats, count, gamma, beta):
    """Fold per-tile (sum, sumsq) partials into BN scale/shift, [2, C] f32."""
    tot = jnp.sum(stats, axis=0)                           # [2, C]
    mean = tot[0] / count
    var = jnp.maximum(tot[1] / count - mean * mean, 0.0)
    scale = gamma * jax.lax.rsqrt(var + BN_EPS)
    shift = beta - mean * scale
    return jnp.stack([scale, shift], axis=0)


def _finish_bn_pool(red, count, gamma, beta, relu):
    """red: [B, 4, C] (max, min, sum, sumsq of the pre-BN activation).  Finish
    BN stats and produce the per-batch max over points of the BN output
    (exact: the BN affine is monotone per channel; ReLU commutes with max)."""
    mean = jnp.sum(red[:, 2, :], axis=0) / count
    var = jnp.maximum(jnp.sum(red[:, 3, :], axis=0) / count - mean * mean, 0.0)
    scale = gamma * jax.lax.rsqrt(var + BN_EPS)
    shift = beta - mean * scale
    pooled = jnp.where(scale >= 0.0,
                       red[:, 0, :] * scale + shift,
                       red[:, 1, :] * scale + shift)
    return jnp.maximum(pooled, 0.0) if relu else pooled


def _conv_stack(pts, w1, layers, B, ntb, tile_n, n_points, last_relu):
    """conv1x1+BN(+ReLU) x3 then max over the points of each batch."""
    count = B * n_points
    (_, g1, b1), (w2, g2, b2), (w3, g3, b3) = layers
    y1, st1 = _layer1(pts, w1, B, ntb, tile_n)
    sc1 = _finish_bn(st1, count, g1, b1)
    y2, st2 = _layer_mid(y1, sc1, w2, B, ntb, tile_n, n_points)
    sc2 = _finish_bn(st2, count, g2, b2)
    red = _layer_last(y2, sc2, w3, B, ntb, tile_n, n_points)
    return _finish_bn_pool(red, count, g3, b3, last_relu)


def _stn_fc_head(pooled, p):
    """STN regression head (fc1/bn4/relu, fc2/bn5/relu, fc3 + identity).
    O(B x 1024) work -> plain JAX f32; fc1/fc2 biases cancel under training BN."""
    def lin_bn_relu(h, W, gamma, beta):
        y = jnp.dot(h, W)
        n = y.shape[0]
        mean = jnp.sum(y, axis=0) / n
        var = jnp.maximum(jnp.sum(y * y, axis=0) / n - mean * mean, 0.0)
        scale = gamma * jax.lax.rsqrt(var + BN_EPS)
        return jnp.maximum(y * scale + (beta - mean * scale), 0.0)

    h = lin_bn_relu(pooled, p['fc1_w'], p['bn4_g'], p['bn4_b'])
    h = lin_bn_relu(h, p['fc2_w'], p['bn5_g'], p['bn5_b'])
    out = jnp.dot(h, p['fc3_w']) + p['fc3_b']
    eye = jnp.eye(3, dtype=jnp.float32).reshape(1, 9)
    return (out + eye).reshape(-1, 3, 3)


def _fold_trans_into_w1(trans, w1):
    """(x @ trans) @ W1[:3] + x_feat @ W1[3:] == x @ [trans @ W1[:3]; W1[3:]]:
    fold the per-batch 3x3 transform into conv1's weight."""
    B = trans.shape[0]
    w1_xyz = jnp.einsum('bij,jc->bic', trans, w1[:3, :])
    rest = jnp.broadcast_to(w1[3:, :][None], (B,) + w1[3:, :].shape)
    return jnp.concatenate([w1_xyz, rest], axis=1)


# ---------------------------------------------------------------------------
# Module forward
# ---------------------------------------------------------------------------
def pointnet_encoder_forward(x, params, max_tile_n=MAX_TILE_N):
    """PointNetEncoder(global_feat=True, feature_transform=False), training-mode
    BatchNorm.  x: [B, D, N] f32 -> (global_feature [B, 1024], trans [B, 3, 3],
    None)."""
    B, D, N = x.shape
    cin_p = params['cin_p']
    tile_n = min(_round_up(N, 16), max_tile_n)     # multiple of 16 (bf16 rows)
    n_pad = _round_up(N, tile_n)
    ntb = n_pad // tile_n

    # Raw point slab [B*n_pad, cin_p] bf16 (row = b*n_pad + n); zero padding of
    # rows / channels is exactly neutral in layer 1 and masked afterwards.
    pts = jnp.transpose(x, (0, 2, 1))
    pts = jnp.pad(pts, ((0, 0), (0, n_pad - N), (0, cin_p - D)))
    pts = pts.reshape(B * n_pad, cin_p).astype(jnp.bfloat16)

    # ---- STN3d: conv stack (Pallas) + tiny fc head (plain JAX). ----
    stn = params['stn']
    w1_stn = stn['conv'][0][0].astype(jnp.bfloat16)[None]      # [1, cin_p, 64]
    pooled = _conv_stack(pts, w1_stn, stn['conv'], B, ntb, tile_n, N,
                         last_relu=True)
    trans = _stn_fc_head(pooled, stn)

    # ---- Main encoder: fold trans into conv1's weight (per batch) so the same
    #      raw point slab is reused with no bmm/concat/transpose round trip. ----
    w1_b = _fold_trans_into_w1(trans, params['conv'][0][0]).astype(jnp.bfloat16)
    gfeat = _conv_stack(pts, w1_b, params['conv'], B, ntb, tile_n, N,
                        last_relu=False)
    return gfeat, trans, None


# ---------------------------------------------------------------------------
# Parameters
# ---------------------------------------------------------------------------
def init_raw_params(key, channel):
    """Unpadded f32 params.  Conv / fc1 / fc2 biases are omitted (they cancel
    exactly under training-mode BN); fc3 keeps its bias.  BN gamma/beta are
    randomised so both signs of the BN scale (and both branches of the fused
    max/min pooling) are exercised."""
    ks = jax.random.split(key, 20)

    def w(k, cin, cout, s=0.1):
        return jax.random.normal(k, (cin, cout), jnp.float32) * s

    def bn(k, c):
        kg, kb = jax.random.split(k)
        return (1.0 + 0.5 * jax.random.normal(kg, (c,), jnp.float32),
                0.1 * jax.random.normal(kb, (c,), jnp.float32))

    return {
        'stn': {
            'conv': [(w(ks[0], channel, 64), *bn(ks[1], 64)),
                     (w(ks[2], 64, 128), *bn(ks[3], 128)),
                     (w(ks[4], 128, 1024), *bn(ks[5], 1024))],
            'fc1_w': w(ks[6], 1024, 512),
            'bn4_g': 1.0 + 0.5 * jax.random.normal(ks[7], (512,), jnp.float32),
            'bn4_b': 0.1 * jax.random.normal(ks[8], (512,), jnp.float32),
            'fc2_w': w(ks[9], 512, 256),
            'bn5_g': 1.0 + 0.5 * jax.random.normal(ks[10], (256,), jnp.float32),
            'bn5_b': 0.1 * jax.random.normal(ks[11], (256,), jnp.float32),
            'fc3_w': w(ks[12], 256, 9, 0.01),
            'fc3_b': 0.01 * jax.random.normal(ks[13], (9,), jnp.float32),
        },
        'conv': [(w(ks[14], channel, 64), *bn(ks[15], 64)),
                 (w(ks[16], 64, 128), *bn(ks[17], 128)),
                 (w(ks[18], 128, 1024), *bn(ks[19], 1024))],
    }


def pack_params(raw, channel):
    """Pad conv1's input-channel dim to a multiple of 8 (sublane alignment only
    -- no 128-lane padding of HBM-staged activations) and cast the big MXU
    weights to bf16; the tiny fc head stays f32."""
    cin_p = _round_up(channel, 8)

    def pack_stack(layers):
        (w1, g1, b1), (w2, g2, b2), (w3, g3, b3) = layers
        w1p = jnp.zeros((cin_p, w1.shape[1]), jnp.float32).at[:channel].set(w1)
        return [(w1p, g1, b1),
                (w2.astype(jnp.bfloat16), g2, b2),
                (w3.astype(jnp.bfloat16), g3, b3)]

    head_keys = ('fc1_w', 'bn4_g', 'bn4_b', 'fc2_w', 'bn5_g', 'bn5_b',
                 'fc3_w', 'fc3_b')
    return {'stn': {'conv': pack_stack(raw['stn']['conv']),
                    **{k: raw['stn'][k] for k in head_keys}},
            'conv': pack_stack(raw['conv']),
            'cin_p': cin_p}


# ---------------------------------------------------------------------------
# Pure-JAX references (mirror the kernel's precision policy: bf16 MXU operands
# and bf16 staging of intermediate activations, f32 stats / affine / pooling).
# ---------------------------------------------------------------------------
def _ref_conv_stack(pts_b, w1_eff, layers, last_relu):
    B, N, _ = pts_b.shape
    (_, g1, b1), (w2, g2, b2), (w3, g3, b3) = layers

    def bn(y, gamma, beta):
        n = y.shape[0]
        mean = jnp.sum(y, axis=0) / n
        var = jnp.maximum(jnp.sum(y * y, axis=0) / n - mean * mean, 0.0)
        scale = gamma * jax.lax.rsqrt(var + BN_EPS)
        return scale, beta - mean * scale

    y1 = jnp.einsum('bnc,bcd->bnd', pts_b, w1_eff,
                    preferred_element_type=jnp.float32).reshape(B * N, -1)
    s1, t1 = bn(y1, g1, b1)
    x1 = jnp.maximum(y1.astype(jnp.bfloat16).astype(jnp.float32) * s1 + t1, 0.0)
    y2 = jnp.dot(x1.astype(jnp.bfloat16), w2.astype(jnp.bfloat16),
                 preferred_element_type=jnp.float32)
    s2, t2 = bn(y2, g2, b2)
    x2 = jnp.maximum(y2.astype(jnp.bfloat16).astype(jnp.float32) * s2 + t2, 0.0)
    y3 = jnp.dot(x2.astype(jnp.bfloat16), w3.astype(jnp.bfloat16),
                 preferred_element_type=jnp.float32)
    s3, t3 = bn(y3, g3, b3)
    out = y3 * s3 + t3
    if last_relu:
        out = jnp.maximum(out, 0.0)
    return jnp.max(out.reshape(B, N, -1), axis=1)


def _ref_stn(x, raw):
    B, D, N = x.shape
    pts = jnp.transpose(x, (0, 2, 1)).astype(jnp.bfloat16)
    w1 = jnp.broadcast_to(raw['stn']['conv'][0][0].astype(jnp.bfloat16)[None],
                          (B, D, 64))
    pooled = _ref_conv_stack(pts, w1, raw['stn']['conv'], last_relu=True)
    return _stn_fc_head(pooled, raw['stn'])


def _ref_encoder_given_trans(x, raw, trans):
    pts = jnp.transpose(x, (0, 2, 1)).astype(jnp.bfloat16)
    w1_eff = _fold_trans_into_w1(trans, raw['conv'][0][0]).astype(jnp.bfloat16)
    return _ref_conv_stack(pts, w1_eff, raw['conv'], last_relu=False)


# ---------------------------------------------------------------------------
if __name__ == "__main__":
    def _check(name, got, want, atol=1e-2, rtol=1e-2):
        if not bool(jnp.allclose(got, want, atol=atol, rtol=rtol)):
            err = float(jnp.max(jnp.abs(got - want)))
            raise AssertionError(f"{name} mismatch (max abs err {err:.3e})")

    def run_case(B, channel, N, key, max_tile_n=MAX_TILE_N):
        kx, kp = jax.random.split(key)
        x = jax.random.normal(kx, (B, channel, N), jnp.float32)
        raw = init_raw_params(kp, channel)
        params = pack_params(raw, channel)

        fwd = jax.jit(functools.partial(pointnet_encoder_forward,
                                        params=params, max_tile_n=max_tile_n))
        gfeat, trans, trans_feat = fwd(x)
        jax.block_until_ready((gfeat, trans))
        assert gfeat.shape == (B, 1024)
        assert trans.shape == (B, 3, 3)
        assert trans_feat is None

        # (1) STN transform, end to end, vs the mirrored pure-JAX reference.
        _check("trans", trans, _ref_stn(x, raw))

        # (2) Global feature vs the mirrored reference given the SAME transform
        #     (validates the main-stack kernels exactly; a full end-to-end
        #     comparison would re-amplify sub-tolerance `trans` differences
        #     through three BatchNorm layers and is ill-conditioned).
        _check("gfeat", gfeat, _ref_encoder_given_trans(x, raw, trans))

        # (3) The trans-into-conv1 folding equals the PyTorch op order
        #     (bmm(x, trans) then conv1), checked in float64 on the host.
        x64 = np.asarray(x, np.float64)
        t64 = np.asarray(trans, np.float64)
        w1_64 = np.asarray(raw['conv'][0][0], np.float64)
        pts64 = np.transpose(x64, (0, 2, 1))
        xyz = np.einsum('bni,bij->bnj', pts64[:, :, :3], t64)
        y_torch = (np.einsum('bnj,jc->bnc', xyz, w1_64[:3, :]) +
                   np.einsum('bnd,dc->bnc', pts64[:, :, 3:], w1_64[3:, :]))
        w_fold = np.asarray(_fold_trans_into_w1(trans, raw['conv'][0][0]),
                            np.float64)
        y_fold = np.einsum('bnd,bdc->bnc', pts64, w_fold)
        assert np.allclose(y_torch, y_fold, atol=1e-4, rtol=1e-4), \
            "trans folding mismatch vs PyTorch op order"

    key = jax.random.PRNGKey(0)
    k1, k2 = jax.random.split(key)
    # Case 1: tile divides N -> exercises multi-tile per-batch accumulation.
    run_case(B=4, channel=3, N=1024, key=k1, max_tile_n=512)
    # Case 2: ragged N (no multiple-of-8 divisor) -> exercises in-kernel masking.
    run_case(B=4, channel=3, N=200, key=k2)
    print("KERNEL_OK")
</pallas_src>

<mosaic_0001>
module attributes {stable_mosaic.version = 11 : i64} {
  func.func @_layer1_kernel(%arg0: i32, %arg1: i32, %arg2: memref<512x8xbf16, #tpu.memory_space<vmem>>, %arg3: memref<1x8x64xbf16, #tpu.memory_space<vmem>>, %arg4: memref<512x64xbf16, #tpu.memory_space<vmem>>, %arg5: memref<1x2x64xf32, #tpu.memory_space<vmem>>) attributes {dimension_semantics = [#tpu.dimension_semantics<parallel>, #tpu.dimension_semantics<parallel>], iteration_bounds = array<i64: 4, 2>, scalar_prefetch = 0 : i64, scratch_operands = 0 : i64, tpu.core_type = #tpu.core_type<tc>, window_params = [{transform_indices = @transform_0, window_bounds = array<i64: 512, 8>}, {pipeline_mode = #tpu.pipeline_mode<synchronous>, transform_indices = @transform_1, window_bounds = array<i64: 1, 8, 64>}, {transform_indices = @transform_2, window_bounds = array<i64: 512, 64>}, {transform_indices = @transform_3, window_bounds = array<i64: 1, 2, 64>}]} {
    %c0 = arith.constant 0 : index
    %c0_0 = arith.constant 0 : index
    %0 = vector.load %arg2[%c0, %c0_0] : memref<512x8xbf16, #tpu.memory_space<vmem>>, vector<512x8xbf16>
    %c0_1 = arith.constant 0 : index
    %c0_2 = arith.constant 0 : index
    %c0_3 = arith.constant 0 : index
    %1 = vector.load %arg3[%c0_1, %c0_2, %c0_3] : memref<1x8x64xbf16, #tpu.memory_space<vmem>>, vector<1x8x64xbf16>
    %2 = vector.shape_cast %1 : vector<1x8x64xbf16> to vector<8x64xbf16>
    %cst = arith.constant dense<0.000000e+00> : vector<512x64xf32>
    %3 = tpu.matmul %0, %2, %cst {dimension_numbers = #tpu.dot_dimension_numbers<[1], [0], [0], [1], [0, 0, 1, 1], [], []>} : vector<512x8xbf16>, vector<8x64xbf16>, vector<512x64xf32> -> vector<512x64xf32>
    %4 = arith.truncf %3 : vector<512x64xf32> to vector<512x64xbf16>
    %c0_4 = arith.constant 0 : index
    %c0_5 = arith.constant 0 : index
    %5 = vector.load %arg4[%c0_4, %c0_5] : memref<512x64xbf16, #tpu.memory_space<vmem>>, vector<512x64xbf16>
    tpu.vector_store %arg4[%c0_4, %c0_5], %4 {strides = array<i32>} : memref<512x64xbf16, #tpu.memory_space<vmem>>, vector<512x64xbf16>,
    %cst_6 = arith.constant dense<0.000000e+00> : vector<64xf32>
    %6 = vector.multi_reduction <add>, %3, %cst_6 [0] : vector<512x64xf32> to vector<64xf32>
    %7 = vector.shape_cast %6 : vector<64xf32> to vector<1x64xf32>
    %8 = vector.shape_cast %7 : vector<1x64xf32> to vector<1x1x64xf32>
    %c0_7 = arith.constant 0 : index
    %c0_8 = arith.constant 0 : index
    %c0_9 = arith.constant 0 : index
    %9 = vector.load %arg5[%c0_7, %c0_8, %c0_9] : memref<1x2x64xf32, #tpu.memory_space<vmem>>, vector<1x1x64xf32>
    tpu.vector_store %arg5[%c0_7, %c0_8, %c0_9], %8 {strides = array<i32>} : memref<1x2x64xf32, #tpu.memory_space<vmem>>, vector<1x1x64xf32>,
    %10 = arith.mulf %3, %3 : vector<512x64xf32>
    %cst_10 = arith.constant dense<0.000000e+00> : vector<64xf32>
    %11 = vector.multi_reduction <add>, %10, %cst_10 [0] : vector<512x64xf32> to vector<64xf32>
    %12 = vector.shape_cast %11 : vector<64xf32> to vector<1x64xf32>
    %13 = vector.shape_cast %12 : vector<1x64xf32> to vector<1x1x64xf32>
    %c0_11 = arith.constant 0 : index
    %c1 = arith.constant 1 : index
    %c0_12 = arith.constant 0 : index
    %14 = vector.load %arg5[%c0_11, %c1, %c0_12] : memref<1x2x64xf32, #tpu.memory_space<vmem>>, vector<1x1x64xf32>
    tpu.vector_store %arg5[%c0_11, %c1, %c0_12], %13 {strides = array<i32>} : memref<1x2x64xf32, #tpu.memory_space<vmem>>, vector<1x1x64xf32>,
    return
  }
  func.func @transform_0(%arg0: i32, %arg1: i32) -> (i32, i32) {
    %c2_i32 = arith.constant 2 : i32
    %0 = arith.muli %arg0, %c2_i32 : i32
    %1 = arith.addi %0, %arg1 : i32
    %c0_i32 = arith.constant 0 : i32
    %c0_i32_0 = arith.constant 0 : i32
    return %1, %c0_i32 : i32, i32
  }
  func.func @transform_1(%arg0: i32, %arg1: i32) -> (i32, i32, i32) {
    %c0_i32 = arith.constant 0 : i32
    %c0_i32_0 = arith.constant 0 : i32
    %c0_i32_1 = arith.constant 0 : i32
    %c0_i32_2 = arith.constant 0 : i32
    return %c0_i32, %c0_i32_0, %c0_i32_1 : i32, i32, i32
  }
  func.func @transform_2(%arg0: i32, %arg1: i32) -> (i32, i32) {
    %c2_i32 = arith.constant 2 : i32
    %0 = arith.muli %arg0, %c2_i32 : i32
    %1 = arith.addi %0, %arg1 : i32
    %c0_i32 = arith.constant 0 : i32
    %c0_i32_0 = arith.constant 0 : i32
    return %1, %c0_i32 : i32, i32
  }
  func.func @transform_3(%arg0: i32, %arg1: i32) -> (i32, i32, i32) {
    %c2_i32 = arith.constant 2 : i32
    %0 = arith.muli %arg0, %c2_i32 : i32
    %1 = arith.addi %0, %arg1 : i32
    %c0_i32 = arith.constant 0 : i32
    %c0_i32_0 = arith.constant 0 : i32
    %c0_i32_1 = arith.constant 0 : i32
    return %1, %c0_i32, %c0_i32_0 : i32, i32, i32
  }
}

module attributes {stable_mosaic.version = 11 : i64} {
  func.func @kernel(%arg0: i32, %arg1: i32, %arg2: memref<512x64xbf16, #tpu.memory_space<vmem>>, %arg3: memref<2x64xf32, #tpu.memory_space<vmem>>, %arg4: memref<64x128xbf16, #tpu.memory_space<vmem>>, %arg5: memref<512x128xbf16, #tpu.memory_space<vmem>>, %arg6: memref<1x2x128xf32, #tpu.memory_space<vmem>>) attributes {dimension_semantics = [#tpu.dimension_semantics<parallel>, #tpu.dimension_semantics<parallel>], iteration_bounds = array<i64: 4, 2>, scalar_prefetch = 0 : i64, scratch_operands = 0 : i64, tpu.core_type = #tpu.core_type<tc>, window_params = [{transform_indices = @transform_0, window_bounds = array<i64: 512, 64>}, {pipeline_mode = #tpu.pipeline_mode<synchronous>, transform_indices = @transform_1, window_bounds = array<i64: 2, 64>}, {pipeline_mode = #tpu.pipeline_mode<synchronous>, transform_indices = @transform_2, window_bounds = array<i64: 64, 128>}, {transform_indices = @transform_3, window_bounds = array<i64: 512, 128>}, {transform_indices = @transform_4, window_bounds = array<i64: 1, 2, 128>}]} {
    %c0 = arith.constant 0 : index
    %c0_0 = arith.constant 0 : index
    %0 = vector.load %arg2[%c0, %c0_0] : memref<512x64xbf16, #tpu.memory_space<vmem>>, vector<512x64xbf16>
    %1 = arith.extf %0 : vector<512x64xbf16> to vector<512x64xf32>
    %c0_1 = arith.constant 0 : index
    %c0_2 = arith.constant 0 : index
    %2 = vector.load %arg3[%c0_1, %c0_2] : memref<2x64xf32, #tpu.memory_space<vmem>>, vector<1x64xf32>
    %3 = vector.broadcast %2 : vector<1x64xf32> to vector<512x64xf32>
    %4 = arith.mulf %1, %3 : vector<512x64xf32>
    %c1 = arith.constant 1 : index
    %c0_3 = arith.constant 0 : index
    %5 = vector.load %arg3[%c1, %c0_3] : memref<2x64xf32, #tpu.memory_space<vmem>>, vector<1x64xf32>
    %6 = vector.broadcast %5 : vector<1x64xf32> to vector<512x64xf32>
    %7 = arith.addf %4, %6 : vector<512x64xf32>
    %cst = arith.constant 0.000000e+00 : f32
    %8 = vector.broadcast %cst : f32 to vector<512x64xf32>
    %9 = arith.maximumf %7, %8 : vector<512x64xf32>
    %10 = arith.truncf %9 : vector<512x64xf32> to vector<512x64xbf16>
    %c0_4 = arith.constant 0 : index
    %c0_5 = arith.constant 0 : index
    %11 = vector.load %arg4[%c0_4, %c0_5] : memref<64x128xbf16, #tpu.memory_space<vmem>>, vector<64x128xbf16>
    %cst_6 = arith.constant dense<0.000000e+00> : vector<512x128xf32>
    %12 = tpu.matmul %10, %11, %cst_6 {dimension_numbers = #tpu.dot_dimension_numbers<[1], [0], [0], [1], [0, 0, 1, 1], [], []>} : vector<512x64xbf16>, vector<64x128xbf16>, vector<512x128xf32> -> vector<512x128xf32>
    %13 = arith.truncf %12 : vector<512x128xf32> to vector<512x128xbf16>
    %c0_7 = arith.constant 0 : index
    %c0_8 = arith.constant 0 : index
    %14 = vector.load %arg5[%c0_7, %c0_8] : memref<512x128xbf16, #tpu.memory_space<vmem>>, vector<512x128xbf16>
    tpu.vector_store %arg5[%c0_7, %c0_8], %13 {strides = array<i32>} : memref<512x128xbf16, #tpu.memory_space<vmem>>, vector<512x128xbf16>,
    %cst_9 = arith.constant dense<0.000000e+00> : vector<128xf32>
    %15 = vector.multi_reduction <add>, %12, %cst_9 [0] : vector<512x128xf32> to vector<128xf32>
    %16 = vector.shape_cast %15 : vector<128xf32> to vector<1x128xf32>
    %17 = vector.shape_cast %16 : vector<1x128xf32> to vector<1x1x128xf32>
    %c0_10 = arith.constant 0 : index
    %c0_11 = arith.constant 0 : index
    %c0_12 = arith.constant 0 : index
    %18 = vector.load %arg6[%c0_10, %c0_11, %c0_12] : memref<1x2x128xf32, #tpu.memory_space<vmem>>, vector<1x1x128xf32>
    tpu.vector_store %arg6[%c0_10, %c0_11, %c0_12], %17 {strides = array<i32>} : memref<1x2x128xf32, #tpu.memory_space<vmem>>, vector<1x1x128xf32>,
    %19 = arith.mulf %12, %12 : vector<512x128xf32>
    %cst_13 = arith.constant dense<0.000000e+00> : vector<128xf32>
    %20 = vector.multi_reduction <add>, %19, %cst_13 [0] : vector<512x128xf32> to vector<128xf32>
    %21 = vector.shape_cast %20 : vector<128xf32> to vector<1x128xf32>
    %22 = vector.shape_cast %21 : vector<1x128xf32> to vector<1x1x128xf32>
    %c0_14 = arith.constant 0 : index
    %c1_15 = arith.constant 1 : index
    %c0_16 = arith.constant 0 : index
    %23 = vector.load %arg6[%c0_14, %c1_15, %c0_16] : memref<1x2x128xf32, #tpu.memory_space<vmem>>, vector<1x1x128xf32>
    tpu.vector_store %arg6[%c0_14, %c1_15, %c0_16], %22 {strides = array<i32>} : memref<1x2x128xf32, #tpu.memory_space<vmem>>, vector<1x1x128xf32>,
    return
  }
  func.func @transform_0(%arg0: i32, %arg1: i32) -> (i32, i32) {
    %c2_i32 = arith.constant 2 : i32
    %0 = arith.muli %arg0, %c2_i32 : i32
    %1 = arith.addi %0, %arg1 : i32
    %c0_i32 = arith.constant 0 : i32
    %c0_i32_0 = arith.constant 0 : i32
    return %1, %c0_i32 : i32, i32
  }
  func.func @transform_1(%arg0: i32, %arg1: i32) -> (i32, i32) {
    %c0_i32 = arith.constant 0 : i32
    %c0_i32_0 = arith.constant 0 : i32
    %c0_i32_1 = arith.constant 0 : i32
    return %c0_i32, %c0_i32_0 : i32, i32
  }
  func.func @transform_2(%arg0: i32, %arg1: i32) -> (i32, i32) {
    %c0_i32 = arith.constant 0 : i32
    %c0_i32_0 = arith.constant 0 : i32
    %c0_i32_1 = arith.constant 0 : i32
    return %c0_i32, %c0_i32_0 : i32, i32
  }
  func.func @transform_3(%arg0: i32, %arg1: i32) -> (i32, i32) {
    %c2_i32 = arith.constant 2 : i32
    %0 = arith.muli %arg0, %c2_i32 : i32
    %1 = arith.addi %0, %arg1 : i32
    %c0_i32 = arith.constant 0 : i32
    %c0_i32_0 = arith.constant 0 : i32
    return %1, %c0_i32 : i32, i32
  }
  func.func @transform_4(%arg0: i32, %arg1: i32) -> (i32, i32, i32) {
    %c2_i32 = arith.constant 2 : i32
    %0 = arith.muli %arg0, %c2_i32 : i32
    %1 = arith.addi %0, %arg1 : i32
    %c0_i32 = arith.constant 0 : i32
    %c0_i32_0 = arith.constant 0 : i32
    %c0_i32_1 = arith.constant 0 : i32
    return %1, %c0_i32, %c0_i32_0 : i32, i32, i32
  }
}

module attributes {stable_mosaic.version = 11 : i64} {
  func.func @kernel(%arg0: i32, %arg1: i32, %arg2: memref<512x128xbf16, #tpu.memory_space<vmem>>, %arg3: memref<2x128xf32, #tpu.memory_space<vmem>>, %arg4: memref<128x1024xbf16, #tpu.memory_space<vmem>>, %arg5: memref<1x4x1024xf32, #tpu.memory_space<vmem>>) attributes {dimension_semantics = [#tpu.dimension_semantics<parallel>, #tpu.dimension_semantics<arbitrary>], iteration_bounds = array<i64: 4, 2>, scalar_prefetch = 0 : i64, scratch_operands = 0 : i64, tpu.core_type = #tpu.core_type<tc>, window_params = [{transform_indices = @transform_0, window_bounds = array<i64: 512, 128>}, {pipeline_mode = #tpu.pipeline_mode<synchronous>, transform_indices = @transform_1, window_bounds = array<i64: 2, 128>}, {pipeline_mode = #tpu.pipeline_mode<synchronous>, transform_indices = @transform_2, window_bounds = array<i64: 128, 1024>}, {transform_indices = @transform_3, window_bounds = array<i64: 1, 4, 1024>}]} {
    %c0 = arith.constant 0 : index
    %c0_0 = arith.constant 0 : index
    %0 = vector.load %arg2[%c0, %c0_0] : memref<512x128xbf16, #tpu.memory_space<vmem>>, vector<512x128xbf16>
    %1 = arith.extf %0 : vector<512x128xbf16> to vector<512x128xf32>
    %c0_1 = arith.constant 0 : index
    %c0_2 = arith.constant 0 : index
    %2 = vector.load %arg3[%c0_1, %c0_2] : memref<2x128xf32, #tpu.memory_space<vmem>>, vector<1x128xf32>
    %3 = vector.broadcast %2 : vector<1x128xf32> to vector<512x128xf32>
    %4 = arith.mulf %1, %3 : vector<512x128xf32>
    %c1 = arith.constant 1 : index
    %c0_3 = arith.constant 0 : index
    %5 = vector.load %arg3[%c1, %c0_3] : memref<2x128xf32, #tpu.memory_space<vmem>>, vector<1x128xf32>
    %6 = vector.broadcast %5 : vector<1x128xf32> to vector<512x128xf32>
    %7 = arith.addf %4, %6 : vector<512x128xf32>
    %cst = arith.constant 0.000000e+00 : f32
    %8 = vector.broadcast %cst : f32 to vector<512x128xf32>
    %9 = arith.maximumf %7, %8 : vector<512x128xf32>
    %10 = arith.truncf %9 : vector<512x128xf32> to vector<512x128xbf16>
    %c0_4 = arith.constant 0 : index
    %c0_5 = arith.constant 0 : index
    %11 = vector.load %arg4[%c0_4, %c0_5] : memref<128x1024xbf16, #tpu.memory_space<vmem>>, vector<128x1024xbf16>
    %cst_6 = arith.constant dense<0.000000e+00> : vector<512x1024xf32>
    %12 = tpu.matmul %10, %11, %cst_6 {dimension_numbers = #tpu.dot_dimension_numbers<[1], [0], [0], [1], [0, 0, 1, 1], [], []>} : vector<512x128xbf16>, vector<128x1024xbf16>, vector<512x1024xf32> -> vector<512x1024xf32>
    %cst_7 = arith.constant dense<0xFF800000> : vector<1024xf32>
    %13 = vector.multi_reduction <maximumf>, %12, %cst_7 [0] : vector<512x1024xf32> to vector<1024xf32>
    %14 = vector.shape_cast %13 : vector<1024xf32> to vector<1x1024xf32>
    %15 = vector.shape_cast %14 : vector<1x1024xf32> to vector<1x1x1024xf32>
    %cst_8 = arith.constant dense<0x7F800000> : vector<1024xf32>
    %16 = vector.multi_reduction <minimumf>, %12, %cst_8 [0] : vector<512x1024xf32> to vector<1024xf32>
    %17 = vector.shape_cast %16 : vector<1024xf32> to vector<1x1024xf32>
    %18 = vector.shape_cast %17 : vector<1x1024xf32> to vector<1x1x1024xf32>
    %cst_9 = arith.constant dense<0.000000e+00> : vector<1024xf32>
    %19 = vector.multi_reduction <add>, %12, %cst_9 [0] : vector<512x1024xf32> to vector<1024xf32>
    %20 = vector.shape_cast %19 : vector<1024xf32> to vector<1x1024xf32>
    %21 = vector.shape_cast %20 : vector<1x1024xf32> to vector<1x1x1024xf32>
    %22 = arith.mulf %12, %12 : vector<512x1024xf32>
    %cst_10 = arith.constant dense<0.000000e+00> : vector<1024xf32>
    %23 = vector.multi_reduction <add>, %22, %cst_10 [0] : vector<512x1024xf32> to vector<1024xf32>
    %24 = vector.shape_cast %23 : vector<1024xf32> to vector<1x1024xf32>
    %25 = vector.shape_cast %24 : vector<1x1024xf32> to vector<1x1x1024xf32>
    %c0_i32 = arith.constant 0 : i32
    %26 = arith.cmpi eq, %arg1, %c0_i32 : i32
    %27 = arith.extui %26 : i1 to i32
    %c0_i32_11 = arith.constant 0 : i32
    %28 = arith.cmpi ne, %27, %c0_i32_11 : i32
    scf.if %28 {
      %c0_14 = arith.constant 0 : index
      %c0_15 = arith.constant 0 : index
      %c0_16 = arith.constant 0 : index
      %32 = vector.load %arg5[%c0_14, %c0_15, %c0_16] : memref<1x4x1024xf32, #tpu.memory_space<vmem>>, vector<1x1x1024xf32>
      tpu.vector_store %arg5[%c0_14, %c0_15, %c0_16], %15 {strides = array<i32>} : memref<1x4x1024xf32, #tpu.memory_space<vmem>>, vector<1x1x1024xf32>,
      %c0_17 = arith.constant 0 : index
      %c1_18 = arith.constant 1 : index
      %c0_19 = arith.constant 0 : index
      %33 = vector.load %arg5[%c0_17, %c1_18, %c0_19] : memref<1x4x1024xf32, #tpu.memory_space<vmem>>, vector<1x1x1024xf32>
      tpu.vector_store %arg5[%c0_17, %c1_18, %c0_19], %18 {strides = array<i32>} : memref<1x4x1024xf32, #tpu.memory_space<vmem>>, vector<1x1x1024xf32>,
      %c0_20 = arith.constant 0 : index
      %c2 = arith.constant 2 : index
      %c0_21 = arith.constant 0 : index
      %34 = vector.load %arg5[%c0_20, %c2, %c0_21] : memref<1x4x1024xf32, #tpu.memory_space<vmem>>, vector<1x1x1024xf32>
      tpu.vector_store %arg5[%c0_20, %c2, %c0_21], %21 {strides = array<i32>} : memref<1x4x1024xf32, #tpu.memory_space<vmem>>, vector<1x1x1024xf32>,
      %c0_22 = arith.constant 0 : index
      %c3 = arith.constant 3 : index
      %c0_23 = arith.constant 0 : index
      %35 = vector.load %arg5[%c0_22, %c3, %c0_23] : memref<1x4x1024xf32, #tpu.memory_space<vmem>>, vector<1x1x1024xf32>
      tpu.vector_store %arg5[%c0_22, %c3, %c0_23], %25 {strides = array<i32>} : memref<1x4x1024xf32, #tpu.memory_space<vmem>>, vector<1x1x1024xf32>,
    } else {
    }
    %c0_i32_12 = arith.constant 0 : i32
    %29 = arith.cmpi sgt, %arg1, %c0_i32_12 : i32
    %30 = arith.extui %29 : i1 to i32
    %c0_i32_13 = arith.constant 0 : i32
    %31 = arith.cmpi ne, %30, %c0_i32_13 : i32
    scf.if %31 {
      %c0_14 = arith.constant 0 : index
      %c0_15 = arith.constant 0 : index
      %c0_16 = arith.constant 0 : index
      %32 = vector.load %arg5[%c0_14, %c0_15, %c0_16] : memref<1x4x1024xf32, #tpu.memory_space<vmem>>, vector<1x1x1024xf32>
      %33 = arith.maximumf %32, %15 : vector<1x1x1024xf32>
      %c0_17 = arith.constant 0 : index
      %c0_18 = arith.constant 0 : index
      %c0_19 = arith.constant 0 : index
      %34 = vector.load %arg5[%c0_17, %c0_18, %c0_19] : memref<1x4x1024xf32, #tpu.memory_space<vmem>>, vector<1x1x1024xf32>
      tpu.vector_store %arg5[%c0_17, %c0_18, %c0_19], %33 {strides = array<i32>} : memref<1x4x1024xf32, #tpu.memory_space<vmem>>, vector<1x1x1024xf32>,
      %c0_20 = arith.constant 0 : index
      %c1_21 = arith.constant 1 : index
      %c0_22 = arith.constant 0 : index
      %35 = vector.load %arg5[%c0_20, %c1_21, %c0_22] : memref<1x4x1024xf32, #tpu.memory_space<vmem>>, vector<1x1x1024xf32>
      %36 = arith.minimumf %35, %18 : vector<1x1x1024xf32>
      %c0_23 = arith.constant 0 : index
      %c1_24 = arith.constant 1 : index
      %c0_25 = arith.constant 0 : index
      %37 = vector.load %arg5[%c0_23, %c1_24, %c0_25] : memref<1x4x1024xf32, #tpu.memory_space<vmem>>, vector<1x1x1024xf32>
      tpu.vector_store %arg5[%c0_23, %c1_24, %c0_25], %36 {strides = array<i32>} : memref<1x4x1024xf32, #tpu.memory_space<vmem>>, vector<1x1x1024xf32>,
      %c0_26 = arith.constant 0 : index
      %c2 = arith.constant 2 : index
      %c0_27 = arith.constant 0 : index
      %38 = vector.load %arg5[%c0_26, %c2, %c0_27] : memref<1x4x1024xf32, #tpu.memory_space<vmem>>, vector<1x1x1024xf32>
      %39 = arith.addf %38, %21 : vector<1x1x1024xf32>
      %c0_28 = arith.constant 0 : index
      %c2_29 = arith.constant 2 : index
      %c0_30 = arith.constant 0 : index
      %40 = vector.load %arg5[%c0_28, %c2_29, %c0_30] : memref<1x4x1024xf32, #tpu.memory_space<vmem>>, vector<1x1x1024xf32>
      tpu.vector_store %arg5[%c0_28, %c2_29, %c0_30], %39 {strides = array<i32>} : memref<1x4x1024xf32, #tpu.memory_space<vmem>>, vector<1x1x1024xf32>,
      %c0_31 = arith.constant 0 : index
      %c3 = arith.constant 3 : index
      %c0_32 = arith.constant 0 : index
      %41 = vector.load %arg5[%c0_31, %c3, %c0_32] : memref<1x4x1024xf32, #tpu.memory_space<vmem>>, vector<1x1x1024xf32>
      %42 = arith.addf %41, %25 : vector<1x1x1024xf32>
      %c0_33 = arith.constant 0 : index
      %c3_34 = arith.constant 3 : index
      %c0_35 = arith.constant 0 : index
      %43 = vector.load %arg5[%c0_33, %c3_34, %c0_35] : memref<1x4x1024xf32, #tpu.memory_space<vmem>>, vector<1x1x1024xf32>
      tpu.vector_store %arg5[%c0_33, %c3_34, %c0_35], %42 {strides = array<i32>} : memref<1x4x1024xf32, #tpu.memory_space<vmem>>, vector<1x1x1024xf32>,
    } else {
    }
    return
  }
  func.func @transform_0(%arg0: i32, %arg1: i32) -> (i32, i32) {
    %c2_i32 = arith.constant 2 : i32
    %0 = arith.muli %arg0, %c2_i32 : i32
    %1 = arith.addi %0, %arg1 : i32
    %c0_i32 = arith.constant 0 : i32
    %c0_i32_0 = arith.constant 0 : i32
    return %1, %c0_i32 : i32, i32
  }
  func.func @transform_1(%arg0: i32, %arg1: i32) -> (i32, i32) {
    %c0_i32 = arith.constant 0 : i32
    %c0_i32_0 = arith.constant 0 : i32
    %c0_i32_1 = arith.constant 0 : i32
    return %c0_i32, %c0_i32_0 : i32, i32
  }
  func.func @transform_2(%arg0: i32, %arg1: i32) -> (i32, i32) {
    %c0_i32 = arith.constant 0 : i32
    %c0_i32_0 = arith.constant 0 : i32
    %c0_i32_1 = arith.constant 0 : i32
    return %c0_i32, %c0_i32_0 : i32, i32
  }
  func.func @transform_3(%arg0: i32, %arg1: i32) -> (i32, i32, i32) {
    %c0_i32 = arith.constant 0 : i32
    %c0_i32_0 = arith.constant 0 : i32
    %c0_i32_1 = arith.constant 0 : i32
    return %arg0, %c0_i32, %c0_i32_0 : i32, i32, i32
  }
}

module attributes {stable_mosaic.version = 11 : i64} {
  func.func @_layer1_kernel(%arg0: i32, %arg1: i32, %arg2: memref<512x8xbf16, #tpu.memory_space<vmem>>, %arg3: memref<1x8x64xbf16, #tpu.memory_space<vmem>>, %arg4: memref<512x64xbf16, #tpu.memory_space<vmem>>, %arg5: memref<1x2x64xf32, #tpu.memory_space<vmem>>) attributes {dimension_semantics = [#tpu.dimension_semantics<parallel>, #tpu.dimension_semantics<parallel>], iteration_bounds = array<i64: 4, 2>, scalar_prefetch = 0 : i64, scratch_operands = 0 : i64, tpu.core_type = #tpu.core_type<tc>, window_params = [{transform_indices = @transform_0, window_bounds = array<i64: 512, 8>}, {transform_indices = @transform_1, window_bounds = array<i64: 1, 8, 64>}, {transform_indices = @transform_2, window_bounds = array<i64: 512, 64>}, {transform_indices = @transform_3, window_bounds = array<i64: 1, 2, 64>}]} {
    %c0 = arith.constant 0 : index
    %c0_0 = arith.constant 0 : index
    %0 = vector.load %arg2[%c0, %c0_0] : memref<512x8xbf16, #tpu.memory_space<vmem>>, vector<512x8xbf16>
    %c0_1 = arith.constant 0 : index
    %c0_2 = arith.constant 0 : index
    %c0_3 = arith.constant 0 : index
    %1 = vector.load %arg3[%c0_1, %c0_2, %c0_3] : memref<1x8x64xbf16, #tpu.memory_space<vmem>>, vector<1x8x64xbf16>
    %2 = vector.shape_cast %1 : vector<1x8x64xbf16> to vector<8x64xbf16>
    %cst = arith.constant dense<0.000000e+00> : vector<512x64xf32>
    %3 = tpu.matmul %0, %2, %cst {dimension_numbers = #tpu.dot_dimension_numbers<[1], [0], [0], [1], [0, 0, 1, 1], [], []>} : vector<512x8xbf16>, vector<8x64xbf16>, vector<512x64xf32> -> vector<512x64xf32>
    %4 = arith.truncf %3 : vector<512x64xf32> to vector<512x64xbf16>
    %c0_4 = arith.constant 0 : index
    %c0_5 = arith.constant 0 : index
    %5 = vector.load %arg4[%c0_4, %c0_5] : memref<512x64xbf16, #tpu.memory_space<vmem>>, vector<512x64xbf16>
    tpu.vector_store %arg4[%c0_4, %c0_5], %4 {strides = array<i32>} : memref<512x64xbf16, #tpu.memory_space<vmem>>, vector<512x64xbf16>,
    %cst_6 = arith.constant dense<0.000000e+00> : vector<64xf32>
    %6 = vector.multi_reduction <add>, %3, %cst_6 [0] : vector<512x64xf32> to vector<64xf32>
    %7 = vector.shape_cast %6 : vector<64xf32> to vector<1x64xf32>
    %8 = vector.shape_cast %7 : vector<1x64xf32> to vector<1x1x64xf32>
    %c0_7 = arith.constant 0 : index
    %c0_8 = arith.constant 0 : index
    %c0_9 = arith.constant 0 : index
    %9 = vector.load %arg5[%c0_7, %c0_8, %c0_9] : memref<1x2x64xf32, #tpu.memory_space<vmem>>, vector<1x1x64xf32>
    tpu.vector_store %arg5[%c0_7, %c0_8, %c0_9], %8 {strides = array<i32>} : memref<1x2x64xf32, #tpu.memory_space<vmem>>, vector<1x1x64xf32>,
    %10 = arith.mulf %3, %3 : vector<512x64xf32>
    %cst_10 = arith.constant dense<0.000000e+00> : vector<64xf32>
    %11 = vector.multi_reduction <add>, %10, %cst_10 [0] : vector<512x64xf32> to vector<64xf32>
    %12 = vector.shape_cast %11 : vector<64xf32> to vector<1x64xf32>
    %13 = vector.shape_cast %12 : vector<1x64xf32> to vector<1x1x64xf32>
    %c0_11 = arith.constant 0 : index
    %c1 = arith.constant 1 : index
    %c0_12 = arith.constant 0 : index
    %14 = vector.load %arg5[%c0_11, %c1, %c0_12] : memref<1x2x64xf32, #tpu.memory_space<vmem>>, vector<1x1x64xf32>
    tpu.vector_store %arg5[%c0_11, %c1, %c0_12], %13 {strides = array<i32>} : memref<1x2x64xf32, #tpu.memory_space<vmem>>, vector<1x1x64xf32>,
    return
  }
  func.func @transform_0(%arg0: i32, %arg1: i32) -> (i32, i32) {
    %c2_i32 = arith.constant 2 : i32
    %0 = arith.muli %arg0, %c2_i32 : i32
    %1 = arith.addi %0, %arg1 : i32
    %c0_i32 = arith.constant 0 : i32
    %c0_i32_0 = arith.constant 0 : i32
    return %1, %c0_i32 : i32, i32
  }
  func.func @transform_1(%arg0: i32, %arg1: i32) -> (i32, i32, i32) {
    %c0_i32 = arith.constant 0 : i32
    %c0_i32_0 = arith.constant 0 : i32
    %c0_i32_1 = arith.constant 0 : i32
    return %arg0, %c0_i32, %c0_i32_0 : i32, i32, i32
  }
  func.func @transform_2(%arg0: i32, %arg1: i32) -> (i32, i32) {
    %c2_i32 = arith.constant 2 : i32
    %0 = arith.muli %arg0, %c2_i32 : i32
    %1 = arith.addi %0, %arg1 : i32
    %c0_i32 = arith.constant 0 : i32
    %c0_i32_0 = arith.constant 0 : i32
    return %1, %c0_i32 : i32, i32
  }
  func.func @transform_3(%arg0: i32, %arg1: i32) -> (i32, i32, i32) {
    %c2_i32 = arith.constant 2 : i32
    %0 = arith.muli %arg0, %c2_i32 : i32
    %1 = arith.addi %0, %arg1 : i32
    %c0_i32 = arith.constant 0 : i32
    %c0_i32_0 = arith.constant 0 : i32
    %c0_i32_1 = arith.constant 0 : i32
    return %1, %c0_i32, %c0_i32_0 : i32, i32, i32
  }
}

</mosaic_0001>

<llo_original>
// kernel: pointnet_encoder_forward.6
$region0: #{pointnet_encoder_forward.6}
  #allocation0 [shape = 'u32[]', space=smem, size = 0x4, offset = 0x4, fixed_abs, tag = 'smem constant byte address 0x4 - core index']
  #allocation1 [shape = 'u32[144,128]{1,0:T(1,128)}', space=vmem, size = 0x12000, scoped, tag = 'internal scratch']
  %s0 = inlined_call_operand.vmem [shape: bf16[4096,8], index: 0, kind: input, shape index: {}]
  %s1 = inlined_call_operand.vmem [shape: bf16[1,8,64], index: 1, kind: input, shape index: {}]
  %s2 = inlined_call_operand.vmem [shape: bf16[4096,64], index: 2, kind: output, shape index: {0}]
  %s3 = inlined_call_operand.vmem [shape: f32[8,2,64], index: 3, kind: output, shape index: {1}]
  %4 = xla_tuple %s2, %s3
  %s5 = sld [smem:[#allocation0]]
  $region49: #{pointnet_encoder_forward.6} parent=0
    _
  %s7 = ssub.s32 1, %s5
  %s8 = scalar_select 0, %s7, %s5
  loop: start=0, step=1, limit=10
  $region2: #{pointnet_encoder_forward.6} parent=0 // loop_pre_header
    _
  $region3: #{pointnet_encoder_forward.6} parent=0 // loop_header
    %s10 = sphi 0, %s14
    %p11 = scmp.ge.s32.totalorder %s10, 10
    %s17 = sphi 0, %s29
    %s18 = sphi 0, %s25
    %s19 = sphi 0, %s17
    %s20 = sphi 0, %s18
    %s21 = sphi 0, %s19
    %s22 = sphi 0, %s20
    %s36 = sphi 0, %s38
    %s39 = sphi 0, %s36
    %s40 = sphi 0, %s39
    %s56 = sphi 0, %s40
    %s60 = sphi 0, %s60
    %s62 = sphi 0, %s60
    %s63 = sphi 0, %s62
    %s77 = sphi 0, %s63
    %s87 = sphi 0, %s89
    %s90 = sphi 0, %s87
    %s91 = sphi 0, %s90
    %s107 = sphi 0, %s91
    %s117 = sphi 0, %s119
    %s120 = sphi 0, %s117
    %s121 = sphi 0, %s120
    %s137 = sphi 0, %s121
  $region4: #{pointnet_encoder_forward.6} parent=0 // loop_header_branch
    %13 = sbr.rel (%p11) target = $region8
  $region5: #{pointnet_encoder_forward.6} parent=0 // loop_body
    %s15 = ssub.s32 %s10, 1
    %s16 = ssub.s32 %s10, 2
    %s23 = sadd.s32 1, %s18
    %p24 = scmp.ge.s32.totalorder %s23, 2
    %s25 = scalar_select %p24, 0, %s23
    %s26 = sadd.s32 1, %s17
    %s27 = scalar_select %p24, %s26, %s17
    %p28 = scmp.ge.s32.totalorder %s27, 4
    %s29 = scalar_select %p28, 0, %s27
    %s30 = smul.u32 %s17, 2
    %s31 = sadd.s32 %s30, %s18
    %s32 = smul.u32 %s29, 2
    %s33 = sadd.s32 %s32, %s25
    %s34 = ssub.s32 %s31, %s33
    %p35 = scmp.eq.s32.totalorder %s34, 0
    %s37 = sadd.s32 %s36, 1
    %s38 = scalar_select %p35, %s36, %s37
    %p41 = pneg %p35
    %p42 = scmp.eq.s32.totalorder %s10, 7
    %p43 = por %p41, %p42
    %p44 = scmp.ne.s32.totalorder %s36, %s39
    %p45 = scmp.eq.s32.totalorder %s10, 0
    %p46 = por %p44, %p45
    %p47 = scmp.ne.s32.totalorder %s36, %s39
    %p48 = scmp.eq.s32.totalorder %s15, 7
    %p49 = por %p47, %p48
    %p50 = scmp.ne.s32.totalorder %s39, %s40
    %p51 = scmp.eq.s32.totalorder %s15, 0
    %p52 = por %p50, %p51
    %p53 = scmp.ne.s32.totalorder %s39, %s40
    %p54 = scmp.eq.s32.totalorder %s16, 7
    %p55 = por %p53, %p54
    %p57 = scmp.ne.s32.totalorder %s40, %s56
    %p58 = scmp.eq.s32.totalorder %s16, 0
    %p59 = por %p57, %p58
    %s61 = sadd.s32 %s60, 1
    %p64 = scmp.eq.s32.totalorder %s10, 7
    %p65 = scmp.ne.s32.totalorder %s60, %s62
    %p66 = scmp.eq.s32.totalorder %s10, 0
    %p67 = por %p65, %p66
    %p68 = scmp.ne.s32.totalorder %s60, %s62
    %p69 = scmp.eq.s32.totalorder %s15, 7
    %p70 = por %p68, %p69
    %p71 = scmp.ne.s32.totalorder %s62, %s63
    %p72 = scmp.eq.s32.totalorder %s15, 0
    %p73 = por %p71, %p72
    %p74 = scmp.ne.s32.totalorder %s62, %s63
    %p75 = scmp.eq.s32.totalorder %s16, 7
    %p76 = por %p74, %p75
    %p78 = scmp.ne.s32.totalorder %s63, %s77
    %p79 = scmp.eq.s32.totalorder %s16, 0
    %p80 = por %p78, %p79
    %s81 = smul.u32 %s17, 2
    %s82 = sadd.s32 %s81, %s18
    %s83 = smul.u32 %s29, 2
    %s84 = sadd.s32 %s83, %s25
    %s85 = ssub.s32 %s82, %s84
    %p86 = scmp.eq.s32.totalorder %s85, 0
    %s88 = sadd.s32 %s87, 1
    %s89 = scalar_select %p86, %s87, %s88
    %p92 = pneg %p86
    %p93 = scmp.eq.s32.totalorder %s10, 7
    %p94 = por %p92, %p93
    %p95 = scmp.ne.s32.totalorder %s87, %s90
    %p96 = scmp.eq.s32.totalorder %s10, 0
    %p97 = por %p95, %p96
    %p98 = scmp.ne.s32.totalorder %s87, %s90
    %p99 = scmp.eq.s32.totalorder %s15, 7
    %p100 = por %p98, %p99
    %p101 = scmp.ne.s32.totalorder %s90, %s91
    %p102 = scmp.eq.s32.totalorder %s15, 0
    %p103 = por %p101, %p102
    %p104 = scmp.ne.s32.totalorder %s90, %s91
    %p105 = scmp.eq.s32.totalorder %s16, 7
    %p106 = por %p104, %p105
    %p108 = scmp.ne.s32.totalorder %s91, %s107
    %p109 = scmp.eq.s32.totalorder %s16, 0
    %p110 = por %p108, %p109
    %s111 = smul.u32 %s17, 2
    %s112 = sadd.s32 %s111, %s18
    %s113 = smul.u32 %s29, 2
    %s114 = sadd.s32 %s113, %s25
    %s115 = ssub.s32 %s112, %s114
    %p116 = scmp.eq.s32.totalorder %s115, 0
    %s118 = sadd.s32 %s117, 1
    %s119 = scalar_select %p116, %s117, %s118
    %p122 = pneg %p116
    %p123 = scmp.eq.s32.totalorder %s10, 7
    %p124 = por %p122, %p123
    %p125 = scmp.ne.s32.totalorder %s117, %s120
    %p126 = scmp.eq.s32.totalorder %s10, 0
    %p127 = por %p125, %p126
    %p128 = scmp.ne.s32.totalorder %s117, %s120
    %p129 = scmp.eq.s32.totalorder %s15, 7
    %p130 = por %p128, %p129
    %p131 = scmp.ne.s32.totalorder %s120, %s121
    %p132 = scmp.eq.s32.totalorder %s15, 0
    %p133 = por %p131, %p132
    %p134 = scmp.ne.s32.totalorder %s120, %s121
    %p135 = scmp.eq.s32.totalorder %s16, 7
    %p136 = por %p134, %p135
    %p138 = scmp.ne.s32.totalorder %s121, %s137
    %p139 = scmp.eq.s32.totalorder %s16, 0
    %p140 = por %p138, %p139
    %p141 = scmp.le.s32.totalorder 1, %s10
    %p142 = scmp.lt.s32.totalorder %s10, 9
    %p143 = pnand %p141, %p142
    %p144 = pneg %p143
    // Predicated region
    $region9: #{pointnet_encoder_forward.6} parent=5 // pred_check
      _
    $region10: #{pointnet_encoder_forward.6} parent=5 // pred_check_branch
      %146 = sbr.rel (%p143) target = $region12
    $region11: #{pointnet_encoder_forward.6} parent=5 // pred_region
      %s147 = ssub.s32 %s10, 1
      // Predicated region
      $region13: #{pointnet_encoder_forward.6} parent=11 // pred_check
        %p148 = pneg %p73
      $region14: #{pointnet_encoder_forward.6} parent=11 // pred_check_branch
        %150 = sbr.rel (%p148) target = $region16
      $region15: #{pointnet_encoder_forward.6} parent=11 // pred_region
        _
      $region16: #{pointnet_encoder_forward.6} parent=11 // pred_fallthru
        _
    $region12: #{pointnet_encoder_forward.6} parent=5 // pred_fallthru
      _
    %p151 = scmp.lt.s32.totalorder %s10, 8
    // Predicated region
    $region17: #{pointnet_encoder_forward.6} parent=5 // pred_check
      %p152 = pneg %p151
    $region18: #{pointnet_encoder_forward.6} parent=5 // pred_check_branch
      %154 = sbr.rel (%p152) target = $region20
    $region19: #{pointnet_encoder_forward.6} parent=5 // pred_region
      // Predicated region
      $region21: #{pointnet_encoder_forward.6} parent=19 // pred_check
        %p155 = pneg %p46
      $region22: #{pointnet_encoder_forward.6} parent=19 // pred_check_branch
        %157 = sbr.rel (%p155) target = $region24
      $region23: #{pointnet_encoder_forward.6} parent=19 // pred_region
        %s158 = smul.u32 %s17, 2
        %s159 = sadd.s32 %s158, %s18
        %s160 = smul.u32 64, %s159
        %p161 = scmp.lt.s32.totalorder %s160, 511
        %s162 = scalar_select %p161, %s160, 511
        %s163 = smul.addr %s162, 4
        %s164 = scalar_lea.vmem %s0, %s163
        %s165 = smul.u32 %s17, 2
        %s166 = sadd.s32 %s165, %s18
        %s167 = smul.u32 64, %s166
      $region24: #{pointnet_encoder_forward.6} parent=19 // pred_fallthru
        _
    $region20: #{pointnet_encoder_forward.6} parent=5 // pred_fallthru
      _
    %p168 = scmp.le.s32.totalorder 1, %s10
    %p169 = scmp.lt.s32.totalorder %s10, 9
    %p170 = pnand %p168, %p169
    %p171 = pneg %p170
    // Predicated region
    $region25: #{pointnet_encoder_forward.6} parent=5 // pred_check
      _
    $region26: #{pointnet_encoder_forward.6} parent=5 // pred_check_branch
      %173 = sbr.rel (%p170) target = $region28
    $region27: #{pointnet_encoder_forward.6} parent=5 // pred_region
      %s174 = ssub.s32 %s10, 1
      %s175 = smul.u32 %s19, 2
      %s176 = sadd.s32 %s175, %s20
      %s177 = smul.u32 64, %s176
      %p178 = scmp.lt.s32.totalorder %s177, 511
      %s179 = scalar_select %p178, %s177, 511
      %s180 = smul.addr %s179, 4
      %s181 = scalar_lea.vmem %s0, %s180
      %p182 = pneg %p52
      %p183 = pneg %p49
      %p184 = pneg %p73
      %p185 = pneg %p70
      %p186 = pneg %p103
      %p187 = pneg %p100
      %s188 = smul.u32 %s19, 2
      %s189 = sadd.s32 %s188, %s20
      %s190 = smul.u32 64, %s189
      %p191 = scmp.lt.s32.totalorder %s190, 511
      %s192 = scalar_select %p191, %s190, 511
      %s193 = smul.addr %s192, 4
      %s194 = scalar_lea.vmem %s2, %s193
      %p195 = pneg %p133
      %p196 = pneg %p130
      %s197 = smul.u32 %s19, 2
      %s198 = sadd.s32 %s197, %s20
      %p199 = scmp.lt.s32.totalorder %s198, 7
      %s200 = scalar_select %p199, %s198, 7
      %s201 = smul.addr %s200, 2
      %s202 = scalar_lea.vmem %s3, %s201
      %s203 = smul.u32 %s19, 2
      %s204 = sadd.s32 %s203, %s20
      %s205 = smul.u32 64, %s204
      %p206 = scmp.lt.s32.totalorder %s205, 511
      %s207 = scalar_select %p206, %s205, 511
      %s208 = smul.addr %s207, 4
      %s209 = scalar_lea.vmem %s0, %s208
      %s210 = smul.u32 %s19, 2
      %s211 = sadd.s32 %s210, %s20
      %s212 = smul.u32 64, %s211
      %s213 = smul.u32 %s19, 2
      %s214 = sadd.s32 %s213, %s20
      %s215 = smul.u32 64, %s214
      %p216 = scmp.lt.s32.totalorder %s215, 511
      %s217 = scalar_select %p216, %s215, 511
      %s218 = smul.addr %s217, 4
      %s219 = scalar_lea.vmem %s2, %s218
      %s220 = smul.u32 %s19, 2
      %s221 = sadd.s32 %s220, %s20
      %s222 = smul.u32 64, %s221
      %s223 = smul.u32 %s19, 2
      %s224 = sadd.s32 %s223, %s20
      %p225 = scmp.lt.s32.totalorder %s224, 7
      %s226 = scalar_select %p225, %s224, 7
      %s227 = smul.addr %s226, 2
      %s228 = scalar_lea.vmem %s3, %s227
      %s229 = smul.u32 %s19, 2
      %s230 = sadd.s32 %s229, %s20
      %v232 = vld [vmem:[%s209] sm:$0xf]
      %v233 = vld [vmem:[%s209 + $0x4] sm:$0xf]
      %v234 = vld [vmem:[%s209 + $0x8] sm:$0xf]
      %v235 = vld [vmem:[%s209 + $0xc] sm:$0xf]
      %v236 = vld [vmem:[%s209 + $0x10] sm:$0xf]
      %v237 = vld [vmem:[%s209 + $0x14] sm:$0xf]
      %v238 = vld [vmem:[%s209 + $0x18] sm:$0xf]
      %v239 = vld [vmem:[%s209 + $0x1c] sm:$0xf]
      %v240 = vld [vmem:[%s209 + $0x20] sm:$0xf]
      %v241 = vld [vmem:[%s209 + $0x24] sm:$0xf]
      %v242 = vld [vmem:[%s209 + $0x28] sm:$0xf]
      %v243 = vld [vmem:[%s209 + $0x2c] sm:$0xf]
      %v244 = vld [vmem:[%s209 + $0x30] sm:$0xf]
      %v245 = vld [vmem:[%s209 + $0x34] sm:$0xf]
      %v246 = vld [vmem:[%s209 + $0x38] sm:$0xf]
      %v247 = vld [vmem:[%s209 + $0x3c] sm:$0xf]
      %v248 = vld [vmem:[%s209 + $0x40] sm:$0xf]
      %v249 = vld [vmem:[%s209 + $0x44] sm:$0xf]
      %v250 = vld [vmem:[%s209 + $0x48] sm:$0xf]
      %v251 = vld [vmem:[%s209 + $0x4c] sm:$0xf]
      %v252 = vld [vmem:[%s209 + $0x50] sm:$0xf]
      %v253 = vld [vmem:[%s209 + $0x54] sm:$0xf]
      %v254 = vld [vmem:[%s209 + $0x58] sm:$0xf]
      %v255 = vld [vmem:[%s209 + $0x5c] sm:$0xf]
      %v256 = vld [vmem:[%s209 + $0x60] sm:$0xf]
      %v257 = vld [vmem:[%s209 + $0x64] sm:$0xf]
      %v258 = vld [vmem:[%s209 + $0x68] sm:$0xf]
      %v259 = vld [vmem:[%s209 + $0x6c] sm:$0xf]
      %v260 = vld [vmem:[%s209 + $0x70] sm:$0xf]
      %v261 = vld [vmem:[%s209 + $0x74] sm:$0xf]
      %v262 = vld [vmem:[%s209 + $0x78] sm:$0xf]
      %v263 = vld [vmem:[%s209 + $0x7c] sm:$0xf]
      %v264 = vld [vmem:[%s209 + $0x80] sm:$0xf]
      %v265 = vld [vmem:[%s209 + $0x84] sm:$0xf]
      %v266 = vld [vmem:[%s209 + $0x88] sm:$0xf]
      %v267 = vld [vmem:[%s209 + $0x8c] sm:$0xf]
      %v268 = vld [vmem:[%s209 + $0x90] sm:$0xf]
      %v269 = vld [vmem:[%s209 + $0x94] sm:$0xf]
      %v270 = vld [vmem:[%s209 + $0x98] sm:$0xf]
      %v271 = vld [vmem:[%s209 + $0x9c] sm:$0xf]
      %v272 = vld [vmem:[%s209 + $0xa0] sm:$0xf]
      %v273 = vld [vmem:[%s209 + $0xa4] sm:$0xf]
      %v274 = vld [vmem:[%s209 + $0xa8] sm:$0xf]
      %v275 = vld [vmem:[%s209 + $0xac] sm:$0xf]
      %v276 = vld [vmem:[%s209 + $0xb0] sm:$0xf]
      %v277 = vld [vmem:[%s209 + $0xb4] sm:$0xf]
      %v278 = vld [vmem:[%s209 + $0xb8] sm:$0xf]
      %v279 = vld [vmem:[%s209 + $0xbc] sm:$0xf]
      %v280 = vld [vmem:[%s209 + $0xc0] sm:$0xf]
      %v281 = vld [vmem:[%s209 + $0xc4] sm:$0xf]
      %v282 = vld [vmem:[%s209 + $0xc8] sm:$0xf]
      %v283 = vld [vmem:[%s209 + $0xcc] sm:$0xf]
      %v284 = vld [vmem:[%s209 + $0xd0] sm:$0xf]
      %v285 = vld [vmem:[%s209 + $0xd4] sm:$0xf]
      %v286 = vld [vmem:[%s209 + $0xd8] sm:$0xf]
      %v287 = vld [vmem:[%s209 + $0xdc] sm:$0xf]
      %v288 = vld [vmem:[%s209 + $0xe0] sm:$0xf]
      %v289 = vld [vmem:[%s209 + $0xe4] sm:$0xf]
      %v290 = vld [vmem:[%s209 + $0xe8] sm:$0xf]
      %v291 = vld [vmem:[%s209 + $0xec] sm:$0xf]
      %v292 = vld [vmem:[%s209 + $0xf0] sm:$0xf]
      %v293 = vld [vmem:[%s209 + $0xf4] sm:$0xf]
      %v294 = vld [vmem:[%s209 + $0xf8] sm:$0xf]
      %v295 = vld [vmem:[%s209 + $0xfc] sm:$0xf]
      %v296 = vld [vmem:[%s1] sm:$0xf]
      %v361 = vunpack.c.l.b16 %v232
      %v362 = vunpack.c.l.b16 %v233
      %v363 = vunpack.c.l.b16 %v234
      %v364 = vunpack.c.l.b16 %v235
      %v365 = vunpack.c.l.b16 %v236
      %v366 = vunpack.c.l.b16 %v237
      %v367 = vunpack.c.l.b16 %v238
      %v368 = vunpack.c.l.b16 %v239
      %v369 = vunpack.c.l.b16 %v240
      %v370 = vunpack.c.l.b16 %v241
      %v371 = vunpack.c.l.b16 %v242
      %v372 = vunpack.c.l.b16 %v243
      %v373 = vunpack.c.l.b16 %v244
      %v374 = vunpack.c.l.b16 %v245
      %v375 = vunpack.c.l.b16 %v246
      %v376 = vunpack.c.l.b16 %v247
      %v377 = vunpack.c.l.b16 %v248
      %v378 = vunpack.c.l.b16 %v249
      %v379 = vunpack.c.l.b16 %v250
      %v380 = vunpack.c.l.b16 %v251
      %v381 = vunpack.c.l.b16 %v252
      %v382 = vunpack.c.l.b16 %v253
      %v383 = vunpack.c.l.b16 %v254
      %v384 = vunpack.c.l.b16 %v255
      %v385 = vunpack.c.l.b16 %v256
      %v386 = vunpack.c.l.b16 %v257
      %v387 = vunpack.c.l.b16 %v258
      %v388 = vunpack.c.l.b16 %v259
      %v389 = vunpack.c.l.b16 %v260
      %v390 = vunpack.c.l.b16 %v261
      %v391 = vunpack.c.l.b16 %v262
      %v392 = vunpack.c.l.b16 %v263
      %v393 = vunpack.c.l.b16 %v264
      %v394 = vunpack.c.l.b16 %v265
      %v395 = vunpack.c.l.b16 %v266
      %v396 = vunpack.c.l.b16 %v267
      %v397 = vunpack.c.l.b16 %v268
      %v398 = vunpack.c.l.b16 %v269
      %v399 = vunpack.c.l.b16 %v270
      %v400 = vunpack.c.l.b16 %v271
      %v401 = vunpack.c.l.b16 %v272
      %v402 = vunpack.c.l.b16 %v273
      %v403 = vunpack.c.l.b16 %v274
      %v404 = vunpack.c.l.b16 %v275
      %v405 = vunpack.c.l.b16 %v276
      %v406 = vunpack.c.l.b16 %v277
      %v407 = vunpack.c.l.b16 %v278
      %v408 = vunpack.c.l.b16 %v279
      %v409 = vunpack.c.l.b16 %v280
      %v410 = vunpack.c.l.b16 %v281
      %v411 = vunpack.c.l.b16 %v282
      %v412 = vunpack.c.l.b16 %v283
      %v413 = vunpack.c.l.b16 %v284
      %v414 = vunpack.c.l.b16 %v285
      %v415 = vunpack.c.l.b16 %v286
      %v416 = vunpack.c.l.b16 %v287
      %v417 = vunpack.c.l.b16 %v288
      %v418 = vunpack.c.l.b16 %v289
      %v419 = vunpack.c.l.b16 %v290
      %v420 = vunpack.c.l.b16 %v291
      %v421 = vunpack.c.l.b16 %v292
      %v422 = vunpack.c.l.b16 %v293
      %v423 = vunpack.c.l.b16 %v294
      %v424 = vunpack.c.l.b16 %v295
      %v425 = vpack.c.b16 %v362, %v361
      %v426 = vpack.c.b16 %v364, %v363
      %v427 = vpack.c.b16 %v366, %v365
      %v428 = vpack.c.b16 %v368, %v367
      %v429 = vpack.c.b16 %v370, %v369
      %v430 = vpack.c.b16 %v372, %v371
      %v431 = vpack.c.b16 %v374, %v373
      %v432 = vpack.c.b16 %v376, %v375
      %v433 = vpack.c.b16 %v378, %v377
      %v434 = vpack.c.b16 %v380, %v379
      %v435 = vpack.c.b16 %v382, %v381
      %v436 = vpack.c.b16 %v384, %v383
      %v437 = vpack.c.b16 %v386, %v385
      %v438 = vpack.c.b16 %v388, %v387
      %v439 = vpack.c.b16 %v390, %v389
      %v440 = vpack.c.b16 %v392, %v391
      %v441 = vpack.c.b16 %v394, %v393
      %v442 = vpack.c.b16 %v396, %v395
      %v443 = vpack.c.b16 %v398, %v397
      %v444 = vpack.c.b16 %v400, %v399
      %v445 = vpack.c.b16 %v402, %v401
      %v446 = vpack.c.b16 %v404, %v403
      %v447 = vpack.c.b16 %v406, %v405
      %v448 = vpack.c.b16 %v408, %v407
      %v449 = vpack.c.b16 %v410, %v409
      %v450 = vpack.c.b16 %v412, %v411
      %v451 = vpack.c.b16 %v414, %v413
      %v452 = vpack.c.b16 %v416, %v415
      %v453 = vpack.c.b16 %v418, %v417
      %v454 = vpack.c.b16 %v420, %v419
      %v455 = vpack.c.b16 %v422, %v421
      %v456 = vpack.c.b16 %v424, %v423
      %vm457 = vcmask 64512
      %v459 = vsel %vm457, %v425, 0
      %v462 = vsel %vm457, %v426, 0
      %v465 = vsel %vm457, %v427, 0
      %v468 = vsel %vm457, %v428, 0
      %v471 = vsel %vm457, %v429, 0
      %v474 = vsel %vm457, %v430, 0
      %v477 = vsel %vm457, %v431, 0
      %v480 = vsel %vm457, %v432, 0
      %v483 = vsel %vm457, %v433, 0
      %v486 = vsel %vm457, %v434, 0
      %v489 = vsel %vm457, %v435, 0
      %v492 = vsel %vm457, %v436, 0
      %v495 = vsel %vm457, %v437, 0
      %v498 = vsel %vm457, %v438, 0
      %v501 = vsel %vm457, %v439, 0
      %v504 = vsel %vm457, %v440, 0
      %v507 = vsel %vm457, %v441, 0
      %v510 = vsel %vm457, %v442, 0
      %v513 = vsel %vm457, %v443, 0
      %v516 = vsel %vm457, %v444, 0
      %v519 = vsel %vm457, %v445, 0
      %v522 = vsel %vm457, %v446, 0
      %v525 = vsel %vm457, %v447, 0
      %v528 = vsel %vm457, %v448, 0
      %v531 = vsel %vm457, %v449, 0
      %v534 = vsel %vm457, %v450, 0
      %v537 = vsel %vm457, %v451, 0
      %v540 = vsel %vm457, %v452, 0
      %v543 = vsel %vm457, %v453, 0
      %v546 = vsel %vm457, %v454, 0
      %v549 = vsel %vm457, %v455, 0
      %v552 = vsel %vm457, %v456, 0
      %vm554 = vcmask 1043456
      %v556 = vsel %vm554, %v296, 0
      %558 = vmatprep.subr.bf16.mxu0 0
      %559 = vmatpush1.bf16.msra.mxu0 %v556
      %560 = vmatprep.subr.bf16.mxu0 0
      %561 = vmatpush1.bf16.msra.mxu0 0
      %562 = vmatprep.subr.bf16.mxu0 0
      %563 = vmatpush1.bf16.msra.mxu0 0
      %564 = vmatprep.subr.bf16.mxu0 0
      %565 = vmatpush1.bf16.msra.mxu0 0
      %566 = vmatprep.subr.bf16.mxu0 0
      %567 = vmatpush1.bf16.msra.mxu0 0
      %568 = vmatprep.subr.bf16.mxu0 0
      %569 = vmatpush1.bf16.msra.mxu0 0
      %570 = vmatprep.subr.bf16.mxu0 0
      %571 = vmatpush1.bf16.msra.mxu0 0
      %572 = vmatprep.subr.bf16.mxu0 0
      %573 = vmatpush1.bf16.msra.mxu0 0
      %574 = vmatprep.subr.bf16.mxu0 0
      %575 = vmatpush1.bf16.msra.mxu0 0
      %576 = vmatprep.subr.bf16.mxu0 0
      %577 = vmatpush1.bf16.msra.mxu0 0
      %578 = vmatprep.subr.bf16.mxu0 0
      %579 = vmatpush1.bf16.msra.mxu0 0
      %580 = vmatprep.subr.bf16.mxu0 0
      %581 = vmatpush1.bf16.msra.mxu0 0
      %582 = vmatprep.subr.bf16.mxu0 0
      %583 = vmatpush1.bf16.msra.mxu0 0
      %584 = vmatprep.subr.bf16.mxu0 0
      %585 = vmatpush1.bf16.msra.mxu0 0
      %586 = vmatprep.subr.bf16.mxu0 0
      %587 = vmatpush1.bf16.msra.mxu0 0
      %588 = vmatprep.subr.bf16.mxu0 0
      %589 = vmatpush1.bf16.msra.mxu0 0
      %590 = vmatprep.mubr.bf16.mxu0 0
      %591 = vmatmul.mubr.bf16.gmra.mrb[0].mxu0 %v459
      %v592 = vpop.f32.mrb[0].mxu0
      %v593 = vadd.f32 0.0, %v592
      %v594 = vpop.f32.mrb[0].mxu0
      %v595 = vpop.f32.mrb[0].mxu0
      %v596 = vadd.f32 0.0, %v595
      %v597 = vpop.f32.mrb[0].mxu0
      %598 = vmatprep.mubr.bf16.mxu0 0
      %599 = vmatmul.mubr.bf16.gmra.mrb[0].mxu0 %v462
      %v600 = vpop.f32.mrb[0].mxu0
      %v601 = vadd.f32 0.0, %v600
      %v602 = vpop.f32.mrb[0].mxu0
      %v603 = vpop.f32.mrb[0].mxu0
      %v604 = vadd.f32 0.0, %v603
      %v605 = vpop.f32.mrb[0].mxu0
      %606 = vmatprep.mubr.bf16.mxu0 0
      %607 = vmatmul.mubr.bf16.gmra.mrb[0].mxu0 %v465
      %v608 = vpop.f32.mrb[0].mxu0
      %v609 = vadd.f32 0.0, %v608
      %v610 = vpop.f32.mrb[0].mxu0
      %v611 = vpop.f32.mrb[0].mxu0
      %v612 = vadd.f32 0.0, %v611
      %v613 = vpop.f32.mrb[0].mxu0
      %614 = vmatprep.mubr.bf16.mxu0 0
      %615 = vmatmul.mubr.bf16.gmra.mrb[0].mxu0 %v468
      %v616 = vpop.f32.mrb[0].mxu0
      %v617 = vadd.f32 0.0, %v616
      %v618 = vpop.f32.mrb[0].mxu0
      %v619 = vpop.f32.mrb[0].mxu0
      %v620 = vadd.f32 0.0, %v619
      %v621 = vpop.f32.mrb[0].mxu0
      %622 = vmatprep.mubr.bf16.mxu0 0
      %623 = vmatmul.mubr.bf16.gmra.mrb[0].mxu0 %v471
      %v624 = vpop.f32.mrb[0].mxu0
      %v625 = vadd.f32 0.0, %v624
      %v626 = vpop.f32.mrb[0].mxu0
      %v627 = vpop.f32.mrb[0].mxu0
      %v628 = vadd.f32 0.0, %v627
      %v629 = vpop.f32.mrb[0].mxu0
      %630 = vmatprep.mubr.bf16.mxu0 0
      %631 = vmatmul.mubr.bf16.gmra.mrb[0].mxu0 %v474
      %v632 = vpop.f32.mrb[0].mxu0
      %v633 = vadd.f32 0.0, %v632
      %v634 = vpop.f32.mrb[0].mxu0
      %v635 = vpop.f32.mrb[0].mxu0
      %v636 = vadd.f32 0.0, %v635
      %v637 = vpop.f32.mrb[0].mxu0
      %638 = vmatprep.mubr.bf16.mxu0 0
      %639 = vmatmul.mubr.bf16.gmra.mrb[0].mxu0 %v477
      %v640 = vpop.f32.mrb[0].mxu0
      %v641 = vadd.f32 0.0, %v640
      %v642 = vpop.f32.mrb[0].mxu0
      %v643 = vpop.f32.mrb[0].mxu0
      %v644 = vadd.f32 0.0, %v643
      %v645 = vpop.f32.mrb[0].mxu0
      %646 = vmatprep.mubr.bf16.mxu0 0
      %647 = vmatmul.mubr.bf16.gmra.mrb[0].mxu0 %v480
      %v648 = vpop.f32.mrb[0].mxu0
      %v649 = vadd.f32 0.0, %v648
      %v650 = vpop.f32.mrb[0].mxu0
      %v651 = vpop.f32.mrb[0].mxu0
      %v652 = vadd.f32 0.0, %v651
      %v653 = vpop.f32.mrb[0].mxu0
      %654 = vmatprep.mubr.bf16.mxu0 0
      %655 = vmatmul.mubr.bf16.gmra.mrb[0].mxu0 %v483
      %v656 = vpop.f32.mrb[0].mxu0
      %v657 = vadd.f32 0.0, %v656
      %v658 = vpop.f32.mrb[0].mxu0
      %v659 = vpop.f32.mrb[0].mxu0
      %v660 = vadd.f32 0.0, %v659
      %v661 = vpop.f32.mrb[0].mxu0
      %662 = vmatprep.mubr.bf16.mxu0 0
      %663 = vmatmul.mubr.bf16.gmra.mrb[0].mxu0 %v486
      %v664 = vpop.f32.mrb[0].mxu0
      %v665 = vadd.f32 0.0, %v664
      %v666 = vpop.f32.mrb[0].mxu0
      %v667 = vpop.f32.mrb[0].mxu0
      %v668 = vadd.f32 0.0, %v667
      %v669 = vpop.f32.mrb[0].mxu0
      %670 = vmatprep.mubr.bf16.mxu0 0
      %671 = vmatmul.mubr.bf16.gmra.mrb[0].mxu0 %v489
      %v672 = vpop.f32.mrb[0].mxu0
      %v673 = vadd.f32 0.0, %v672
      %v674 = vpop.f32.mrb[0].mxu0
      %v675 = vpop.f32.mrb[0].mxu0
      %v676 = vadd.f32 0.0, %v675
      %v677 = vpop.f32.mrb[0].mxu0
      %678 = vmatprep.mubr.bf16.mxu0 0
      %679 = vmatmul.mubr.bf16.gmra.mrb[0].mxu0 %v492
      %v680 = vpop.f32.mrb[0].mxu0
      %v681 = vadd.f32 0.0, %v680
      %v682 = vpop.f32.mrb[0].mxu0
      %v683 = vpop.f32.mrb[0].mxu0
      %v684 = vadd.f32 0.0, %v683
      %v685 = vpop.f32.mrb[0].mxu0
      %686 = vmatprep.mubr.bf16.mxu0 0
      %687 = vmatmul.mubr.bf16.gmra.mrb[0].mxu0 %v495
      %v688 = vpop.f32.mrb[0].mxu0
      %v689 = vadd.f32 0.0, %v688
      %v690 = vpop.f32.mrb[0].mxu0
      %v691 = vpop.f32.mrb[0].mxu0
      %v692 = vadd.f32 0.0, %v691
      %v693 = vpop.f32.mrb[0].mxu0
      %694 = vmatprep.mubr.bf16.mxu0 0
      %695 = vmatmul.mubr.bf16.gmra.mrb[0].mxu0 %v498
      %v696 = vpop.f32.mrb[0].mxu0
      %v697 = vadd.f32 0.0, %v696
      %v698 = vpop.f32.mrb[0].mxu0
      %v699 = vpop.f32.mrb[0].mxu0
      %v700 = vadd.f32 0.0, %v699
      %v701 = vpop.f32.mrb[0].mxu0
      %702 = vmatprep.mubr.bf16.mxu0 0
      %703 = vmatmul.mubr.bf16.gmra.mrb[0].mxu0 %v501
      %v704 = vpop.f32.mrb[0].mxu0
      %v705 = vadd.f32 0.0, %v704
      %v706 = vpop.f32.mrb[0].mxu0
      %v707 = vpop.f32.mrb[0].mxu0
      %v708 = vadd.f32 0.0, %v707
      %v709 = vpop.f32.mrb[0].mxu0
      %710 = vmatprep.mubr.bf16.mxu0 0
      %711 = vmatmul.mubr.bf16.gmra.mrb[0].mxu0 %v504
      %v712 = vpop.f32.mrb[0].mxu0
      %v713 = vadd.f32 0.0, %v712
      %v714 = vpop.f32.mrb[0].mxu0
      %v715 = vpop.f32.mrb[0].mxu0
      %v716 = vadd.f32 0.0, %v715
      %v717 = vpop.f32.mrb[0].mxu0
      %718 = vmatprep.mubr.bf16.mxu0 0
      %719 = vmatmul.mubr.bf16.gmra.mrb[0].mxu0 %v507
      %v720 = vpop.f32.mrb[0].mxu0
      %v721 = vadd.f32 0.0, %v720
      %v722 = vpop.f32.mrb[0].mxu0
      %v723 = vpop.f32.mrb[0].mxu0
      %v724 = vadd.f32 0.0, %v723
      %v725 = vpop.f32.mrb[0].mxu0
      %726 = vmatprep.mubr.bf16.mxu0 0
      %727 = vmatmul.mubr.bf16.gmra.mrb[0].mxu0 %v510
      %v728 = vpop.f32.mrb[0].mxu0
      %v729 = vadd.f32 0.0, %v728
      %v730 = vpop.f32.mrb[0].mxu0
      %v731 = vpop.f32.mrb[0].mxu0
      %v732 = vadd.f32 0.0, %v731
      %v733 = vpop.f32.mrb[0].mxu0
      %734 = vmatprep.mubr.bf16.mxu0 0
      %735 = vmatmul.mubr.bf16.gmra.mrb[0].mxu0 %v513
      %v736 = vpop.f32.mrb[0].mxu0
      %v737 = vadd.f32 0.0, %v736
      %v738 = vpop.f32.mrb[0].mxu0
      %v739 = vpop.f32.mrb[0].mxu0
      %v740 = vadd.f32 0.0, %v739
      %v741 = vpop.f32.mrb[0].mxu0
      %742 = vmatprep.mubr.bf16.mxu0 0
      %743 = vmatmul.mubr.bf16.gmra.mrb[0].mxu0 %v516
      %v744 = vpop.f32.mrb[0].mxu0
      %v745 = vadd.f32 0.0, %v744
      %v746 = vpop.f32.mrb[0].mxu0
      %v747 = vpop.f32.mrb[0].mxu0
      %v748 = vadd.f32 0.0, %v747
      %v749 = vpop.f32.mrb[0].mxu0
      %750 = vmatprep.mubr.bf16.mxu0 0
      %751 = vmatmul.mubr.bf16.gmra.mrb[0].mxu0 %v519
      %v752 = vpop.f32.mrb[0].mxu0
      %v753 = vadd.f32 0.0, %v752
      %v754 = vpop.f32.mrb[0].mxu0
      %v755 = vpop.f32.mrb[0].mxu0
      %v756 = vadd.f32 0.0, %v755
      %v757 = vpop.f32.mrb[0].mxu0
      %758 = vmatprep.mubr.bf16.mxu0 0
      %759 = vmatmul.mubr.bf16.gmra.mrb[0].mxu0 %v522
      %v760 = vpop.f32.mrb[0].mxu0
      %v761 = vadd.f32 0.0, %v760
      %v762 = vpop.f32.mrb[0].mxu0
      %v763 = vpop.f32.mrb[0].mxu0
      %v764 = vadd.f32 0.0, %v763
      %v765 = vpop.f32.mrb[0].mxu0
      %766 = vmatprep.mubr.bf16.mxu0 0
      %767 = vmatmul.mubr.bf16.gmra.mrb[0].mxu0 %v525
      %v768 = vpop.f32.mrb[0].mxu0
      %v769 = vadd.f32 0.0, %v768
      %v770 = vpop.f32.mrb[0].mxu0
      %v771 = vpop.f32.mrb[0].mxu0
      %v772 = vadd.f32 0.0, %v771
      %v773 = vpop.f32.mrb[0].mxu0
      %774 = vmatprep.mubr.bf16.mxu0 0
      %775 = vmatmul.mubr.bf16.gmra.mrb[0].mxu0 %v528
      %v776 = vpop.f32.mrb[0].mxu0
      %v777 = vadd.f32 0.0, %v776
      %v778 = vpop.f32.mrb[0].mxu0
      %v779 = vpop.f32.mrb[0].mxu0
      %v780 = vadd.f32 0.0, %v779
      %v781 = vpop.f32.mrb[0].mxu0
      %782 = vmatprep.mubr.bf16.mxu0 0
      %783 = vmatmul.mubr.bf16.gmra.mrb[0].mxu0 %v531
      %v784 = vpop.f32.mrb[0].mxu0
      %v785 = vadd.f32 0.0, %v784
      %v786 = vpop.f32.mrb[0].mxu0
      %v787 = vpop.f32.mrb[0].mxu0
      %v788 = vadd.f32 0.0, %v787
      %v789 = vpop.f32.mrb[0].mxu0
      %790 = vmatprep.mubr.bf16.mxu0 0
      %791 = vmatmul.mubr.bf16.gmra.mrb[0].mxu0 %v534
      %v792 = vpop.f32.mrb[0].mxu0
      %v793 = vadd.f32 0.0, %v792
      %v794 = vpop.f32.mrb[0].mxu0
      %v795 = vpop.f32.mrb[0].mxu0
      %v796 = vadd.f32 0.0, %v795
      %v797 = vpop.f32.mrb[0].mxu0
      %798 = vmatprep.mubr.bf16.mxu0 0
      %799 = vmatmul.mubr.bf16.gmra.mrb[0].mxu0 %v537
      %v800 = vpop.f32.mrb[0].mxu0
      %v801 = vadd.f32 0.0, %v800
      %v802 = vpop.f32.mrb[0].mxu0
      %v803 = vpop.f32.mrb[0].mxu0
      %v804 = vadd.f32 0.0, %v803
      %v805 = vpop.f32.mrb[0].mxu0
      %806 = vmatprep.mubr.bf16.mxu0 0
      %807 = vmatmul.mubr.bf16.gmra.mrb[0].mxu0 %v540
      %v808 = vpop.f32.mrb[0].mxu0
      %v809 = vadd.f32 0.0, %v808
      %v810 = vpop.f32.mrb[0].mxu0
      %v811 = vpop.f32.mrb[0].mxu0
      %v812 = vadd.f32 0.0, %v811
      %v813 = vpop.f32.mrb[0].mxu0
      %814 = vmatprep.mubr.bf16.mxu0 0
      %815 = vmatmul.mubr.bf16.gmra.mrb[0].mxu0 %v543
      %v816 = vpop.f32.mrb[0].mxu0
      %v817 = vadd.f32 0.0, %v816
      %v818 = vpop.f32.mrb[0].mxu0
      %v819 = vpop.f32.mrb[0].mxu0
      %v820 = vadd.f32 0.0, %v819
      %v821 = vpop.f32.mrb[0].mxu0
      %822 = vmatprep.mubr.bf16.mxu0 0
      %823 = vmatmul.mubr.bf16.gmra.mrb[0].mxu0 %v546
      %v824 = vpop.f32.mrb[0].mxu0
      %v825 = vadd.f32 0.0, %v824
      %v826 = vpop.f32.mrb[0].mxu0
      %v827 = vpop.f32.mrb[0].mxu0
      %v828 = vadd.f32 0.0, %v827
      %v829 = vpop.f32.mrb[0].mxu0
      %830 = vmatprep.mubr.bf16.mxu0 0
      %831 = vmatmul.mubr.bf16.gmra.mrb[0].mxu0 %v549
      %v832 = vpop.f32.mrb[0].mxu0
      %v833 = vadd.f32 0.0, %v832
      %v834 = vpop.f32.mrb[0].mxu0
      %v835 = vpop.f32.mrb[0].mxu0
      %v836 = vadd.f32 0.0, %v835
      %v837 = vpop.f32.mrb[0].mxu0
      %838 = vmatprep.mubr.bf16.mxu0 0
      %839 = vmatmul.mubr.bf16.gmra.mrb[0].mxu0 %v552
      %v840 = vpop.f32.mrb[0].mxu0
      %v841 = vadd.f32 0.0, %v840
      %v842 = vpop.f32.mrb[0].mxu0
      %v843 = vpop.f32.mrb[0].mxu0
      %v844 = vadd.f32 0.0, %v843
      %v845 = vpop.f32.mrb[0].mxu0
      %846 = vdwg.mxu0
      %v847 = vpack.c.bf16 %v596, %v593
      %v848 = vpack.c.bf16 %v604, %v601
      %v849 = vpack.c.bf16 %v612, %v609
      %v850 = vpack.c.bf16 %v620, %v617
      %v851 = vpack.c.bf16 %v628, %v625
      %v852 = vpack.c.bf16 %v636, %v633
      %v853 = vpack.c.bf16 %v644, %v641
      %v854 = vpack.c.bf16 %v652, %v649
      %v855 = vpack.c.bf16 %v660, %v657
      %v856 = vpack.c.bf16 %v668, %v665
      %v857 = vpack.c.bf16 %v676, %v673
      %v858 = vpack.c.bf16 %v684, %v681
      %v859 = vpack.c.bf16 %v692, %v689
      %v860 = vpack.c.bf16 %v700, %v697
      %v861 = vpack.c.bf16 %v708, %v705
      %v862 = vpack.c.bf16 %v716, %v713
      %v863 = vpack.c.bf16 %v724, %v721
      %v864 = vpack.c.bf16 %v732, %v729
      %v865 = vpack.c.bf16 %v740, %v737
      %v866 = vpack.c.bf16 %v748, %v745
      %v867 = vpack.c.bf16 %v756, %v753
      %v868 = vpack.c.bf16 %v764, %v761
      %v869 = vpack.c.bf16 %v772, %v769
      %v870 = vpack.c.bf16 %v780, %v777
      %v871 = vpack.c.bf16 %v788, %v785
      %v872 = vpack.c.bf16 %v796, %v793
      %v873 = vpack.c.bf16 %v804, %v801
      %v874 = vpack.c.bf16 %v812, %v809
      %v875 = vpack.c.bf16 %v820, %v817
      %v876 = vpack.c.bf16 %v828, %v825
      %v877 = vpack.c.bf16 %v836, %v833
      %v878 = vpack.c.bf16 %v844, %v841
      %v911 = vunpack.c.l.b16 %v847
      %v912 = vunpack.c.h.b16 %v847
      %v913 = vunpack.c.l.b16 %v848
      %v914 = vunpack.c.h.b16 %v848
      %v915 = vunpack.c.l.b16 %v849
      %v916 = vunpack.c.h.b16 %v849
      %v917 = vunpack.c.l.b16 %v850
      %v918 = vunpack.c.h.b16 %v850
      %v919 = vunpack.c.l.b16 %v851
      %v920 = vunpack.c.h.b16 %v851
      %v921 = vunpack.c.l.b16 %v852
      %v922 = vunpack.c.h.b16 %v852
      %v923 = vunpack.c.l.b16 %v853
      %v924 = vunpack.c.h.b16 %v853
      %v925 = vunpack.c.l.b16 %v854
      %v926 = vunpack.c.h.b16 %v854
      %v927 = vunpack.c.l.b16 %v855
      %v928 = vunpack.c.h.b16 %v855
      %v929 = vunpack.c.l.b16 %v856
      %v930 = vunpack.c.h.b16 %v856
      %v931 = vunpack.c.l.b16 %v857
      %v932 = vunpack.c.h.b16 %v857
      %v933 = vunpack.c.l.b16 %v858
      %v934 = vunpack.c.h.b16 %v858
      %v935 = vunpack.c.l.b16 %v859
      %v936 = vunpack.c.h.b16 %v859
      %v937 = vunpack.c.l.b16 %v860
      %v938 = vunpack.c.h.b16 %v860
      %v939 = vunpack.c.l.b16 %v861
      %v940 = vunpack.c.h.b16 %v861
      %v941 = vunpack.c.l.b16 %v862
      %v942 = vunpack.c.h.b16 %v862
      %v943 = vunpack.c.l.b16 %v863
      %v944 = vunpack.c.h.b16 %v863
      %v945 = vunpack.c.l.b16 %v864
      %v946 = vunpack.c.h.b16 %v864
      %v947 = vunpack.c.l.b16 %v865
      %v948 = vunpack.c.h.b16 %v865
      %v949 = vunpack.c.l.b16 %v866
      %v950 = vunpack.c.h.b16 %v866
      %v951 = vunpack.c.l.b16 %v867
      %v952 = vunpack.c.h.b16 %v867
      %v953 = vunpack.c.l.b16 %v868
      %v954 = vunpack.c.h.b16 %v868
      %v955 = vunpack.c.l.b16 %v869
      %v956 = vunpack.c.h.b16 %v869
      %v957 = vunpack.c.l.b16 %v870
      %v958 = vunpack.c.h.b16 %v870
      %v959 = vunpack.c.l.b16 %v871
      %v960 = vunpack.c.h.b16 %v871
      %v961 = vunpack.c.l.b16 %v872
      %v962 = vunpack.c.h.b16 %v872
      %v963 = vunpack.c.l.b16 %v873
      %v964 = vunpack.c.h.b16 %v873
      %v965 = vunpack.c.l.b16 %v874
      %v966 = vunpack.c.h.b16 %v874
      %v967 = vunpack.c.l.b16 %v875
      %v968 = vunpack.c.h.b16 %v875
      %v969 = vunpack.c.l.b16 %v876
      %v970 = vunpack.c.h.b16 %v876
      %v971 = vunpack.c.l.b16 %v877
      %v972 = vunpack.c.h.b16 %v877
      %v973 = vunpack.c.l.b16 %v878
      %v974 = vunpack.c.h.b16 %v878
      %v975 = vpack.c.b16 %v911, %v911
      %v976 = vpack.c.b16 %v912, %v912
      %v977 = vpack.c.b16 %v913, %v913
      %v978 = vpack.c.b16 %v914, %v914
      %v979 = vpack.c.b16 %v915, %v915
      %v980 = vpack.c.b16 %v916, %v916
      %v981 = vpack.c.b16 %v917, %v917
      %v982 = vpack.c.b16 %v918, %v918
      %v983 = vpack.c.b16 %v919, %v919
      %v984 = vpack.c.b16 %v920, %v920
      %v985 = vpack.c.b16 %v921, %v921
      %v986 = vpack.c.b16 %v922, %v922
      %v987 = vpack.c.b16 %v923, %v923
      %v988 = vpack.c.b16 %v924, %v924
      %v989 = vpack.c.b16 %v925, %v925
      %v990 = vpack.c.b16 %v926, %v926
      %v991 = vpack.c.b16 %v927, %v927
      %v992 = vpack.c.b16 %v928, %v928
      %v993 = vpack.c.b16 %v929, %v929
      %v994 = vpack.c.b16 %v930, %v930
      %v995 = vpack.c.b16 %v931, %v931
      %v996 = vpack.c.b16 %v932, %v932
      %v997 = vpack.c.b16 %v933, %v933
      %v998 = vpack.c.b16 %v934, %v934
      %v999 = vpack.c.b16 %v935, %v935
      %v1000 = vpack.c.b16 %v936, %v936
      %v1001 = vpack.c.b16 %v937, %v937
      %v1002 = vpack.c.b16 %v938, %v938
      %v1003 = vpack.c.b16 %v939, %v939
      %v1004 = vpack.c.b16 %v940, %v940
      %v1005 = vpack.c.b16 %v941, %v941
      %v1006 = vpack.c.b16 %v942, %v942
      %v1007 = vpack.c.b16 %v943, %v943
      %v1008 = vpack.c.b16 %v944, %v944
      %v1009 = vpack.c.b16 %v945, %v945
      %v1010 = vpack.c.b16 %v946, %v946
      %v1011 = vpack.c.b16 %v947, %v947
      %v1012 = vpack.c.b16 %v948, %v948
      %v1013 = vpack.c.b16 %v949, %v949
      %v1014 = vpack.c.b16 %v950, %v950
      %v1015 = vpack.c.b16 %v951, %v951
      %v1016 = vpack.c.b16 %v952, %v952
      %v1017 = vpack.c.b16 %v953, %v953
      %v1018 = vpack.c.b16 %v954, %v954
      %v1019 = vpack.c.b16 %v955, %v955
      %v1020 = vpack.c.b16 %v956, %v956
      %v1021 = vpack.c.b16 %v957, %v957
      %v1022 = vpack.c.b16 %v958, %v958
      %v1023 = vpack.c.b16 %v959, %v959
      %v1024 = vpack.c.b16 %v960, %v960
      %v1025 = vpack.c.b16 %v961, %v961
      %v1026 = vpack.c.b16 %v962, %v962
      %v1027 = vpack.c.b16 %v963, %v963
      %v1028 = vpack.c.b16 %v964, %v964
      %v1029 = vpack.c.b16 %v965, %v965
      %v1030 = vpack.c.b16 %v966, %v966
      %v1031 = vpack.c.b16 %v967, %v967
      %v1032 = vpack.c.b16 %v968, %v968
      %v1033 = vpack.c.b16 %v969, %v969
      %v1034 = vpack.c.b16 %v970, %v970
      %v1035 = vpack.c.b16 %v971, %v971
      %v1036 = vpack.c.b16 %v972, %v972
      %v1037 = vpack.c.b16 %v973, %v973
      %v1038 = vpack.c.b16 %v974, %v974
      %vm1103 = vcmask 519168
      %1104 = vst.msk [vmem:[%s219] sm:$0xf] %vm1103, %v975
      %1105 = vst.msk [vmem:[%s219 + $0x4] sm:$0xf] %vm1103, %v976
      %1106 = vst.msk [vmem:[%s219 + $0x8] sm:$0xf] %vm1103, %v977
      %1107 = vst.msk [vmem:[%s219 + $0xc] sm:$0xf] %vm1103, %v978
      %1108 = vst.msk [vmem:[%s219 + $0x10] sm:$0xf] %vm1103, %v979
      %1109 = vst.msk [vmem:[%s219 + $0x14] sm:$0xf] %vm1103, %v980
      %1110 = vst.msk [vmem:[%s219 + $0x18] sm:$0xf] %vm1103, %v981
      %1111 = vst.msk [vmem:[%s219 + $0x1c] sm:$0xf] %vm1103, %v982
      %1112 = vst.msk [vmem:[%s219 + $0x20] sm:$0xf] %vm1103, %v983
      %1113 = vst.msk [vmem:[%s219 + $0x24] sm:$0xf] %vm1103, %v984
      %1114 = vst.msk [vmem:[%s219 + $0x28] sm:$0xf] %vm1103, %v985
      %1115 = vst.msk [vmem:[%s219 + $0x2c] sm:$0xf] %vm1103, %v986
      %1116 = vst.msk [vmem:[%s219 + $0x30] sm:$0xf] %vm1103, %v987
      %1117 = vst.msk [vmem:[%s219 + $0x34] sm:$0xf] %vm1103, %v988
      %1118 = vst.msk [vmem:[%s219 + $0x38] sm:$0xf] %vm1103, %v989
      %1119 = vst.msk [vmem:[%s219 + $0x3c] sm:$0xf] %vm1103, %v990
      %1120 = vst.msk [vmem:[%s219 + $0x40] sm:$0xf] %vm1103, %v991
      %1121 = vst.msk [vmem:[%s219 + $0x44] sm:$0xf] %vm1103, %v992
      %1122 = vst.msk [vmem:[%s219 + $0x48] sm:$0xf] %vm1103, %v993
      %1123 = vst.msk [vmem:[%s219 + $0x4c] sm:$0xf] %vm1103, %v994
      %1124 = vst.msk [vmem:[%s219 + $0x50] sm:$0xf] %vm1103, %v995
      %1125 = vst.msk [vmem:[%s219 + $0x54] sm:$0xf] %vm1103, %v996
      %1126 = vst.msk [vmem:[%s219 + $0x58] sm:$0xf] %vm1103, %v997
      %1127 = vst.msk [vmem:[%s219 + $0x5c] sm:$0xf] %vm1103, %v998
      %1128 = vst.msk [vmem:[%s219 + $0x60] sm:$0xf] %vm1103, %v999
      %1129 = vst.msk [vmem:[%s219 + $0x64] sm:$0xf] %vm1103, %v1000
      %1130 = vst.msk [vmem:[%s219 + $0x68] sm:$0xf] %vm1103, %v1001
      %1131 = vst.msk [vmem:[%s219 + $0x6c] sm:$0xf] %vm1103, %v1002
      %1132 = vst.msk [vmem:[%s219 + $0x70] sm:$0xf] %vm1103, %v1003
      %1133 = vst.msk [vmem:[%s219 + $0x74] sm:$0xf] %vm1103, %v1004
      %1134 = vst.msk [vmem:[%s219 + $0x78] sm:$0xf] %vm1103, %v1005
      %1135 = vst.msk [vmem:[%s219 + $0x7c] sm:$0xf] %vm1103, %v1006
      %1136 = vst.msk [vmem:[%s219 + $0x80] sm:$0xf] %vm1103, %v1007
      %1137 = vst.msk [vmem:[%s219 + $0x84] sm:$0xf] %vm1103, %v1008
      %1138 = vst.msk [vmem:[%s219 + $0x88] sm:$0xf] %vm1103, %v1009
      %1139 = vst.msk [vmem:[%s219 + $0x8c] sm:$0xf] %vm1103, %v1010
      %1140 = vst.msk [vmem:[%s219 + $0x90] sm:$0xf] %vm1103, %v1011
      %1141 = vst.msk [vmem:[%s219 + $0x94] sm:$0xf] %vm1103, %v1012
      %1142 = vst.msk [vmem:[%s219 + $0x98] sm:$0xf] %vm1103, %v1013
      %1143 = vst.msk [vmem:[%s219 + $0x9c] sm:$0xf] %vm1103, %v1014
      %1144 = vst.msk [vmem:[%s219 + $0xa0] sm:$0xf] %vm1103, %v1015
      %1145 = vst.msk [vmem:[%s219 + $0xa4] sm:$0xf] %vm1103, %v1016
      %1146 = vst.msk [vmem:[%s219 + $0xa8] sm:$0xf] %vm1103, %v1017
      %1147 = vst.msk [vmem:[%s219 + $0xac] sm:$0xf] %vm1103, %v1018
      %1148 = vst.msk [vmem:[%s219 + $0xb0] sm:$0xf] %vm1103, %v1019
      %1149 = vst.msk [vmem:[%s219 + $0xb4] sm:$0xf] %vm1103, %v1020
      %1150 = vst.msk [vmem:[%s219 + $0xb8] sm:$0xf] %vm1103, %v1021
      %1151 = vst.msk [vmem:[%s219 + $0xbc] sm:$0xf] %vm1103, %v1022
      %1152 = vst.msk [vmem:[%s219 + $0xc0] sm:$0xf] %vm1103, %v1023
      %1153 = vst.msk [vmem:[%s219 + $0xc4] sm:$0xf] %vm1103, %v1024
      %1154 = vst.msk [vmem:[%s219 + $0xc8] sm:$0xf] %vm1103, %v1025
      %1155 = vst.msk [vmem:[%s219 + $0xcc] sm:$0xf] %vm1103, %v1026
      %1156 = vst.msk [vmem:[%s219 + $0xd0] sm:$0xf] %vm1103, %v1027
      %1157 = vst.msk [vmem:[%s219 + $0xd4] sm:$0xf] %vm1103, %v1028
      %1158 = vst.msk [vmem:[%s219 + $0xd8] sm:$0xf] %vm1103, %v1029
      %1159 = vst.msk [vmem:[%s219 + $0xdc] sm:$0xf] %vm1103, %v1030
      %1160 = vst.msk [vmem:[%s219 + $0xe0] sm:$0xf] %vm1103, %v1031
      %1161 = vst.msk [vmem:[%s219 + $0xe4] sm:$0xf] %vm1103, %v1032
      %1162 = vst.msk [vmem:[%s219 + $0xe8] sm:$0xf] %vm1103, %v1033
      %1163 = vst.msk [vmem:[%s219 + $0xec] sm:$0xf] %vm1103, %v1034
      %1164 = vst.msk [vmem:[%s219 + $0xf0] sm:$0xf] %vm1103, %v1035
      %1165 = vst.msk [vmem:[%s219 + $0xf4] sm:$0xf] %vm1103, %v1036
      %1166 = vst.msk [vmem:[%s219 + $0xf8] sm:$0xf] %vm1103, %v1037
      %1167 = vst.msk [vmem:[%s219 + $0xfc] sm:$0xf] %vm1103, %v1038
      %vm1168 = vcmask 523264
      %v1169 = vsel %vm1168, %v593, 0.0
      %v1170 = vsel %vm1168, %v596, 0.0
      %v1171 = vadd.f32 %v1169, %v1170
      %v1172 = vsel %vm1168, %v601, 0.0
      %v1173 = vadd.f32 %v1171, %v1172
      %v1174 = vsel %vm1168, %v604, 0.0
      %v1175 = vadd.f32 %v1173, %v1174
      %v1176 = vsel %vm1168, %v609, 0.0
      %v1177 = vadd.f32 %v1175, %v1176
      %v1178 = vsel %vm1168, %v612, 0.0
      %v1179 = vadd.f32 %v1177, %v1178
      %v1180 = vsel %vm1168, %v617, 0.0
      %v1181 = vadd.f32 %v1179, %v1180
      %v1182 = vsel %vm1168, %v620, 0.0
      %v1183 = vadd.f32 %v1181, %v1182
      %v1184 = vsel %vm1168, %v625, 0.0
      %v1185 = vadd.f32 %v1183, %v1184
      %v1186 = vsel %vm1168, %v628, 0.0
      %v1187 = vadd.f32 %v1185, %v1186
      %v1188 = vsel %vm1168, %v633, 0.0
      %v1189 = vadd.f32 %v1187, %v1188
      %v1190 = vsel %vm1168, %v636, 0.0
      %v1191 = vadd.f32 %v1189, %v1190
      %v1192 = vsel %vm1168, %v641, 0.0
      %v1193 = vadd.f32 %v1191, %v1192
      %v1194 = vsel %vm1168, %v644, 0.0
      %v1195 = vadd.f32 %v1193, %v1194
      %v1196 = vsel %vm1168, %v649, 0.0
      %v1197 = vadd.f32 %v1195, %v1196
      %v1198 = vsel %vm1168, %v652, 0.0
      %v1199 = vadd.f32 %v1197, %v1198
      %v1200 = vsel %vm1168, %v657, 0.0
      %v1201 = vadd.f32 %v1199, %v1200
      %v1202 = vsel %vm1168, %v660, 0.0
      %v1203 = vadd.f32 %v1201, %v1202
      %v1204 = vsel %vm1168, %v665, 0.0
      %v1205 = vadd.f32 %v1203, %v1204
      %v1206 = vsel %vm1168, %v668, 0.0
      %v1207 = vadd.f32 %v1205, %v1206
      %v1208 = vsel %vm1168, %v673, 0.0
      %v1209 = vadd.f32 %v1207, %v1208
      %v1210 = vsel %vm1168, %v676, 0.0
      %v1211 = vadd.f32 %v1209, %v1210
      %v1212 = vsel %vm1168, %v681, 0.0
      %v1213 = vadd.f32 %v1211, %v1212
      %v1214 = vsel %vm1168, %v684, 0.0
      %v1215 = vadd.f32 %v1213, %v1214
      %v1216 = vsel %vm1168, %v689, 0.0
      %v1217 = vadd.f32 %v1215, %v1216
      %v1218 = vsel %vm1168, %v692, 0.0
      %v1219 = vadd.f32 %v1217, %v1218
      %v1220 = vsel %vm1168, %v697, 0.0
      %v1221 = vadd.f32 %v1219, %v1220
      %v1222 = vsel %vm1168, %v700, 0.0
      %v1223 = vadd.f32 %v1221, %v1222
      %v1224 = vsel %vm1168, %v705, 0.0
      %v1225 = vadd.f32 %v1223, %v1224
      %v1226 = vsel %vm1168, %v708, 0.0
      %v1227 = vadd.f32 %v1225, %v1226
      %v1228 = vsel %vm1168, %v713, 0.0
      %v1229 = vadd.f32 %v1227, %v1228
      %v1230 = vsel %vm1168, %v716, 0.0
      %v1231 = vadd.f32 %v1229, %v1230
      %v1232 = vsel %vm1168, %v721, 0.0
      %v1233 = vadd.f32 %v1231, %v1232
      %v1234 = vsel %vm1168, %v724, 0.0
      %v1235 = vadd.f32 %v1233, %v1234
      %v1236 = vsel %vm1168, %v729, 0.0
      %v1237 = vadd.f32 %v1235, %v1236
      %v1238 = vsel %vm1168, %v732, 0.0
      %v1239 = vadd.f32 %v1237, %v1238
      %v1240 = vsel %vm1168, %v737, 0.0
      %v1241 = vadd.f32 %v1239, %v1240
      %v1242 = vsel %vm1168, %v740, 0.0
      %v1243 = vadd.f32 %v1241, %v1242
      %v1244 = vsel %vm1168, %v745, 0.0
      %v1245 = vadd.f32 %v1243, %v1244
      %v1246 = vsel %vm1168, %v748, 0.0
      %v1247 = vadd.f32 %v1245, %v1246
      %v1248 = vsel %vm1168, %v753, 0.0
      %v1249 = vadd.f32 %v1247, %v1248
      %v1250 = vsel %vm1168, %v756, 0.0
      %v1251 = vadd.f32 %v1249, %v1250
      %v1252 = vsel %vm1168, %v761, 0.0
      %v1253 = vadd.f32 %v1251, %v1252
      %v1254 = vsel %vm1168, %v764, 0.0
      %v1255 = vadd.f32 %v1253, %v1254
      %v1256 = vsel %vm1168, %v769, 0.0
      %v1257 = vadd.f32 %v1255, %v1256
      %v1258 = vsel %vm1168, %v772, 0.0
      %v1259 = vadd.f32 %v1257, %v1258
      %v1260 = vsel %vm1168, %v777, 0.0
      %v1261 = vadd.f32 %v1259, %v1260
      %v1262 = vsel %vm1168, %v780, 0.0
      %v1263 = vadd.f32 %v1261, %v1262
      %v1264 = vsel %vm1168, %v785, 0.0
      %v1265 = vadd.f32 %v1263, %v1264
      %v1266 = vsel %vm1168, %v788, 0.0
      %v1267 = vadd.f32 %v1265, %v1266
      %v1268 = vsel %vm1168, %v793, 0.0
      %v1269 = vadd.f32 %v1267, %v1268
      %v1270 = vsel %vm1168, %v796, 0.0
      %v1271 = vadd.f32 %v1269, %v1270
      %v1272 = vsel %vm1168, %v801, 0.0
      %v1273 = vadd.f32 %v1271, %v1272
      %v1274 = vsel %vm1168, %v804, 0.0
      %v1275 = vadd.f32 %v1273, %v1274
      %v1276 = vsel %vm1168, %v809, 0.0
      %v1277 = vadd.f32 %v1275, %v1276
      %v1278 = vsel %vm1168, %v812, 0.0
      %v1279 = vadd.f32 %v1277, %v1278
      %v1280 = vsel %vm1168, %v817, 0.0
      %v1281 = vadd.f32 %v1279, %v1280
      %v1282 = vsel %vm1168, %v820, 0.0
      %v1283 = vadd.f32 %v1281, %v1282
      %v1284 = vsel %vm1168, %v825, 0.0
      %v1285 = vadd.f32 %v1283, %v1284
      %v1286 = vsel %vm1168, %v828, 0.0
      %v1287 = vadd.f32 %v1285, %v1286
      %v1288 = vsel %vm1168, %v833, 0.0
      %v1289 = vadd.f32 %v1287, %v1288
      %v1290 = vsel %vm1168, %v836, 0.0
      %v1291 = vadd.f32 %v1289, %v1290
      %v1292 = vsel %vm1168, %v841, 0.0
      %v1293 = vadd.f32 %v1291, %v1292
      %v1294 = vsel %vm1168, %v844, 0.0
      %v1295 = vadd.f32 %v1293, %v1294
      %v1296 = vrot.slane %v1295, 4
      %v1297 = vadd.f32 %v1295, %v1296
      %v1298 = vrot.slane %v1297, 2
      %v1299 = vadd.f32 %v1297, %v1298
      %v1300 = vrot.slane %v1299, 1
      %v1301 = vadd.f32 %v1299, %v1300
      %vm1302 = vcmask 516096
      %1303 = vst.msk [vmem:[%s228] sm:$0x1] %vm1302, %v1301
      %v1304 = vmul.f32 %v593, %v593
      %v1305 = vmul.f32 %v596, %v596
      %v1306 = vmul.f32 %v601, %v601
      %v1307 = vmul.f32 %v604, %v604
      %v1308 = vmul.f32 %v609, %v609
      %v1309 = vmul.f32 %v612, %v612
      %v1310 = vmul.f32 %v617, %v617
      %v1311 = vmul.f32 %v620, %v620
      %v1312 = vmul.f32 %v625, %v625
      %v1313 = vmul.f32 %v628, %v628
      %v1314 = vmul.f32 %v633, %v633
      %v1315 = vmul.f32 %v636, %v636
      %v1316 = vmul.f32 %v641, %v641
      %v1317 = vmul.f32 %v644, %v644
      %v1318 = vmul.f32 %v649, %v649
      %v1319 = vmul.f32 %v652, %v652
      %v1320 = vmul.f32 %v657, %v657
      %v1321 = vmul.f32 %v660, %v660
      %v1322 = vmul.f32 %v665, %v665
      %v1323 = vmul.f32 %v668, %v668
      %v1324 = vmul.f32 %v673, %v673
      %v1325 = vmul.f32 %v676, %v676
      %v1326 = vmul.f32 %v681, %v681
      %v1327 = vmul.f32 %v684, %v684
      %v1328 = vmul.f32 %v689, %v689
      %v1329 = vmul.f32 %v692, %v692
      %v1330 = vmul.f32 %v697, %v697
      %v1331 = vmul.f32 %v700, %v700
      %v1332 = vmul.f32 %v705, %v705
      %v1333 = vmul.f32 %v708, %v708
      %v1334 = vmul.f32 %v713, %v713
      %v1335 = vmul.f32 %v716, %v716
      %v1336 = vmul.f32 %v721, %v721
      %v1337 = vmul.f32 %v724, %v724
      %v1338 = vmul.f32 %v729, %v729
      %v1339 = vmul.f32 %v732, %v732
      %v1340 = vmul.f32 %v737, %v737
      %v1341 = vmul.f32 %v740, %v740
      %v1342 = vmul.f32 %v745, %v745
      %v1343 = vmul.f32 %v748, %v748
      %v1344 = vmul.f32 %v753, %v753
      %v1345 = vmul.f32 %v756, %v756
      %v1346 = vmul.f32 %v761, %v761
      %v1347 = vmul.f32 %v764, %v764
      %v1348 = vmul.f32 %v769, %v769
      %v1349 = vmul.f32 %v772, %v772
      %v1350 = vmul.f32 %v777, %v777
      %v1351 = vmul.f32 %v780, %v780
      %v1352 = vmul.f32 %v785, %v785
      %v1353 = vmul.f32 %v788, %v788
      %v1354 = vmul.f32 %v793, %v793
      %v1355 = vmul.f32 %v796, %v796
      %v1356 = vmul.f32 %v801, %v801
      %v1357 = vmul.f32 %v804, %v804
      %v1358 = vmul.f32 %v809, %v809
      %v1359 = vmul.f32 %v812, %v812
      %v1360 = vmul.f32 %v817, %v817
      %v1361 = vmul.f32 %v820, %v820
      %v1362 = vmul.f32 %v825, %v825
      %v1363 = vmul.f32 %v828, %v828
      %v1364 = vmul.f32 %v833, %v833
      %v1365 = vmul.f32 %v836, %v836
      %v1366 = vmul.f32 %v841, %v841
      %v1367 = vmul.f32 %v844, %v844
      %v1368 = vsel %vm1168, %v1304, 0.0
      %v1369 = vsel %vm1168, %v1305, 0.0
      %v1370 = vadd.f32 %v1368, %v1369
      %v1371 = vsel %vm1168, %v1306, 0.0
      %v1372 = vadd.f32 %v1370, %v1371
      %v1373 = vsel %vm1168, %v1307, 0.0
      %v1374 = vadd.f32 %v1372, %v1373
      %v1375 = vsel %vm1168, %v1308, 0.0
      %v1376 = vadd.f32 %v1374, %v1375
      %v1377 = vsel %vm1168, %v1309, 0.0
      %v1378 = vadd.f32 %v1376, %v1377
      %v1379 = vsel %vm1168, %v1310, 0.0
      %v1380 = vadd.f32 %v1378, %v1379
      %v1381 = vsel %vm1168, %v1311, 0.0
      %v1382 = vadd.f32 %v1380, %v1381
      %v1383 = vsel %vm1168, %v1312, 0.0
      %v1384 = vadd.f32 %v1382, %v1383
      %v1385 = vsel %vm1168, %v1313, 0.0
      %v1386 = vadd.f32 %v1384, %v1385
      %v1387 = vsel %vm1168, %v1314, 0.0
      %v1388 = vadd.f32 %v1386, %v1387
      %v1389 = vsel %vm1168, %v1315, 0.0
      %v1390 = vadd.f32 %v1388, %v1389
      %v1391 = vsel %vm1168, %v1316, 0.0
      %v1392 = vadd.f32 %v1390, %v1391
      %v1393 = vsel %vm1168, %v1317, 0.0
      %v1394 = vadd.f32 %v1392, %v1393
      %v1395 = vsel %vm1168, %v1318, 0.0
      %v1396 = vadd.f32 %v1394, %v1395
      %v1397 = vsel %vm1168, %v1319, 0.0
      %v1398 = vadd.f32 %v1396, %v1397
      %v1399 = vsel %vm1168, %v1320, 0.0
      %v1400 = vadd.f32 %v1398, %v1399
      %v1401 = vsel %vm1168, %v1321, 0.0
      %v1402 = vadd.f32 %v1400, %v1401
      %v1403 = vsel %vm1168, %v1322, 0.0
      %v1404 = vadd.f32 %v1402, %v1403
      %v1405 = vsel %vm1168, %v1323, 0.0
      %v1406 = vadd.f32 %v1404, %v1405
      %v1407 = vsel %vm1168, %v1324, 0.0
      %v1408 = vadd.f32 %v1406, %v1407
      %v1409 = vsel %vm1168, %v1325, 0.0
      %v1410 = vadd.f32 %v1408, %v1409
      %v1411 = vsel %vm1168, %v1326, 0.0
      %v1412 = vadd.f32 %v1410, %v1411
      %v1413 = vsel %vm1168, %v1327, 0.0
      %v1414 = vadd.f32 %v1412, %v1413
      %v1415 = vsel %vm1168, %v1328, 0.0
      %v1416 = vadd.f32 %v1414, %v1415
      %v1417 = vsel %vm1168, %v1329, 0.0
      %v1418 = vadd.f32 %v1416, %v1417
      %v1419 = vsel %vm1168, %v1330, 0.0
      %v1420 = vadd.f32 %v1418, %v1419
      %v1421 = vsel %vm1168, %v1331, 0.0
      %v1422 = vadd.f32 %v1420, %v1421
      %v1423 = vsel %vm1168, %v1332, 0.0
      %v1424 = vadd.f32 %v1422, %v1423
      %v1425 = vsel %vm1168, %v1333, 0.0
      %v1426 = vadd.f32 %v1424, %v1425
      %v1427 = vsel %vm1168, %v1334, 0.0
      %v1428 = vadd.f32 %v1426, %v1427
      %v1429 = vsel %vm1168, %v1335, 0.0
      %v1430 = vadd.f32 %v1428, %v1429
      %v1431 = vsel %vm1168, %v1336, 0.0
      %v1432 = vadd.f32 %v1430, %v1431
      %v1433 = vsel %vm1168, %v1337, 0.0
      %v1434 = vadd.f32 %v1432, %v1433
      %v1435 = vsel %vm1168, %v1338, 0.0
      %v1436 = vadd.f32 %v1434, %v1435
      %v1437 = vsel %vm1168, %v1339, 0.0
      %v1438 = vadd.f32 %v1436, %v1437
      %v1439 = vsel %vm1168, %v1340, 0.0
      %v1440 = vadd.f32 %v1438, %v1439
      %v1441 = vsel %vm1168, %v1341, 0.0
      %v1442 = vadd.f32 %v1440, %v1441
      %v1443 = vsel %vm1168, %v1342, 0.0
      %v1444 = vadd.f32 %v1442, %v1443
      %v1445 = vsel %vm1168, %v1343, 0.0
      %v1446 = vadd.f32 %v1444, %v1445
      %v1447 = vsel %vm1168, %v1344, 0.0
      %v1448 = vadd.f32 %v1446, %v1447
      %v1449 = vsel %vm1168, %v1345, 0.0
      %v1450 = vadd.f32 %v1448, %v1449
      %v1451 = vsel %vm1168, %v1346, 0.0
      %v1452 = vadd.f32 %v1450, %v1451
      %v1453 = vsel %vm1168, %v1347, 0.0
      %v1454 = vadd.f32 %v1452, %v1453
      %v1455 = vsel %vm1168, %v1348, 0.0
      %v1456 = vadd.f32 %v1454, %v1455
      %v1457 = vsel %vm1168, %v1349, 0.0
      %v1458 = vadd.f32 %v1456, %v1457
      %v1459 = vsel %vm1168, %v1350, 0.0
      %v1460 = vadd.f32 %v1458, %v1459
      %v1461 = vsel %vm1168, %v1351, 0.0
      %v1462 = vadd.f32 %v1460, %v1461
      %v1463 = vsel %vm1168, %v1352, 0.0
      %v1464 = vadd.f32 %v1462, %v1463
      %v1465 = vsel %vm1168, %v1353, 0.0
      %v1466 = vadd.f32 %v1464, %v1465
      %v1467 = vsel %vm1168, %v1354, 0.0
      %v1468 = vadd.f32 %v1466, %v1467
      %v1469 = vsel %vm1168, %v1355, 0.0
      %v1470 = vadd.f32 %v1468, %v1469
      %v1471 = vsel %vm1168, %v1356, 0.0
      %v1472 = vadd.f32 %v1470, %v1471
      %v1473 = vsel %vm1168, %v1357, 0.0
      %v1474 = vadd.f32 %v1472, %v1473
      %v1475 = vsel %vm1168, %v1358, 0.0
      %v1476 = vadd.f32 %v1474, %v1475
      %v1477 = vsel %vm1168, %v1359, 0.0
      %v1478 = vadd.f32 %v1476, %v1477
      %v1479 = vsel %vm1168, %v1360, 0.0
      %v1480 = vadd.f32 %v1478, %v1479
      %v1481 = vsel %vm1168, %v1361, 0.0
      %v1482 = vadd.f32 %v1480, %v1481
      %v1483 = vsel %vm1168, %v1362, 0.0
      %v1484 = vadd.f32 %v1482, %v1483
      %v1485 = vsel %vm1168, %v1363, 0.0
      %v1486 = vadd.f32 %v1484, %v1485
      %v1487 = vsel %vm1168, %v1364, 0.0
      %v1488 = vadd.f32 %v1486, %v1487
      %v1489 = vsel %vm1168, %v1365, 0.0
      %v1490 = vadd.f32 %v1488, %v1489
      %v1491 = vsel %vm1168, %v1366, 0.0
      %v1492 = vadd.f32 %v1490, %v1491
      %v1493 = vsel %vm1168, %v1367, 0.0
      %v1494 = vadd.f32 %v1492, %v1493
      %v1495 = vrot.slane %v1494, 4
      %v1496 = vadd.f32 %v1494, %v1495
      %v1497 = vrot.slane %v1496, 2
      %v1498 = vadd.f32 %v1496, %v1497
      %v1499 = vrot.slane %v1498, 1
      %v1500 = vadd.f32 %v1498, %v1499
      %1501 = vst.msk [vmem:[%s228 + $0x1] sm:$0x1] %vm1302, %v1500
      %s1502 = smul.u32 %s19, 2
      %s1503 = sadd.s32 %s1502, %s20
      %s1504 = smul.u32 64, %s1503
      %p1505 = scmp.lt.s32.totalorder %s1504, 511
      %s1506 = scalar_select %p1505, %s1504, 511
      %s1507 = smul.addr %s1506, 4
      %s1508 = scalar_lea.vmem %s2, %s1507
      %s1509 = smul.u32 %s19, 2
      %s1510 = sadd.s32 %s1509, %s20
      %p1511 = scmp.lt.s32.totalorder %s1510, 7
      %s1512 = scalar_select %p1511, %s1510, 7
      %s1513 = smul.addr %s1512, 2
      %s1514 = scalar_lea.vmem %s3, %s1513
      // Predicated region
      $region29: #{pointnet_encoder_forward.6} parent=27 // pred_check
        %p1515 = pneg %p100
      $region30: #{pointnet_encoder_forward.6} parent=27 // pred_check_branch
        %1517 = sbr.rel (%p1515) target = $region32
      $region31: #{pointnet_encoder_forward.6} parent=27 // pred_region
        %s1518 = smul.u32 %s19, 2
        %s1519 = sadd.s32 %s1518, %s20
        %s1520 = smul.u32 64, %s1519
      $region32: #{pointnet_encoder_forward.6} parent=27 // pred_fallthru
        _
      // Predicated region
      $region33: #{pointnet_encoder_forward.6} parent=27 // pred_check
        %p1521 = pneg %p130
      $region34: #{pointnet_encoder_forward.6} parent=27 // pred_check_branch
        %1523 = sbr.rel (%p1521) target = $region36
      $region35: #{pointnet_encoder_forward.6} parent=27 // pred_region
        %s1524 = smul.u32 %s19, 2
        %s1525 = sadd.s32 %s1524, %s20
      $region36: #{pointnet_encoder_forward.6} parent=27 // pred_fallthru
        _
    $region28: #{pointnet_encoder_forward.6} parent=5 // pred_fallthru
      _
    %p1526 = scmp.le.s32.totalorder 2, %s10
    // Predicated region
    $region37: #{pointnet_encoder_forward.6} parent=5 // pred_check
      %p1527 = pneg %p1526
    $region38: #{pointnet_encoder_forward.6} parent=5 // pred_check_branch
      %1529 = sbr.rel (%p1527) target = $region40
    $region39: #{pointnet_encoder_forward.6} parent=5 // pred_region
      %s1530 = ssub.s32 %s10, 2
      // Predicated region
      $region41: #{pointnet_encoder_forward.6} parent=39 // pred_check
        %p1531 = pneg %p106
      $region42: #{pointnet_encoder_forward.6} parent=39 // pred_check_branch
        %1533 = sbr.rel (%p1531) target = $region44
      $region43: #{pointnet_encoder_forward.6} parent=39 // pred_region
        %s1534 = smul.u32 %s21, 2
        %s1535 = sadd.s32 %s1534, %s22
        %s1536 = smul.u32 64, %s1535
        %p1537 = scmp.lt.s32.totalorder %s1536, 511
        %s1538 = scalar_select %p1537, %s1536, 511
        %s1539 = smul.addr %s1538, 4
        %s1540 = scalar_lea.vmem %s2, %s1539
      $region44: #{pointnet_encoder_forward.6} parent=39 // pred_fallthru
        _
      // Predicated region
      $region45: #{pointnet_encoder_forward.6} parent=39 // pred_check
        %p1541 = pneg %p136
      $region46: #{pointnet_encoder_forward.6} parent=39 // pred_check_branch
        %1543 = sbr.rel (%p1541) target = $region48
      $region47: #{pointnet_encoder_forward.6} parent=39 // pred_region
        %s1544 = smul.u32 %s21, 2
        %s1545 = sadd.s32 %s1544, %s22
        %p1546 = scmp.lt.s32.totalorder %s1545, 7
        %s1547 = scalar_select %p1546, %s1545, 7
        %s1548 = smul.addr %s1547, 2
        %s1549 = scalar_lea.vmem %s3, %s1548
      $region48: #{pointnet_encoder_forward.6} parent=39 // pred_fallthru
        _
    $region40: #{pointnet_encoder_forward.6} parent=5 // pred_fallthru
      _
  $region6: #{pointnet_encoder_forward.6} parent=0 // loop_footer
    %s14 = sadd.s32 1, %s10
  $region7: #{pointnet_encoder_forward.6} parent=0 // loop_footer_branch
    %9 = sbr.rel target = $region3
  $region8: #{pointnet_encoder_forward.6} parent=0 // loop_exit
    _

// kernel: pointnet_encoder_forward.7
$region0: #{pointnet_encoder_forward.7}
  #allocation0 [shape = 'u32[]', space=smem, size = 0x4, offset = 0x4, fixed_abs, tag = 'smem constant byte address 0x4 - core index']
  #allocation1 [shape = 'u32[144,128]{1,0:T(1,128)}', space=vmem, size = 0x12000, scoped, tag = 'internal scratch']
  %s0 = inlined_call_operand.vmem [shape: bf16[4096,64], index: 0, kind: input, shape index: {}]
  %s1 = inlined_call_operand.vmem [shape: f32[2,64], index: 1, kind: input, shape index: {}]
  %s2 = inlined_call_operand.vmem [shape: bf16[64,128], index: 2, kind: input, shape index: {}]
  %s3 = inlined_call_operand.vmem [shape: bf16[4096,128], index: 3, kind: output, shape index: {0}]
  %s4 = inlined_call_operand.vmem [shape: f32[8,2,128], index: 4, kind: output, shape index: {1}]
  %5 = xla_tuple %s3, %s4
  %s6 = sld [smem:[#allocation0]]
  $region53: #{pointnet_encoder_forward.7} parent=0
    _
  %s8 = ssub.s32 1, %s6
  %s9 = scalar_select 0, %s8, %s6
  loop: start=0, step=1, limit=10
  $region2: #{pointnet_encoder_forward.7} parent=0 // loop_pre_header
    _
  $region3: #{pointnet_encoder_forward.7} parent=0 // loop_header
    %s11 = sphi 0, %s15
    %p12 = scmp.ge.s32.totalorder %s11, 10
    %s18 = sphi 0, %s30
    %s19 = sphi 0, %s26
    %s20 = sphi 0, %s18
    %s21 = sphi 0, %s19
    %s22 = sphi 0, %s20
    %s23 = sphi 0, %s21
    %s37 = sphi 0, %s39
    %s40 = sphi 0, %s37
    %s41 = sphi 0, %s40
    %s57 = sphi 0, %s41
    %s61 = sphi 0, %s61
    %s63 = sphi 0, %s61
    %s64 = sphi 0, %s63
    %s78 = sphi 0, %s64
    %s82 = sphi 0, %s82
    %s84 = sphi 0, %s82
    %s85 = sphi 0, %s84
    %s99 = sphi 0, %s85
    %s109 = sphi 0, %s111
    %s112 = sphi 0, %s109
    %s113 = sphi 0, %s112
    %s129 = sphi 0, %s113
    %s139 = sphi 0, %s141
    %s142 = sphi 0, %s139
    %s143 = sphi 0, %s142
    %s159 = sphi 0, %s143
  $region4: #{pointnet_encoder_forward.7} parent=0 // loop_header_branch
    %14 = sbr.rel (%p12) target = $region8
  $region5: #{pointnet_encoder_forward.7} parent=0 // loop_body
    %s16 = ssub.s32 %s11, 1
    %s17 = ssub.s32 %s11, 2
    %s24 = sadd.s32 1, %s19
    %p25 = scmp.ge.s32.totalorder %s24, 2
    %s26 = scalar_select %p25, 0, %s24
    %s27 = sadd.s32 1, %s18
    %s28 = scalar_select %p25, %s27, %s18
    %p29 = scmp.ge.s32.totalorder %s28, 4
    %s30 = scalar_select %p29, 0, %s28
    %s31 = smul.u32 %s18, 2
    %s32 = sadd.s32 %s31, %s19
    %s33 = smul.u32 %s30, 2
    %s34 = sadd.s32 %s33, %s26
    %s35 = ssub.s32 %s32, %s34
    %p36 = scmp.eq.s32.totalorder %s35, 0
    %s38 = sadd.s32 %s37, 1
    %s39 = scalar_select %p36, %s37, %s38
    %p42 = pneg %p36
    %p43 = scmp.eq.s32.totalorder %s11, 7
    %p44 = por %p42, %p43
    %p45 = scmp.ne.s32.totalorder %s37, %s40
    %p46 = scmp.eq.s32.totalorder %s11, 0
    %p47 = por %p45, %p46
    %p48 = scmp.ne.s32.totalorder %s37, %s40
    %p49 = scmp.eq.s32.totalorder %s16, 7
    %p50 = por %p48, %p49
    %p51 = scmp.ne.s32.totalorder %s40, %s41
    %p52 = scmp.eq.s32.totalorder %s16, 0
    %p53 = por %p51, %p52
    %p54 = scmp.ne.s32.totalorder %s40, %s41
    %p55 = scmp.eq.s32.totalorder %s17, 7
    %p56 = por %p54, %p55
    %p58 = scmp.ne.s32.totalorder %s41, %s57
    %p59 = scmp.eq.s32.totalorder %s17, 0
    %p60 = por %p58, %p59
    %s62 = sadd.s32 %s61, 1
    %p65 = scmp.eq.s32.totalorder %s11, 7
    %p66 = scmp.ne.s32.totalorder %s61, %s63
    %p67 = scmp.eq.s32.totalorder %s11, 0
    %p68 = por %p66, %p67
    %p69 = scmp.ne.s32.totalorder %s61, %s63
    %p70 = scmp.eq.s32.totalorder %s16, 7
    %p71 = por %p69, %p70
    %p72 = scmp.ne.s32.totalorder %s63, %s64
    %p73 = scmp.eq.s32.totalorder %s16, 0
    %p74 = por %p72, %p73
    %p75 = scmp.ne.s32.totalorder %s63, %s64
    %p76 = scmp.eq.s32.totalorder %s17, 7
    %p77 = por %p75, %p76
    %p79 = scmp.ne.s32.totalorder %s64, %s78
    %p80 = scmp.eq.s32.totalorder %s17, 0
    %p81 = por %p79, %p80
    %s83 = sadd.s32 %s82, 1
    %p86 = scmp.eq.s32.totalorder %s11, 7
    %p87 = scmp.ne.s32.totalorder %s82, %s84
    %p88 = scmp.eq.s32.totalorder %s11, 0
    %p89 = por %p87, %p88
    %p90 = scmp.ne.s32.totalorder %s82, %s84
    %p91 = scmp.eq.s32.totalorder %s16, 7
    %p92 = por %p90, %p91
    %p93 = scmp.ne.s32.totalorder %s84, %s85
    %p94 = scmp.eq.s32.totalorder %s16, 0
    %p95 = por %p93, %p94
    %p96 = scmp.ne.s32.totalorder %s84, %s85
    %p97 = scmp.eq.s32.totalorder %s17, 7
    %p98 = por %p96, %p97
    %p100 = scmp.ne.s32.totalorder %s85, %s99
    %p101 = scmp.eq.s32.totalorder %s17, 0
    %p102 = por %p100, %p101
    %s103 = smul.u32 %s18, 2
    %s104 = sadd.s32 %s103, %s19
    %s105 = smul.u32 %s30, 2
    %s106 = sadd.s32 %s105, %s26
    %s107 = ssub.s32 %s104, %s106
    %p108 = scmp.eq.s32.totalorder %s107, 0
    %s110 = sadd.s32 %s109, 1
    %s111 = scalar_select %p108, %s109, %s110
    %p114 = pneg %p108
    %p115 = scmp.eq.s32.totalorder %s11, 7
    %p116 = por %p114, %p115
    %p117 = scmp.ne.s32.totalorder %s109, %s112
    %p118 = scmp.eq.s32.totalorder %s11, 0
    %p119 = por %p117, %p118
    %p120 = scmp.ne.s32.totalorder %s109, %s112
    %p121 = scmp.eq.s32.totalorder %s16, 7
    %p122 = por %p120, %p121
    %p123 = scmp.ne.s32.totalorder %s112, %s113
    %p124 = scmp.eq.s32.totalorder %s16, 0
    %p125 = por %p123, %p124
    %p126 = scmp.ne.s32.totalorder %s112, %s113
    %p127 = scmp.eq.s32.totalorder %s17, 7
    %p128 = por %p126, %p127
    %p130 = scmp.ne.s32.totalorder %s113, %s129
    %p131 = scmp.eq.s32.totalorder %s17, 0
    %p132 = por %p130, %p131
    %s133 = smul.u32 %s18, 2
    %s134 = sadd.s32 %s133, %s19
    %s135 = smul.u32 %s30, 2
    %s136 = sadd.s32 %s135, %s26
    %s137 = ssub.s32 %s134, %s136
    %p138 = scmp.eq.s32.totalorder %s137, 0
    %s140 = sadd.s32 %s139, 1
    %s141 = scalar_select %p138, %s139, %s140
    %p144 = pneg %p138
    %p145 = scmp.eq.s32.totalorder %s11, 7
    %p146 = por %p144, %p145
    %p147 = scmp.ne.s32.totalorder %s139, %s142
    %p148 = scmp.eq.s32.totalorder %s11, 0
    %p149 = por %p147, %p148
    %p150 = scmp.ne.s32.totalorder %s139, %s142
    %p151 = scmp.eq.s32.totalorder %s16, 7
    %p152 = por %p150, %p151
    %p153 = scmp.ne.s32.totalorder %s142, %s143
    %p154 = scmp.eq.s32.totalorder %s16, 0
    %p155 = por %p153, %p154
    %p156 = scmp.ne.s32.totalorder %s142, %s143
    %p157 = scmp.eq.s32.totalorder %s17, 7
    %p158 = por %p156, %p157
    %p160 = scmp.ne.s32.totalorder %s143, %s159
    %p161 = scmp.eq.s32.totalorder %s17, 0
    %p162 = por %p160, %p161
    %p163 = scmp.le.s32.totalorder 1, %s11
    %p164 = scmp.lt.s32.totalorder %s11, 9
    %p165 = pnand %p163, %p164
    %p166 = pneg %p165
    // Predicated region
    $region9: #{pointnet_encoder_forward.7} parent=5 // pred_check
      _
    $region10: #{pointnet_encoder_forward.7} parent=5 // pred_check_branch
      %168 = sbr.rel (%p165) target = $region12
    $region11: #{pointnet_encoder_forward.7} parent=5 // pred_region
      %s169 = ssub.s32 %s11, 1
      // Predicated region
      $region13: #{pointnet_encoder_forward.7} parent=11 // pred_check
        %p170 = pneg %p74
      $region14: #{pointnet_encoder_forward.7} parent=11 // pred_check_branch
        %172 = sbr.rel (%p170) target = $region16
      $region15: #{pointnet_encoder_forward.7} parent=11 // pred_region
        _
      $region16: #{pointnet_encoder_forward.7} parent=11 // pred_fallthru
        _
      // Predicated region
      $region17: #{pointnet_encoder_forward.7} parent=11 // pred_check
        %p173 = pneg %p95
      $region18: #{pointnet_encoder_forward.7} parent=11 // pred_check_branch
        %175 = sbr.rel (%p173) target = $region20
      $region19: #{pointnet_encoder_forward.7} parent=11 // pred_region
        _
      $region20: #{pointnet_encoder_forward.7} parent=11 // pred_fallthru
        _
    $region12: #{pointnet_encoder_forward.7} parent=5 // pred_fallthru
      _
    %p176 = scmp.lt.s32.totalorder %s11, 8
    // Predicated region
    $region21: #{pointnet_encoder_forward.7} parent=5 // pred_check
      %p177 = pneg %p176
    $region22: #{pointnet_encoder_forward.7} parent=5 // pred_check_branch
      %179 = sbr.rel (%p177) target = $region24
    $region23: #{pointnet_encoder_forward.7} parent=5 // pred_region
      // Predicated region
      $region25: #{pointnet_encoder_forward.7} parent=23 // pred_check
        %p180 = pneg %p47
      $region26: #{pointnet_encoder_forward.7} parent=23 // pred_check_branch
        %182 = sbr.rel (%p180) target = $region28
      $region27: #{pointnet_encoder_forward.7} parent=23 // pred_region
        %s183 = smul.u32 %s18, 2
        %s184 = sadd.s32 %s183, %s19
        %s185 = smul.u32 64, %s184
        %p186 = scmp.lt.s32.totalorder %s185, 511
        %s187 = scalar_select %p186, %s185, 511
        %s188 = smul.addr %s187, 4
        %s189 = scalar_lea.vmem %s0, %s188
        %s190 = smul.u32 %s18, 2
        %s191 = sadd.s32 %s190, %s19
        %s192 = smul.u32 64, %s191
      $region28: #{pointnet_encoder_forward.7} parent=23 // pred_fallthru
        _
    $region24: #{pointnet_encoder_forward.7} parent=5 // pred_fallthru
      _
    %p193 = scmp.le.s32.totalorder 1, %s11
    %p194 = scmp.lt.s32.totalorder %s11, 9
    %p195 = pnand %p193, %p194
    %p196 = pneg %p195
    // Predicated region
    $region29: #{pointnet_encoder_forward.7} parent=5 // pred_check
      _
    $region30: #{pointnet_encoder_forward.7} parent=5 // pred_check_branch
      %198 = sbr.rel (%p195) target = $region32
    $region31: #{pointnet_encoder_forward.7} parent=5 // pred_region
      %s199 = ssub.s32 %s11, 1
      %s200 = smul.u32 %s20, 2
      %s201 = sadd.s32 %s200, %s21
      %s202 = smul.u32 64, %s201
      %p203 = scmp.lt.s32.totalorder %s202, 511
      %s204 = scalar_select %p203, %s202, 511
      %s205 = smul.addr %s204, 4
      %s206 = scalar_lea.vmem %s0, %s205
      %p207 = pneg %p53
      %p208 = pneg %p50
      %p209 = pneg %p74
      %p210 = pneg %p71
      %p211 = pneg %p95
      %p212 = pneg %p92
      %p213 = pneg %p125
      %p214 = pneg %p122
      %s215 = smul.u32 %s20, 2
      %s216 = sadd.s32 %s215, %s21
      %s217 = smul.u32 64, %s216
      %p218 = scmp.lt.s32.totalorder %s217, 511
      %s219 = scalar_select %p218, %s217, 511
      %s220 = smul.addr %s219, 4
      %s221 = scalar_lea.vmem %s3, %s220
      %p222 = pneg %p155
      %p223 = pneg %p152
      %s224 = smul.u32 %s20, 2
      %s225 = sadd.s32 %s224, %s21
      %p226 = scmp.lt.s32.totalorder %s225, 7
      %s227 = scalar_select %p226, %s225, 7
      %s228 = smul.addr %s227, 2
      %s229 = scalar_lea.vmem %s4, %s228
      %s230 = smul.u32 %s20, 2
      %s231 = sadd.s32 %s230, %s21
      %s232 = smul.u32 64, %s231
      %p233 = scmp.lt.s32.totalorder %s232, 511
      %s234 = scalar_select %p233, %s232, 511
      %s235 = smul.addr %s234, 4
      %s236 = scalar_lea.vmem %s0, %s235
      %s237 = smul.u32 %s20, 2
      %s238 = sadd.s32 %s237, %s21
      %s239 = smul.u32 64, %s238
      %s240 = smul.u32 %s20, 2
      %s241 = sadd.s32 %s240, %s21
      %s242 = smul.u32 64, %s241
      %p243 = scmp.lt.s32.totalorder %s242, 511
      %s244 = scalar_select %p243, %s242, 511
      %s245 = smul.addr %s244, 4
      %s246 = scalar_lea.vmem %s3, %s245
      %s247 = smul.u32 %s20, 2
      %s248 = sadd.s32 %s247, %s21
      %s249 = smul.u32 64, %s248
      %s250 = smul.u32 %s20, 2
      %s251 = sadd.s32 %s250, %s21
      %p252 = scmp.lt.s32.totalorder %s251, 7
      %s253 = scalar_select %p252, %s251, 7
      %s254 = smul.addr %s253, 2
      %s255 = scalar_lea.vmem %s4, %s254
      %s256 = smul.u32 %s20, 2
      %s257 = sadd.s32 %s256, %s21
      %v259 = vld [vmem:[%s236] sm:$0xf]
      %v260 = vld [vmem:[%s236 + $0x4] sm:$0xf]
      %v261 = vld [vmem:[%s236 + $0x8] sm:$0xf]
      %v262 = vld [vmem:[%s236 + $0xc] sm:$0xf]
      %v263 = vld [vmem:[%s236 + $0x10] sm:$0xf]
      %v264 = vld [vmem:[%s236 + $0x14] sm:$0xf]
      %v265 = vld [vmem:[%s236 + $0x18] sm:$0xf]
      %v266 = vld [vmem:[%s236 + $0x1c] sm:$0xf]
      %v267 = vld [vmem:[%s236 + $0x20] sm:$0xf]
      %v268 = vld [vmem:[%s236 + $0x24] sm:$0xf]
      %v269 = vld [vmem:[%s236 + $0x28] sm:$0xf]
      %v270 = vld [vmem:[%s236 + $0x2c] sm:$0xf]
      %v271 = vld [vmem:[%s236 + $0x30] sm:$0xf]
      %v272 = vld [vmem:[%s236 + $0x34] sm:$0xf]
      %v273 = vld [vmem:[%s236 + $0x38] sm:$0xf]
      %v274 = vld [vmem:[%s236 + $0x3c] sm:$0xf]
      %v275 = vld [vmem:[%s236 + $0x40] sm:$0xf]
      %v276 = vld [vmem:[%s236 + $0x44] sm:$0xf]
      %v277 = vld [vmem:[%s236 + $0x48] sm:$0xf]
      %v278 = vld [vmem:[%s236 + $0x4c] sm:$0xf]
      %v279 = vld [vmem:[%s236 + $0x50] sm:$0xf]
      %v280 = vld [vmem:[%s236 + $0x54] sm:$0xf]
      %v281 = vld [vmem:[%s236 + $0x58] sm:$0xf]
      %v282 = vld [vmem:[%s236 + $0x5c] sm:$0xf]
      %v283 = vld [vmem:[%s236 + $0x60] sm:$0xf]
      %v284 = vld [vmem:[%s236 + $0x64] sm:$0xf]
      %v285 = vld [vmem:[%s236 + $0x68] sm:$0xf]
      %v286 = vld [vmem:[%s236 + $0x6c] sm:$0xf]
      %v287 = vld [vmem:[%s236 + $0x70] sm:$0xf]
      %v288 = vld [vmem:[%s236 + $0x74] sm:$0xf]
      %v289 = vld [vmem:[%s236 + $0x78] sm:$0xf]
      %v290 = vld [vmem:[%s236 + $0x7c] sm:$0xf]
      %v291 = vld [vmem:[%s236 + $0x80] sm:$0xf]
      %v292 = vld [vmem:[%s236 + $0x84] sm:$0xf]
      %v293 = vld [vmem:[%s236 + $0x88] sm:$0xf]
      %v294 = vld [vmem:[%s236 + $0x8c] sm:$0xf]
      %v295 = vld [vmem:[%s236 + $0x90] sm:$0xf]
      %v296 = vld [vmem:[%s236 + $0x94] sm:$0xf]
      %v297 = vld [vmem:[%s236 + $0x98] sm:$0xf]
      %v298 = vld [vmem:[%s236 + $0x9c] sm:$0xf]
      %v299 = vld [vmem:[%s236 + $0xa0] sm:$0xf]
      %v300 = vld [vmem:[%s236 + $0xa4] sm:$0xf]
      %v301 = vld [vmem:[%s236 + $0xa8] sm:$0xf]
      %v302 = vld [vmem:[%s236 + $0xac] sm:$0xf]
      %v303 = vld [vmem:[%s236 + $0xb0] sm:$0xf]
      %v304 = vld [vmem:[%s236 + $0xb4] sm:$0xf]
      %v305 = vld [vmem:[%s236 + $0xb8] sm:$0xf]
      %v306 = vld [vmem:[%s236 + $0xbc] sm:$0xf]
      %v307 = vld [vmem:[%s236 + $0xc0] sm:$0xf]
      %v308 = vld [vmem:[%s236 + $0xc4] sm:$0xf]
      %v309 = vld [vmem:[%s236 + $0xc8] sm:$0xf]
      %v310 = vld [vmem:[%s236 + $0xcc] sm:$0xf]
      %v311 = vld [vmem:[%s236 + $0xd0] sm:$0xf]
      %v312 = vld [vmem:[%s236 + $0xd4] sm:$0xf]
      %v313 = vld [vmem:[%s236 + $0xd8] sm:$0xf]
      %v314 = vld [vmem:[%s236 + $0xdc] sm:$0xf]
      %v315 = vld [vmem:[%s236 + $0xe0] sm:$0xf]
      %v316 = vld [vmem:[%s236 + $0xe4] sm:$0xf]
      %v317 = vld [vmem:[%s236 + $0xe8] sm:$0xf]
      %v318 = vld [vmem:[%s236 + $0xec] sm:$0xf]
      %v319 = vld [vmem:[%s236 + $0xf0] sm:$0xf]
      %v320 = vld [vmem:[%s236 + $0xf4] sm:$0xf]
      %v321 = vld [vmem:[%s236 + $0xf8] sm:$0xf]
      %v322 = vld [vmem:[%s236 + $0xfc] sm:$0xf]
      %v323 = vunpack.c.l.bf16 %v259
      %v324 = vunpack.c.l.bf16 %v260
      %v325 = vunpack.c.l.bf16 %v261
      %v326 = vunpack.c.l.bf16 %v262
      %v327 = vunpack.c.l.bf16 %v263
      %v328 = vunpack.c.l.bf16 %v264
      %v329 = vunpack.c.l.bf16 %v265
      %v330 = vunpack.c.l.bf16 %v266
      %v331 = vunpack.c.l.bf16 %v267
      %v332 = vunpack.c.l.bf16 %v268
      %v333 = vunpack.c.l.bf16 %v269
      %v334 = vunpack.c.l.bf16 %v270
      %v335 = vunpack.c.l.bf16 %v271
      %v336 = vunpack.c.l.bf16 %v272
      %v337 = vunpack.c.l.bf16 %v273
      %v338 = vunpack.c.l.bf16 %v274
      %v339 = vunpack.c.l.bf16 %v275
      %v340 = vunpack.c.l.bf16 %v276
      %v341 = vunpack.c.l.bf16 %v277
      %v342 = vunpack.c.l.bf16 %v278
      %v343 = vunpack.c.l.bf16 %v279
      %v344 = vunpack.c.l.bf16 %v280
      %v345 = vunpack.c.l.bf16 %v281
      %v346 = vunpack.c.l.bf16 %v282
      %v347 = vunpack.c.l.bf16 %v283
      %v348 = vunpack.c.l.bf16 %v284
      %v349 = vunpack.c.l.bf16 %v285
      %v350 = vunpack.c.l.bf16 %v286
      %v351 = vunpack.c.l.bf16 %v287
      %v352 = vunpack.c.l.bf16 %v288
      %v353 = vunpack.c.l.bf16 %v289
      %v354 = vunpack.c.l.bf16 %v290
      %v355 = vunpack.c.l.bf16 %v291
      %v356 = vunpack.c.l.bf16 %v292
      %v357 = vunpack.c.l.bf16 %v293
      %v358 = vunpack.c.l.bf16 %v294
      %v359 = vunpack.c.l.bf16 %v295
      %v360 = vunpack.c.l.bf16 %v296
      %v361 = vunpack.c.l.bf16 %v297
      %v362 = vunpack.c.l.bf16 %v298
      %v363 = vunpack.c.l.bf16 %v299
      %v364 = vunpack.c.l.bf16 %v300
      %v365 = vunpack.c.l.bf16 %v301
      %v366 = vunpack.c.l.bf16 %v302
      %v367 = vunpack.c.l.bf16 %v303
      %v368 = vunpack.c.l.bf16 %v304
      %v369 = vunpack.c.l.bf16 %v305
      %v370 = vunpack.c.l.bf16 %v306
      %v371 = vunpack.c.l.bf16 %v307
      %v372 = vunpack.c.l.bf16 %v308
      %v373 = vunpack.c.l.bf16 %v309
      %v374 = vunpack.c.l.bf16 %v310
      %v375 = vunpack.c.l.bf16 %v311
      %v376 = vunpack.c.l.bf16 %v312
      %v377 = vunpack.c.l.bf16 %v313
      %v378 = vunpack.c.l.bf16 %v314
      %v379 = vunpack.c.l.bf16 %v315
      %v380 = vunpack.c.l.bf16 %v316
      %v381 = vunpack.c.l.bf16 %v317
      %v382 = vunpack.c.l.bf16 %v318
      %v383 = vunpack.c.l.bf16 %v319
      %v384 = vunpack.c.l.bf16 %v320
      %v385 = vunpack.c.l.bf16 %v321
      %v386 = vunpack.c.l.bf16 %v322
      %v387 = vld [vmem:[%s1] sm:$0x1]
      %v388 = vlaneseq
      %v389 = vshrl.u32 %v388, 7
      %v390 = vsub.s32 0, %v389
      %v391 = vrot.slane %v387, %v390
      %v392 = vmul.f32 %v323, %v391
      %v393 = vmul.f32 %v324, %v391
      %v394 = vmul.f32 %v325, %v391
      %v395 = vmul.f32 %v326, %v391
      %v396 = vmul.f32 %v327, %v391
      %v397 = vmul.f32 %v328, %v391
      %v398 = vmul.f32 %v329, %v391
      %v399 = vmul.f32 %v330, %v391
      %v400 = vmul.f32 %v331, %v391
      %v401 = vmul.f32 %v332, %v391
      %v402 = vmul.f32 %v333, %v391
      %v403 = vmul.f32 %v334, %v391
      %v404 = vmul.f32 %v335, %v391
      %v405 = vmul.f32 %v336, %v391
      %v406 = vmul.f32 %v337, %v391
      %v407 = vmul.f32 %v338, %v391
      %v408 = vmul.f32 %v339, %v391
      %v409 = vmul.f32 %v340, %v391
      %v410 = vmul.f32 %v341, %v391
      %v411 = vmul.f32 %v342, %v391
      %v412 = vmul.f32 %v343, %v391
      %v413 = vmul.f32 %v344, %v391
      %v414 = vmul.f32 %v345, %v391
      %v415 = vmul.f32 %v346, %v391
      %v416 = vmul.f32 %v347, %v391
      %v417 = vmul.f32 %v348, %v391
      %v418 = vmul.f32 %v349, %v391
      %v419 = vmul.f32 %v350, %v391
      %v420 = vmul.f32 %v351, %v391
      %v421 = vmul.f32 %v352, %v391
      %v422 = vmul.f32 %v353, %v391
      %v423 = vmul.f32 %v354, %v391
      %v424 = vmul.f32 %v355, %v391
      %v425 = vmul.f32 %v356, %v391
      %v426 = vmul.f32 %v357, %v391
      %v427 = vmul.f32 %v358, %v391
      %v428 = vmul.f32 %v359, %v391
      %v429 = vmul.f32 %v360, %v391
      %v430 = vmul.f32 %v361, %v391
      %v431 = vmul.f32 %v362, %v391
      %v432 = vmul.f32 %v363, %v391
      %v433 = vmul.f32 %v364, %v391
      %v434 = vmul.f32 %v365, %v391
      %v435 = vmul.f32 %v366, %v391
      %v436 = vmul.f32 %v367, %v391
      %v437 = vmul.f32 %v368, %v391
      %v438 = vmul.f32 %v369, %v391
      %v439 = vmul.f32 %v370, %v391
      %v440 = vmul.f32 %v371, %v391
      %v441 = vmul.f32 %v372, %v391
      %v442 = vmul.f32 %v373, %v391
      %v443 = vmul.f32 %v374, %v391
      %v444 = vmul.f32 %v375, %v391
      %v445 = vmul.f32 %v376, %v391
      %v446 = vmul.f32 %v377, %v391
      %v447 = vmul.f32 %v378, %v391
      %v448 = vmul.f32 %v379, %v391
      %v449 = vmul.f32 %v380, %v391
      %v450 = vmul.f32 %v381, %v391
      %v451 = vmul.f32 %v382, %v391
      %v452 = vmul.f32 %v383, %v391
      %v453 = vmul.f32 %v384, %v391
      %v454 = vmul.f32 %v385, %v391
      %v455 = vmul.f32 %v386, %v391
      %v456 = vld [vmem:[%s1 + $0x1] sm:$0x1]
      %v457 = vlaneseq
      %v458 = vshrl.u32 %v457, 7
      %v459 = vsub.s32 0, %v458
      %v460 = vrot.slane %v456, %v459
      %v461 = vadd.f32 %v392, %v460
      %v462 = vadd.f32 %v393, %v460
      %v463 = vadd.f32 %v394, %v460
      %v464 = vadd.f32 %v395, %v460
      %v465 = vadd.f32 %v396, %v460
      %v466 = vadd.f32 %v397, %v460
      %v467 = vadd.f32 %v398, %v460
      %v468 = vadd.f32 %v399, %v460
      %v469 = vadd.f32 %v400, %v460
      %v470 = vadd.f32 %v401, %v460
      %v471 = vadd.f32 %v402, %v460
      %v472 = vadd.f32 %v403, %v460
      %v473 = vadd.f32 %v404, %v460
      %v474 = vadd.f32 %v405, %v460
      %v475 = vadd.f32 %v406, %v460
      %v476 = vadd.f32 %v407, %v460
      %v477 = vadd.f32 %v408, %v460
      %v478 = vadd.f32 %v409, %v460
      %v479 = vadd.f32 %v410, %v460
      %v480 = vadd.f32 %v411, %v460
      %v481 = vadd.f32 %v412, %v460
      %v482 = vadd.f32 %v413, %v460
      %v483 = vadd.f32 %v414, %v460
      %v484 = vadd.f32 %v415, %v460
      %v485 = vadd.f32 %v416, %v460
      %v486 = vadd.f32 %v417, %v460
      %v487 = vadd.f32 %v418, %v460
      %v488 = vadd.f32 %v419, %v460
      %v489 = vadd.f32 %v420, %v460
      %v490 = vadd.f32 %v421, %v460
      %v491 = vadd.f32 %v422, %v460
      %v492 = vadd.f32 %v423, %v460
      %v493 = vadd.f32 %v424, %v460
      %v494 = vadd.f32 %v425, %v460
      %v495 = vadd.f32 %v426, %v460
      %v496 = vadd.f32 %v427, %v460
      %v497 = vadd.f32 %v428, %v460
      %v498 = vadd.f32 %v429, %v460
      %v499 = vadd.f32 %v430, %v460
      %v500 = vadd.f32 %v431, %v460
      %v501 = vadd.f32 %v432, %v460
      %v502 = vadd.f32 %v433, %v460
      %v503 = vadd.f32 %v434, %v460
      %v504 = vadd.f32 %v435, %v460
      %v505 = vadd.f32 %v436, %v460
      %v506 = vadd.f32 %v437, %v460
      %v507 = vadd.f32 %v438, %v460
      %v508 = vadd.f32 %v439, %v460
      %v509 = vadd.f32 %v440, %v460
      %v510 = vadd.f32 %v441, %v460
      %v511 = vadd.f32 %v442, %v460
      %v512 = vadd.f32 %v443, %v460
      %v513 = vadd.f32 %v444, %v460
      %v514 = vadd.f32 %v445, %v460
      %v515 = vadd.f32 %v446, %v460
      %v516 = vadd.f32 %v447, %v460
      %v517 = vadd.f32 %v448, %v460
      %v518 = vadd.f32 %v449, %v460
      %v519 = vadd.f32 %v450, %v460
      %v520 = vadd.f32 %v451, %v460
      %v521 = vadd.f32 %v452, %v460
      %v522 = vadd.f32 %v453, %v460
      %v523 = vadd.f32 %v454, %v460
      %v524 = vadd.f32 %v455, %v460
      %v525 = vmax.f32 %v461, 0.0
      %v526 = vmax.f32 %v462, 0.0
      %v527 = vmax.f32 %v463, 0.0
      %v528 = vmax.f32 %v464, 0.0
      %v529 = vmax.f32 %v465, 0.0
      %v530 = vmax.f32 %v466, 0.0
      %v531 = vmax.f32 %v467, 0.0
      %v532 = vmax.f32 %v468, 0.0
      %v533 = vmax.f32 %v469, 0.0
      %v534 = vmax.f32 %v470, 0.0
      %v535 = vmax.f32 %v471, 0.0
      %v536 = vmax.f32 %v472, 0.0
      %v537 = vmax.f32 %v473, 0.0
      %v538 = vmax.f32 %v474, 0.0
      %v539 = vmax.f32 %v475, 0.0
      %v540 = vmax.f32 %v476, 0.0
      %v541 = vmax.f32 %v477, 0.0
      %v542 = vmax.f32 %v478, 0.0
      %v543 = vmax.f32 %v479, 0.0
      %v544 = vmax.f32 %v480, 0.0
      %v545 = vmax.f32 %v481, 0.0
      %v546 = vmax.f32 %v482, 0.0
      %v547 = vmax.f32 %v483, 0.0
      %v548 = vmax.f32 %v484, 0.0
      %v549 = vmax.f32 %v485, 0.0
      %v550 = vmax.f32 %v486, 0.0
      %v551 = vmax.f32 %v487, 0.0
      %v552 = vmax.f32 %v488, 0.0
      %v553 = vmax.f32 %v489, 0.0
      %v554 = vmax.f32 %v490, 0.0
      %v555 = vmax.f32 %v491, 0.0
      %v556 = vmax.f32 %v492, 0.0
      %v557 = vmax.f32 %v493, 0.0
      %v558 = vmax.f32 %v494, 0.0
      %v559 = vmax.f32 %v495, 0.0
      %v560 = vmax.f32 %v496, 0.0
      %v561 = vmax.f32 %v497, 0.0
      %v562 = vmax.f32 %v498, 0.0
      %v563 = vmax.f32 %v499, 0.0
      %v564 = vmax.f32 %v500, 0.0
      %v565 = vmax.f32 %v501, 0.0
      %v566 = vmax.f32 %v502, 0.0
      %v567 = vmax.f32 %v503, 0.0
      %v568 = vmax.f32 %v504, 0.0
      %v569 = vmax.f32 %v505, 0.0
      %v570 = vmax.f32 %v506, 0.0
      %v571 = vmax.f32 %v507, 0.0
      %v572 = vmax.f32 %v508, 0.0
      %v573 = vmax.f32 %v509, 0.0
      %v574 = vmax.f32 %v510, 0.0
      %v575 = vmax.f32 %v511, 0.0
      %v576 = vmax.f32 %v512, 0.0
      %v577 = vmax.f32 %v513, 0.0
      %v578 = vmax.f32 %v514, 0.0
      %v579 = vmax.f32 %v515, 0.0
      %v580 = vmax.f32 %v516, 0.0
      %v581 = vmax.f32 %v517, 0.0
      %v582 = vmax.f32 %v518, 0.0
      %v583 = vmax.f32 %v519, 0.0
      %v584 = vmax.f32 %v520, 0.0
      %v585 = vmax.f32 %v521, 0.0
      %v586 = vmax.f32 %v522, 0.0
      %v587 = vmax.f32 %v523, 0.0
      %v588 = vmax.f32 %v524, 0.0
      %v589 = vpack.c.bf16 %v526, %v525
      %v590 = vpack.c.bf16 %v528, %v527
      %v591 = vpack.c.bf16 %v530, %v529
      %v592 = vpack.c.bf16 %v532, %v531
      %v593 = vpack.c.bf16 %v534, %v533
      %v594 = vpack.c.bf16 %v536, %v535
      %v595 = vpack.c.bf16 %v538, %v537
      %v596 = vpack.c.bf16 %v540, %v539
      %v597 = vpack.c.bf16 %v542, %v541
      %v598 = vpack.c.bf16 %v544, %v543
      %v599 = vpack.c.bf16 %v546, %v545
      %v600 = vpack.c.bf16 %v548, %v547
      %v601 = vpack.c.bf16 %v550, %v549
      %v602 = vpack.c.bf16 %v552, %v551
      %v603 = vpack.c.bf16 %v554, %v553
      %v604 = vpack.c.bf16 %v556, %v555
      %v605 = vpack.c.bf16 %v558, %v557
      %v606 = vpack.c.bf16 %v560, %v559
      %v607 = vpack.c.bf16 %v562, %v561
      %v608 = vpack.c.bf16 %v564, %v563
      %v609 = vpack.c.bf16 %v566, %v565
      %v610 = vpack.c.bf16 %v568, %v567
      %v611 = vpack.c.bf16 %v570, %v569
      %v612 = vpack.c.bf16 %v572, %v571
      %v613 = vpack.c.bf16 %v574, %v573
      %v614 = vpack.c.bf16 %v576, %v575
      %v615 = vpack.c.bf16 %v578, %v577
      %v616 = vpack.c.bf16 %v580, %v579
      %v617 = vpack.c.bf16 %v582, %v581
      %v618 = vpack.c.bf16 %v584, %v583
      %v619 = vpack.c.bf16 %v586, %v585
      %v620 = vpack.c.bf16 %v588, %v587
      %v621 = vld [vmem:[%s2] sm:$0xf]
      %v622 = vld [vmem:[%s2 + $0x4] sm:$0xf]
      %v623 = vld [vmem:[%s2 + $0x8] sm:$0xf]
      %v624 = vld [vmem:[%s2 + $0xc] sm:$0xf]
      %v625 = vld [vmem:[%s2 + $0x10] sm:$0xf]
      %v626 = vld [vmem:[%s2 + $0x14] sm:$0xf]
      %v627 = vld [vmem:[%s2 + $0x18] sm:$0xf]
      %v628 = vld [vmem:[%s2 + $0x1c] sm:$0xf]
      %v637 = vunpack.c.l.b16 %v621
      %v638 = vunpack.c.l.b16 %v622
      %v639 = vunpack.c.l.b16 %v623
      %v640 = vunpack.c.l.b16 %v624
      %v641 = vunpack.c.l.b16 %v625
      %v642 = vunpack.c.l.b16 %v626
      %v643 = vunpack.c.l.b16 %v627
      %v644 = vunpack.c.l.b16 %v628
      %v645 = vpack.c.b16 %v638, %v637
      %v646 = vpack.c.b16 %v640, %v639
      %v647 = vpack.c.b16 %v642, %v641
      %v648 = vpack.c.b16 %v644, %v643
      %vm653 = vcmask 523264
      %v655 = vsel %vm653, %v589, 0
      %v658 = vsel %vm653, %v590, 0
      %v661 = vsel %vm653, %v591, 0
      %v664 = vsel %vm653, %v592, 0
      %v667 = vsel %vm653, %v593, 0
      %v670 = vsel %vm653, %v594, 0
      %v673 = vsel %vm653, %v595, 0
      %v676 = vsel %vm653, %v596, 0
      %v679 = vsel %vm653, %v597, 0
      %v682 = vsel %vm653, %v598, 0
      %v685 = vsel %vm653, %v599, 0
      %v688 = vsel %vm653, %v600, 0
      %v691 = vsel %vm653, %v601, 0
      %v694 = vsel %vm653, %v602, 0
      %v697 = vsel %vm653, %v603, 0
      %v700 = vsel %vm653, %v604, 0
      %v703 = vsel %vm653, %v605, 0
      %v706 = vsel %vm653, %v606, 0
      %v709 = vsel %vm653, %v607, 0
      %v712 = vsel %vm653, %v608, 0
      %v715 = vsel %vm653, %v609, 0
      %v718 = vsel %vm653, %v610, 0
      %v721 = vsel %vm653, %v611, 0
      %v724 = vsel %vm653, %v612, 0
      %v727 = vsel %vm653, %v613, 0
      %v730 = vsel %vm653, %v614, 0
      %v733 = vsel %vm653, %v615, 0
      %v736 = vsel %vm653, %v616, 0
      %v739 = vsel %vm653, %v617, 0
      %v742 = vsel %vm653, %v618, 0
      %v745 = vsel %vm653, %v619, 0
      %v748 = vsel %vm653, %v620, 0
      %750 = vmatprep.subr.bf16.mxu0 0
      %751 = vmatpush1.bf16.msra.mxu0 %v645
      %752 = vmatprep.subr.bf16.mxu0 0
      %753 = vmatpush1.bf16.msra.mxu0 %v646
      %754 = vmatprep.subr.bf16.mxu0 0
      %755 = vmatpush1.bf16.msra.mxu0 %v647
      %756 = vmatprep.subr.bf16.mxu0 0
      %757 = vmatpush1.bf16.msra.mxu0 %v648
      %758 = vmatprep.subr.bf16.mxu0 0
      %759 = vmatpush1.bf16.msra.mxu0 0
      %760 = vmatprep.subr.bf16.mxu0 0
      %761 = vmatpush1.bf16.msra.mxu0 0
      %762 = vmatprep.subr.bf16.mxu0 0
      %763 = vmatpush1.bf16.msra.mxu0 0
      %764 = vmatprep.subr.bf16.mxu0 0
      %765 = vmatpush1.bf16.msra.mxu0 0
      %766 = vmatprep.subr.bf16.mxu0 0
      %767 = vmatpush1.bf16.msra.mxu0 0
      %768 = vmatprep.subr.bf16.mxu0 0
      %769 = vmatpush1.bf16.msra.mxu0 0
      %770 = vmatprep.subr.bf16.mxu0 0
      %771 = vmatpush1.bf16.msra.mxu0 0
      %772 = vmatprep.subr.bf16.mxu0 0
      %773 = vmatpush1.bf16.msra.mxu0 0
      %774 = vmatprep.subr.bf16.mxu0 0
      %775 = vmatpush1.bf16.msra.mxu0 0
      %776 = vmatprep.subr.bf16.mxu0 0
      %777 = vmatpush1.bf16.msra.mxu0 0
      %778 = vmatprep.subr.bf16.mxu0 0
      %779 = vmatpush1.bf16.msra.mxu0 0
      %780 = vmatprep.subr.bf16.mxu0 0
      %781 = vmatpush1.bf16.msra.mxu0 0
      %782 = vmatprep.mubr.bf16.mxu0 0
      %783 = vmatmul.mubr.bf16.gmra.mrb[0].mxu0 %v655
      %v784 = vpop.f32.mrb[0].mxu0
      %v785 = vadd.f32 0.0, %v784
      %v786 = vpop.f32.mrb[0].mxu0
      %v787 = vpop.f32.mrb[0].mxu0
      %v788 = vadd.f32 0.0, %v787
      %v789 = vpop.f32.mrb[0].mxu0
      %790 = vmatprep.mubr.bf16.mxu0 0
      %791 = vmatmul.mubr.bf16.gmra.mrb[0].mxu0 %v658
      %v792 = vpop.f32.mrb[0].mxu0
      %v793 = vadd.f32 0.0, %v792
      %v794 = vpop.f32.mrb[0].mxu0
      %v795 = vpop.f32.mrb[0].mxu0
      %v796 = vadd.f32 0.0, %v795
      %v797 = vpop.f32.mrb[0].mxu0
      %798 = vmatprep.mubr.bf16.mxu0 0
      %799 = vmatmul.mubr.bf16.gmra.mrb[0].mxu0 %v661
      %v800 = vpop.f32.mrb[0].mxu0
      %v801 = vadd.f32 0.0, %v800
      %v802 = vpop.f32.mrb[0].mxu0
      %v803 = vpop.f32.mrb[0].mxu0
      %v804 = vadd.f32 0.0, %v803
      %v805 = vpop.f32.mrb[0].mxu0
      %806 = vmatprep.mubr.bf16.mxu0 0
      %807 = vmatmul.mubr.bf16.gmra.mrb[0].mxu0 %v664
      %v808 = vpop.f32.mrb[0].mxu0
      %v809 = vadd.f32 0.0, %v808
      %v810 = vpop.f32.mrb[0].mxu0
      %v811 = vpop.f32.mrb[0].mxu0
      %v812 = vadd.f32 0.0, %v811
      %v813 = vpop.f32.mrb[0].mxu0
      %814 = vmatprep.mubr.bf16.mxu0 0
      %815 = vmatmul.mubr.bf16.gmra.mrb[0].mxu0 %v667
      %v816 = vpop.f32.mrb[0].mxu0
      %v817 = vadd.f32 0.0, %v816
      %v818 = vpop.f32.mrb[0].mxu0
      %v819 = vpop.f32.mrb[0].mxu0
      %v820 = vadd.f32 0.0, %v819
      %v821 = vpop.f32.mrb[0].mxu0
      %822 = vmatprep.mubr.bf16.mxu0 0
      %823 = vmatmul.mubr.bf16.gmra.mrb[0].mxu0 %v670
      %v824 = vpop.f32.mrb[0].mxu0
      %v825 = vadd.f32 0.0, %v824
      %v826 = vpop.f32.mrb[0].mxu0
      %v827 = vpop.f32.mrb[0].mxu0
      %v828 = vadd.f32 0.0, %v827
      %v829 = vpop.f32.mrb[0].mxu0
      %830 = vmatprep.mubr.bf16.mxu0 0
      %831 = vmatmul.mubr.bf16.gmra.mrb[0].mxu0 %v673
      %v832 = vpop.f32.mrb[0].mxu0
      %v833 = vadd.f32 0.0, %v832
      %v834 = vpop.f32.mrb[0].mxu0
      %v835 = vpop.f32.mrb[0].mxu0
      %v836 = vadd.f32 0.0, %v835
      %v837 = vpop.f32.mrb[0].mxu0
      %838 = vmatprep.mubr.bf16.mxu0 0
      %839 = vmatmul.mubr.bf16.gmra.mrb[0].mxu0 %v676
      %v840 = vpop.f32.mrb[0].mxu0
      %v841 = vadd.f32 0.0, %v840
      %v842 = vpop.f32.mrb[0].mxu0
      %v843 = vpop.f32.mrb[0].mxu0
      %v844 = vadd.f32 0.0, %v843
      %v845 = vpop.f32.mrb[0].mxu0
      %846 = vmatprep.mubr.bf16.mxu0 0
      %847 = vmatmul.mubr.bf16.gmra.mrb[0].mxu0 %v679
      %v848 = vpop.f32.mrb[0].mxu0
      %v849 = vadd.f32 0.0, %v848
      %v850 = vpop.f32.mrb[0].mxu0
      %v851 = vpop.f32.mrb[0].mxu0
      %v852 = vadd.f32 0.0, %v851
      %v853 = vpop.f32.mrb[0].mxu0
      %854 = vmatprep.mubr.bf16.mxu0 0
      %855 = vmatmul.mubr.bf16.gmra.mrb[0].mxu0 %v682
      %v856 = vpop.f32.mrb[0].mxu0
      %v857 = vadd.f32 0.0, %v856
      %v858 = vpop.f32.mrb[0].mxu0
      %v859 = vpop.f32.mrb[0].mxu0
      %v860 = vadd.f32 0.0, %v859
      %v861 = vpop.f32.mrb[0].mxu0
      %862 = vmatprep.mubr.bf16.mxu0 0
      %863 = vmatmul.mubr.bf16.gmra.mrb[0].mxu0 %v685
      %v864 = vpop.f32.mrb[0].mxu0
      %v865 = vadd.f32 0.0, %v864
      %v866 = vpop.f32.mrb[0].mxu0
      %v867 = vpop.f32.mrb[0].mxu0
      %v868 = vadd.f32 0.0, %v867
      %v869 = vpop.f32.mrb[0].mxu0
      %870 = vmatprep.mubr.bf16.mxu0 0
      %871 = vmatmul.mubr.bf16.gmra.mrb[0].mxu0 %v688
      %v872 = vpop.f32.mrb[0].mxu0
      %v873 = vadd.f32 0.0, %v872
      %v874 = vpop.f32.mrb[0].mxu0
      %v875 = vpop.f32.mrb[0].mxu0
      %v876 = vadd.f32 0.0, %v875
      %v877 = vpop.f32.mrb[0].mxu0
      %878 = vmatprep.mubr.bf16.mxu0 0
      %879 = vmatmul.mubr.bf16.gmra.mrb[0].mxu0 %v691
      %v880 = vpop.f32.mrb[0].mxu0
      %v881 = vadd.f32 0.0, %v880
      %v882 = vpop.f32.mrb[0].mxu0
      %v883 = vpop.f32.mrb[0].mxu0
      %v884 = vadd.f32 0.0, %v883
      %v885 = vpop.f32.mrb[0].mxu0
      %886 = vmatprep.mubr.bf16.mxu0 0
      %887 = vmatmul.mubr.bf16.gmra.mrb[0].mxu0 %v694
      %v888 = vpop.f32.mrb[0].mxu0
      %v889 = vadd.f32 0.0, %v888
      %v890 = vpop.f32.mrb[0].mxu0
      %v891 = vpop.f32.mrb[0].mxu0
      %v892 = vadd.f32 0.0, %v891
      %v893 = vpop.f32.mrb[0].mxu0
      %894 = vmatprep.mubr.bf16.mxu0 0
      %895 = vmatmul.mubr.bf16.gmra.mrb[0].mxu0 %v697
      %v896 = vpop.f32.mrb[0].mxu0
      %v897 = vadd.f32 0.0, %v896
      %v898 = vpop.f32.mrb[0].mxu0
      %v899 = vpop.f32.mrb[0].mxu0
      %v900 = vadd.f32 0.0, %v899
      %v901 = vpop.f32.mrb[0].mxu0
      %902 = vmatprep.mubr.bf16.mxu0 0
      %903 = vmatmul.mubr.bf16.gmra.mrb[0].mxu0 %v700
      %v904 = vpop.f32.mrb[0].mxu0
      %v905 = vadd.f32 0.0, %v904
      %v906 = vpop.f32.mrb[0].mxu0
      %v907 = vpop.f32.mrb[0].mxu0
      %v908 = vadd.f32 0.0, %v907
      %v909 = vpop.f32.mrb[0].mxu0
      %910 = vmatprep.mubr.bf16.mxu0 0
      %911 = vmatmul.mubr.bf16.gmra.mrb[0].mxu0 %v703
      %v912 = vpop.f32.mrb[0].mxu0
      %v913 = vadd.f32 0.0, %v912
      %v914 = vpop.f32.mrb[0].mxu0
      %v915 = vpop.f32.mrb[0].mxu0
      %v916 = vadd.f32 0.0, %v915
      %v917 = vpop.f32.mrb[0].mxu0
      %918 = vmatprep.mubr.bf16.mxu0 0
      %919 = vmatmul.mubr.bf16.gmra.mrb[0].mxu0 %v706
      %v920 = vpop.f32.mrb[0].mxu0
      %v921 = vadd.f32 0.0, %v920
      %v922 = vpop.f32.mrb[0].mxu0
      %v923 = vpop.f32.mrb[0].mxu0
      %v924 = vadd.f32 0.0, %v923
      %v925 = vpop.f32.mrb[0].mxu0
      %926 = vmatprep.mubr.bf16.mxu0 0
      %927 = vmatmul.mubr.bf16.gmra.mrb[0].mxu0 %v709
      %v928 = vpop.f32.mrb[0].mxu0
      %v929 = vadd.f32 0.0, %v928
      %v930 = vpop.f32.mrb[0].mxu0
      %v931 = vpop.f32.mrb[0].mxu0
      %v932 = vadd.f32 0.0, %v931
      %v933 = vpop.f32.mrb[0].mxu0
      %934 = vmatprep.mubr.bf16.mxu0 0
      %935 = vmatmul.mubr.bf16.gmra.mrb[0].mxu0 %v712
      %v936 = vpop.f32.mrb[0].mxu0
      %v937 = vadd.f32 0.0, %v936
      %v938 = vpop.f32.mrb[0].mxu0
      %v939 = vpop.f32.mrb[0].mxu0
      %v940 = vadd.f32 0.0, %v939
      %v941 = vpop.f32.mrb[0].mxu0
      %942 = vmatprep.mubr.bf16.mxu0 0
      %943 = vmatmul.mubr.bf16.gmra.mrb[0].mxu0 %v715
      %v944 = vpop.f32.mrb[0].mxu0
      %v945 = vadd.f32 0.0, %v944
      %v946 = vpop.f32.mrb[0].mxu0
      %v947 = vpop.f32.mrb[0].mxu0
      %v948 = vadd.f32 0.0, %v947
      %v949 = vpop.f32.mrb[0].mxu0
      %950 = vmatprep.mubr.bf16.mxu0 0
      %951 = vmatmul.mubr.bf16.gmra.mrb[0].mxu0 %v718
      %v952 = vpop.f32.mrb[0].mxu0
      %v953 = vadd.f32 0.0, %v952
      %v954 = vpop.f32.mrb[0].mxu0
      %v955 = vpop.f32.mrb[0].mxu0
      %v956 = vadd.f32 0.0, %v955
      %v957 = vpop.f32.mrb[0].mxu0
      %958 = vmatprep.mubr.bf16.mxu0 0
      %959 = vmatmul.mubr.bf16.gmra.mrb[0].mxu0 %v721
      %v960 = vpop.f32.mrb[0].mxu0
      %v961 = vadd.f32 0.0, %v960
      %v962 = vpop.f32.mrb[0].mxu0
      %v963 = vpop.f32.mrb[0].mxu0
      %v964 = vadd.f32 0.0, %v963
      %v965 = vpop.f32.mrb[0].mxu0
      %966 = vmatprep.mubr.bf16.mxu0 0
      %967 = vmatmul.mubr.bf16.gmra.mrb[0].mxu0 %v724
      %v968 = vpop.f32.mrb[0].mxu0
      %v969 = vadd.f32 0.0, %v968
      %v970 = vpop.f32.mrb[0].mxu0
      %v971 = vpop.f32.mrb[0].mxu0
      %v972 = vadd.f32 0.0, %v971
      %v973 = vpop.f32.mrb[0].mxu0
      %974 = vmatprep.mubr.bf16.mxu0 0
      %975 = vmatmul.mubr.bf16.gmra.mrb[0].mxu0 %v727
      %v976 = vpop.f32.mrb[0].mxu0
      %v977 = vadd.f32 0.0, %v976
      %v978 = vpop.f32.mrb[0].mxu0
      %v979 = vpop.f32.mrb[0].mxu0
      %v980 = vadd.f32 0.0, %v979
      %v981 = vpop.f32.mrb[0].mxu0
      %982 = vmatprep.mubr.bf16.mxu0 0
      %983 = vmatmul.mubr.bf16.gmra.mrb[0].mxu0 %v730
      %v984 = vpop.f32.mrb[0].mxu0
      %v985 = vadd.f32 0.0, %v984
      %v986 = vpop.f32.mrb[0].mxu0
      %v987 = vpop.f32.mrb[0].mxu0
      %v988 = vadd.f32 0.0, %v987
      %v989 = vpop.f32.mrb[0].mxu0
      %990 = vmatprep.mubr.bf16.mxu0 0
      %991 = vmatmul.mubr.bf16.gmra.mrb[0].mxu0 %v733
      %v992 = vpop.f32.mrb[0].mxu0
      %v993 = vadd.f32 0.0, %v992
      %v994 = vpop.f32.mrb[0].mxu0
      %v995 = vpop.f32.mrb[0].mxu0
      %v996 = vadd.f32 0.0, %v995
      %v997 = vpop.f32.mrb[0].mxu0
      %998 = vmatprep.mubr.bf16.mxu0 0
      %999 = vmatmul.mubr.bf16.gmra.mrb[0].mxu0 %v736
      %v1000 = vpop.f32.mrb[0].mxu0
      %v1001 = vadd.f32 0.0, %v1000
      %v1002 = vpop.f32.mrb[0].mxu0
      %v1003 = vpop.f32.mrb[0].mxu0
      %v1004 = vadd.f32 0.0, %v1003
      %v1005 = vpop.f32.mrb[0].mxu0
      %1006 = vmatprep.mubr.bf16.mxu0 0
      %1007 = vmatmul.mubr.bf16.gmra.mrb[0].mxu0 %v739
      %v1008 = vpop.f32.mrb[0].mxu0
      %v1009 = vadd.f32 0.0, %v1008
      %v1010 = vpop.f32.mrb[0].mxu0
      %v1011 = vpop.f32.mrb[0].mxu0
      %v1012 = vadd.f32 0.0, %v1011
      %v1013 = vpop.f32.mrb[0].mxu0
      %1014 = vmatprep.mubr.bf16.mxu0 0
      %1015 = vmatmul.mubr.bf16.gmra.mrb[0].mxu0 %v742
      %v1016 = vpop.f32.mrb[0].mxu0
      %v1017 = vadd.f32 0.0, %v1016
      %v1018 = vpop.f32.mrb[0].mxu0
      %v1019 = vpop.f32.mrb[0].mxu0
      %v1020 = vadd.f32 0.0, %v1019
      %v1021 = vpop.f32.mrb[0].mxu0
      %1022 = vmatprep.mubr.bf16.mxu0 0
      %1023 = vmatmul.mubr.bf16.gmra.mrb[0].mxu0 %v745
      %v1024 = vpop.f32.mrb[0].mxu0
      %v1025 = vadd.f32 0.0, %v1024
      %v1026 = vpop.f32.mrb[0].mxu0
      %v1027 = vpop.f32.mrb[0].mxu0
      %v1028 = vadd.f32 0.0, %v1027
      %v1029 = vpop.f32.mrb[0].mxu0
      %1030 = vmatprep.mubr.bf16.mxu0 0
      %1031 = vmatmul.mubr.bf16.gmra.mrb[0].mxu0 %v748
      %v1032 = vpop.f32.mrb[0].mxu0
      %v1033 = vadd.f32 0.0, %v1032
      %v1034 = vpop.f32.mrb[0].mxu0
      %v1035 = vpop.f32.mrb[0].mxu0
      %v1036 = vadd.f32 0.0, %v1035
      %v1037 = vpop.f32.mrb[0].mxu0
      %1038 = vdwg.mxu0
      %v1039 = vpack.c.bf16 %v788, %v785
      %v1040 = vpack.c.bf16 %v796, %v793
      %v1041 = vpack.c.bf16 %v804, %v801
      %v1042 = vpack.c.bf16 %v812, %v809
      %v1043 = vpack.c.bf16 %v820, %v817
      %v1044 = vpack.c.bf16 %v828, %v825
      %v1045 = vpack.c.bf16 %v836, %v833
      %v1046 = vpack.c.bf16 %v844, %v841
      %v1047 = vpack.c.bf16 %v852, %v849
      %v1048 = vpack.c.bf16 %v860, %v857
      %v1049 = vpack.c.bf16 %v868, %v865
      %v1050 = vpack.c.bf16 %v876, %v873
      %v1051 = vpack.c.bf16 %v884, %v881
      %v1052 = vpack.c.bf16 %v892, %v889
      %v1053 = vpack.c.bf16 %v900, %v897
      %v1054 = vpack.c.bf16 %v908, %v905
      %v1055 = vpack.c.bf16 %v916, %v913
      %v1056 = vpack.c.bf16 %v924, %v921
      %v1057 = vpack.c.bf16 %v932, %v929
      %v1058 = vpack.c.bf16 %v940, %v937
      %v1059 = vpack.c.bf16 %v948, %v945
      %v1060 = vpack.c.bf16 %v956, %v953
      %v1061 = vpack.c.bf16 %v964, %v961
      %v1062 = vpack.c.bf16 %v972, %v969
      %v1063 = vpack.c.bf16 %v980, %v977
      %v1064 = vpack.c.bf16 %v988, %v985
      %v1065 = vpack.c.bf16 %v996, %v993
      %v1066 = vpack.c.bf16 %v1004, %v1001
      %v1067 = vpack.c.bf16 %v1012, %v1009
      %v1068 = vpack.c.bf16 %v1020, %v1017
      %v1069 = vpack.c.bf16 %v1028, %v1025
      %v1070 = vpack.c.bf16 %v1036, %v1033
      %v1103 = vunpack.c.l.b16 %v1039
      %v1104 = vunpack.c.h.b16 %v1039
      %v1105 = vunpack.c.l.b16 %v1040
      %v1106 = vunpack.c.h.b16 %v1040
      %v1107 = vunpack.c.l.b16 %v1041
      %v1108 = vunpack.c.h.b16 %v1041
      %v1109 = vunpack.c.l.b16 %v1042
      %v1110 = vunpack.c.h.b16 %v1042
      %v1111 = vunpack.c.l.b16 %v1043
      %v1112 = vunpack.c.h.b16 %v1043
      %v1113 = vunpack.c.l.b16 %v1044
      %v1114 = vunpack.c.h.b16 %v1044
      %v1115 = vunpack.c.l.b16 %v1045
      %v1116 = vunpack.c.h.b16 %v1045
      %v1117 = vunpack.c.l.b16 %v1046
      %v1118 = vunpack.c.h.b16 %v1046
      %v1119 = vunpack.c.l.b16 %v1047
      %v1120 = vunpack.c.h.b16 %v1047
      %v1121 = vunpack.c.l.b16 %v1048
      %v1122 = vunpack.c.h.b16 %v1048
      %v1123 = vunpack.c.l.b16 %v1049
      %v1124 = vunpack.c.h.b16 %v1049
      %v1125 = vunpack.c.l.b16 %v1050
      %v1126 = vunpack.c.h.b16 %v1050
      %v1127 = vunpack.c.l.b16 %v1051
      %v1128 = vunpack.c.h.b16 %v1051
      %v1129 = vunpack.c.l.b16 %v1052
      %v1130 = vunpack.c.h.b16 %v1052
      %v1131 = vunpack.c.l.b16 %v1053
      %v1132 = vunpack.c.h.b16 %v1053
      %v1133 = vunpack.c.l.b16 %v1054
      %v1134 = vunpack.c.h.b16 %v1054
      %v1135 = vunpack.c.l.b16 %v1055
      %v1136 = vunpack.c.h.b16 %v1055
      %v1137 = vunpack.c.l.b16 %v1056
      %v1138 = vunpack.c.h.b16 %v1056
      %v1139 = vunpack.c.l.b16 %v1057
      %v1140 = vunpack.c.h.b16 %v1057
      %v1141 = vunpack.c.l.b16 %v1058
      %v1142 = vunpack.c.h.b16 %v1058
      %v1143 = vunpack.c.l.b16 %v1059
      %v1144 = vunpack.c.h.b16 %v1059
      %v1145 = vunpack.c.l.b16 %v1060
      %v1146 = vunpack.c.h.b16 %v1060
      %v1147 = vunpack.c.l.b16 %v1061
      %v1148 = vunpack.c.h.b16 %v1061
      %v1149 = vunpack.c.l.b16 %v1062
      %v1150 = vunpack.c.h.b16 %v1062
      %v1151 = vunpack.c.l.b16 %v1063
      %v1152 = vunpack.c.h.b16 %v1063
      %v1153 = vunpack.c.l.b16 %v1064
      %v1154 = vunpack.c.h.b16 %v1064
      %v1155 = vunpack.c.l.b16 %v1065
      %v1156 = vunpack.c.h.b16 %v1065
      %v1157 = vunpack.c.l.b16 %v1066
      %v1158 = vunpack.c.h.b16 %v1066
      %v1159 = vunpack.c.l.b16 %v1067
      %v1160 = vunpack.c.h.b16 %v1067
      %v1161 = vunpack.c.l.b16 %v1068
      %v1162 = vunpack.c.h.b16 %v1068
      %v1163 = vunpack.c.l.b16 %v1069
      %v1164 = vunpack.c.h.b16 %v1069
      %v1165 = vunpack.c.l.b16 %v1070
      %v1166 = vunpack.c.h.b16 %v1070
      %v1167 = vpack.c.b16 %v1103, %v1103
      %v1168 = vpack.c.b16 %v1104, %v1104
      %v1169 = vpack.c.b16 %v1105, %v1105
      %v1170 = vpack.c.b16 %v1106, %v1106
      %v1171 = vpack.c.b16 %v1107, %v1107
      %v1172 = vpack.c.b16 %v1108, %v1108
      %v1173 = vpack.c.b16 %v1109, %v1109
      %v1174 = vpack.c.b16 %v1110, %v1110
      %v1175 = vpack.c.b16 %v1111, %v1111
      %v1176 = vpack.c.b16 %v1112, %v1112
      %v1177 = vpack.c.b16 %v1113, %v1113
      %v1178 = vpack.c.b16 %v1114, %v1114
      %v1179 = vpack.c.b16 %v1115, %v1115
      %v1180 = vpack.c.b16 %v1116, %v1116
      %v1181 = vpack.c.b16 %v1117, %v1117
      %v1182 = vpack.c.b16 %v1118, %v1118
      %v1183 = vpack.c.b16 %v1119, %v1119
      %v1184 = vpack.c.b16 %v1120, %v1120
      %v1185 = vpack.c.b16 %v1121, %v1121
      %v1186 = vpack.c.b16 %v1122, %v1122
      %v1187 = vpack.c.b16 %v1123, %v1123
      %v1188 = vpack.c.b16 %v1124, %v1124
      %v1189 = vpack.c.b16 %v1125, %v1125
      %v1190 = vpack.c.b16 %v1126, %v1126
      %v1191 = vpack.c.b16 %v1127, %v1127
      %v1192 = vpack.c.b16 %v1128, %v1128
      %v1193 = vpack.c.b16 %v1129, %v1129
      %v1194 = vpack.c.b16 %v1130, %v1130
      %v1195 = vpack.c.b16 %v1131, %v1131
      %v1196 = vpack.c.b16 %v1132, %v1132
      %v1197 = vpack.c.b16 %v1133, %v1133
      %v1198 = vpack.c.b16 %v1134, %v1134
      %v1199 = vpack.c.b16 %v1135, %v1135
      %v1200 = vpack.c.b16 %v1136, %v1136
      %v1201 = vpack.c.b16 %v1137, %v1137
      %v1202 = vpack.c.b16 %v1138, %v1138
      %v1203 = vpack.c.b16 %v1139, %v1139
      %v1204 = vpack.c.b16 %v1140, %v1140
      %v1205 = vpack.c.b16 %v1141, %v1141
      %v1206 = vpack.c.b16 %v1142, %v1142
      %v1207 = vpack.c.b16 %v1143, %v1143
      %v1208 = vpack.c.b16 %v1144, %v1144
      %v1209 = vpack.c.b16 %v1145, %v1145
      %v1210 = vpack.c.b16 %v1146, %v1146
      %v1211 = vpack.c.b16 %v1147, %v1147
      %v1212 = vpack.c.b16 %v1148, %v1148
      %v1213 = vpack.c.b16 %v1149, %v1149
      %v1214 = vpack.c.b16 %v1150, %v1150
      %v1215 = vpack.c.b16 %v1151, %v1151
      %v1216 = vpack.c.b16 %v1152, %v1152
      %v1217 = vpack.c.b16 %v1153, %v1153
      %v1218 = vpack.c.b16 %v1154, %v1154
      %v1219 = vpack.c.b16 %v1155, %v1155
      %v1220 = vpack.c.b16 %v1156, %v1156
      %v1221 = vpack.c.b16 %v1157, %v1157
      %v1222 = vpack.c.b16 %v1158, %v1158
      %v1223 = vpack.c.b16 %v1159, %v1159
      %v1224 = vpack.c.b16 %v1160, %v1160
      %v1225 = vpack.c.b16 %v1161, %v1161
      %v1226 = vpack.c.b16 %v1162, %v1162
      %v1227 = vpack.c.b16 %v1163, %v1163
      %v1228 = vpack.c.b16 %v1164, %v1164
      %v1229 = vpack.c.b16 %v1165, %v1165
      %v1230 = vpack.c.b16 %v1166, %v1166
      %1295 = vst [vmem:[%s246] sm:$0xf] %v1167
      %1296 = vst [vmem:[%s246 + $0x4] sm:$0xf] %v1168
      %1297 = vst [vmem:[%s246 + $0x8] sm:$0xf] %v1169
      %1298 = vst [vmem:[%s246 + $0xc] sm:$0xf] %v1170
      %1299 = vst [vmem:[%s246 + $0x10] sm:$0xf] %v1171
      %1300 = vst [vmem:[%s246 + $0x14] sm:$0xf] %v1172
      %1301 = vst [vmem:[%s246 + $0x18] sm:$0xf] %v1173
      %1302 = vst [vmem:[%s246 + $0x1c] sm:$0xf] %v1174
      %1303 = vst [vmem:[%s246 + $0x20] sm:$0xf] %v1175
      %1304 = vst [vmem:[%s246 + $0x24] sm:$0xf] %v1176
      %1305 = vst [vmem:[%s246 + $0x28] sm:$0xf] %v1177
      %1306 = vst [vmem:[%s246 + $0x2c] sm:$0xf] %v1178
      %1307 = vst [vmem:[%s246 + $0x30] sm:$0xf] %v1179
      %1308 = vst [vmem:[%s246 + $0x34] sm:$0xf] %v1180
      %1309 = vst [vmem:[%s246 + $0x38] sm:$0xf] %v1181
      %1310 = vst [vmem:[%s246 + $0x3c] sm:$0xf] %v1182
      %1311 = vst [vmem:[%s246 + $0x40] sm:$0xf] %v1183
      %1312 = vst [vmem:[%s246 + $0x44] sm:$0xf] %v1184
      %1313 = vst [vmem:[%s246 + $0x48] sm:$0xf] %v1185
      %1314 = vst [vmem:[%s246 + $0x4c] sm:$0xf] %v1186
      %1315 = vst [vmem:[%s246 + $0x50] sm:$0xf] %v1187
      %1316 = vst [vmem:[%s246 + $0x54] sm:$0xf] %v1188
      %1317 = vst [vmem:[%s246 + $0x58] sm:$0xf] %v1189
      %1318 = vst [vmem:[%s246 + $0x5c] sm:$0xf] %v1190
      %1319 = vst [vmem:[%s246 + $0x60] sm:$0xf] %v1191
      %1320 = vst [vmem:[%s246 + $0x64] sm:$0xf] %v1192
      %1321 = vst [vmem:[%s246 + $0x68] sm:$0xf] %v1193
      %1322 = vst [vmem:[%s246 + $0x6c] sm:$0xf] %v1194
      %1323 = vst [vmem:[%s246 + $0x70] sm:$0xf] %v1195
      %1324 = vst [vmem:[%s246 + $0x74] sm:$0xf] %v1196
      %1325 = vst [vmem:[%s246 + $0x78] sm:$0xf] %v1197
      %1326 = vst [vmem:[%s246 + $0x7c] sm:$0xf] %v1198
      %1327 = vst [vmem:[%s246 + $0x80] sm:$0xf] %v1199
      %1328 = vst [vmem:[%s246 + $0x84] sm:$0xf] %v1200
      %1329 = vst [vmem:[%s246 + $0x88] sm:$0xf] %v1201
      %1330 = vst [vmem:[%s246 + $0x8c] sm:$0xf] %v1202
      %1331 = vst [vmem:[%s246 + $0x90] sm:$0xf] %v1203
      %1332 = vst [vmem:[%s246 + $0x94] sm:$0xf] %v1204
      %1333 = vst [vmem:[%s246 + $0x98] sm:$0xf] %v1205
      %1334 = vst [vmem:[%s246 + $0x9c] sm:$0xf] %v1206
      %1335 = vst [vmem:[%s246 + $0xa0] sm:$0xf] %v1207
      %1336 = vst [vmem:[%s246 + $0xa4] sm:$0xf] %v1208
      %1337 = vst [vmem:[%s246 + $0xa8] sm:$0xf] %v1209
      %1338 = vst [vmem:[%s246 + $0xac] sm:$0xf] %v1210
      %1339 = vst [vmem:[%s246 + $0xb0] sm:$0xf] %v1211
      %1340 = vst [vmem:[%s246 + $0xb4] sm:$0xf] %v1212
      %1341 = vst [vmem:[%s246 + $0xb8] sm:$0xf] %v1213
      %1342 = vst [vmem:[%s246 + $0xbc] sm:$0xf] %v1214
      %1343 = vst [vmem:[%s246 + $0xc0] sm:$0xf] %v1215
      %1344 = vst [vmem:[%s246 + $0xc4] sm:$0xf] %v1216
      %1345 = vst [vmem:[%s246 + $0xc8] sm:$0xf] %v1217
      %1346 = vst [vmem:[%s246 + $0xcc] sm:$0xf] %v1218
      %1347 = vst [vmem:[%s246 + $0xd0] sm:$0xf] %v1219
      %1348 = vst [vmem:[%s246 + $0xd4] sm:$0xf] %v1220
      %1349 = vst [vmem:[%s246 + $0xd8] sm:$0xf] %v1221
      %1350 = vst [vmem:[%s246 + $0xdc] sm:$0xf] %v1222
      %1351 = vst [vmem:[%s246 + $0xe0] sm:$0xf] %v1223
      %1352 = vst [vmem:[%s246 + $0xe4] sm:$0xf] %v1224
      %1353 = vst [vmem:[%s246 + $0xe8] sm:$0xf] %v1225
      %1354 = vst [vmem:[%s246 + $0xec] sm:$0xf] %v1226
      %1355 = vst [vmem:[%s246 + $0xf0] sm:$0xf] %v1227
      %1356 = vst [vmem:[%s246 + $0xf4] sm:$0xf] %v1228
      %1357 = vst [vmem:[%s246 + $0xf8] sm:$0xf] %v1229
      %1358 = vst [vmem:[%s246 + $0xfc] sm:$0xf] %v1230
      %v1359 = vadd.f32 %v785, %v788
      %v1360 = vadd.f32 %v1359, %v793
      %v1361 = vadd.f32 %v1360, %v796
      %v1362 = vadd.f32 %v1361, %v801
      %v1363 = vadd.f32 %v1362, %v804
      %v1364 = vadd.f32 %v1363, %v809
      %v1365 = vadd.f32 %v1364, %v812
      %v1366 = vadd.f32 %v1365, %v817
      %v1367 = vadd.f32 %v1366, %v820
      %v1368 = vadd.f32 %v1367, %v825
      %v1369 = vadd.f32 %v1368, %v828
      %v1370 = vadd.f32 %v1369, %v833
      %v1371 = vadd.f32 %v1370, %v836
      %v1372 = vadd.f32 %v1371, %v841
      %v1373 = vadd.f32 %v1372, %v844
      %v1374 = vadd.f32 %v1373, %v849
      %v1375 = vadd.f32 %v1374, %v852
      %v1376 = vadd.f32 %v1375, %v857
      %v1377 = vadd.f32 %v1376, %v860
      %v1378 = vadd.f32 %v1377, %v865
      %v1379 = vadd.f32 %v1378, %v868
      %v1380 = vadd.f32 %v1379, %v873
      %v1381 = vadd.f32 %v1380, %v876
      %v1382 = vadd.f32 %v1381, %v881
      %v1383 = vadd.f32 %v1382, %v884
      %v1384 = vadd.f32 %v1383, %v889
      %v1385 = vadd.f32 %v1384, %v892
      %v1386 = vadd.f32 %v1385, %v897
      %v1387 = vadd.f32 %v1386, %v900
      %v1388 = vadd.f32 %v1387, %v905
      %v1389 = vadd.f32 %v1388, %v908
      %v1390 = vadd.f32 %v1389, %v913
      %v1391 = vadd.f32 %v1390, %v916
      %v1392 = vadd.f32 %v1391, %v921
      %v1393 = vadd.f32 %v1392, %v924
      %v1394 = vadd.f32 %v1393, %v929
      %v1395 = vadd.f32 %v1394, %v932
      %v1396 = vadd.f32 %v1395, %v937
      %v1397 = vadd.f32 %v1396, %v940
      %v1398 = vadd.f32 %v1397, %v945
      %v1399 = vadd.f32 %v1398, %v948
      %v1400 = vadd.f32 %v1399, %v953
      %v1401 = vadd.f32 %v1400, %v956
      %v1402 = vadd.f32 %v1401, %v961
      %v1403 = vadd.f32 %v1402, %v964
      %v1404 = vadd.f32 %v1403, %v969
      %v1405 = vadd.f32 %v1404, %v972
      %v1406 = vadd.f32 %v1405, %v977
      %v1407 = vadd.f32 %v1406, %v980
      %v1408 = vadd.f32 %v1407, %v985
      %v1409 = vadd.f32 %v1408, %v988
      %v1410 = vadd.f32 %v1409, %v993
      %v1411 = vadd.f32 %v1410, %v996
      %v1412 = vadd.f32 %v1411, %v1001
      %v1413 = vadd.f32 %v1412, %v1004
      %v1414 = vadd.f32 %v1413, %v1009
      %v1415 = vadd.f32 %v1414, %v1012
      %v1416 = vadd.f32 %v1415, %v1017
      %v1417 = vadd.f32 %v1416, %v1020
      %v1418 = vadd.f32 %v1417, %v1025
      %v1419 = vadd.f32 %v1418, %v1028
      %v1420 = vadd.f32 %v1419, %v1033
      %v1421 = vadd.f32 %v1420, %v1036
      %v1422 = vrot.slane %v1421, 4
      %v1423 = vadd.f32 %v1421, %v1422
      %v1424 = vrot.slane %v1423, 2
      %v1425 = vadd.f32 %v1423, %v1424
      %v1426 = vrot.slane %v1425, 1
      %v1427 = vadd.f32 %v1425, %v1426
      %1428 = vst [vmem:[%s255] sm:$0x1] %v1427
      %v1429 = vmul.f32 %v785, %v785
      %v1430 = vmul.f32 %v788, %v788
      %v1431 = vmul.f32 %v793, %v793
      %v1432 = vmul.f32 %v796, %v796
      %v1433 = vmul.f32 %v801, %v801
      %v1434 = vmul.f32 %v804, %v804
      %v1435 = vmul.f32 %v809, %v809
      %v1436 = vmul.f32 %v812, %v812
      %v1437 = vmul.f32 %v817, %v817
      %v1438 = vmul.f32 %v820, %v820
      %v1439 = vmul.f32 %v825, %v825
      %v1440 = vmul.f32 %v828, %v828
      %v1441 = vmul.f32 %v833, %v833
      %v1442 = vmul.f32 %v836, %v836
      %v1443 = vmul.f32 %v841, %v841
      %v1444 = vmul.f32 %v844, %v844
      %v1445 = vmul.f32 %v849, %v849
      %v1446 = vmul.f32 %v852, %v852
      %v1447 = vmul.f32 %v857, %v857
      %v1448 = vmul.f32 %v860, %v860
      %v1449 = vmul.f32 %v865, %v865
      %v1450 = vmul.f32 %v868, %v868
      %v1451 = vmul.f32 %v873, %v873
      %v1452 = vmul.f32 %v876, %v876
      %v1453 = vmul.f32 %v881, %v881
      %v1454 = vmul.f32 %v884, %v884
      %v1455 = vmul.f32 %v889, %v889
      %v1456 = vmul.f32 %v892, %v892
      %v1457 = vmul.f32 %v897, %v897
      %v1458 = vmul.f32 %v900, %v900
      %v1459 = vmul.f32 %v905, %v905
      %v1460 = vmul.f32 %v908, %v908
      %v1461 = vmul.f32 %v913, %v913
      %v1462 = vmul.f32 %v916, %v916
      %v1463 = vmul.f32 %v921, %v921
      %v1464 = vmul.f32 %v924, %v924
      %v1465 = vmul.f32 %v929, %v929
      %v1466 = vmul.f32 %v932, %v932
      %v1467 = vmul.f32 %v937, %v937
      %v1468 = vmul.f32 %v940, %v940
      %v1469 = vmul.f32 %v945, %v945
      %v1470 = vmul.f32 %v948, %v948
      %v1471 = vmul.f32 %v953, %v953
      %v1472 = vmul.f32 %v956, %v956
      %v1473 = vmul.f32 %v961, %v961
      %v1474 = vmul.f32 %v964, %v964
      %v1475 = vmul.f32 %v969, %v969
      %v1476 = vmul.f32 %v972, %v972
      %v1477 = vmul.f32 %v977, %v977
      %v1478 = vmul.f32 %v980, %v980
      %v1479 = vmul.f32 %v985, %v985
      %v1480 = vmul.f32 %v988, %v988
      %v1481 = vmul.f32 %v993, %v993
      %v1482 = vmul.f32 %v996, %v996
      %v1483 = vmul.f32 %v1001, %v1001
      %v1484 = vmul.f32 %v1004, %v1004
      %v1485 = vmul.f32 %v1009, %v1009
      %v1486 = vmul.f32 %v1012, %v1012
      %v1487 = vmul.f32 %v1017, %v1017
      %v1488 = vmul.f32 %v1020, %v1020
      %v1489 = vmul.f32 %v1025, %v1025
      %v1490 = vmul.f32 %v1028, %v1028
      %v1491 = vmul.f32 %v1033, %v1033
      %v1492 = vmul.f32 %v1036, %v1036
      %v1493 = vadd.f32 %v1429, %v1430
      %v1494 = vadd.f32 %v1493, %v1431
      %v1495 = vadd.f32 %v1494, %v1432
      %v1496 = vadd.f32 %v1495, %v1433
      %v1497 = vadd.f32 %v1496, %v1434
      %v1498 = vadd.f32 %v1497, %v1435
      %v1499 = vadd.f32 %v1498, %v1436
      %v1500 = vadd.f32 %v1499, %v1437
      %v1501 = vadd.f32 %v1500, %v1438
      %v1502 = vadd.f32 %v1501, %v1439
      %v1503 = vadd.f32 %v1502, %v1440
      %v1504 = vadd.f32 %v1503, %v1441
      %v1505 = vadd.f32 %v1504, %v1442
      %v1506 = vadd.f32 %v1505, %v1443
      %v1507 = vadd.f32 %v1506, %v1444
      %v1508 = vadd.f32 %v1507, %v1445
      %v1509 = vadd.f32 %v1508, %v1446
      %v1510 = vadd.f32 %v1509, %v1447
      %v1511 = vadd.f32 %v1510, %v1448
      %v1512 = vadd.f32 %v1511, %v1449
      %v1513 = vadd.f32 %v1512, %v1450
      %v1514 = vadd.f32 %v1513, %v1451
      %v1515 = vadd.f32 %v1514, %v1452
      %v1516 = vadd.f32 %v1515, %v1453
      %v1517 = vadd.f32 %v1516, %v1454
      %v1518 = vadd.f32 %v1517, %v1455
      %v1519 = vadd.f32 %v1518, %v1456
      %v1520 = vadd.f32 %v1519, %v1457
      %v1521 = vadd.f32 %v1520, %v1458
      %v1522 = vadd.f32 %v1521, %v1459
      %v1523 = vadd.f32 %v1522, %v1460
      %v1524 = vadd.f32 %v1523, %v1461
      %v1525 = vadd.f32 %v1524, %v1462
      %v1526 = vadd.f32 %v1525, %v1463
      %v1527 = vadd.f32 %v1526, %v1464
      %v1528 = vadd.f32 %v1527, %v1465
      %v1529 = vadd.f32 %v1528, %v1466
      %v1530 = vadd.f32 %v1529, %v1467
      %v1531 = vadd.f32 %v1530, %v1468
      %v1532 = vadd.f32 %v1531, %v1469
      %v1533 = vadd.f32 %v1532, %v1470
      %v1534 = vadd.f32 %v1533, %v1471
      %v1535 = vadd.f32 %v1534, %v1472
      %v1536 = vadd.f32 %v1535, %v1473
      %v1537 = vadd.f32 %v1536, %v1474
      %v1538 = vadd.f32 %v1537, %v1475
      %v1539 = vadd.f32 %v1538, %v1476
      %v1540 = vadd.f32 %v1539, %v1477
      %v1541 = vadd.f32 %v1540, %v1478
      %v1542 = vadd.f32 %v1541, %v1479
      %v1543 = vadd.f32 %v1542, %v1480
      %v1544 = vadd.f32 %v1543, %v1481
      %v1545 = vadd.f32 %v1544, %v1482
      %v1546 = vadd.f32 %v1545, %v1483
      %v1547 = vadd.f32 %v1546, %v1484
      %v1548 = vadd.f32 %v1547, %v1485
      %v1549 = vadd.f32 %v1548, %v1486
      %v1550 = vadd.f32 %v1549, %v1487
      %v1551 = vadd.f32 %v1550, %v1488
      %v1552 = vadd.f32 %v1551, %v1489
      %v1553 = vadd.f32 %v1552, %v1490
      %v1554 = vadd.f32 %v1553, %v1491
      %v1555 = vadd.f32 %v1554, %v1492
      %v1556 = vrot.slane %v1555, 4
      %v1557 = vadd.f32 %v1555, %v1556
      %v1558 = vrot.slane %v1557, 2
      %v1559 = vadd.f32 %v1557, %v1558
      %v1560 = vrot.slane %v1559, 1
      %v1561 = vadd.f32 %v1559, %v1560
      %1562 = vst [vmem:[%s255 + $0x1] sm:$0x1] %v1561
      %s1563 = smul.u32 %s20, 2
      %s1564 = sadd.s32 %s1563, %s21
      %s1565 = smul.u32 64, %s1564
      %p1566 = scmp.lt.s32.totalorder %s1565, 511
      %s1567 = scalar_select %p1566, %s1565, 511
      %s1568 = smul.addr %s1567, 4
      %s1569 = scalar_lea.vmem %s3, %s1568
      %s1570 = smul.u32 %s20, 2
      %s1571 = sadd.s32 %s1570, %s21
      %p1572 = scmp.lt.s32.totalorder %s1571, 7
      %s1573 = scalar_select %p1572, %s1571, 7
      %s1574 = smul.addr %s1573, 2
      %s1575 = scalar_lea.vmem %s4, %s1574
      // Predicated region
      $region33: #{pointnet_encoder_forward.7} parent=31 // pred_check
        %p1576 = pneg %p122
      $region34: #{pointnet_encoder_forward.7} parent=31 // pred_check_branch
        %1578 = sbr.rel (%p1576) target = $region36
      $region35: #{pointnet_encoder_forward.7} parent=31 // pred_region
        %s1579 = smul.u32 %s20, 2
        %s1580 = sadd.s32 %s1579, %s21
        %s1581 = smul.u32 64, %s1580
      $region36: #{pointnet_encoder_forward.7} parent=31 // pred_fallthru
        _
      // Predicated region
      $region37: #{pointnet_encoder_forward.7} parent=31 // pred_check
        %p1582 = pneg %p152
      $region38: #{pointnet_encoder_forward.7} parent=31 // pred_check_branch
        %1584 = sbr.rel (%p1582) target = $region40
      $region39: #{pointnet_encoder_forward.7} parent=31 // pred_region
        %s1585 = smul.u32 %s20, 2
        %s1586 = sadd.s32 %s1585, %s21
      $region40: #{pointnet_encoder_forward.7} parent=31 // pred_fallthru
        _
    $region32: #{pointnet_encoder_forward.7} parent=5 // pred_fallthru
      _
    %p1587 = scmp.le.s32.totalorder 2, %s11
    // Predicated region
    $region41: #{pointnet_encoder_forward.7} parent=5 // pred_check
      %p1588 = pneg %p1587
    $region42: #{pointnet_encoder_forward.7} parent=5 // pred_check_branch
      %1590 = sbr.rel (%p1588) target = $region44
    $region43: #{pointnet_encoder_forward.7} parent=5 // pred_region
      %s1591 = ssub.s32 %s11, 2
      // Predicated region
      $region45: #{pointnet_encoder_forward.7} parent=43 // pred_check
        %p1592 = pneg %p128
      $region46: #{pointnet_encoder_forward.7} parent=43 // pred_check_branch
        %1594 = sbr.rel (%p1592) target = $region48
      $region47: #{pointnet_encoder_forward.7} parent=43 // pred_region
        %s1595 = smul.u32 %s22, 2
        %s1596 = sadd.s32 %s1595, %s23
        %s1597 = smul.u32 64, %s1596
        %p1598 = scmp.lt.s32.totalorder %s1597, 511
        %s1599 = scalar_select %p1598, %s1597, 511
        %s1600 = smul.addr %s1599, 4
        %s1601 = scalar_lea.vmem %s3, %s1600
      $region48: #{pointnet_encoder_forward.7} parent=43 // pred_fallthru
        _
      // Predicated region
      $region49: #{pointnet_encoder_forward.7} parent=43 // pred_check
        %p1602 = pneg %p158
      $region50: #{pointnet_encoder_forward.7} parent=43 // pred_check_branch
        %1604 = sbr.rel (%p1602) target = $region52
      $region51: #{pointnet_encoder_forward.7} parent=43 // pred_region
        %s1605 = smul.u32 %s22, 2
        %s1606 = sadd.s32 %s1605, %s23
        %p1607 = scmp.lt.s32.totalorder %s1606, 7
        %s1608 = scalar_select %p1607, %s1606, 7
        %s1609 = smul.addr %s1608, 2
        %s1610 = scalar_lea.vmem %s4, %s1609
      $region52: #{pointnet_encoder_forward.7} parent=43 // pred_fallthru
        _
    $region44: #{pointnet_encoder_forward.7} parent=5 // pred_fallthru
      _
  $region6: #{pointnet_encoder_forward.7} parent=0 // loop_footer
    %s15 = sadd.s32 1, %s11
  $region7: #{pointnet_encoder_forward.7} parent=0 // loop_footer_branch
    %10 = sbr.rel target = $region3
  $region8: #{pointnet_encoder_forward.7} parent=0 // loop_exit
    _

// kernel: pointnet_encoder_forward.9
$region0: #{pointnet_encoder_forward.9}
  #allocation0 [shape = 'u32[]', space=smem, size = 0x4, offset = 0x4, fixed_abs, tag = 'smem constant byte address 0x4 - core index']
  #allocation1 [shape = 'u32[144,128]{1,0:T(1,128)}', space=vmem, size = 0x12000, scoped, tag = 'internal scratch']
  %s0 = inlined_call_operand.vmem [shape: bf16[4096,8], index: 0, kind: input, shape index: {}]
  %s1 = inlined_call_operand.vmem [shape: bf16[4,8,64], index: 1, kind: input, shape index: {}]
  %s2 = inlined_call_operand.vmem [shape: bf16[4096,64], index: 2, kind: output, shape index: {0}]
  %s3 = inlined_call_operand.vmem [shape: f32[8,2,64], index: 3, kind: output, shape index: {1}]
  %4 = xla_tuple %s2, %s3
  %s5 = sld [smem:[#allocation0]]
  $region49: #{pointnet_encoder_forward.9} parent=0
    _
  %s7 = ssub.s32 1, %s5
  %s8 = scalar_select 0, %s7, %s5
  loop: start=0, step=1, limit=10
  $region2: #{pointnet_encoder_forward.9} parent=0 // loop_pre_header
    _
  $region3: #{pointnet_encoder_forward.9} parent=0 // loop_header
    %s10 = sphi 0, %s14
    %p11 = scmp.ge.s32.totalorder %s10, 10
    %s17 = sphi 0, %s29
    %s18 = sphi 0, %s25
    %s19 = sphi 0, %s17
    %s20 = sphi 0, %s18
    %s21 = sphi 0, %s19
    %s22 = sphi 0, %s20
    %s36 = sphi 0, %s38
    %s39 = sphi 0, %s36
    %s40 = sphi 0, %s39
    %s56 = sphi 0, %s40
    %s62 = sphi 0, %s64
    %s65 = sphi 0, %s62
    %s66 = sphi 0, %s65
    %s82 = sphi 0, %s66
    %s92 = sphi 0, %s94
    %s95 = sphi 0, %s92
    %s96 = sphi 0, %s95
    %s112 = sphi 0, %s96
    %s122 = sphi 0, %s124
    %s125 = sphi 0, %s122
    %s126 = sphi 0, %s125
    %s142 = sphi 0, %s126
  $region4: #{pointnet_encoder_forward.9} parent=0 // loop_header_branch
    %13 = sbr.rel (%p11) target = $region8
  $region5: #{pointnet_encoder_forward.9} parent=0 // loop_body
    %s15 = ssub.s32 %s10, 1
    %s16 = ssub.s32 %s10, 2
    %s23 = sadd.s32 1, %s18
    %p24 = scmp.ge.s32.totalorder %s23, 2
    %s25 = scalar_select %p24, 0, %s23
    %s26 = sadd.s32 1, %s17
    %s27 = scalar_select %p24, %s26, %s17
    %p28 = scmp.ge.s32.totalorder %s27, 4
    %s29 = scalar_select %p28, 0, %s27
    %s30 = smul.u32 %s17, 2
    %s31 = sadd.s32 %s30, %s18
    %s32 = smul.u32 %s29, 2
    %s33 = sadd.s32 %s32, %s25
    %s34 = ssub.s32 %s31, %s33
    %p35 = scmp.eq.s32.totalorder %s34, 0
    %s37 = sadd.s32 %s36, 1
    %s38 = scalar_select %p35, %s36, %s37
    %p41 = pneg %p35
    %p42 = scmp.eq.s32.totalorder %s10, 7
    %p43 = por %p41, %p42
    %p44 = scmp.ne.s32.totalorder %s36, %s39
    %p45 = scmp.eq.s32.totalorder %s10, 0
    %p46 = por %p44, %p45
    %p47 = scmp.ne.s32.totalorder %s36, %s39
    %p48 = scmp.eq.s32.totalorder %s15, 7
    %p49 = por %p47, %p48
    %p50 = scmp.ne.s32.totalorder %s39, %s40
    %p51 = scmp.eq.s32.totalorder %s15, 0
    %p52 = por %p50, %p51
    %p53 = scmp.ne.s32.totalorder %s39, %s40
    %p54 = scmp.eq.s32.totalorder %s16, 7
    %p55 = por %p53, %p54
    %p57 = scmp.ne.s32.totalorder %s40, %s56
    %p58 = scmp.eq.s32.totalorder %s16, 0
    %p59 = por %p57, %p58
    %s60 = ssub.s32 %s17, %s29
    %p61 = scmp.eq.s32.totalorder %s60, 0
    %s63 = sadd.s32 %s62, 1
    %s64 = scalar_select %p61, %s62, %s63
    %p67 = pneg %p61
    %p68 = scmp.eq.s32.totalorder %s10, 7
    %p69 = por %p67, %p68
    %p70 = scmp.ne.s32.totalorder %s62, %s65
    %p71 = scmp.eq.s32.totalorder %s10, 0
    %p72 = por %p70, %p71
    %p73 = scmp.ne.s32.totalorder %s62, %s65
    %p74 = scmp.eq.s32.totalorder %s15, 7
    %p75 = por %p73, %p74
    %p76 = scmp.ne.s32.totalorder %s65, %s66
    %p77 = scmp.eq.s32.totalorder %s15, 0
    %p78 = por %p76, %p77
    %p79 = scmp.ne.s32.totalorder %s65, %s66
    %p80 = scmp.eq.s32.totalorder %s16, 7
    %p81 = por %p79, %p80
    %p83 = scmp.ne.s32.totalorder %s66, %s82
    %p84 = scmp.eq.s32.totalorder %s16, 0
    %p85 = por %p83, %p84
    %s86 = smul.u32 %s17, 2
    %s87 = sadd.s32 %s86, %s18
    %s88 = smul.u32 %s29, 2
    %s89 = sadd.s32 %s88, %s25
    %s90 = ssub.s32 %s87, %s89
    %p91 = scmp.eq.s32.totalorder %s90, 0
    %s93 = sadd.s32 %s92, 1
    %s94 = scalar_select %p91, %s92, %s93
    %p97 = pneg %p91
    %p98 = scmp.eq.s32.totalorder %s10, 7
    %p99 = por %p97, %p98
    %p100 = scmp.ne.s32.totalorder %s92, %s95
    %p101 = scmp.eq.s32.totalorder %s10, 0
    %p102 = por %p100, %p101
    %p103 = scmp.ne.s32.totalorder %s92, %s95
    %p104 = scmp.eq.s32.totalorder %s15, 7
    %p105 = por %p103, %p104
    %p106 = scmp.ne.s32.totalorder %s95, %s96
    %p107 = scmp.eq.s32.totalorder %s15, 0
    %p108 = por %p106, %p107
    %p109 = scmp.ne.s32.totalorder %s95, %s96
    %p110 = scmp.eq.s32.totalorder %s16, 7
    %p111 = por %p109, %p110
    %p113 = scmp.ne.s32.totalorder %s96, %s112
    %p114 = scmp.eq.s32.totalorder %s16, 0
    %p115 = por %p113, %p114
    %s116 = smul.u32 %s17, 2
    %s117 = sadd.s32 %s116, %s18
    %s118 = smul.u32 %s29, 2
    %s119 = sadd.s32 %s118, %s25
    %s120 = ssub.s32 %s117, %s119
    %p121 = scmp.eq.s32.totalorder %s120, 0
    %s123 = sadd.s32 %s122, 1
    %s124 = scalar_select %p121, %s122, %s123
    %p127 = pneg %p121
    %p128 = scmp.eq.s32.totalorder %s10, 7
    %p129 = por %p127, %p128
    %p130 = scmp.ne.s32.totalorder %s122, %s125
    %p131 = scmp.eq.s32.totalorder %s10, 0
    %p132 = por %p130, %p131
    %p133 = scmp.ne.s32.totalorder %s122, %s125
    %p134 = scmp.eq.s32.totalorder %s15, 7
    %p135 = por %p133, %p134
    %p136 = scmp.ne.s32.totalorder %s125, %s126
    %p137 = scmp.eq.s32.totalorder %s15, 0
    %p138 = por %p136, %p137
    %p139 = scmp.ne.s32.totalorder %s125, %s126
    %p140 = scmp.eq.s32.totalorder %s16, 7
    %p141 = por %p139, %p140
    %p143 = scmp.ne.s32.totalorder %s126, %s142
    %p144 = scmp.eq.s32.totalorder %s16, 0
    %p145 = por %p143, %p144
    %p146 = scmp.le.s32.totalorder 1, %s10
    %p147 = scmp.lt.s32.totalorder %s10, 9
    %p148 = pnand %p146, %p147
    %p149 = pneg %p148
    // Predicated region
    $region9: #{pointnet_encoder_forward.9} parent=5 // pred_check
      _
    $region10: #{pointnet_encoder_forward.9} parent=5 // pred_check_branch
      %151 = sbr.rel (%p148) target = $region12
    $region11: #{pointnet_encoder_forward.9} parent=5 // pred_region
      %s152 = ssub.s32 %s10, 1
    $region12: #{pointnet_encoder_forward.9} parent=5 // pred_fallthru
      _
    %p153 = scmp.lt.s32.totalorder %s10, 8
    // Predicated region
    $region13: #{pointnet_encoder_forward.9} parent=5 // pred_check
      %p154 = pneg %p153
    $region14: #{pointnet_encoder_forward.9} parent=5 // pred_check_branch
      %156 = sbr.rel (%p154) target = $region16
    $region15: #{pointnet_encoder_forward.9} parent=5 // pred_region
      // Predicated region
      $region17: #{pointnet_encoder_forward.9} parent=15 // pred_check
        %p157 = pneg %p46
      $region18: #{pointnet_encoder_forward.9} parent=15 // pred_check_branch
        %159 = sbr.rel (%p157) target = $region20
      $region19: #{pointnet_encoder_forward.9} parent=15 // pred_region
        %s160 = smul.u32 %s17, 2
        %s161 = sadd.s32 %s160, %s18
        %s162 = smul.u32 64, %s161
        %p163 = scmp.lt.s32.totalorder %s162, 511
        %s164 = scalar_select %p163, %s162, 511
        %s165 = smul.addr %s164, 4
        %s166 = scalar_lea.vmem %s0, %s165
        %s167 = smul.u32 %s17, 2
        %s168 = sadd.s32 %s167, %s18
        %s169 = smul.u32 64, %s168
      $region20: #{pointnet_encoder_forward.9} parent=15 // pred_fallthru
        _
      // Predicated region
      $region21: #{pointnet_encoder_forward.9} parent=15 // pred_check
        %p170 = pneg %p72
      $region22: #{pointnet_encoder_forward.9} parent=15 // pred_check_branch
        %172 = sbr.rel (%p170) target = $region24
      $region23: #{pointnet_encoder_forward.9} parent=15 // pred_region
        %p173 = scmp.lt.s32.totalorder %s17, 3
        %s174 = scalar_select %p173, %s17, 3
        %s175 = smul.addr %s174, 4
        %s176 = scalar_lea.vmem %s1, %s175
      $region24: #{pointnet_encoder_forward.9} parent=15 // pred_fallthru
        _
    $region16: #{pointnet_encoder_forward.9} parent=5 // pred_fallthru
      _
    %p177 = scmp.le.s32.totalorder 1, %s10
    %p178 = scmp.lt.s32.totalorder %s10, 9
    %p179 = pnand %p177, %p178
    %p180 = pneg %p179
    // Predicated region
    $region25: #{pointnet_encoder_forward.9} parent=5 // pred_check
      _
    $region26: #{pointnet_encoder_forward.9} parent=5 // pred_check_branch
      %182 = sbr.rel (%p179) target = $region28
    $region27: #{pointnet_encoder_forward.9} parent=5 // pred_region
      %s183 = ssub.s32 %s10, 1
      %s184 = smul.u32 %s19, 2
      %s185 = sadd.s32 %s184, %s20
      %s186 = smul.u32 64, %s185
      %p187 = scmp.lt.s32.totalorder %s186, 511
      %s188 = scalar_select %p187, %s186, 511
      %s189 = smul.addr %s188, 4
      %s190 = scalar_lea.vmem %s0, %s189
      %p191 = pneg %p52
      %p192 = pneg %p49
      %p193 = scmp.lt.s32.totalorder %s19, 3
      %s194 = scalar_select %p193, %s19, 3
      %s195 = smul.addr %s194, 4
      %s196 = scalar_lea.vmem %s1, %s195
      %p197 = pneg %p78
      %p198 = pneg %p75
      %p199 = pneg %p108
      %p200 = pneg %p105
      %s201 = smul.u32 %s19, 2
      %s202 = sadd.s32 %s201, %s20
      %s203 = smul.u32 64, %s202
      %p204 = scmp.lt.s32.totalorder %s203, 511
      %s205 = scalar_select %p204, %s203, 511
      %s206 = smul.addr %s205, 4
      %s207 = scalar_lea.vmem %s2, %s206
      %p208 = pneg %p138
      %p209 = pneg %p135
      %s210 = smul.u32 %s19, 2
      %s211 = sadd.s32 %s210, %s20
      %p212 = scmp.lt.s32.totalorder %s211, 7
      %s213 = scalar_select %p212, %s211, 7
      %s214 = smul.addr %s213, 2
      %s215 = scalar_lea.vmem %s3, %s214
      %s216 = smul.u32 %s19, 2
      %s217 = sadd.s32 %s216, %s20
      %s218 = smul.u32 64, %s217
      %p219 = scmp.lt.s32.totalorder %s218, 511
      %s220 = scalar_select %p219, %s218, 511
      %s221 = smul.addr %s220, 4
      %s222 = scalar_lea.vmem %s0, %s221
      %s223 = smul.u32 %s19, 2
      %s224 = sadd.s32 %s223, %s20
      %s225 = smul.u32 64, %s224
      %p226 = scmp.lt.s32.totalorder %s19, 3
      %s227 = scalar_select %p226, %s19, 3
      %s228 = smul.addr %s227, 4
      %s229 = scalar_lea.vmem %s1, %s228
      %s230 = smul.u32 %s19, 2
      %s231 = sadd.s32 %s230, %s20
      %s232 = smul.u32 64, %s231
      %p233 = scmp.lt.s32.totalorder %s232, 511
      %s234 = scalar_select %p233, %s232, 511
      %s235 = smul.addr %s234, 4
      %s236 = scalar_lea.vmem %s2, %s235
      %s237 = smul.u32 %s19, 2
      %s238 = sadd.s32 %s237, %s20
      %s239 = smul.u32 64, %s238
      %s240 = smul.u32 %s19, 2
      %s241 = sadd.s32 %s240, %s20
      %p242 = scmp.lt.s32.totalorder %s241, 7
      %s243 = scalar_select %p242, %s241, 7
      %s244 = smul.addr %s243, 2
      %s245 = scalar_lea.vmem %s3, %s244
      %s246 = smul.u32 %s19, 2
      %s247 = sadd.s32 %s246, %s20
      %v249 = vld [vmem:[%s222] sm:$0xf]
      %v250 = vld [vmem:[%s222 + $0x4] sm:$0xf]
      %v251 = vld [vmem:[%s222 + $0x8] sm:$0xf]
      %v252 = vld [vmem:[%s222 + $0xc] sm:$0xf]
      %v253 = vld [vmem:[%s222 + $0x10] sm:$0xf]
      %v254 = vld [vmem:[%s222 + $0x14] sm:$0xf]
      %v255 = vld [vmem:[%s222 + $0x18] sm:$0xf]
      %v256 = vld [vmem:[%s222 + $0x1c] sm:$0xf]
      %v257 = vld [vmem:[%s222 + $0x20] sm:$0xf]
      %v258 = vld [vmem:[%s222 + $0x24] sm:$0xf]
      %v259 = vld [vmem:[%s222 + $0x28] sm:$0xf]
      %v260 = vld [vmem:[%s222 + $0x2c] sm:$0xf]
      %v261 = vld [vmem:[%s222 + $0x30] sm:$0xf]
      %v262 = vld [vmem:[%s222 + $0x34] sm:$0xf]
      %v263 = vld [vmem:[%s222 + $0x38] sm:$0xf]
      %v264 = vld [vmem:[%s222 + $0x3c] sm:$0xf]
      %v265 = vld [vmem:[%s222 + $0x40] sm:$0xf]
      %v266 = vld [vmem:[%s222 + $0x44] sm:$0xf]
      %v267 = vld [vmem:[%s222 + $0x48] sm:$0xf]
      %v268 = vld [vmem:[%s222 + $0x4c] sm:$0xf]
      %v269 = vld [vmem:[%s222 + $0x50] sm:$0xf]
      %v270 = vld [vmem:[%s222 + $0x54] sm:$0xf]
      %v271 = vld [vmem:[%s222 + $0x58] sm:$0xf]
      %v272 = vld [vmem:[%s222 + $0x5c] sm:$0xf]
      %v273 = vld [vmem:[%s222 + $0x60] sm:$0xf]
      %v274 = vld [vmem:[%s222 + $0x64] sm:$0xf]
      %v275 = vld [vmem:[%s222 + $0x68] sm:$0xf]
      %v276 = vld [vmem:[%s222 + $0x6c] sm:$0xf]
      %v277 = vld [vmem:[%s222 + $0x70] sm:$0xf]
      %v278 = vld [vmem:[%s222 + $0x74] sm:$0xf]
      %v279 = vld [vmem:[%s222 + $0x78] sm:$0xf]
      %v280 = vld [vmem:[%s222 + $0x7c] sm:$0xf]
      %v281 = vld [vmem:[%s222 + $0x80] sm:$0xf]
      %v282 = vld [vmem:[%s222 + $0x84] sm:$0xf]
      %v283 = vld [vmem:[%s222 + $0x88] sm:$0xf]
      %v284 = vld [vmem:[%s222 + $0x8c] sm:$0xf]
      %v285 = vld [vmem:[%s222 + $0x90] sm:$0xf]
      %v286 = vld [vmem:[%s222 + $0x94] sm:$0xf]
      %v287 = vld [vmem:[%s222 + $0x98] sm:$0xf]
      %v288 = vld [vmem:[%s222 + $0x9c] sm:$0xf]
      %v289 = vld [vmem:[%s222 + $0xa0] sm:$0xf]
      %v290 = vld [vmem:[%s222 + $0xa4] sm:$0xf]
      %v291 = vld [vmem:[%s222 + $0xa8] sm:$0xf]
      %v292 = vld [vmem:[%s222 + $0xac] sm:$0xf]
      %v293 = vld [vmem:[%s222 + $0xb0] sm:$0xf]
      %v294 = vld [vmem:[%s222 + $0xb4] sm:$0xf]
      %v295 = vld [vmem:[%s222 + $0xb8] sm:$0xf]
      %v296 = vld [vmem:[%s222 + $0xbc] sm:$0xf]
      %v297 = vld [vmem:[%s222 + $0xc0] sm:$0xf]
      %v298 = vld [vmem:[%s222 + $0xc4] sm:$0xf]
      %v299 = vld [vmem:[%s222 + $0xc8] sm:$0xf]
      %v300 = vld [vmem:[%s222 + $0xcc] sm:$0xf]
      %v301 = vld [vmem:[%s222 + $0xd0] sm:$0xf]
      %v302 = vld [vmem:[%s222 + $0xd4] sm:$0xf]
      %v303 = vld [vmem:[%s222 + $0xd8] sm:$0xf]
      %v304 = vld [vmem:[%s222 + $0xdc] sm:$0xf]
      %v305 = vld [vmem:[%s222 + $0xe0] sm:$0xf]
      %v306 = vld [vmem:[%s222 + $0xe4] sm:$0xf]
      %v307 = vld [vmem:[%s222 + $0xe8] sm:$0xf]
      %v308 = vld [vmem:[%s222 + $0xec] sm:$0xf]
      %v309 = vld [vmem:[%s222 + $0xf0] sm:$0xf]
      %v310 = vld [vmem:[%s222 + $0xf4] sm:$0xf]
      %v311 = vld [vmem:[%s222 + $0xf8] sm:$0xf]
      %v312 = vld [vmem:[%s222 + $0xfc] sm:$0xf]
      %v313 = vld [vmem:[%s229] sm:$0xf]
      %v378 = vunpack.c.l.b16 %v249
      %v379 = vunpack.c.l.b16 %v250
      %v380 = vunpack.c.l.b16 %v251
      %v381 = vunpack.c.l.b16 %v252
      %v382 = vunpack.c.l.b16 %v253
      %v383 = vunpack.c.l.b16 %v254
      %v384 = vunpack.c.l.b16 %v255
      %v385 = vunpack.c.l.b16 %v256
      %v386 = vunpack.c.l.b16 %v257
      %v387 = vunpack.c.l.b16 %v258
      %v388 = vunpack.c.l.b16 %v259
      %v389 = vunpack.c.l.b16 %v260
      %v390 = vunpack.c.l.b16 %v261
      %v391 = vunpack.c.l.b16 %v262
      %v392 = vunpack.c.l.b16 %v263
      %v393 = vunpack.c.l.b16 %v264
      %v394 = vunpack.c.l.b16 %v265
      %v395 = vunpack.c.l.b16 %v266
      %v396 = vunpack.c.l.b16 %v267
      %v397 = vunpack.c.l.b16 %v268
      %v398 = vunpack.c.l.b16 %v269
      %v399 = vunpack.c.l.b16 %v270
      %v400 = vunpack.c.l.b16 %v271
      %v401 = vunpack.c.l.b16 %v272
      %v402 = vunpack.c.l.b16 %v273
      %v403 = vunpack.c.l.b16 %v274
      %v404 = vunpack.c.l.b16 %v275
      %v405 = vunpack.c.l.b16 %v276
      %v406 = vunpack.c.l.b16 %v277
      %v407 = vunpack.c.l.b16 %v278
      %v408 = vunpack.c.l.b16 %v279
      %v409 = vunpack.c.l.b16 %v280
      %v410 = vunpack.c.l.b16 %v281
      %v411 = vunpack.c.l.b16 %v282
      %v412 = vunpack.c.l.b16 %v283
      %v413 = vunpack.c.l.b16 %v284
      %v414 = vunpack.c.l.b16 %v285
      %v415 = vunpack.c.l.b16 %v286
      %v416 = vunpack.c.l.b16 %v287
      %v417 = vunpack.c.l.b16 %v288
      %v418 = vunpack.c.l.b16 %v289
      %v419 = vunpack.c.l.b16 %v290
      %v420 = vunpack.c.l.b16 %v291
      %v421 = vunpack.c.l.b16 %v292
      %v422 = vunpack.c.l.b16 %v293
      %v423 = vunpack.c.l.b16 %v294
      %v424 = vunpack.c.l.b16 %v295
      %v425 = vunpack.c.l.b16 %v296
      %v426 = vunpack.c.l.b16 %v297
      %v427 = vunpack.c.l.b16 %v298
      %v428 = vunpack.c.l.b16 %v299
      %v429 = vunpack.c.l.b16 %v300
      %v430 = vunpack.c.l.b16 %v301
      %v431 = vunpack.c.l.b16 %v302
      %v432 = vunpack.c.l.b16 %v303
      %v433 = vunpack.c.l.b16 %v304
      %v434 = vunpack.c.l.b16 %v305
      %v435 = vunpack.c.l.b16 %v306
      %v436 = vunpack.c.l.b16 %v307
      %v437 = vunpack.c.l.b16 %v308
      %v438 = vunpack.c.l.b16 %v309
      %v439 = vunpack.c.l.b16 %v310
      %v440 = vunpack.c.l.b16 %v311
      %v441 = vunpack.c.l.b16 %v312
      %v442 = vpack.c.b16 %v379, %v378
      %v443 = vpack.c.b16 %v381, %v380
      %v444 = vpack.c.b16 %v383, %v382
      %v445 = vpack.c.b16 %v385, %v384
      %v446 = vpack.c.b16 %v387, %v386
      %v447 = vpack.c.b16 %v389, %v388
      %v448 = vpack.c.b16 %v391, %v390
      %v449 = vpack.c.b16 %v393, %v392
      %v450 = vpack.c.b16 %v395, %v394
      %v451 = vpack.c.b16 %v397, %v396
      %v452 = vpack.c.b16 %v399, %v398
      %v453 = vpack.c.b16 %v401, %v400
      %v454 = vpack.c.b16 %v403, %v402
      %v455 = vpack.c.b16 %v405, %v404
      %v456 = vpack.c.b16 %v407, %v406
      %v457 = vpack.c.b16 %v409, %v408
      %v458 = vpack.c.b16 %v411, %v410
      %v459 = vpack.c.b16 %v413, %v412
      %v460 = vpack.c.b16 %v415, %v414
      %v461 = vpack.c.b16 %v417, %v416
      %v462 = vpack.c.b16 %v419, %v418
      %v463 = vpack.c.b16 %v421, %v420
      %v464 = vpack.c.b16 %v423, %v422
      %v465 = vpack.c.b16 %v425, %v424
      %v466 = vpack.c.b16 %v427, %v426
      %v467 = vpack.c.b16 %v429, %v428
      %v468 = vpack.c.b16 %v431, %v430
      %v469 = vpack.c.b16 %v433, %v432
      %v470 = vpack.c.b16 %v435, %v434
      %v471 = vpack.c.b16 %v437, %v436
      %v472 = vpack.c.b16 %v439, %v438
      %v473 = vpack.c.b16 %v441, %v440
      %vm474 = vcmask 64512
      %v476 = vsel %vm474, %v442, 0
      %v479 = vsel %vm474, %v443, 0
      %v482 = vsel %vm474, %v444, 0
      %v485 = vsel %vm474, %v445, 0
      %v488 = vsel %vm474, %v446, 0
      %v491 = vsel %vm474, %v447, 0
      %v494 = vsel %vm474, %v448, 0
      %v497 = vsel %vm474, %v449, 0
      %v500 = vsel %vm474, %v450, 0
      %v503 = vsel %vm474, %v451, 0
      %v506 = vsel %vm474, %v452, 0
      %v509 = vsel %vm474, %v453, 0
      %v512 = vsel %vm474, %v454, 0
      %v515 = vsel %vm474, %v455, 0
      %v518 = vsel %vm474, %v456, 0
      %v521 = vsel %vm474, %v457, 0
      %v524 = vsel %vm474, %v458, 0
      %v527 = vsel %vm474, %v459, 0
      %v530 = vsel %vm474, %v460, 0
      %v533 = vsel %vm474, %v461, 0
      %v536 = vsel %vm474, %v462, 0
      %v539 = vsel %vm474, %v463, 0
      %v542 = vsel %vm474, %v464, 0
      %v545 = vsel %vm474, %v465, 0
      %v548 = vsel %vm474, %v466, 0
      %v551 = vsel %vm474, %v467, 0
      %v554 = vsel %vm474, %v468, 0
      %v557 = vsel %vm474, %v469, 0
      %v560 = vsel %vm474, %v470, 0
      %v563 = vsel %vm474, %v471, 0
      %v566 = vsel %vm474, %v472, 0
      %v569 = vsel %vm474, %v473, 0
      %vm571 = vcmask 1043456
      %v573 = vsel %vm571, %v313, 0
      %575 = vmatprep.subr.bf16.mxu0 0
      %576 = vmatpush1.bf16.msra.mxu0 %v573
      %577 = vmatprep.subr.bf16.mxu0 0
      %578 = vmatpush1.bf16.msra.mxu0 0
      %579 = vmatprep.subr.bf16.mxu0 0
      %580 = vmatpush1.bf16.msra.mxu0 0
      %581 = vmatprep.subr.bf16.mxu0 0
      %582 = vmatpush1.bf16.msra.mxu0 0
      %583 = vmatprep.subr.bf16.mxu0 0
      %584 = vmatpush1.bf16.msra.mxu0 0
      %585 = vmatprep.subr.bf16.mxu0 0
      %586 = vmatpush1.bf16.msra.mxu0 0
      %587 = vmatprep.subr.bf16.mxu0 0
      %588 = vmatpush1.bf16.msra.mxu0 0
      %589 = vmatprep.subr.bf16.mxu0 0
      %590 = vmatpush1.bf16.msra.mxu0 0
      %591 = vmatprep.subr.bf16.mxu0 0
      %592 = vmatpush1.bf16.msra.mxu0 0
      %593 = vmatprep.subr.bf16.mxu0 0
      %594 = vmatpush1.bf16.msra.mxu0 0
      %595 = vmatprep.subr.bf16.mxu0 0
      %596 = vmatpush1.bf16.msra.mxu0 0
      %597 = vmatprep.subr.bf16.mxu0 0
      %598 = vmatpush1.bf16.msra.mxu0 0
      %599 = vmatprep.subr.bf16.mxu0 0
      %600 = vmatpush1.bf16.msra.mxu0 0
      %601 = vmatprep.subr.bf16.mxu0 0
      %602 = vmatpush1.bf16.msra.mxu0 0
      %603 = vmatprep.subr.bf16.mxu0 0
      %604 = vmatpush1.bf16.msra.mxu0 0
      %605 = vmatprep.subr.bf16.mxu0 0
      %606 = vmatpush1.bf16.msra.mxu0 0
      %607 = vmatprep.mubr.bf16.mxu0 0
      %608 = vmatmul.mubr.bf16.gmra.mrb[0].mxu0 %v476
      %v609 = vpop.f32.mrb[0].mxu0
      %v610 = vadd.f32 0.0, %v609
      %v611 = vpop.f32.mrb[0].mxu0
      %v612 = vpop.f32.mrb[0].mxu0
      %v613 = vadd.f32 0.0, %v612
      %v614 = vpop.f32.mrb[0].mxu0
      %615 = vmatprep.mubr.bf16.mxu0 0
      %616 = vmatmul.mubr.bf16.gmra.mrb[0].mxu0 %v479
      %v617 = vpop.f32.mrb[0].mxu0
      %v618 = vadd.f32 0.0, %v617
      %v619 = vpop.f32.mrb[0].mxu0
      %v620 = vpop.f32.mrb[0].mxu0
      %v621 = vadd.f32 0.0, %v620
      %v622 = vpop.f32.mrb[0].mxu0
      %623 = vmatprep.mubr.bf16.mxu0 0
      %624 = vmatmul.mubr.bf16.gmra.mrb[0].mxu0 %v482
      %v625 = vpop.f32.mrb[0].mxu0
      %v626 = vadd.f32 0.0, %v625
      %v627 = vpop.f32.mrb[0].mxu0
      %v628 = vpop.f32.mrb[0].mxu0
      %v629 = vadd.f32 0.0, %v628
      %v630 = vpop.f32.mrb[0].mxu0
      %631 = vmatprep.mubr.bf16.mxu0 0
      %632 = vmatmul.mubr.bf16.gmra.mrb[0].mxu0 %v485
      %v633 = vpop.f32.mrb[0].mxu0
      %v634 = vadd.f32 0.0, %v633
      %v635 = vpop.f32.mrb[0].mxu0
      %v636 = vpop.f32.mrb[0].mxu0
      %v637 = vadd.f32 0.0, %v636
      %v638 = vpop.f32.mrb[0].mxu0
      %639 = vmatprep.mubr.bf16.mxu0 0
      %640 = vmatmul.mubr.bf16.gmra.mrb[0].mxu0 %v488
      %v641 = vpop.f32.mrb[0].mxu0
      %v642 = vadd.f32 0.0, %v641
      %v643 = vpop.f32.mrb[0].mxu0
      %v644 = vpop.f32.mrb[0].mxu0
      %v645 = vadd.f32 0.0, %v644
      %v646 = vpop.f32.mrb[0].mxu0
      %647 = vmatprep.mubr.bf16.mxu0 0
      %648 = vmatmul.mubr.bf16.gmra.mrb[0].mxu0 %v491
      %v649 = vpop.f32.mrb[0].mxu0
      %v650 = vadd.f32 0.0, %v649
      %v651 = vpop.f32.mrb[0].mxu0
      %v652 = vpop.f32.mrb[0].mxu0
      %v653 = vadd.f32 0.0, %v652
      %v654 = vpop.f32.mrb[0].mxu0
      %655 = vmatprep.mubr.bf16.mxu0 0
      %656 = vmatmul.mubr.bf16.gmra.mrb[0].mxu0 %v494
      %v657 = vpop.f32.mrb[0].mxu0
      %v658 = vadd.f32 0.0, %v657
      %v659 = vpop.f32.mrb[0].mxu0
      %v660 = vpop.f32.mrb[0].mxu0
      %v661 = vadd.f32 0.0, %v660
      %v662 = vpop.f32.mrb[0].mxu0
      %663 = vmatprep.mubr.bf16.mxu0 0
      %664 = vmatmul.mubr.bf16.gmra.mrb[0].mxu0 %v497
      %v665 = vpop.f32.mrb[0].mxu0
      %v666 = vadd.f32 0.0, %v665
      %v667 = vpop.f32.mrb[0].mxu0
      %v668 = vpop.f32.mrb[0].mxu0
      %v669 = vadd.f32 0.0, %v668
      %v670 = vpop.f32.mrb[0].mxu0
      %671 = vmatprep.mubr.bf16.mxu0 0
      %672 = vmatmul.mubr.bf16.gmra.mrb[0].mxu0 %v500
      %v673 = vpop.f32.mrb[0].mxu0
      %v674 = vadd.f32 0.0, %v673
      %v675 = vpop.f32.mrb[0].mxu0
      %v676 = vpop.f32.mrb[0].mxu0
      %v677 = vadd.f32 0.0, %v676
      %v678 = vpop.f32.mrb[0].mxu0
      %679 = vmatprep.mubr.bf16.mxu0 0
      %680 = vmatmul.mubr.bf16.gmra.mrb[0].mxu0 %v503
      %v681 = vpop.f32.mrb[0].mxu0
      %v682 = vadd.f32 0.0, %v681
      %v683 = vpop.f32.mrb[0].mxu0
      %v684 = vpop.f32.mrb[0].mxu0
      %v685 = vadd.f32 0.0, %v684
      %v686 = vpop.f32.mrb[0].mxu0
      %687 = vmatprep.mubr.bf16.mxu0 0
      %688 = vmatmul.mubr.bf16.gmra.mrb[0].mxu0 %v506
      %v689 = vpop.f32.mrb[0].mxu0
      %v690 = vadd.f32 0.0, %v689
      %v691 = vpop.f32.mrb[0].mxu0
      %v692 = vpop.f32.mrb[0].mxu0
      %v693 = vadd.f32 0.0, %v692
      %v694 = vpop.f32.mrb[0].mxu0
      %695 = vmatprep.mubr.bf16.mxu0 0
      %696 = vmatmul.mubr.bf16.gmra.mrb[0].mxu0 %v509
      %v697 = vpop.f32.mrb[0].mxu0
      %v698 = vadd.f32 0.0, %v697
      %v699 = vpop.f32.mrb[0].mxu0
      %v700 = vpop.f32.mrb[0].mxu0
      %v701 = vadd.f32 0.0, %v700
      %v702 = vpop.f32.mrb[0].mxu0
      %703 = vmatprep.mubr.bf16.mxu0 0
      %704 = vmatmul.mubr.bf16.gmra.mrb[0].mxu0 %v512
      %v705 = vpop.f32.mrb[0].mxu0
      %v706 = vadd.f32 0.0, %v705
      %v707 = vpop.f32.mrb[0].mxu0
      %v708 = vpop.f32.mrb[0].mxu0
      %v709 = vadd.f32 0.0, %v708
      %v710 = vpop.f32.mrb[0].mxu0
      %711 = vmatprep.mubr.bf16.mxu0 0
      %712 = vmatmul.mubr.bf16.gmra.mrb[0].mxu0 %v515
      %v713 = vpop.f32.mrb[0].mxu0
      %v714 = vadd.f32 0.0, %v713
      %v715 = vpop.f32.mrb[0].mxu0
      %v716 = vpop.f32.mrb[0].mxu0
      %v717 = vadd.f32 0.0, %v716
      %v718 = vpop.f32.mrb[0].mxu0
      %719 = vmatprep.mubr.bf16.mxu0 0
      %720 = vmatmul.mubr.bf16.gmra.mrb[0].mxu0 %v518
      %v721 = vpop.f32.mrb[0].mxu0
      %v722 = vadd.f32 0.0, %v721
      %v723 = vpop.f32.mrb[0].mxu0
      %v724 = vpop.f32.mrb[0].mxu0
      %v725 = vadd.f32 0.0, %v724
      %v726 = vpop.f32.mrb[0].mxu0
      %727 = vmatprep.mubr.bf16.mxu0 0
      %728 = vmatmul.mubr.bf16.gmra.mrb[0].mxu0 %v521
      %v729 = vpop.f32.mrb[0].mxu0
      %v730 = vadd.f32 0.0, %v729
      %v731 = vpop.f32.mrb[0].mxu0
      %v732 = vpop.f32.mrb[0].mxu0
      %v733 = vadd.f32 0.0, %v732
      %v734 = vpop.f32.mrb[0].mxu0
      %735 = vmatprep.mubr.bf16.mxu0 0
      %736 = vmatmul.mubr.bf16.gmra.mrb[0].mxu0 %v524
      %v737 = vpop.f32.mrb[0].mxu0
      %v738 = vadd.f32 0.0, %v737
      %v739 = vpop.f32.mrb[0].mxu0
      %v740 = vpop.f32.mrb[0].mxu0
      %v741 = vadd.f32 0.0, %v740
      %v742 = vpop.f32.mrb[0].mxu0
      %743 = vmatprep.mubr.bf16.mxu0 0
      %744 = vmatmul.mubr.bf16.gmra.mrb[0].mxu0 %v527
      %v745 = vpop.f32.mrb[0].mxu0
      %v746 = vadd.f32 0.0, %v745
      %v747 = vpop.f32.mrb[0].mxu0
      %v748 = vpop.f32.mrb[0].mxu0
      %v749 = vadd.f32 0.0, %v748
      %v750 = vpop.f32.mrb[0].mxu0
      %751 = vmatprep.mubr.bf16.mxu0 0
      %752 = vmatmul.mubr.bf16.gmra.mrb[0].mxu0 %v530
      %v753 = vpop.f32.mrb[0].mxu0
      %v754 = vadd.f32 0.0, %v753
      %v755 = vpop.f32.mrb[0].mxu0
      %v756 = vpop.f32.mrb[0].mxu0
      %v757 = vadd.f32 0.0, %v756
      %v758 = vpop.f32.mrb[0].mxu0
      %759 = vmatprep.mubr.bf16.mxu0 0
      %760 = vmatmul.mubr.bf16.gmra.mrb[0].mxu0 %v533
      %v761 = vpop.f32.mrb[0].mxu0
      %v762 = vadd.f32 0.0, %v761
      %v763 = vpop.f32.mrb[0].mxu0
      %v764 = vpop.f32.mrb[0].mxu0
      %v765 = vadd.f32 0.0, %v764
      %v766 = vpop.f32.mrb[0].mxu0
      %767 = vmatprep.mubr.bf16.mxu0 0
      %768 = vmatmul.mubr.bf16.gmra.mrb[0].mxu0 %v536
      %v769 = vpop.f32.mrb[0].mxu0
      %v770 = vadd.f32 0.0, %v769
      %v771 = vpop.f32.mrb[0].mxu0
      %v772 = vpop.f32.mrb[0].mxu0
      %v773 = vadd.f32 0.0, %v772
      %v774 = vpop.f32.mrb[0].mxu0
      %775 = vmatprep.mubr.bf16.mxu0 0
      %776 = vmatmul.mubr.bf16.gmra.mrb[0].mxu0 %v539
      %v777 = vpop.f32.mrb[0].mxu0
      %v778 = vadd.f32 0.0, %v777
      %v779 = vpop.f32.mrb[0].mxu0
      %v780 = vpop.f32.mrb[0].mxu0
      %v781 = vadd.f32 0.0, %v780
      %v782 = vpop.f32.mrb[0].mxu0
      %783 = vmatprep.mubr.bf16.mxu0 0
      %784 = vmatmul.mubr.bf16.gmra.mrb[0].mxu0 %v542
      %v785 = vpop.f32.mrb[0].mxu0
      %v786 = vadd.f32 0.0, %v785
      %v787 = vpop.f32.mrb[0].mxu0
      %v788 = vpop.f32.mrb[0].mxu0
      %v789 = vadd.f32 0.0, %v788
      %v790 = vpop.f32.mrb[0].mxu0
      %791 = vmatprep.mubr.bf16.mxu0 0
      %792 = vmatmul.mubr.bf16.gmra.mrb[0].mxu0 %v545
      %v793 = vpop.f32.mrb[0].mxu0
      %v794 = vadd.f32 0.0, %v793
      %v795 = vpop.f32.mrb[0].mxu0
      %v796 = vpop.f32.mrb[0].mxu0
      %v797 = vadd.f32 0.0, %v796
      %v798 = vpop.f32.mrb[0].mxu0
      %799 = vmatprep.mubr.bf16.mxu0 0
      %800 = vmatmul.mubr.bf16.gmra.mrb[0].mxu0 %v548
      %v801 = vpop.f32.mrb[0].mxu0
      %v802 = vadd.f32 0.0, %v801
      %v803 = vpop.f32.mrb[0].mxu0
      %v804 = vpop.f32.mrb[0].mxu0
      %v805 = vadd.f32 0.0, %v804
      %v806 = vpop.f32.mrb[0].mxu0
      %807 = vmatprep.mubr.bf16.mxu0 0
      %808 = vmatmul.mubr.bf16.gmra.mrb[0].mxu0 %v551
      %v809 = vpop.f32.mrb[0].mxu0
      %v810 = vadd.f32 0.0, %v809
      %v811 = vpop.f32.mrb[0].mxu0
      %v812 = vpop.f32.mrb[0].mxu0
      %v813 = vadd.f32 0.0, %v812
      %v814 = vpop.f32.mrb[0].mxu0
      %815 = vmatprep.mubr.bf16.mxu0 0
      %816 = vmatmul.mubr.bf16.gmra.mrb[0].mxu0 %v554
      %v817 = vpop.f32.mrb[0].mxu0
      %v818 = vadd.f32 0.0, %v817
      %v819 = vpop.f32.mrb[0].mxu0
      %v820 = vpop.f32.mrb[0].mxu0
      %v821 = vadd.f32 0.0, %v820
      %v822 = vpop.f32.mrb[0].mxu0
      %823 = vmatprep.mubr.bf16.mxu0 0
      %824 = vmatmul.mubr.bf16.gmra.mrb[0].mxu0 %v557
      %v825 = vpop.f32.mrb[0].mxu0
      %v826 = vadd.f32 0.0, %v825
      %v827 = vpop.f32.mrb[0].mxu0
      %v828 = vpop.f32.mrb[0].mxu0
      %v829 = vadd.f32 0.0, %v828
      %v830 = vpop.f32.mrb[0].mxu0
      %831 = vmatprep.mubr.bf16.mxu0 0
      %832 = vmatmul.mubr.bf16.gmra.mrb[0].mxu0 %v560
      %v833 = vpop.f32.mrb[0].mxu0
      %v834 = vadd.f32 0.0, %v833
      %v835 = vpop.f32.mrb[0].mxu0
      %v836 = vpop.f32.mrb[0].mxu0
      %v837 = vadd.f32 0.0, %v836
      %v838 = vpop.f32.mrb[0].mxu0
      %839 = vmatprep.mubr.bf16.mxu0 0
      %840 = vmatmul.mubr.bf16.gmra.mrb[0].mxu0 %v563
      %v841 = vpop.f32.mrb[0].mxu0
      %v842 = vadd.f32 0.0, %v841
      %v843 = vpop.f32.mrb[0].mxu0
      %v844 = vpop.f32.mrb[0].mxu0
      %v845 = vadd.f32 0.0, %v844
      %v846 = vpop.f32.mrb[0].mxu0
      %847 = vmatprep.mubr.bf16.mxu0 0
      %848 = vmatmul.mubr.bf16.gmra.mrb[0].mxu0 %v566
      %v849 = vpop.f32.mrb[0].mxu0
      %v850 = vadd.f32 0.0, %v849
      %v851 = vpop.f32.mrb[0].mxu0
      %v852 = vpop.f32.mrb[0].mxu0
      %v853 = vadd.f32 0.0, %v852
      %v854 = vpop.f32.mrb[0].mxu0
      %855 = vmatprep.mubr.bf16.mxu0 0
      %856 = vmatmul.mubr.bf16.gmra.mrb[0].mxu0 %v569
      %v857 = vpop.f32.mrb[0].mxu0
      %v858 = vadd.f32 0.0, %v857
      %v859 = vpop.f32.mrb[0].mxu0
      %v860 = vpop.f32.mrb[0].mxu0
      %v861 = vadd.f32 0.0, %v860
      %v862 = vpop.f32.mrb[0].mxu0
      %863 = vdwg.mxu0
      %v864 = vpack.c.bf16 %v613, %v610
      %v865 = vpack.c.bf16 %v621, %v618
      %v866 = vpack.c.bf16 %v629, %v626
      %v867 = vpack.c.bf16 %v637, %v634
      %v868 = vpack.c.bf16 %v645, %v642
      %v869 = vpack.c.bf16 %v653, %v650
      %v870 = vpack.c.bf16 %v661, %v658
      %v871 = vpack.c.bf16 %v669, %v666
      %v872 = vpack.c.bf16 %v677, %v674
      %v873 = vpack.c.bf16 %v685, %v682
      %v874 = vpack.c.bf16 %v693, %v690
      %v875 = vpack.c.bf16 %v701, %v698
      %v876 = vpack.c.bf16 %v709, %v706
      %v877 = vpack.c.bf16 %v717, %v714
      %v878 = vpack.c.bf16 %v725, %v722
      %v879 = vpack.c.bf16 %v733, %v730
      %v880 = vpack.c.bf16 %v741, %v738
      %v881 = vpack.c.bf16 %v749, %v746
      %v882 = vpack.c.bf16 %v757, %v754
      %v883 = vpack.c.bf16 %v765, %v762
      %v884 = vpack.c.bf16 %v773, %v770
      %v885 = vpack.c.bf16 %v781, %v778
      %v886 = vpack.c.bf16 %v789, %v786
      %v887 = vpack.c.bf16 %v797, %v794
      %v888 = vpack.c.bf16 %v805, %v802
      %v889 = vpack.c.bf16 %v813, %v810
      %v890 = vpack.c.bf16 %v821, %v818
      %v891 = vpack.c.bf16 %v829, %v826
      %v892 = vpack.c.bf16 %v837, %v834
      %v893 = vpack.c.bf16 %v845, %v842
      %v894 = vpack.c.bf16 %v853, %v850
      %v895 = vpack.c.bf16 %v861, %v858
      %v928 = vunpack.c.l.b16 %v864
      %v929 = vunpack.c.h.b16 %v864
      %v930 = vunpack.c.l.b16 %v865
      %v931 = vunpack.c.h.b16 %v865
      %v932 = vunpack.c.l.b16 %v866
      %v933 = vunpack.c.h.b16 %v866
      %v934 = vunpack.c.l.b16 %v867
      %v935 = vunpack.c.h.b16 %v867
      %v936 = vunpack.c.l.b16 %v868
      %v937 = vunpack.c.h.b16 %v868
      %v938 = vunpack.c.l.b16 %v869
      %v939 = vunpack.c.h.b16 %v869
      %v940 = vunpack.c.l.b16 %v870
      %v941 = vunpack.c.h.b16 %v870
      %v942 = vunpack.c.l.b16 %v871
      %v943 = vunpack.c.h.b16 %v871
      %v944 = vunpack.c.l.b16 %v872
      %v945 = vunpack.c.h.b16 %v872
      %v946 = vunpack.c.l.b16 %v873
      %v947 = vunpack.c.h.b16 %v873
      %v948 = vunpack.c.l.b16 %v874
      %v949 = vunpack.c.h.b16 %v874
      %v950 = vunpack.c.l.b16 %v875
      %v951 = vunpack.c.h.b16 %v875
      %v952 = vunpack.c.l.b16 %v876
      %v953 = vunpack.c.h.b16 %v876
      %v954 = vunpack.c.l.b16 %v877
      %v955 = vunpack.c.h.b16 %v877
      %v956 = vunpack.c.l.b16 %v878
      %v957 = vunpack.c.h.b16 %v878
      %v958 = vunpack.c.l.b16 %v879
      %v959 = vunpack.c.h.b16 %v879
      %v960 = vunpack.c.l.b16 %v880
      %v961 = vunpack.c.h.b16 %v880
      %v962 = vunpack.c.l.b16 %v881
      %v963 = vunpack.c.h.b16 %v881
      %v964 = vunpack.c.l.b16 %v882
      %v965 = vunpack.c.h.b16 %v882
      %v966 = vunpack.c.l.b16 %v883
      %v967 = vunpack.c.h.b16 %v883
      %v968 = vunpack.c.l.b16 %v884
      %v969 = vunpack.c.h.b16 %v884
      %v970 = vunpack.c.l.b16 %v885
      %v971 = vunpack.c.h.b16 %v885
      %v972 = vunpack.c.l.b16 %v886
      %v973 = vunpack.c.h.b16 %v886
      %v974 = vunpack.c.l.b16 %v887
      %v975 = vunpack.c.h.b16 %v887
      %v976 = vunpack.c.l.b16 %v888
      %v977 = vunpack.c.h.b16 %v888
      %v978 = vunpack.c.l.b16 %v889
      %v979 = vunpack.c.h.b16 %v889
      %v980 = vunpack.c.l.b16 %v890
      %v981 = vunpack.c.h.b16 %v890
      %v982 = vunpack.c.l.b16 %v891
      %v983 = vunpack.c.h.b16 %v891
      %v984 = vunpack.c.l.b16 %v892
      %v985 = vunpack.c.h.b16 %v892
      %v986 = vunpack.c.l.b16 %v893
      %v987 = vunpack.c.h.b16 %v893
      %v988 = vunpack.c.l.b16 %v894
      %v989 = vunpack.c.h.b16 %v894
      %v990 = vunpack.c.l.b16 %v895
      %v991 = vunpack.c.h.b16 %v895
      %v992 = vpack.c.b16 %v928, %v928
      %v993 = vpack.c.b16 %v929, %v929
      %v994 = vpack.c.b16 %v930, %v930
      %v995 = vpack.c.b16 %v931, %v931
      %v996 = vpack.c.b16 %v932, %v932
      %v997 = vpack.c.b16 %v933, %v933
      %v998 = vpack.c.b16 %v934, %v934
      %v999 = vpack.c.b16 %v935, %v935
      %v1000 = vpack.c.b16 %v936, %v936
      %v1001 = vpack.c.b16 %v937, %v937
      %v1002 = vpack.c.b16 %v938, %v938
      %v1003 = vpack.c.b16 %v939, %v939
      %v1004 = vpack.c.b16 %v940, %v940
      %v1005 = vpack.c.b16 %v941, %v941
      %v1006 = vpack.c.b16 %v942, %v942
      %v1007 = vpack.c.b16 %v943, %v943
      %v1008 = vpack.c.b16 %v944, %v944
      %v1009 = vpack.c.b16 %v945, %v945
      %v1010 = vpack.c.b16 %v946, %v946
      %v1011 = vpack.c.b16 %v947, %v947
      %v1012 = vpack.c.b16 %v948, %v948
      %v1013 = vpack.c.b16 %v949, %v949
      %v1014 = vpack.c.b16 %v950, %v950
      %v1015 = vpack.c.b16 %v951, %v951
      %v1016 = vpack.c.b16 %v952, %v952
      %v1017 = vpack.c.b16 %v953, %v953
      %v1018 = vpack.c.b16 %v954, %v954
      %v1019 = vpack.c.b16 %v955, %v955
      %v1020 = vpack.c.b16 %v956, %v956
      %v1021 = vpack.c.b16 %v957, %v957
      %v1022 = vpack.c.b16 %v958, %v958
      %v1023 = vpack.c.b16 %v959, %v959
      %v1024 = vpack.c.b16 %v960, %v960
      %v1025 = vpack.c.b16 %v961, %v961
      %v1026 = vpack.c.b16 %v962, %v962
      %v1027 = vpack.c.b16 %v963, %v963
      %v1028 = vpack.c.b16 %v964, %v964
      %v1029 = vpack.c.b16 %v965, %v965
      %v1030 = vpack.c.b16 %v966, %v966
      %v1031 = vpack.c.b16 %v967, %v967
      %v1032 = vpack.c.b16 %v968, %v968
      %v1033 = vpack.c.b16 %v969, %v969
      %v1034 = vpack.c.b16 %v970, %v970
      %v1035 = vpack.c.b16 %v971, %v971
      %v1036 = vpack.c.b16 %v972, %v972
      %v1037 = vpack.c.b16 %v973, %v973
      %v1038 = vpack.c.b16 %v974, %v974
      %v1039 = vpack.c.b16 %v975, %v975
      %v1040 = vpack.c.b16 %v976, %v976
      %v1041 = vpack.c.b16 %v977, %v977
      %v1042 = vpack.c.b16 %v978, %v978
      %v1043 = vpack.c.b16 %v979, %v979
      %v1044 = vpack.c.b16 %v980, %v980
      %v1045 = vpack.c.b16 %v981, %v981
      %v1046 = vpack.c.b16 %v982, %v982
      %v1047 = vpack.c.b16 %v983, %v983
      %v1048 = vpack.c.b16 %v984, %v984
      %v1049 = vpack.c.b16 %v985, %v985
      %v1050 = vpack.c.b16 %v986, %v986
      %v1051 = vpack.c.b16 %v987, %v987
      %v1052 = vpack.c.b16 %v988, %v988
      %v1053 = vpack.c.b16 %v989, %v989
      %v1054 = vpack.c.b16 %v990, %v990
      %v1055 = vpack.c.b16 %v991, %v991
      %vm1120 = vcmask 519168
      %1121 = vst.msk [vmem:[%s236] sm:$0xf] %vm1120, %v992
      %1122 = vst.msk [vmem:[%s236 + $0x4] sm:$0xf] %vm1120, %v993
      %1123 = vst.msk [vmem:[%s236 + $0x8] sm:$0xf] %vm1120, %v994
      %1124 = vst.msk [vmem:[%s236 + $0xc] sm:$0xf] %vm1120, %v995
      %1125 = vst.msk [vmem:[%s236 + $0x10] sm:$0xf] %vm1120, %v996
      %1126 = vst.msk [vmem:[%s236 + $0x14] sm:$0xf] %vm1120, %v997
      %1127 = vst.msk [vmem:[%s236 + $0x18] sm:$0xf] %vm1120, %v998
      %1128 = vst.msk [vmem:[%s236 + $0x1c] sm:$0xf] %vm1120, %v999
      %1129 = vst.msk [vmem:[%s236 + $0x20] sm:$0xf] %vm1120, %v1000
      %1130 = vst.msk [vmem:[%s236 + $0x24] sm:$0xf] %vm1120, %v1001
      %1131 = vst.msk [vmem:[%s236 + $0x28] sm:$0xf] %vm1120, %v1002
      %1132 = vst.msk [vmem:[%s236 + $0x2c] sm:$0xf] %vm1120, %v1003
      %1133 = vst.msk [vmem:[%s236 + $0x30] sm:$0xf] %vm1120, %v1004
      %1134 = vst.msk [vmem:[%s236 + $0x34] sm:$0xf] %vm1120, %v1005
      %1135 = vst.msk [vmem:[%s236 + $0x38] sm:$0xf] %vm1120, %v1006
      %1136 = vst.msk [vmem:[%s236 + $0x3c] sm:$0xf] %vm1120, %v1007
      %1137 = vst.msk [vmem:[%s236 + $0x40] sm:$0xf] %vm1120, %v1008
      %1138 = vst.msk [vmem:[%s236 + $0x44] sm:$0xf] %vm1120, %v1009
      %1139 = vst.msk [vmem:[%s236 + $0x48] sm:$0xf] %vm1120, %v1010
      %1140 = vst.msk [vmem:[%s236 + $0x4c] sm:$0xf] %vm1120, %v1011
      %1141 = vst.msk [vmem:[%s236 + $0x50] sm:$0xf] %vm1120, %v1012
      %1142 = vst.msk [vmem:[%s236 + $0x54] sm:$0xf] %vm1120, %v1013
      %1143 = vst.msk [vmem:[%s236 + $0x58] sm:$0xf] %vm1120, %v1014
      %1144 = vst.msk [vmem:[%s236 + $0x5c] sm:$0xf] %vm1120, %v1015
      %1145 = vst.msk [vmem:[%s236 + $0x60] sm:$0xf] %vm1120, %v1016
      %1146 = vst.msk [vmem:[%s236 + $0x64] sm:$0xf] %vm1120, %v1017
      %1147 = vst.msk [vmem:[%s236 + $0x68] sm:$0xf] %vm1120, %v1018
      %1148 = vst.msk [vmem:[%s236 + $0x6c] sm:$0xf] %vm1120, %v1019
      %1149 = vst.msk [vmem:[%s236 + $0x70] sm:$0xf] %vm1120, %v1020
      %1150 = vst.msk [vmem:[%s236 + $0x74] sm:$0xf] %vm1120, %v1021
      %1151 = vst.msk [vmem:[%s236 + $0x78] sm:$0xf] %vm1120, %v1022
      %1152 = vst.msk [vmem:[%s236 + $0x7c] sm:$0xf] %vm1120, %v1023
      %1153 = vst.msk [vmem:[%s236 + $0x80] sm:$0xf] %vm1120, %v1024
      %1154 = vst.msk [vmem:[%s236 + $0x84] sm:$0xf] %vm1120, %v1025
      %1155 = vst.msk [vmem:[%s236 + $0x88] sm:$0xf] %vm1120, %v1026
      %1156 = vst.msk [vmem:[%s236 + $0x8c] sm:$0xf] %vm1120, %v1027
      %1157 = vst.msk [vmem:[%s236 + $0x90] sm:$0xf] %vm1120, %v1028
      %1158 = vst.msk [vmem:[%s236 + $0x94] sm:$0xf] %vm1120, %v1029
      %1159 = vst.msk [vmem:[%s236 + $0x98] sm:$0xf] %vm1120, %v1030
      %1160 = vst.msk [vmem:[%s236 + $0x9c] sm:$0xf] %vm1120, %v1031
      %1161 = vst.msk [vmem:[%s236 + $0xa0] sm:$0xf] %vm1120, %v1032
      %1162 = vst.msk [vmem:[%s236 + $0xa4] sm:$0xf] %vm1120, %v1033
      %1163 = vst.msk [vmem:[%s236 + $0xa8] sm:$0xf] %vm1120, %v1034
      %1164 = vst.msk [vmem:[%s236 + $0xac] sm:$0xf] %vm1120, %v1035
      %1165 = vst.msk [vmem:[%s236 + $0xb0] sm:$0xf] %vm1120, %v1036
      %1166 = vst.msk [vmem:[%s236 + $0xb4] sm:$0xf] %vm1120, %v1037
      %1167 = vst.msk [vmem:[%s236 + $0xb8] sm:$0xf] %vm1120, %v1038
      %1168 = vst.msk [vmem:[%s236 + $0xbc] sm:$0xf] %vm1120, %v1039
      %1169 = vst.msk [vmem:[%s236 + $0xc0] sm:$0xf] %vm1120, %v1040
      %1170 = vst.msk [vmem:[%s236 + $0xc4] sm:$0xf] %vm1120, %v1041
      %1171 = vst.msk [vmem:[%s236 + $0xc8] sm:$0xf] %vm1120, %v1042
      %1172 = vst.msk [vmem:[%s236 + $0xcc] sm:$0xf] %vm1120, %v1043
      %1173 = vst.msk [vmem:[%s236 + $0xd0] sm:$0xf] %vm1120, %v1044
      %1174 = vst.msk [vmem:[%s236 + $0xd4] sm:$0xf] %vm1120, %v1045
      %1175 = vst.msk [vmem:[%s236 + $0xd8] sm:$0xf] %vm1120, %v1046
      %1176 = vst.msk [vmem:[%s236 + $0xdc] sm:$0xf] %vm1120, %v1047
      %1177 = vst.msk [vmem:[%s236 + $0xe0] sm:$0xf] %vm1120, %v1048
      %1178 = vst.msk [vmem:[%s236 + $0xe4] sm:$0xf] %vm1120, %v1049
      %1179 = vst.msk [vmem:[%s236 + $0xe8] sm:$0xf] %vm1120, %v1050
      %1180 = vst.msk [vmem:[%s236 + $0xec] sm:$0xf] %vm1120, %v1051
      %1181 = vst.msk [vmem:[%s236 + $0xf0] sm:$0xf] %vm1120, %v1052
      %1182 = vst.msk [vmem:[%s236 + $0xf4] sm:$0xf] %vm1120, %v1053
      %1183 = vst.msk [vmem:[%s236 + $0xf8] sm:$0xf] %vm1120, %v1054
      %1184 = vst.msk [vmem:[%s236 + $0xfc] sm:$0xf] %vm1120, %v1055
      %vm1185 = vcmask 523264
      %v1186 = vsel %vm1185, %v610, 0.0
      %v1187 = vsel %vm1185, %v613, 0.0
      %v1188 = vadd.f32 %v1186, %v1187
      %v1189 = vsel %vm1185, %v618, 0.0
      %v1190 = vadd.f32 %v1188, %v1189
      %v1191 = vsel %vm1185, %v621, 0.0
      %v1192 = vadd.f32 %v1190, %v1191
      %v1193 = vsel %vm1185, %v626, 0.0
      %v1194 = vadd.f32 %v1192, %v1193
      %v1195 = vsel %vm1185, %v629, 0.0
      %v1196 = vadd.f32 %v1194, %v1195
      %v1197 = vsel %vm1185, %v634, 0.0
      %v1198 = vadd.f32 %v1196, %v1197
      %v1199 = vsel %vm1185, %v637, 0.0
      %v1200 = vadd.f32 %v1198, %v1199
      %v1201 = vsel %vm1185, %v642, 0.0
      %v1202 = vadd.f32 %v1200, %v1201
      %v1203 = vsel %vm1185, %v645, 0.0
      %v1204 = vadd.f32 %v1202, %v1203
      %v1205 = vsel %vm1185, %v650, 0.0
      %v1206 = vadd.f32 %v1204, %v1205
      %v1207 = vsel %vm1185, %v653, 0.0
      %v1208 = vadd.f32 %v1206, %v1207
      %v1209 = vsel %vm1185, %v658, 0.0
      %v1210 = vadd.f32 %v1208, %v1209
      %v1211 = vsel %vm1185, %v661, 0.0
      %v1212 = vadd.f32 %v1210, %v1211
      %v1213 = vsel %vm1185, %v666, 0.0
      %v1214 = vadd.f32 %v1212, %v1213
      %v1215 = vsel %vm1185, %v669, 0.0
      %v1216 = vadd.f32 %v1214, %v1215
      %v1217 = vsel %vm1185, %v674, 0.0
      %v1218 = vadd.f32 %v1216, %v1217
      %v1219 = vsel %vm1185, %v677, 0.0
      %v1220 = vadd.f32 %v1218, %v1219
      %v1221 = vsel %vm1185, %v682, 0.0
      %v1222 = vadd.f32 %v1220, %v1221
      %v1223 = vsel %vm1185, %v685, 0.0
      %v1224 = vadd.f32 %v1222, %v1223
      %v1225 = vsel %vm1185, %v690, 0.0
      %v1226 = vadd.f32 %v1224, %v1225
      %v1227 = vsel %vm1185, %v693, 0.0
      %v1228 = vadd.f32 %v1226, %v1227
      %v1229 = vsel %vm1185, %v698, 0.0
      %v1230 = vadd.f32 %v1228, %v1229
      %v1231 = vsel %vm1185, %v701, 0.0
      %v1232 = vadd.f32 %v1230, %v1231
      %v1233 = vsel %vm1185, %v706, 0.0
      %v1234 = vadd.f32 %v1232, %v1233
      %v1235 = vsel %vm1185, %v709, 0.0
      %v1236 = vadd.f32 %v1234, %v1235
      %v1237 = vsel %vm1185, %v714, 0.0
      %v1238 = vadd.f32 %v1236, %v1237
      %v1239 = vsel %vm1185, %v717, 0.0
      %v1240 = vadd.f32 %v1238, %v1239
      %v1241 = vsel %vm1185, %v722, 0.0
      %v1242 = vadd.f32 %v1240, %v1241
      %v1243 = vsel %vm1185, %v725, 0.0
      %v1244 = vadd.f32 %v1242, %v1243
      %v1245 = vsel %vm1185, %v730, 0.0
      %v1246 = vadd.f32 %v1244, %v1245
      %v1247 = vsel %vm1185, %v733, 0.0
      %v1248 = vadd.f32 %v1246, %v1247
      %v1249 = vsel %vm1185, %v738, 0.0
      %v1250 = vadd.f32 %v1248, %v1249
      %v1251 = vsel %vm1185, %v741, 0.0
      %v1252 = vadd.f32 %v1250, %v1251
      %v1253 = vsel %vm1185, %v746, 0.0
      %v1254 = vadd.f32 %v1252, %v1253
      %v1255 = vsel %vm1185, %v749, 0.0
      %v1256 = vadd.f32 %v1254, %v1255
      %v1257 = vsel %vm1185, %v754, 0.0
      %v1258 = vadd.f32 %v1256, %v1257
      %v1259 = vsel %vm1185, %v757, 0.0
      %v1260 = vadd.f32 %v1258, %v1259
      %v1261 = vsel %vm1185, %v762, 0.0
      %v1262 = vadd.f32 %v1260, %v1261
      %v1263 = vsel %vm1185, %v765, 0.0
      %v1264 = vadd.f32 %v1262, %v1263
      %v1265 = vsel %vm1185, %v770, 0.0
      %v1266 = vadd.f32 %v1264, %v1265
      %v1267 = vsel %vm1185, %v773, 0.0
      %v1268 = vadd.f32 %v1266, %v1267
      %v1269 = vsel %vm1185, %v778, 0.0
      %v1270 = vadd.f32 %v1268, %v1269
      %v1271 = vsel %vm1185, %v781, 0.0
      %v1272 = vadd.f32 %v1270, %v1271
      %v1273 = vsel %vm1185, %v786, 0.0
      %v1274 = vadd.f32 %v1272, %v1273
      %v1275 = vsel %vm1185, %v789, 0.0
      %v1276 = vadd.f32 %v1274, %v1275
      %v1277 = vsel %vm1185, %v794, 0.0
      %v1278 = vadd.f32 %v1276, %v1277
      %v1279 = vsel %vm1185, %v797, 0.0
      %v1280 = vadd.f32 %v1278, %v1279
      %v1281 = vsel %vm1185, %v802, 0.0
      %v1282 = vadd.f32 %v1280, %v1281
      %v1283 = vsel %vm1185, %v805, 0.0
      %v1284 = vadd.f32 %v1282, %v1283
      %v1285 = vsel %vm1185, %v810, 0.0
      %v1286 = vadd.f32 %v1284, %v1285
      %v1287 = vsel %vm1185, %v813, 0.0
      %v1288 = vadd.f32 %v1286, %v1287
      %v1289 = vsel %vm1185, %v818, 0.0
      %v1290 = vadd.f32 %v1288, %v1289
      %v1291 = vsel %vm1185, %v821, 0.0
      %v1292 = vadd.f32 %v1290, %v1291
      %v1293 = vsel %vm1185, %v826, 0.0
      %v1294 = vadd.f32 %v1292, %v1293
      %v1295 = vsel %vm1185, %v829, 0.0
      %v1296 = vadd.f32 %v1294, %v1295
      %v1297 = vsel %vm1185, %v834, 0.0
      %v1298 = vadd.f32 %v1296, %v1297
      %v1299 = vsel %vm1185, %v837, 0.0
      %v1300 = vadd.f32 %v1298, %v1299
      %v1301 = vsel %vm1185, %v842, 0.0
      %v1302 = vadd.f32 %v1300, %v1301
      %v1303 = vsel %vm1185, %v845, 0.0
      %v1304 = vadd.f32 %v1302, %v1303
      %v1305 = vsel %vm1185, %v850, 0.0
      %v1306 = vadd.f32 %v1304, %v1305
      %v1307 = vsel %vm1185, %v853, 0.0
      %v1308 = vadd.f32 %v1306, %v1307
      %v1309 = vsel %vm1185, %v858, 0.0
      %v1310 = vadd.f32 %v1308, %v1309
      %v1311 = vsel %vm1185, %v861, 0.0
      %v1312 = vadd.f32 %v1310, %v1311
      %v1313 = vrot.slane %v1312, 4
      %v1314 = vadd.f32 %v1312, %v1313
      %v1315 = vrot.slane %v1314, 2
      %v1316 = vadd.f32 %v1314, %v1315
      %v1317 = vrot.slane %v1316, 1
      %v1318 = vadd.f32 %v1316, %v1317
      %vm1319 = vcmask 516096
      %1320 = vst.msk [vmem:[%s245] sm:$0x1] %vm1319, %v1318
      %v1321 = vmul.f32 %v610, %v610
      %v1322 = vmul.f32 %v613, %v613
      %v1323 = vmul.f32 %v618, %v618
      %v1324 = vmul.f32 %v621, %v621
      %v1325 = vmul.f32 %v626, %v626
      %v1326 = vmul.f32 %v629, %v629
      %v1327 = vmul.f32 %v634, %v634
      %v1328 = vmul.f32 %v637, %v637
      %v1329 = vmul.f32 %v642, %v642
      %v1330 = vmul.f32 %v645, %v645
      %v1331 = vmul.f32 %v650, %v650
      %v1332 = vmul.f32 %v653, %v653
      %v1333 = vmul.f32 %v658, %v658
      %v1334 = vmul.f32 %v661, %v661
      %v1335 = vmul.f32 %v666, %v666
      %v1336 = vmul.f32 %v669, %v669
      %v1337 = vmul.f32 %v674, %v674
      %v1338 = vmul.f32 %v677, %v677
      %v1339 = vmul.f32 %v682, %v682
      %v1340 = vmul.f32 %v685, %v685
      %v1341 = vmul.f32 %v690, %v690
      %v1342 = vmul.f32 %v693, %v693
      %v1343 = vmul.f32 %v698, %v698
      %v1344 = vmul.f32 %v701, %v701
      %v1345 = vmul.f32 %v706, %v706
      %v1346 = vmul.f32 %v709, %v709
      %v1347 = vmul.f32 %v714, %v714
      %v1348 = vmul.f32 %v717, %v717
      %v1349 = vmul.f32 %v722, %v722
      %v1350 = vmul.f32 %v725, %v725
      %v1351 = vmul.f32 %v730, %v730
      %v1352 = vmul.f32 %v733, %v733
      %v1353 = vmul.f32 %v738, %v738
      %v1354 = vmul.f32 %v741, %v741
      %v1355 = vmul.f32 %v746, %v746
      %v1356 = vmul.f32 %v749, %v749
      %v1357 = vmul.f32 %v754, %v754
      %v1358 = vmul.f32 %v757, %v757
      %v1359 = vmul.f32 %v762, %v762
      %v1360 = vmul.f32 %v765, %v765
      %v1361 = vmul.f32 %v770, %v770
      %v1362 = vmul.f32 %v773, %v773
      %v1363 = vmul.f32 %v778, %v778
      %v1364 = vmul.f32 %v781, %v781
      %v1365 = vmul.f32 %v786, %v786
      %v1366 = vmul.f32 %v789, %v789
      %v1367 = vmul.f32 %v794, %v794
      %v1368 = vmul.f32 %v797, %v797
      %v1369 = vmul.f32 %v802, %v802
      %v1370 = vmul.f32 %v805, %v805
      %v1371 = vmul.f32 %v810, %v810
      %v1372 = vmul.f32 %v813, %v813
      %v1373 = vmul.f32 %v818, %v818
      %v1374 = vmul.f32 %v821, %v821
      %v1375 = vmul.f32 %v826, %v826
      %v1376 = vmul.f32 %v829, %v829
      %v1377 = vmul.f32 %v834, %v834
      %v1378 = vmul.f32 %v837, %v837
      %v1379 = vmul.f32 %v842, %v842
      %v1380 = vmul.f32 %v845, %v845
      %v1381 = vmul.f32 %v850, %v850
      %v1382 = vmul.f32 %v853, %v853
      %v1383 = vmul.f32 %v858, %v858
      %v1384 = vmul.f32 %v861, %v861
      %v1385 = vsel %vm1185, %v1321, 0.0
      %v1386 = vsel %vm1185, %v1322, 0.0
      %v1387 = vadd.f32 %v1385, %v1386
      %v1388 = vsel %vm1185, %v1323, 0.0
      %v1389 = vadd.f32 %v1387, %v1388
      %v1390 = vsel %vm1185, %v1324, 0.0
      %v1391 = vadd.f32 %v1389, %v1390
      %v1392 = vsel %vm1185, %v1325, 0.0
      %v1393 = vadd.f32 %v1391, %v1392
      %v1394 = vsel %vm1185, %v1326, 0.0
      %v1395 = vadd.f32 %v1393, %v1394
      %v1396 = vsel %vm1185, %v1327, 0.0
      %v1397 = vadd.f32 %v1395, %v1396
      %v1398 = vsel %vm1185, %v1328, 0.0
      %v1399 = vadd.f32 %v1397, %v1398
      %v1400 = vsel %vm1185, %v1329, 0.0
      %v1401 = vadd.f32 %v1399, %v1400
      %v1402 = vsel %vm1185, %v1330, 0.0
      %v1403 = vadd.f32 %v1401, %v1402
      %v1404 = vsel %vm1185, %v1331, 0.0
      %v1405 = vadd.f32 %v1403, %v1404
      %v1406 = vsel %vm1185, %v1332, 0.0
      %v1407 = vadd.f32 %v1405, %v1406
      %v1408 = vsel %vm1185, %v1333, 0.0
      %v1409 = vadd.f32 %v1407, %v1408
      %v1410 = vsel %vm1185, %v1334, 0.0
      %v1411 = vadd.f32 %v1409, %v1410
      %v1412 = vsel %vm1185, %v1335, 0.0
      %v1413 = vadd.f32 %v1411, %v1412
      %v1414 = vsel %vm1185, %v1336, 0.0
      %v1415 = vadd.f32 %v1413, %v1414
      %v1416 = vsel %vm1185, %v1337, 0.0
      %v1417 = vadd.f32 %v1415, %v1416
      %v1418 = vsel %vm1185, %v1338, 0.0
      %v1419 = vadd.f32 %v1417, %v1418
      %v1420 = vsel %vm1185, %v1339, 0.0
      %v1421 = vadd.f32 %v1419, %v1420
      %v1422 = vsel %vm1185, %v1340, 0.0
      %v1423 = vadd.f32 %v1421, %v1422
      %v1424 = vsel %vm1185, %v1341, 0.0
      %v1425 = vadd.f32 %v1423, %v1424
      %v1426 = vsel %vm1185, %v1342, 0.0
      %v1427 = vadd.f32 %v1425, %v1426
      %v1428 = vsel %vm1185, %v1343, 0.0
      %v1429 = vadd.f32 %v1427, %v1428
      %v1430 = vsel %vm1185, %v1344, 0.0
      %v1431 = vadd.f32 %v1429, %v1430
      %v1432 = vsel %vm1185, %v1345, 0.0
      %v1433 = vadd.f32 %v1431, %v1432
      %v1434 = vsel %vm1185, %v1346, 0.0
      %v1435 = vadd.f32 %v1433, %v1434
      %v1436 = vsel %vm1185, %v1347, 0.0
      %v1437 = vadd.f32 %v1435, %v1436
      %v1438 = vsel %vm1185, %v1348, 0.0
      %v1439 = vadd.f32 %v1437, %v1438
      %v1440 = vsel %vm1185, %v1349, 0.0
      %v1441 = vadd.f32 %v1439, %v1440
      %v1442 = vsel %vm1185, %v1350, 0.0
      %v1443 = vadd.f32 %v1441, %v1442
      %v1444 = vsel %vm1185, %v1351, 0.0
      %v1445 = vadd.f32 %v1443, %v1444
      %v1446 = vsel %vm1185, %v1352, 0.0
      %v1447 = vadd.f32 %v1445, %v1446
      %v1448 = vsel %vm1185, %v1353, 0.0
      %v1449 = vadd.f32 %v1447, %v1448
      %v1450 = vsel %vm1185, %v1354, 0.0
      %v1451 = vadd.f32 %v1449, %v1450
      %v1452 = vsel %vm1185, %v1355, 0.0
      %v1453 = vadd.f32 %v1451, %v1452
      %v1454 = vsel %vm1185, %v1356, 0.0
      %v1455 = vadd.f32 %v1453, %v1454
      %v1456 = vsel %vm1185, %v1357, 0.0
      %v1457 = vadd.f32 %v1455, %v1456
      %v1458 = vsel %vm1185, %v1358, 0.0
      %v1459 = vadd.f32 %v1457, %v1458
      %v1460 = vsel %vm1185, %v1359, 0.0
      %v1461 = vadd.f32 %v1459, %v1460
      %v1462 = vsel %vm1185, %v1360, 0.0
      %v1463 = vadd.f32 %v1461, %v1462
      %v1464 = vsel %vm1185, %v1361, 0.0
      %v1465 = vadd.f32 %v1463, %v1464
      %v1466 = vsel %vm1185, %v1362, 0.0
      %v1467 = vadd.f32 %v1465, %v1466
      %v1468 = vsel %vm1185, %v1363, 0.0
      %v1469 = vadd.f32 %v1467, %v1468
      %v1470 = vsel %vm1185, %v1364, 0.0
      %v1471 = vadd.f32 %v1469, %v1470
      %v1472 = vsel %vm1185, %v1365, 0.0
      %v1473 = vadd.f32 %v1471, %v1472
      %v1474 = vsel %vm1185, %v1366, 0.0
      %v1475 = vadd.f32 %v1473, %v1474
      %v1476 = vsel %vm1185, %v1367, 0.0
      %v1477 = vadd.f32 %v1475, %v1476
      %v1478 = vsel %vm1185, %v1368, 0.0
      %v1479 = vadd.f32 %v1477, %v1478
      %v1480 = vsel %vm1185, %v1369, 0.0
      %v1481 = vadd.f32 %v1479, %v1480
      %v1482 = vsel %vm1185, %v1370, 0.0
      %v1483 = vadd.f32 %v1481, %v1482
      %v1484 = vsel %vm1185, %v1371, 0.0
      %v1485 = vadd.f32 %v1483, %v1484
      %v1486 = vsel %vm1185, %v1372, 0.0
      %v1487 = vadd.f32 %v1485, %v1486
      %v1488 = vsel %vm1185, %v1373, 0.0
      %v1489 = vadd.f32 %v1487, %v1488
      %v1490 = vsel %vm1185, %v1374, 0.0
      %v1491 = vadd.f32 %v1489, %v1490
      %v1492 = vsel %vm1185, %v1375, 0.0
      %v1493 = vadd.f32 %v1491, %v1492
      %v1494 = vsel %vm1185, %v1376, 0.0
      %v1495 = vadd.f32 %v1493, %v1494
      %v1496 = vsel %vm1185, %v1377, 0.0
      %v1497 = vadd.f32 %v1495, %v1496
      %v1498 = vsel %vm1185, %v1378, 0.0
      %v1499 = vadd.f32 %v1497, %v1498
      %v1500 = vsel %vm1185, %v1379, 0.0
      %v1501 = vadd.f32 %v1499, %v1500
      %v1502 = vsel %vm1185, %v1380, 0.0
      %v1503 = vadd.f32 %v1501, %v1502
      %v1504 = vsel %vm1185, %v1381, 0.0
      %v1505 = vadd.f32 %v1503, %v1504
      %v1506 = vsel %vm1185, %v1382, 0.0
      %v1507 = vadd.f32 %v1505, %v1506
      %v1508 = vsel %vm1185, %v1383, 0.0
      %v1509 = vadd.f32 %v1507, %v1508
      %v1510 = vsel %vm1185, %v1384, 0.0
      %v1511 = vadd.f32 %v1509, %v1510
      %v1512 = vrot.slane %v1511, 4
      %v1513 = vadd.f32 %v1511, %v1512
      %v1514 = vrot.slane %v1513, 2
      %v1515 = vadd.f32 %v1513, %v1514
      %v1516 = vrot.slane %v1515, 1
      %v1517 = vadd.f32 %v1515, %v1516
      %1518 = vst.msk [vmem:[%s245 + $0x1] sm:$0x1] %vm1319, %v1517
      %s1519 = smul.u32 %s19, 2
      %s1520 = sadd.s32 %s1519, %s20
      %s1521 = smul.u32 64, %s1520
      %p1522 = scmp.lt.s32.totalorder %s1521, 511
      %s1523 = scalar_select %p1522, %s1521, 511
      %s1524 = smul.addr %s1523, 4
      %s1525 = scalar_lea.vmem %s2, %s1524
      %s1526 = smul.u32 %s19, 2
      %s1527 = sadd.s32 %s1526, %s20
      %p1528 = scmp.lt.s32.totalorder %s1527, 7
      %s1529 = scalar_select %p1528, %s1527, 7
      %s1530 = smul.addr %s1529, 2
      %s1531 = scalar_lea.vmem %s3, %s1530
      // Predicated region
      $region29: #{pointnet_encoder_forward.9} parent=27 // pred_check
        %p1532 = pneg %p105
      $region30: #{pointnet_encoder_forward.9} parent=27 // pred_check_branch
        %1534 = sbr.rel (%p1532) target = $region32
      $region31: #{pointnet_encoder_forward.9} parent=27 // pred_region
        %s1535 = smul.u32 %s19, 2
        %s1536 = sadd.s32 %s1535, %s20
        %s1537 = smul.u32 64, %s1536
      $region32: #{pointnet_encoder_forward.9} parent=27 // pred_fallthru
        _
      // Predicated region
      $region33: #{pointnet_encoder_forward.9} parent=27 // pred_check
        %p1538 = pneg %p135
      $region34: #{pointnet_encoder_forward.9} parent=27 // pred_check_branch
        %1540 = sbr.rel (%p1538) target = $region36
      $region35: #{pointnet_encoder_forward.9} parent=27 // pred_region
        %s1541 = smul.u32 %s19, 2
        %s1542 = sadd.s32 %s1541, %s20
      $region36: #{pointnet_encoder_forward.9} parent=27 // pred_fallthru
        _
    $region28: #{pointnet_encoder_forward.9} parent=5 // pred_fallthru
      _
    %p1543 = scmp.le.s32.totalorder 2, %s10
    // Predicated region
    $region37: #{pointnet_encoder_forward.9} parent=5 // pred_check
      %p1544 = pneg %p1543
    $region38: #{pointnet_encoder_forward.9} parent=5 // pred_check_branch
      %1546 = sbr.rel (%p1544) target = $region40
    $region39: #{pointnet_encoder_forward.9} parent=5 // pred_region
      %s1547 = ssub.s32 %s10, 2
      // Predicated region
      $region41: #{pointnet_encoder_forward.9} parent=39 // pred_check
        %p1548 = pneg %p111
      $region42: #{pointnet_encoder_forward.9} parent=39 // pred_check_branch
        %1550 = sbr.rel (%p1548) target = $region44
      $region43: #{pointnet_encoder_forward.9} parent=39 // pred_region
        %s1551 = smul.u32 %s21, 2
        %s1552 = sadd.s32 %s1551, %s22
        %s1553 = smul.u32 64, %s1552
        %p1554 = scmp.lt.s32.totalorder %s1553, 511
        %s1555 = scalar_select %p1554, %s1553, 511
        %s1556 = smul.addr %s1555, 4
        %s1557 = scalar_lea.vmem %s2, %s1556
      $region44: #{pointnet_encoder_forward.9} parent=39 // pred_fallthru
        _
      // Predicated region
      $region45: #{pointnet_encoder_forward.9} parent=39 // pred_check
        %p1558 = pneg %p141
      $region46: #{pointnet_encoder_forward.9} parent=39 // pred_check_branch
        %1560 = sbr.rel (%p1558) target = $region48
      $region47: #{pointnet_encoder_forward.9} parent=39 // pred_region
        %s1561 = smul.u32 %s21, 2
        %s1562 = sadd.s32 %s1561, %s22
        %p1563 = scmp.lt.s32.totalorder %s1562, 7
        %s1564 = scalar_select %p1563, %s1562, 7
        %s1565 = smul.addr %s1564, 2
        %s1566 = scalar_lea.vmem %s3, %s1565
      $region48: #{pointnet_encoder_forward.9} parent=39 // pred_fallthru
        _
    $region40: #{pointnet_encoder_forward.9} parent=5 // pred_fallthru
      _
  $region6: #{pointnet_encoder_forward.9} parent=0 // loop_footer
    %s14 = sadd.s32 1, %s10
  $region7: #{pointnet_encoder_forward.9} parent=0 // loop_footer_branch
    %9 = sbr.rel target = $region3
  $region8: #{pointnet_encoder_forward.9} parent=0 // loop_exit
    _

// kernel: pointnet_encoder_forward.8
$region0: #{pointnet_encoder_forward.8}
  #allocation0 [shape = 'u32[]', space=smem, size = 0x4, offset = 0x4, fixed_abs, tag = 'smem constant byte address 0x4 - core index']
  #allocation1 [shape = 'u32[144,128]{1,0:T(1,128)}', space=vmem, size = 0x12000, scoped, tag = 'internal scratch']
  %s0 = inlined_call_operand.vmem [shape: bf16[4096,128], index: 0, kind: input, shape index: {}]
  %s1 = inlined_call_operand.vmem [shape: f32[2,128], index: 1, kind: input, shape index: {}]
  %s2 = inlined_call_operand.vmem [shape: bf16[128,1024], index: 2, kind: input, shape index: {}]
  %s3 = inlined_call_operand.vmem [shape: f32[4,4,1024], index: 3, kind: output, shape index: {}]
  %s4 = sld [smem:[#allocation0]]
  $region53: #{pointnet_encoder_forward.8} parent=0
    _
  %s6 = ssub.s32 1, %s4
  %s7 = scalar_select 0, %s6, %s4
  loop: start=0, step=1, limit=10
  $region2: #{pointnet_encoder_forward.8} parent=0 // loop_pre_header
    _
  $region3: #{pointnet_encoder_forward.8} parent=0 // loop_header
    %s9 = sphi 0, %s13
    %p10 = scmp.ge.s32.totalorder %s9, 10
    %s16 = sphi 0, %s28
    %s17 = sphi 0, %s24
    %s18 = sphi 0, %s16
    %s19 = sphi 0, %s17
    %s20 = sphi 0, %s18
    %s21 = sphi 0, %s19
    %s35 = sphi 0, %s37
    %s38 = sphi 0, %s35
    %s39 = sphi 0, %s38
    %s55 = sphi 0, %s39
    %s59 = sphi 0, %s59
    %s61 = sphi 0, %s59
    %s62 = sphi 0, %s61
    %s76 = sphi 0, %s62
    %s80 = sphi 0, %s80
    %s82 = sphi 0, %s80
    %s83 = sphi 0, %s82
    %s97 = sphi 0, %s83
    %s103 = sphi 0, %s105
    %s106 = sphi 0, %s103
    %s107 = sphi 0, %s106
    %s123 = sphi 0, %s107
  $region4: #{pointnet_encoder_forward.8} parent=0 // loop_header_branch
    %12 = sbr.rel (%p10) target = $region8
  $region5: #{pointnet_encoder_forward.8} parent=0 // loop_body
    %s14 = ssub.s32 %s9, 1
    %s15 = ssub.s32 %s9, 2
    %s22 = sadd.s32 1, %s17
    %p23 = scmp.ge.s32.totalorder %s22, 2
    %s24 = scalar_select %p23, 0, %s22
    %s25 = sadd.s32 1, %s16
    %s26 = scalar_select %p23, %s25, %s16
    %p27 = scmp.ge.s32.totalorder %s26, 4
    %s28 = scalar_select %p27, 0, %s26
    %s29 = smul.u32 %s16, 2
    %s30 = sadd.s32 %s29, %s17
    %s31 = smul.u32 %s28, 2
    %s32 = sadd.s32 %s31, %s24
    %s33 = ssub.s32 %s30, %s32
    %p34 = scmp.eq.s32.totalorder %s33, 0
    %s36 = sadd.s32 %s35, 1
    %s37 = scalar_select %p34, %s35, %s36
    %p40 = pneg %p34
    %p41 = scmp.eq.s32.totalorder %s9, 7
    %p42 = por %p40, %p41
    %p43 = scmp.ne.s32.totalorder %s35, %s38
    %p44 = scmp.eq.s32.totalorder %s9, 0
    %p45 = por %p43, %p44
    %p46 = scmp.ne.s32.totalorder %s35, %s38
    %p47 = scmp.eq.s32.totalorder %s14, 7
    %p48 = por %p46, %p47
    %p49 = scmp.ne.s32.totalorder %s38, %s39
    %p50 = scmp.eq.s32.totalorder %s14, 0
    %p51 = por %p49, %p50
    %p52 = scmp.ne.s32.totalorder %s38, %s39
    %p53 = scmp.eq.s32.totalorder %s15, 7
    %p54 = por %p52, %p53
    %p56 = scmp.ne.s32.totalorder %s39, %s55
    %p57 = scmp.eq.s32.totalorder %s15, 0
    %p58 = por %p56, %p57
    %s60 = sadd.s32 %s59, 1
    %p63 = scmp.eq.s32.totalorder %s9, 7
    %p64 = scmp.ne.s32.totalorder %s59, %s61
    %p65 = scmp.eq.s32.totalorder %s9, 0
    %p66 = por %p64, %p65
    %p67 = scmp.ne.s32.totalorder %s59, %s61
    %p68 = scmp.eq.s32.totalorder %s14, 7
    %p69 = por %p67, %p68
    %p70 = scmp.ne.s32.totalorder %s61, %s62
    %p71 = scmp.eq.s32.totalorder %s14, 0
    %p72 = por %p70, %p71
    %p73 = scmp.ne.s32.totalorder %s61, %s62
    %p74 = scmp.eq.s32.totalorder %s15, 7
    %p75 = por %p73, %p74
    %p77 = scmp.ne.s32.totalorder %s62, %s76
    %p78 = scmp.eq.s32.totalorder %s15, 0
    %p79 = por %p77, %p78
    %s81 = sadd.s32 %s80, 1
    %p84 = scmp.eq.s32.totalorder %s9, 7
    %p85 = scmp.ne.s32.totalorder %s80, %s82
    %p86 = scmp.eq.s32.totalorder %s9, 0
    %p87 = por %p85, %p86
    %p88 = scmp.ne.s32.totalorder %s80, %s82
    %p89 = scmp.eq.s32.totalorder %s14, 7
    %p90 = por %p88, %p89
    %p91 = scmp.ne.s32.totalorder %s82, %s83
    %p92 = scmp.eq.s32.totalorder %s14, 0
    %p93 = por %p91, %p92
    %p94 = scmp.ne.s32.totalorder %s82, %s83
    %p95 = scmp.eq.s32.totalorder %s15, 7
    %p96 = por %p94, %p95
    %p98 = scmp.ne.s32.totalorder %s83, %s97
    %p99 = scmp.eq.s32.totalorder %s15, 0
    %p100 = por %p98, %p99
    %s101 = ssub.s32 %s16, %s28
    %p102 = scmp.eq.s32.totalorder %s101, 0
    %s104 = sadd.s32 %s103, 1
    %s105 = scalar_select %p102, %s103, %s104
    %p108 = pneg %p102
    %p109 = scmp.eq.s32.totalorder %s9, 7
    %p110 = por %p108, %p109
    %p111 = scmp.ne.s32.totalorder %s103, %s106
    %p112 = scmp.eq.s32.totalorder %s9, 0
    %p113 = por %p111, %p112
    %p114 = scmp.ne.s32.totalorder %s103, %s106
    %p115 = scmp.eq.s32.totalorder %s14, 7
    %p116 = por %p114, %p115
    %p117 = scmp.ne.s32.totalorder %s106, %s107
    %p118 = scmp.eq.s32.totalorder %s14, 0
    %p119 = por %p117, %p118
    %p120 = scmp.ne.s32.totalorder %s106, %s107
    %p121 = scmp.eq.s32.totalorder %s15, 7
    %p122 = por %p120, %p121
    %p124 = scmp.ne.s32.totalorder %s107, %s123
    %p125 = scmp.eq.s32.totalorder %s15, 0
    %p126 = por %p124, %p125
    %p127 = scmp.le.s32.totalorder 1, %s9
    %p128 = scmp.lt.s32.totalorder %s9, 9
    %p129 = pnand %p127, %p128
    %p130 = pneg %p129
    // Predicated region
    $region9: #{pointnet_encoder_forward.8} parent=5 // pred_check
      _
    $region10: #{pointnet_encoder_forward.8} parent=5 // pred_check_branch
      %132 = sbr.rel (%p129) target = $region12
    $region11: #{pointnet_encoder_forward.8} parent=5 // pred_region
      %s133 = ssub.s32 %s9, 1
      // Predicated region
      $region13: #{pointnet_encoder_forward.8} parent=11 // pred_check
        %p134 = pneg %p72
      $region14: #{pointnet_encoder_forward.8} parent=11 // pred_check_branch
        %136 = sbr.rel (%p134) target = $region16
      $region15: #{pointnet_encoder_forward.8} parent=11 // pred_region
        _
      $region16: #{pointnet_encoder_forward.8} parent=11 // pred_fallthru
        _
      // Predicated region
      $region17: #{pointnet_encoder_forward.8} parent=11 // pred_check
        %p137 = pneg %p93
      $region18: #{pointnet_encoder_forward.8} parent=11 // pred_check_branch
        %139 = sbr.rel (%p137) target = $region20
      $region19: #{pointnet_encoder_forward.8} parent=11 // pred_region
        _
      $region20: #{pointnet_encoder_forward.8} parent=11 // pred_fallthru
        _
    $region12: #{pointnet_encoder_forward.8} parent=5 // pred_fallthru
      _
    %p140 = scmp.lt.s32.totalorder %s9, 8
    // Predicated region
    $region21: #{pointnet_encoder_forward.8} parent=5 // pred_check
      %p141 = pneg %p140
    $region22: #{pointnet_encoder_forward.8} parent=5 // pred_check_branch
      %143 = sbr.rel (%p141) target = $region24
    $region23: #{pointnet_encoder_forward.8} parent=5 // pred_region
      // Predicated region
      $region25: #{pointnet_encoder_forward.8} parent=23 // pred_check
        %p144 = pneg %p45
      $region26: #{pointnet_encoder_forward.8} parent=23 // pred_check_branch
        %146 = sbr.rel (%p144) target = $region28
      $region27: #{pointnet_encoder_forward.8} parent=23 // pred_region
        %s147 = smul.u32 %s16, 2
        %s148 = sadd.s32 %s147, %s17
        %s149 = smul.u32 64, %s148
        %p150 = scmp.lt.s32.totalorder %s149, 511
        %s151 = scalar_select %p150, %s149, 511
        %s152 = smul.addr %s151, 4
        %s153 = scalar_lea.vmem %s0, %s152
        %s154 = smul.u32 %s16, 2
        %s155 = sadd.s32 %s154, %s17
        %s156 = smul.u32 64, %s155
      $region28: #{pointnet_encoder_forward.8} parent=23 // pred_fallthru
        _
    $region24: #{pointnet_encoder_forward.8} parent=5 // pred_fallthru
      _
    %p157 = scmp.le.s32.totalorder 1, %s9
    %p158 = scmp.lt.s32.totalorder %s9, 9
    %p159 = pnand %p157, %p158
    %p160 = pneg %p159
    // Predicated region
    $region29: #{pointnet_encoder_forward.8} parent=5 // pred_check
      _
    $region30: #{pointnet_encoder_forward.8} parent=5 // pred_check_branch
      %162 = sbr.rel (%p159) target = $region32
    $region31: #{pointnet_encoder_forward.8} parent=5 // pred_region
      %s163 = ssub.s32 %s9, 1
      %s164 = smul.u32 %s18, 2
      %s165 = sadd.s32 %s164, %s19
      %s166 = smul.u32 64, %s165
      %p167 = scmp.lt.s32.totalorder %s166, 511
      %s168 = scalar_select %p167, %s166, 511
      %s169 = smul.addr %s168, 4
      %s170 = scalar_lea.vmem %s0, %s169
      %p171 = pneg %p51
      %p172 = pneg %p48
      %p173 = pneg %p72
      %p174 = pneg %p69
      %p175 = pneg %p93
      %p176 = pneg %p90
      %p177 = pneg %p119
      %p178 = pneg %p116
      %p179 = scmp.lt.s32.totalorder %s18, 3
      %s180 = scalar_select %p179, %s18, 3
      %s181 = smul.addr %s180, 8
      %s182 = smul.addr %s181, 4
      %s183 = scalar_lea.vmem %s3, %s182
      %s184 = smul.u32 %s18, 2
      %s185 = sadd.s32 %s184, %s19
      %s186 = smul.u32 64, %s185
      %p187 = scmp.lt.s32.totalorder %s186, 511
      %s188 = scalar_select %p187, %s186, 511
      %s189 = smul.addr %s188, 4
      %s190 = scalar_lea.vmem %s0, %s189
      %s191 = smul.u32 %s18, 2
      %s192 = sadd.s32 %s191, %s19
      %s193 = smul.u32 64, %s192
      %p194 = scmp.lt.s32.totalorder %s18, 3
      %s195 = scalar_select %p194, %s18, 3
      %s196 = smul.addr %s195, 8
      %s197 = smul.addr %s196, 4
      %s198 = scalar_lea.vmem %s3, %s197
      %v200 = vld [vmem:[%s190] sm:$0xf]
      %v201 = vld [vmem:[%s190 + $0x4] sm:$0xf]
      %v202 = vld [vmem:[%s190 + $0x8] sm:$0xf]
      %v203 = vld [vmem:[%s190 + $0xc] sm:$0xf]
      %v204 = vld [vmem:[%s190 + $0x10] sm:$0xf]
      %v205 = vld [vmem:[%s190 + $0x14] sm:$0xf]
      %v206 = vld [vmem:[%s190 + $0x18] sm:$0xf]
      %v207 = vld [vmem:[%s190 + $0x1c] sm:$0xf]
      %v208 = vld [vmem:[%s190 + $0x20] sm:$0xf]
      %v209 = vld [vmem:[%s190 + $0x24] sm:$0xf]
      %v210 = vld [vmem:[%s190 + $0x28] sm:$0xf]
      %v211 = vld [vmem:[%s190 + $0x2c] sm:$0xf]
      %v212 = vld [vmem:[%s190 + $0x30] sm:$0xf]
      %v213 = vld [vmem:[%s190 + $0x34] sm:$0xf]
      %v214 = vld [vmem:[%s190 + $0x38] sm:$0xf]
      %v215 = vld [vmem:[%s190 + $0x3c] sm:$0xf]
      %v216 = vld [vmem:[%s190 + $0x40] sm:$0xf]
      %v217 = vld [vmem:[%s190 + $0x44] sm:$0xf]
      %v218 = vld [vmem:[%s190 + $0x48] sm:$0xf]
      %v219 = vld [vmem:[%s190 + $0x4c] sm:$0xf]
      %v220 = vld [vmem:[%s190 + $0x50] sm:$0xf]
      %v221 = vld [vmem:[%s190 + $0x54] sm:$0xf]
      %v222 = vld [vmem:[%s190 + $0x58] sm:$0xf]
      %v223 = vld [vmem:[%s190 + $0x5c] sm:$0xf]
      %v224 = vld [vmem:[%s190 + $0x60] sm:$0xf]
      %v225 = vld [vmem:[%s190 + $0x64] sm:$0xf]
      %v226 = vld [vmem:[%s190 + $0x68] sm:$0xf]
      %v227 = vld [vmem:[%s190 + $0x6c] sm:$0xf]
      %v228 = vld [vmem:[%s190 + $0x70] sm:$0xf]
      %v229 = vld [vmem:[%s190 + $0x74] sm:$0xf]
      %v230 = vld [vmem:[%s190 + $0x78] sm:$0xf]
      %v231 = vld [vmem:[%s190 + $0x7c] sm:$0xf]
      %v232 = vld [vmem:[%s190 + $0x80] sm:$0xf]
      %v233 = vld [vmem:[%s190 + $0x84] sm:$0xf]
      %v234 = vld [vmem:[%s190 + $0x88] sm:$0xf]
      %v235 = vld [vmem:[%s190 + $0x8c] sm:$0xf]
      %v236 = vld [vmem:[%s190 + $0x90] sm:$0xf]
      %v237 = vld [vmem:[%s190 + $0x94] sm:$0xf]
      %v238 = vld [vmem:[%s190 + $0x98] sm:$0xf]
      %v239 = vld [vmem:[%s190 + $0x9c] sm:$0xf]
      %v240 = vld [vmem:[%s190 + $0xa0] sm:$0xf]
      %v241 = vld [vmem:[%s190 + $0xa4] sm:$0xf]
      %v242 = vld [vmem:[%s190 + $0xa8] sm:$0xf]
      %v243 = vld [vmem:[%s190 + $0xac] sm:$0xf]
      %v244 = vld [vmem:[%s190 + $0xb0] sm:$0xf]
      %v245 = vld [vmem:[%s190 + $0xb4] sm:$0xf]
      %v246 = vld [vmem:[%s190 + $0xb8] sm:$0xf]
      %v247 = vld [vmem:[%s190 + $0xbc] sm:$0xf]
      %v248 = vld [vmem:[%s190 + $0xc0] sm:$0xf]
      %v249 = vld [vmem:[%s190 + $0xc4] sm:$0xf]
      %v250 = vld [vmem:[%s190 + $0xc8] sm:$0xf]
      %v251 = vld [vmem:[%s190 + $0xcc] sm:$0xf]
      %v252 = vld [vmem:[%s190 + $0xd0] sm:$0xf]
      %v253 = vld [vmem:[%s190 + $0xd4] sm:$0xf]
      %v254 = vld [vmem:[%s190 + $0xd8] sm:$0xf]
      %v255 = vld [vmem:[%s190 + $0xdc] sm:$0xf]
      %v256 = vld [vmem:[%s190 + $0xe0] sm:$0xf]
      %v257 = vld [vmem:[%s190 + $0xe4] sm:$0xf]
      %v258 = vld [vmem:[%s190 + $0xe8] sm:$0xf]
      %v259 = vld [vmem:[%s190 + $0xec] sm:$0xf]
      %v260 = vld [vmem:[%s190 + $0xf0] sm:$0xf]
      %v261 = vld [vmem:[%s190 + $0xf4] sm:$0xf]
      %v262 = vld [vmem:[%s190 + $0xf8] sm:$0xf]
      %v263 = vld [vmem:[%s190 + $0xfc] sm:$0xf]
      %v264 = vunpack.c.l.bf16 %v200
      %v265 = vunpack.c.l.bf16 %v201
      %v266 = vunpack.c.l.bf16 %v202
      %v267 = vunpack.c.l.bf16 %v203
      %v268 = vunpack.c.l.bf16 %v204
      %v269 = vunpack.c.l.bf16 %v205
      %v270 = vunpack.c.l.bf16 %v206
      %v271 = vunpack.c.l.bf16 %v207
      %v272 = vunpack.c.l.bf16 %v208
      %v273 = vunpack.c.l.bf16 %v209
      %v274 = vunpack.c.l.bf16 %v210
      %v275 = vunpack.c.l.bf16 %v211
      %v276 = vunpack.c.l.bf16 %v212
      %v277 = vunpack.c.l.bf16 %v213
      %v278 = vunpack.c.l.bf16 %v214
      %v279 = vunpack.c.l.bf16 %v215
      %v280 = vunpack.c.l.bf16 %v216
      %v281 = vunpack.c.l.bf16 %v217
      %v282 = vunpack.c.l.bf16 %v218
      %v283 = vunpack.c.l.bf16 %v219
      %v284 = vunpack.c.l.bf16 %v220
      %v285 = vunpack.c.l.bf16 %v221
      %v286 = vunpack.c.l.bf16 %v222
      %v287 = vunpack.c.l.bf16 %v223
      %v288 = vunpack.c.l.bf16 %v224
      %v289 = vunpack.c.l.bf16 %v225
      %v290 = vunpack.c.l.bf16 %v226
      %v291 = vunpack.c.l.bf16 %v227
      %v292 = vunpack.c.l.bf16 %v228
      %v293 = vunpack.c.l.bf16 %v229
      %v294 = vunpack.c.l.bf16 %v230
      %v295 = vunpack.c.l.bf16 %v231
      %v296 = vunpack.c.l.bf16 %v232
      %v297 = vunpack.c.l.bf16 %v233
      %v298 = vunpack.c.l.bf16 %v234
      %v299 = vunpack.c.l.bf16 %v235
      %v300 = vunpack.c.l.bf16 %v236
      %v301 = vunpack.c.l.bf16 %v237
      %v302 = vunpack.c.l.bf16 %v238
      %v303 = vunpack.c.l.bf16 %v239
      %v304 = vunpack.c.l.bf16 %v240
      %v305 = vunpack.c.l.bf16 %v241
      %v306 = vunpack.c.l.bf16 %v242
      %v307 = vunpack.c.l.bf16 %v243
      %v308 = vunpack.c.l.bf16 %v244
      %v309 = vunpack.c.l.bf16 %v245
      %v310 = vunpack.c.l.bf16 %v246
      %v311 = vunpack.c.l.bf16 %v247
      %v312 = vunpack.c.l.bf16 %v248
      %v313 = vunpack.c.l.bf16 %v249
      %v314 = vunpack.c.l.bf16 %v250
      %v315 = vunpack.c.l.bf16 %v251
      %v316 = vunpack.c.l.bf16 %v252
      %v317 = vunpack.c.l.bf16 %v253
      %v318 = vunpack.c.l.bf16 %v254
      %v319 = vunpack.c.l.bf16 %v255
      %v320 = vunpack.c.l.bf16 %v256
      %v321 = vunpack.c.l.bf16 %v257
      %v322 = vunpack.c.l.bf16 %v258
      %v323 = vunpack.c.l.bf16 %v259
      %v324 = vunpack.c.l.bf16 %v260
      %v325 = vunpack.c.l.bf16 %v261
      %v326 = vunpack.c.l.bf16 %v262
      %v327 = vunpack.c.l.bf16 %v263
      %v328 = vld [vmem:[%s1] sm:$0x1]
      %v329 = vlaneseq
      %v330 = vshrl.u32 %v329, 7
      %v331 = vsub.s32 0, %v330
      %v332 = vrot.slane %v328, %v331
      %v333 = vmul.f32 %v264, %v332
      %v334 = vmul.f32 %v265, %v332
      %v335 = vmul.f32 %v266, %v332
      %v336 = vmul.f32 %v267, %v332
      %v337 = vmul.f32 %v268, %v332
      %v338 = vmul.f32 %v269, %v332
      %v339 = vmul.f32 %v270, %v332
      %v340 = vmul.f32 %v271, %v332
      %v341 = vmul.f32 %v272, %v332
      %v342 = vmul.f32 %v273, %v332
      %v343 = vmul.f32 %v274, %v332
      %v344 = vmul.f32 %v275, %v332
      %v345 = vmul.f32 %v276, %v332
      %v346 = vmul.f32 %v277, %v332
      %v347 = vmul.f32 %v278, %v332
      %v348 = vmul.f32 %v279, %v332
      %v349 = vmul.f32 %v280, %v332
      %v350 = vmul.f32 %v281, %v332
      %v351 = vmul.f32 %v282, %v332
      %v352 = vmul.f32 %v283, %v332
      %v353 = vmul.f32 %v284, %v332
      %v354 = vmul.f32 %v285, %v332
      %v355 = vmul.f32 %v286, %v332
      %v356 = vmul.f32 %v287, %v332
      %v357 = vmul.f32 %v288, %v332
      %v358 = vmul.f32 %v289, %v332
      %v359 = vmul.f32 %v290, %v332
      %v360 = vmul.f32 %v291, %v332
      %v361 = vmul.f32 %v292, %v332
      %v362 = vmul.f32 %v293, %v332
      %v363 = vmul.f32 %v294, %v332
      %v364 = vmul.f32 %v295, %v332
      %v365 = vmul.f32 %v296, %v332
      %v366 = vmul.f32 %v297, %v332
      %v367 = vmul.f32 %v298, %v332
      %v368 = vmul.f32 %v299, %v332
      %v369 = vmul.f32 %v300, %v332
      %v370 = vmul.f32 %v301, %v332
      %v371 = vmul.f32 %v302, %v332
      %v372 = vmul.f32 %v303, %v332
      %v373 = vmul.f32 %v304, %v332
      %v374 = vmul.f32 %v305, %v332
      %v375 = vmul.f32 %v306, %v332
      %v376 = vmul.f32 %v307, %v332
      %v377 = vmul.f32 %v308, %v332
      %v378 = vmul.f32 %v309, %v332
      %v379 = vmul.f32 %v310, %v332
      %v380 = vmul.f32 %v311, %v332
      %v381 = vmul.f32 %v312, %v332
      %v382 = vmul.f32 %v313, %v332
      %v383 = vmul.f32 %v314, %v332
      %v384 = vmul.f32 %v315, %v332
      %v385 = vmul.f32 %v316, %v332
      %v386 = vmul.f32 %v317, %v332
      %v387 = vmul.f32 %v318, %v332
      %v388 = vmul.f32 %v319, %v332
      %v389 = vmul.f32 %v320, %v332
      %v390 = vmul.f32 %v321, %v332
      %v391 = vmul.f32 %v322, %v332
      %v392 = vmul.f32 %v323, %v332
      %v393 = vmul.f32 %v324, %v332
      %v394 = vmul.f32 %v325, %v332
      %v395 = vmul.f32 %v326, %v332
      %v396 = vmul.f32 %v327, %v332
      %v397 = vld [vmem:[%s1 + $0x1] sm:$0x1]
      %v398 = vlaneseq
      %v399 = vshrl.u32 %v398, 7
      %v400 = vsub.s32 0, %v399
      %v401 = vrot.slane %v397, %v400
      %v402 = vadd.f32 %v333, %v401
      %v403 = vadd.f32 %v334, %v401
      %v404 = vadd.f32 %v335, %v401
      %v405 = vadd.f32 %v336, %v401
      %v406 = vadd.f32 %v337, %v401
      %v407 = vadd.f32 %v338, %v401
      %v408 = vadd.f32 %v339, %v401
      %v409 = vadd.f32 %v340, %v401
      %v410 = vadd.f32 %v341, %v401
      %v411 = vadd.f32 %v342, %v401
      %v412 = vadd.f32 %v343, %v401
      %v413 = vadd.f32 %v344, %v401
      %v414 = vadd.f32 %v345, %v401
      %v415 = vadd.f32 %v346, %v401
      %v416 = vadd.f32 %v347, %v401
      %v417 = vadd.f32 %v348, %v401
      %v418 = vadd.f32 %v349, %v401
      %v419 = vadd.f32 %v350, %v401
      %v420 = vadd.f32 %v351, %v401
      %v421 = vadd.f32 %v352, %v401
      %v422 = vadd.f32 %v353, %v401
      %v423 = vadd.f32 %v354, %v401
      %v424 = vadd.f32 %v355, %v401
      %v425 = vadd.f32 %v356, %v401
      %v426 = vadd.f32 %v357, %v401
      %v427 = vadd.f32 %v358, %v401
      %v428 = vadd.f32 %v359, %v401
      %v429 = vadd.f32 %v360, %v401
      %v430 = vadd.f32 %v361, %v401
      %v431 = vadd.f32 %v362, %v401
      %v432 = vadd.f32 %v363, %v401
      %v433 = vadd.f32 %v364, %v401
      %v434 = vadd.f32 %v365, %v401
      %v435 = vadd.f32 %v366, %v401
      %v436 = vadd.f32 %v367, %v401
      %v437 = vadd.f32 %v368, %v401
      %v438 = vadd.f32 %v369, %v401
      %v439 = vadd.f32 %v370, %v401
      %v440 = vadd.f32 %v371, %v401
      %v441 = vadd.f32 %v372, %v401
      %v442 = vadd.f32 %v373, %v401
      %v443 = vadd.f32 %v374, %v401
      %v444 = vadd.f32 %v375, %v401
      %v445 = vadd.f32 %v376, %v401
      %v446 = vadd.f32 %v377, %v401
      %v447 = vadd.f32 %v378, %v401
      %v448 = vadd.f32 %v379, %v401
      %v449 = vadd.f32 %v380, %v401
      %v450 = vadd.f32 %v381, %v401
      %v451 = vadd.f32 %v382, %v401
      %v452 = vadd.f32 %v383, %v401
      %v453 = vadd.f32 %v384, %v401
      %v454 = vadd.f32 %v385, %v401
      %v455 = vadd.f32 %v386, %v401
      %v456 = vadd.f32 %v387, %v401
      %v457 = vadd.f32 %v388, %v401
      %v458 = vadd.f32 %v389, %v401
      %v459 = vadd.f32 %v390, %v401
      %v460 = vadd.f32 %v391, %v401
      %v461 = vadd.f32 %v392, %v401
      %v462 = vadd.f32 %v393, %v401
      %v463 = vadd.f32 %v394, %v401
      %v464 = vadd.f32 %v395, %v401
      %v465 = vadd.f32 %v396, %v401
      %v466 = vmax.f32 %v402, 0.0
      %v467 = vmax.f32 %v403, 0.0
      %v468 = vmax.f32 %v404, 0.0
      %v469 = vmax.f32 %v405, 0.0
      %v470 = vmax.f32 %v406, 0.0
      %v471 = vmax.f32 %v407, 0.0
      %v472 = vmax.f32 %v408, 0.0
      %v473 = vmax.f32 %v409, 0.0
      %v474 = vmax.f32 %v410, 0.0
      %v475 = vmax.f32 %v411, 0.0
      %v476 = vmax.f32 %v412, 0.0
      %v477 = vmax.f32 %v413, 0.0
      %v478 = vmax.f32 %v414, 0.0
      %v479 = vmax.f32 %v415, 0.0
      %v480 = vmax.f32 %v416, 0.0
      %v481 = vmax.f32 %v417, 0.0
      %v482 = vmax.f32 %v418, 0.0
      %v483 = vmax.f32 %v419, 0.0
      %v484 = vmax.f32 %v420, 0.0
      %v485 = vmax.f32 %v421, 0.0
      %v486 = vmax.f32 %v422, 0.0
      %v487 = vmax.f32 %v423, 0.0
      %v488 = vmax.f32 %v424, 0.0
      %v489 = vmax.f32 %v425, 0.0
      %v490 = vmax.f32 %v426, 0.0
      %v491 = vmax.f32 %v427, 0.0
      %v492 = vmax.f32 %v428, 0.0
      %v493 = vmax.f32 %v429, 0.0
      %v494 = vmax.f32 %v430, 0.0
      %v495 = vmax.f32 %v431, 0.0
      %v496 = vmax.f32 %v432, 0.0
      %v497 = vmax.f32 %v433, 0.0
      %v498 = vmax.f32 %v434, 0.0
      %v499 = vmax.f32 %v435, 0.0
      %v500 = vmax.f32 %v436, 0.0
      %v501 = vmax.f32 %v437, 0.0
      %v502 = vmax.f32 %v438, 0.0
      %v503 = vmax.f32 %v439, 0.0
      %v504 = vmax.f32 %v440, 0.0
      %v505 = vmax.f32 %v441, 0.0
      %v506 = vmax.f32 %v442, 0.0
      %v507 = vmax.f32 %v443, 0.0
      %v508 = vmax.f32 %v444, 0.0
      %v509 = vmax.f32 %v445, 0.0
      %v510 = vmax.f32 %v446, 0.0
      %v511 = vmax.f32 %v447, 0.0
      %v512 = vmax.f32 %v448, 0.0
      %v513 = vmax.f32 %v449, 0.0
      %v514 = vmax.f32 %v450, 0.0
      %v515 = vmax.f32 %v451, 0.0
      %v516 = vmax.f32 %v452, 0.0
      %v517 = vmax.f32 %v453, 0.0
      %v518 = vmax.f32 %v454, 0.0
      %v519 = vmax.f32 %v455, 0.0
      %v520 = vmax.f32 %v456, 0.0
      %v521 = vmax.f32 %v457, 0.0
      %v522 = vmax.f32 %v458, 0.0
      %v523 = vmax.f32 %v459, 0.0
      %v524 = vmax.f32 %v460, 0.0
      %v525 = vmax.f32 %v461, 0.0
      %v526 = vmax.f32 %v462, 0.0
      %v527 = vmax.f32 %v463, 0.0
      %v528 = vmax.f32 %v464, 0.0
      %v529 = vmax.f32 %v465, 0.0
      %v530 = vpack.c.bf16 %v467, %v466
      %v531 = vpack.c.bf16 %v469, %v468
      %v532 = vpack.c.bf16 %v471, %v470
      %v533 = vpack.c.bf16 %v473, %v472
      %v534 = vpack.c.bf16 %v475, %v474
      %v535 = vpack.c.bf16 %v477, %v476
      %v536 = vpack.c.bf16 %v479, %v478
      %v537 = vpack.c.bf16 %v481, %v480
      %v538 = vpack.c.bf16 %v483, %v482
      %v539 = vpack.c.bf16 %v485, %v484
      %v540 = vpack.c.bf16 %v487, %v486
      %v541 = vpack.c.bf16 %v489, %v488
      %v542 = vpack.c.bf16 %v491, %v490
      %v543 = vpack.c.bf16 %v493, %v492
      %v544 = vpack.c.bf16 %v495, %v494
      %v545 = vpack.c.bf16 %v497, %v496
      %v546 = vpack.c.bf16 %v499, %v498
      %v547 = vpack.c.bf16 %v501, %v500
      %v548 = vpack.c.bf16 %v503, %v502
      %v549 = vpack.c.bf16 %v505, %v504
      %v550 = vpack.c.bf16 %v507, %v506
      %v551 = vpack.c.bf16 %v509, %v508
      %v552 = vpack.c.bf16 %v511, %v510
      %v553 = vpack.c.bf16 %v513, %v512
      %v554 = vpack.c.bf16 %v515, %v514
      %v555 = vpack.c.bf16 %v517, %v516
      %v556 = vpack.c.bf16 %v519, %v518
      %v557 = vpack.c.bf16 %v521, %v520
      %v558 = vpack.c.bf16 %v523, %v522
      %v559 = vpack.c.bf16 %v525, %v524
      %v560 = vpack.c.bf16 %v527, %v526
      %v561 = vpack.c.bf16 %v529, %v528
      %v562 = vld [vmem:[%s2] sm:$0xff]
      %v563 = vld [vmem:[%s2 + $0x8] sm:$0xff]
      %v564 = vld [vmem:[%s2 + $0x10] sm:$0xff]
      %v565 = vld [vmem:[%s2 + $0x18] sm:$0xff]
      %v566 = vld [vmem:[%s2 + $0x20] sm:$0xff]
      %v567 = vld [vmem:[%s2 + $0x28] sm:$0xff]
      %v568 = vld [vmem:[%s2 + $0x30] sm:$0xff]
      %v569 = vld [vmem:[%s2 + $0x38] sm:$0xff]
      %v570 = vld [vmem:[%s2 + $0x40] sm:$0xff]
      %v571 = vld [vmem:[%s2 + $0x48] sm:$0xff]
      %v572 = vld [vmem:[%s2 + $0x50] sm:$0xff]
      %v573 = vld [vmem:[%s2 + $0x58] sm:$0xff]
      %v574 = vld [vmem:[%s2 + $0x60] sm:$0xff]
      %v575 = vld [vmem:[%s2 + $0x68] sm:$0xff]
      %v576 = vld [vmem:[%s2 + $0x70] sm:$0xff]
      %v577 = vld [vmem:[%s2 + $0x78] sm:$0xff]
      %v578 = vld [vmem:[%s2 + $0x80] sm:$0xff]
      %v579 = vld [vmem:[%s2 + $0x88] sm:$0xff]
      %v580 = vld [vmem:[%s2 + $0x90] sm:$0xff]
      %v581 = vld [vmem:[%s2 + $0x98] sm:$0xff]
      %v582 = vld [vmem:[%s2 + $0xa0] sm:$0xff]
      %v583 = vld [vmem:[%s2 + $0xa8] sm:$0xff]
      %v584 = vld [vmem:[%s2 + $0xb0] sm:$0xff]
      %v585 = vld [vmem:[%s2 + $0xb8] sm:$0xff]
      %v586 = vld [vmem:[%s2 + $0xc0] sm:$0xff]
      %v587 = vld [vmem:[%s2 + $0xc8] sm:$0xff]
      %v588 = vld [vmem:[%s2 + $0xd0] sm:$0xff]
      %v589 = vld [vmem:[%s2 + $0xd8] sm:$0xff]
      %v590 = vld [vmem:[%s2 + $0xe0] sm:$0xff]
      %v591 = vld [vmem:[%s2 + $0xe8] sm:$0xff]
      %v592 = vld [vmem:[%s2 + $0xf0] sm:$0xff]
      %v593 = vld [vmem:[%s2 + $0xf8] sm:$0xff]
      %v594 = vld [vmem:[%s2 + $0x100] sm:$0xff]
      %v595 = vld [vmem:[%s2 + $0x108] sm:$0xff]
      %v596 = vld [vmem:[%s2 + $0x110] sm:$0xff]
      %v597 = vld [vmem:[%s2 + $0x118] sm:$0xff]
      %v598 = vld [vmem:[%s2 + $0x120] sm:$0xff]
      %v599 = vld [vmem:[%s2 + $0x128] sm:$0xff]
      %v600 = vld [vmem:[%s2 + $0x130] sm:$0xff]
      %v601 = vld [vmem:[%s2 + $0x138] sm:$0xff]
      %v602 = vld [vmem:[%s2 + $0x140] sm:$0xff]
      %v603 = vld [vmem:[%s2 + $0x148] sm:$0xff]
      %v604 = vld [vmem:[%s2 + $0x150] sm:$0xff]
      %v605 = vld [vmem:[%s2 + $0x158] sm:$0xff]
      %v606 = vld [vmem:[%s2 + $0x160] sm:$0xff]
      %v607 = vld [vmem:[%s2 + $0x168] sm:$0xff]
      %v608 = vld [vmem:[%s2 + $0x170] sm:$0xff]
      %v609 = vld [vmem:[%s2 + $0x178] sm:$0xff]
      %v610 = vld [vmem:[%s2 + $0x180] sm:$0xff]
      %v611 = vld [vmem:[%s2 + $0x188] sm:$0xff]
      %v612 = vld [vmem:[%s2 + $0x190] sm:$0xff]
      %v613 = vld [vmem:[%s2 + $0x198] sm:$0xff]
      %v614 = vld [vmem:[%s2 + $0x1a0] sm:$0xff]
      %v615 = vld [vmem:[%s2 + $0x1a8] sm:$0xff]
      %v616 = vld [vmem:[%s2 + $0x1b0] sm:$0xff]
      %v617 = vld [vmem:[%s2 + $0x1b8] sm:$0xff]
      %v618 = vld [vmem:[%s2 + $0x1c0] sm:$0xff]
      %v619 = vld [vmem:[%s2 + $0x1c8] sm:$0xff]
      %v620 = vld [vmem:[%s2 + $0x1d0] sm:$0xff]
      %v621 = vld [vmem:[%s2 + $0x1d8] sm:$0xff]
      %v622 = vld [vmem:[%s2 + $0x1e0] sm:$0xff]
      %v623 = vld [vmem:[%s2 + $0x1e8] sm:$0xff]
      %v624 = vld [vmem:[%s2 + $0x1f0] sm:$0xff]
      %v625 = vld [vmem:[%s2 + $0x1f8] sm:$0xff]
      %v690 = vunpack.c.l.b16 %v562
      %v691 = vunpack.c.h.b16 %v562
      %v692 = vunpack.c.l.b16 %v563
      %v693 = vunpack.c.h.b16 %v563
      %v694 = vunpack.c.l.b16 %v564
      %v695 = vunpack.c.h.b16 %v564
      %v696 = vunpack.c.l.b16 %v565
      %v697 = vunpack.c.h.b16 %v565
      %v698 = vunpack.c.l.b16 %v566
      %v699 = vunpack.c.h.b16 %v566
      %v700 = vunpack.c.l.b16 %v567
      %v701 = vunpack.c.h.b16 %v567
      %v702 = vunpack.c.l.b16 %v568
      %v703 = vunpack.c.h.b16 %v568
      %v704 = vunpack.c.l.b16 %v569
      %v705 = vunpack.c.h.b16 %v569
      %v706 = vunpack.c.l.b16 %v570
      %v707 = vunpack.c.h.b16 %v570
      %v708 = vunpack.c.l.b16 %v571
      %v709 = vunpack.c.h.b16 %v571
      %v710 = vunpack.c.l.b16 %v572
      %v711 = vunpack.c.h.b16 %v572
      %v712 = vunpack.c.l.b16 %v573
      %v713 = vunpack.c.h.b16 %v573
      %v714 = vunpack.c.l.b16 %v574
      %v715 = vunpack.c.h.b16 %v574
      %v716 = vunpack.c.l.b16 %v575
      %v717 = vunpack.c.h.b16 %v575
      %v718 = vunpack.c.l.b16 %v576
      %v719 = vunpack.c.h.b16 %v576
      %v720 = vunpack.c.l.b16 %v577
      %v721 = vunpack.c.h.b16 %v577
      %v722 = vunpack.c.l.b16 %v578
      %v723 = vunpack.c.h.b16 %v578
      %v724 = vunpack.c.l.b16 %v579
      %v725 = vunpack.c.h.b16 %v579
      %v726 = vunpack.c.l.b16 %v580
      %v727 = vunpack.c.h.b16 %v580
      %v728 = vunpack.c.l.b16 %v581
      %v729 = vunpack.c.h.b16 %v581
      %v730 = vunpack.c.l.b16 %v582
      %v731 = vunpack.c.h.b16 %v582
      %v732 = vunpack.c.l.b16 %v583
      %v733 = vunpack.c.h.b16 %v583
      %v734 = vunpack.c.l.b16 %v584
      %v735 = vunpack.c.h.b16 %v584
      %v736 = vunpack.c.l.b16 %v585
      %v737 = vunpack.c.h.b16 %v585
      %v738 = vunpack.c.l.b16 %v586
      %v739 = vunpack.c.h.b16 %v586
      %v740 = vunpack.c.l.b16 %v587
      %v741 = vunpack.c.h.b16 %v587
      %v742 = vunpack.c.l.b16 %v588
      %v743 = vunpack.c.h.b16 %v588
      %v744 = vunpack.c.l.b16 %v589
      %v745 = vunpack.c.h.b16 %v589
      %v746 = vunpack.c.l.b16 %v590
      %v747 = vunpack.c.h.b16 %v590
      %v748 = vunpack.c.l.b16 %v591
      %v749 = vunpack.c.h.b16 %v591
      %v750 = vunpack.c.l.b16 %v592
      %v751 = vunpack.c.h.b16 %v592
      %v752 = vunpack.c.l.b16 %v593
      %v753 = vunpack.c.h.b16 %v593
      %v754 = vunpack.c.l.b16 %v594
      %v755 = vunpack.c.h.b16 %v594
      %v756 = vunpack.c.l.b16 %v595
      %v757 = vunpack.c.h.b16 %v595
      %v758 = vunpack.c.l.b16 %v596
      %v759 = vunpack.c.h.b16 %v596
      %v760 = vunpack.c.l.b16 %v597
      %v761 = vunpack.c.h.b16 %v597
      %v762 = vunpack.c.l.b16 %v598
      %v763 = vunpack.c.h.b16 %v598
      %v764 = vunpack.c.l.b16 %v599
      %v765 = vunpack.c.h.b16 %v599
      %v766 = vunpack.c.l.b16 %v600
      %v767 = vunpack.c.h.b16 %v600
      %v768 = vunpack.c.l.b16 %v601
      %v769 = vunpack.c.h.b16 %v601
      %v770 = vunpack.c.l.b16 %v602
      %v771 = vunpack.c.h.b16 %v602
      %v772 = vunpack.c.l.b16 %v603
      %v773 = vunpack.c.h.b16 %v603
      %v774 = vunpack.c.l.b16 %v604
      %v775 = vunpack.c.h.b16 %v604
      %v776 = vunpack.c.l.b16 %v605
      %v777 = vunpack.c.h.b16 %v605
      %v778 = vunpack.c.l.b16 %v606
      %v779 = vunpack.c.h.b16 %v606
      %v780 = vunpack.c.l.b16 %v607
      %v781 = vunpack.c.h.b16 %v607
      %v782 = vunpack.c.l.b16 %v608
      %v783 = vunpack.c.h.b16 %v608
      %v784 = vunpack.c.l.b16 %v609
      %v785 = vunpack.c.h.b16 %v609
      %v786 = vunpack.c.l.b16 %v610
      %v787 = vunpack.c.h.b16 %v610
      %v788 = vunpack.c.l.b16 %v611
      %v789 = vunpack.c.h.b16 %v611
      %v790 = vunpack.c.l.b16 %v612
      %v791 = vunpack.c.h.b16 %v612
      %v792 = vunpack.c.l.b16 %v613
      %v793 = vunpack.c.h.b16 %v613
      %v794 = vunpack.c.l.b16 %v614
      %v795 = vunpack.c.h.b16 %v614
      %v796 = vunpack.c.l.b16 %v615
      %v797 = vunpack.c.h.b16 %v615
      %v798 = vunpack.c.l.b16 %v616
      %v799 = vunpack.c.h.b16 %v616
      %v800 = vunpack.c.l.b16 %v617
      %v801 = vunpack.c.h.b16 %v617
      %v802 = vunpack.c.l.b16 %v618
      %v803 = vunpack.c.h.b16 %v618
      %v804 = vunpack.c.l.b16 %v619
      %v805 = vunpack.c.h.b16 %v619
      %v806 = vunpack.c.l.b16 %v620
      %v807 = vunpack.c.h.b16 %v620
      %v808 = vunpack.c.l.b16 %v621
      %v809 = vunpack.c.h.b16 %v621
      %v810 = vunpack.c.l.b16 %v622
      %v811 = vunpack.c.h.b16 %v622
      %v812 = vunpack.c.l.b16 %v623
      %v813 = vunpack.c.h.b16 %v623
      %v814 = vunpack.c.l.b16 %v624
      %v815 = vunpack.c.h.b16 %v624
      %v816 = vunpack.c.l.b16 %v625
      %v817 = vunpack.c.h.b16 %v625
      %v818 = vpack.c.b16 %v698, %v690
      %v819 = vpack.c.b16 %v699, %v691
      %v820 = vpack.c.b16 %v700, %v692
      %v821 = vpack.c.b16 %v701, %v693
      %v822 = vpack.c.b16 %v702, %v694
      %v823 = vpack.c.b16 %v703, %v695
      %v824 = vpack.c.b16 %v704, %v696
      %v825 = vpack.c.b16 %v705, %v697
      %v826 = vpack.c.b16 %v714, %v706
      %v827 = vpack.c.b16 %v715, %v707
      %v828 = vpack.c.b16 %v716, %v708
      %v829 = vpack.c.b16 %v717, %v709
      %v830 = vpack.c.b16 %v718, %v710
      %v831 = vpack.c.b16 %v719, %v711
      %v832 = vpack.c.b16 %v720, %v712
      %v833 = vpack.c.b16 %v721, %v713
      %v834 = vpack.c.b16 %v730, %v722
      %v835 = vpack.c.b16 %v731, %v723
      %v836 = vpack.c.b16 %v732, %v724
      %v837 = vpack.c.b16 %v733, %v725
      %v838 = vpack.c.b16 %v734, %v726
      %v839 = vpack.c.b16 %v735, %v727
      %v840 = vpack.c.b16 %v736, %v728
      %v841 = vpack.c.b16 %v737, %v729
      %v842 = vpack.c.b16 %v746, %v738
      %v843 = vpack.c.b16 %v747, %v739
      %v844 = vpack.c.b16 %v748, %v740
      %v845 = vpack.c.b16 %v749, %v741
      %v846 = vpack.c.b16 %v750, %v742
      %v847 = vpack.c.b16 %v751, %v743
      %v848 = vpack.c.b16 %v752, %v744
      %v849 = vpack.c.b16 %v753, %v745
      %v850 = vpack.c.b16 %v762, %v754
      %v851 = vpack.c.b16 %v763, %v755
      %v852 = vpack.c.b16 %v764, %v756
      %v853 = vpack.c.b16 %v765, %v757
      %v854 = vpack.c.b16 %v766, %v758
      %v855 = vpack.c.b16 %v767, %v759
      %v856 = vpack.c.b16 %v768, %v760
      %v857 = vpack.c.b16 %v769, %v761
      %v858 = vpack.c.b16 %v778, %v770
      %v859 = vpack.c.b16 %v779, %v771
      %v860 = vpack.c.b16 %v780, %v772
      %v861 = vpack.c.b16 %v781, %v773
      %v862 = vpack.c.b16 %v782, %v774
      %v863 = vpack.c.b16 %v783, %v775
      %v864 = vpack.c.b16 %v784, %v776
      %v865 = vpack.c.b16 %v785, %v777
      %v866 = vpack.c.b16 %v794, %v786
      %v867 = vpack.c.b16 %v795, %v787
      %v868 = vpack.c.b16 %v796, %v788
      %v869 = vpack.c.b16 %v797, %v789
      %v870 = vpack.c.b16 %v798, %v790
      %v871 = vpack.c.b16 %v799, %v791
      %v872 = vpack.c.b16 %v800, %v792
      %v873 = vpack.c.b16 %v801, %v793
      %v874 = vpack.c.b16 %v810, %v802
      %v875 = vpack.c.b16 %v811, %v803
      %v876 = vpack.c.b16 %v812, %v804
      %v877 = vpack.c.b16 %v813, %v805
      %v878 = vpack.c.b16 %v814, %v806
      %v879 = vpack.c.b16 %v815, %v807
      %v880 = vpack.c.b16 %v816, %v808
      %v881 = vpack.c.b16 %v817, %v809
      %946 = vmatprep.subr.bf16.mxu0 %v819
      %947 = vmatpush1.bf16.msra.mxu0 %v818
      %948 = vmatprep.subr.bf16.mxu0 %v827
      %949 = vmatpush1.bf16.msra.mxu0 %v826
      %950 = vmatprep.subr.bf16.mxu0 %v835
      %951 = vmatpush1.bf16.msra.mxu0 %v834
      %952 = vmatprep.subr.bf16.mxu0 %v843
      %953 = vmatpush1.bf16.msra.mxu0 %v842
      %954 = vmatprep.subr.bf16.mxu0 %v851
      %955 = vmatpush1.bf16.msra.mxu0 %v850
      %956 = vmatprep.subr.bf16.mxu0 %v859
      %957 = vmatpush1.bf16.msra.mxu0 %v858
      %958 = vmatprep.subr.bf16.mxu0 %v867
      %959 = vmatpush1.bf16.msra.mxu0 %v866
      %960 = vmatprep.subr.bf16.mxu0 %v875
      %961 = vmatpush1.bf16.msra.mxu0 %v874
      %962 = vmatprep.subr.bf16.mxu0 0
      %963 = vmatpush1.bf16.msra.mxu0 0
      %964 = vmatprep.subr.bf16.mxu0 0
      %965 = vmatpush1.bf16.msra.mxu0 0
      %966 = vmatprep.subr.bf16.mxu0 0
      %967 = vmatpush1.bf16.msra.mxu0 0
      %968 = vmatprep.subr.bf16.mxu0 0
      %969 = vmatpush1.bf16.msra.mxu0 0
      %970 = vmatprep.subr.bf16.mxu0 0
      %971 = vmatpush1.bf16.msra.mxu0 0
      %972 = vmatprep.subr.bf16.mxu0 0
      %973 = vmatpush1.bf16.msra.mxu0 0
      %974 = vmatprep.subr.bf16.mxu0 0
      %975 = vmatpush1.bf16.msra.mxu0 0
      %976 = vmatprep.subr.bf16.mxu0 0
      %977 = vmatpush1.bf16.msra.mxu0 0
      %978 = vmatprep.mubr.bf16.mxu0 0
      %979 = vmatmul.mubr.bf16.gmra.mrb[0].mxu0 %v530
      %v980 = vpop.f32.mrb[0].mxu0
      %v981 = vadd.f32 0.0, %v980
      %v982 = vpop.f32.mrb[0].mxu0
      %v983 = vadd.f32 0.0, %v982
      %v984 = vpop.f32.mrb[0].mxu0
      %v985 = vadd.f32 0.0, %v984
      %v986 = vpop.f32.mrb[0].mxu0
      %v987 = vadd.f32 0.0, %v986
      %988 = vmatprep.mubr.bf16.mxu0 0
      %989 = vmatmul.mubr.bf16.gmra.mrb[0].mxu0 %v531
      %v990 = vpop.f32.mrb[0].mxu0
      %v991 = vadd.f32 0.0, %v990
      %v992 = vpop.f32.mrb[0].mxu0
      %v993 = vadd.f32 0.0, %v992
      %v994 = vpop.f32.mrb[0].mxu0
      %v995 = vadd.f32 0.0, %v994
      %v996 = vpop.f32.mrb[0].mxu0
      %v997 = vadd.f32 0.0, %v996
      %998 = vmatprep.mubr.bf16.mxu0 0
      %999 = vmatmul.mubr.bf16.gmra.mrb[0].mxu0 %v532
      %v1000 = vpop.f32.mrb[0].mxu0
      %v1001 = vadd.f32 0.0, %v1000
      %v1002 = vpop.f32.mrb[0].mxu0
      %v1003 = vadd.f32 0.0, %v1002
      %v1004 = vpop.f32.mrb[0].mxu0
      %v1005 = vadd.f32 0.0, %v1004
      %v1006 = vpop.f32.mrb[0].mxu0
      %v1007 = vadd.f32 0.0, %v1006
      %1008 = vmatprep.mubr.bf16.mxu0 0
      %1009 = vmatmul.mubr.bf16.gmra.mrb[0].mxu0 %v533
      %v1010 = vpop.f32.mrb[0].mxu0
      %v1011 = vadd.f32 0.0, %v1010
      %v1012 = vpop.f32.mrb[0].mxu0
      %v1013 = vadd.f32 0.0, %v1012
      %v1014 = vpop.f32.mrb[0].mxu0
      %v1015 = vadd.f32 0.0, %v1014
      %v1016 = vpop.f32.mrb[0].mxu0
      %v1017 = vadd.f32 0.0, %v1016
      %1018 = vmatprep.mubr.bf16.mxu0 0
      %1019 = vmatmul.mubr.bf16.gmra.mrb[0].mxu0 %v534
      %v1020 = vpop.f32.mrb[0].mxu0
      %v1021 = vadd.f32 0.0, %v1020
      %v1022 = vpop.f32.mrb[0].mxu0
      %v1023 = vadd.f32 0.0, %v1022
      %v1024 = vpop.f32.mrb[0].mxu0
      %v1025 = vadd.f32 0.0, %v1024
      %v1026 = vpop.f32.mrb[0].mxu0
      %v1027 = vadd.f32 0.0, %v1026
      %1028 = vmatprep.mubr.bf16.mxu0 0
      %1029 = vmatmul.mubr.bf16.gmra.mrb[0].mxu0 %v535
      %v1030 = vpop.f32.mrb[0].mxu0
      %v1031 = vadd.f32 0.0, %v1030
      %v1032 = vpop.f32.mrb[0].mxu0
      %v1033 = vadd.f32 0.0, %v1032
      %v1034 = vpop.f32.mrb[0].mxu0
      %v1035 = vadd.f32 0.0, %v1034
      %v1036 = vpop.f32.mrb[0].mxu0
      %v1037 = vadd.f32 0.0, %v1036
      %1038 = vmatprep.mubr.bf16.mxu0 0
      %1039 = vmatmul.mubr.bf16.gmra.mrb[0].mxu0 %v536
      %v1040 = vpop.f32.mrb[0].mxu0
      %v1041 = vadd.f32 0.0, %v1040
      %v1042 = vpop.f32.mrb[0].mxu0
      %v1043 = vadd.f32 0.0, %v1042
      %v1044 = vpop.f32.mrb[0].mxu0
      %v1045 = vadd.f32 0.0, %v1044
      %v1046 = vpop.f32.mrb[0].mxu0
      %v1047 = vadd.f32 0.0, %v1046
      %1048 = vmatprep.mubr.bf16.mxu0 0
      %1049 = vmatmul.mubr.bf16.gmra.mrb[0].mxu0 %v537
      %v1050 = vpop.f32.mrb[0].mxu0
      %v1051 = vadd.f32 0.0, %v1050
      %v1052 = vpop.f32.mrb[0].mxu0
      %v1053 = vadd.f32 0.0, %v1052
      %v1054 = vpop.f32.mrb[0].mxu0
      %v1055 = vadd.f32 0.0, %v1054
      %v1056 = vpop.f32.mrb[0].mxu0
      %v1057 = vadd.f32 0.0, %v1056
      %1058 = vmatprep.mubr.bf16.mxu0 0
      %1059 = vmatmul.mubr.bf16.gmra.mrb[0].mxu0 %v538
      %v1060 = vpop.f32.mrb[0].mxu0
      %v1061 = vadd.f32 0.0, %v1060
      %v1062 = vpop.f32.mrb[0].mxu0
      %v1063 = vadd.f32 0.0, %v1062
      %v1064 = vpop.f32.mrb[0].mxu0
      %v1065 = vadd.f32 0.0, %v1064
      %v1066 = vpop.f32.mrb[0].mxu0
      %v1067 = vadd.f32 0.0, %v1066
      %1068 = vmatprep.mubr.bf16.mxu0 0
      %1069 = vmatmul.mubr.bf16.gmra.mrb[0].mxu0 %v539
      %v1070 = vpop.f32.mrb[0].mxu0
      %v1071 = vadd.f32 0.0, %v1070
      %v1072 = vpop.f32.mrb[0].mxu0
      %v1073 = vadd.f32 0.0, %v1072
      %v1074 = vpop.f32.mrb[0].mxu0
      %v1075 = vadd.f32 0.0, %v1074
      %v1076 = vpop.f32.mrb[0].mxu0
      %v1077 = vadd.f32 0.0, %v1076
      %1078 = vmatprep.mubr.bf16.mxu0 0
      %1079 = vmatmul.mubr.bf16.gmra.mrb[0].mxu0 %v540
      %v1080 = vpop.f32.mrb[0].mxu0
      %v1081 = vadd.f32 0.0, %v1080
      %v1082 = vpop.f32.mrb[0].mxu0
      %v1083 = vadd.f32 0.0, %v1082
      %v1084 = vpop.f32.mrb[0].mxu0
      %v1085 = vadd.f32 0.0, %v1084
      %v1086 = vpop.f32.mrb[0].mxu0
      %v1087 = vadd.f32 0.0, %v1086
      %1088 = vmatprep.mubr.bf16.mxu0 0
      %1089 = vmatmul.mubr.bf16.gmra.mrb[0].mxu0 %v541
      %v1090 = vpop.f32.mrb[0].mxu0
      %v1091 = vadd.f32 0.0, %v1090
      %v1092 = vpop.f32.mrb[0].mxu0
      %v1093 = vadd.f32 0.0, %v1092
      %v1094 = vpop.f32.mrb[0].mxu0
      %v1095 = vadd.f32 0.0, %v1094
      %v1096 = vpop.f32.mrb[0].mxu0
      %v1097 = vadd.f32 0.0, %v1096
      %1098 = vmatprep.mubr.bf16.mxu0 0
      %1099 = vmatmul.mubr.bf16.gmra.mrb[0].mxu0 %v542
      %v1100 = vpop.f32.mrb[0].mxu0
      %v1101 = vadd.f32 0.0, %v1100
      %v1102 = vpop.f32.mrb[0].mxu0
      %v1103 = vadd.f32 0.0, %v1102
      %v1104 = vpop.f32.mrb[0].mxu0
      %v1105 = vadd.f32 0.0, %v1104
      %v1106 = vpop.f32.mrb[0].mxu0
      %v1107 = vadd.f32 0.0, %v1106
      %1108 = vmatprep.mubr.bf16.mxu0 0
      %1109 = vmatmul.mubr.bf16.gmra.mrb[0].mxu0 %v543
      %v1110 = vpop.f32.mrb[0].mxu0
      %v1111 = vadd.f32 0.0, %v1110
      %v1112 = vpop.f32.mrb[0].mxu0
      %v1113 = vadd.f32 0.0, %v1112
      %v1114 = vpop.f32.mrb[0].mxu0
      %v1115 = vadd.f32 0.0, %v1114
      %v1116 = vpop.f32.mrb[0].mxu0
      %v1117 = vadd.f32 0.0, %v1116
      %1118 = vmatprep.mubr.bf16.mxu0 0
      %1119 = vmatmul.mubr.bf16.gmra.mrb[0].mxu0 %v544
      %v1120 = vpop.f32.mrb[0].mxu0
      %v1121 = vadd.f32 0.0, %v1120
      %v1122 = vpop.f32.mrb[0].mxu0
      %v1123 = vadd.f32 0.0, %v1122
      %v1124 = vpop.f32.mrb[0].mxu0
      %v1125 = vadd.f32 0.0, %v1124
      %v1126 = vpop.f32.mrb[0].mxu0
      %v1127 = vadd.f32 0.0, %v1126
      %1128 = vmatprep.mubr.bf16.mxu0 0
      %1129 = vmatmul.mubr.bf16.gmra.mrb[0].mxu0 %v545
      %v1130 = vpop.f32.mrb[0].mxu0
      %v1131 = vadd.f32 0.0, %v1130
      %v1132 = vpop.f32.mrb[0].mxu0
      %v1133 = vadd.f32 0.0, %v1132
      %v1134 = vpop.f32.mrb[0].mxu0
      %v1135 = vadd.f32 0.0, %v1134
      %v1136 = vpop.f32.mrb[0].mxu0
      %v1137 = vadd.f32 0.0, %v1136
      %1138 = vmatprep.mubr.bf16.mxu0 0
      %1139 = vmatmul.mubr.bf16.gmra.mrb[0].mxu0 %v546
      %v1140 = vpop.f32.mrb[0].mxu0
      %v1141 = vadd.f32 0.0, %v1140
      %v1142 = vpop.f32.mrb[0].mxu0
      %v1143 = vadd.f32 0.0, %v1142
      %v1144 = vpop.f32.mrb[0].mxu0
      %v1145 = vadd.f32 0.0, %v1144
      %v1146 = vpop.f32.mrb[0].mxu0
      %v1147 = vadd.f32 0.0, %v1146
      %1148 = vmatprep.mubr.bf16.mxu0 0
      %1149 = vmatmul.mubr.bf16.gmra.mrb[0].mxu0 %v547
      %v1150 = vpop.f32.mrb[0].mxu0
      %v1151 = vadd.f32 0.0, %v1150
      %v1152 = vpop.f32.mrb[0].mxu0
      %v1153 = vadd.f32 0.0, %v1152
      %v1154 = vpop.f32.mrb[0].mxu0
      %v1155 = vadd.f32 0.0, %v1154
      %v1156 = vpop.f32.mrb[0].mxu0
      %v1157 = vadd.f32 0.0, %v1156
      %1158 = vmatprep.mubr.bf16.mxu0 0
      %1159 = vmatmul.mubr.bf16.gmra.mrb[0].mxu0 %v548
      %v1160 = vpop.f32.mrb[0].mxu0
      %v1161 = vadd.f32 0.0, %v1160
      %v1162 = vpop.f32.mrb[0].mxu0
      %v1163 = vadd.f32 0.0, %v1162
      %v1164 = vpop.f32.mrb[0].mxu0
      %v1165 = vadd.f32 0.0, %v1164
      %v1166 = vpop.f32.mrb[0].mxu0
      %v1167 = vadd.f32 0.0, %v1166
      %1168 = vmatprep.mubr.bf16.mxu0 0
      %1169 = vmatmul.mubr.bf16.gmra.mrb[0].mxu0 %v549
      %v1170 = vpop.f32.mrb[0].mxu0
      %v1171 = vadd.f32 0.0, %v1170
      %v1172 = vpop.f32.mrb[0].mxu0
      %v1173 = vadd.f32 0.0, %v1172
      %v1174 = vpop.f32.mrb[0].mxu0
      %v1175 = vadd.f32 0.0, %v1174
      %v1176 = vpop.f32.mrb[0].mxu0
      %v1177 = vadd.f32 0.0, %v1176
      %1178 = vmatprep.mubr.bf16.mxu0 0
      %1179 = vmatmul.mubr.bf16.gmra.mrb[0].mxu0 %v550
      %v1180 = vpop.f32.mrb[0].mxu0
      %v1181 = vadd.f32 0.0, %v1180
      %v1182 = vpop.f32.mrb[0].mxu0
      %v1183 = vadd.f32 0.0, %v1182
      %v1184 = vpop.f32.mrb[0].mxu0
      %v1185 = vadd.f32 0.0, %v1184
      %v1186 = vpop.f32.mrb[0].mxu0
      %v1187 = vadd.f32 0.0, %v1186
      %1188 = vmatprep.mubr.bf16.mxu0 0
      %1189 = vmatmul.mubr.bf16.gmra.mrb[0].mxu0 %v551
      %v1190 = vpop.f32.mrb[0].mxu0
      %v1191 = vadd.f32 0.0, %v1190
      %v1192 = vpop.f32.mrb[0].mxu0
      %v1193 = vadd.f32 0.0, %v1192
      %v1194 = vpop.f32.mrb[0].mxu0
      %v1195 = vadd.f32 0.0, %v1194
      %v1196 = vpop.f32.mrb[0].mxu0
      %v1197 = vadd.f32 0.0, %v1196
      %1198 = vmatprep.mubr.bf16.mxu0 0
      %1199 = vmatmul.mubr.bf16.gmra.mrb[0].mxu0 %v552
      %v1200 = vpop.f32.mrb[0].mxu0
      %v1201 = vadd.f32 0.0, %v1200
      %v1202 = vpop.f32.mrb[0].mxu0
      %v1203 = vadd.f32 0.0, %v1202
      %v1204 = vpop.f32.mrb[0].mxu0
      %v1205 = vadd.f32 0.0, %v1204
      %v1206 = vpop.f32.mrb[0].mxu0
      %v1207 = vadd.f32 0.0, %v1206
      %1208 = vmatprep.mubr.bf16.mxu0 0
      %1209 = vmatmul.mubr.bf16.gmra.mrb[0].mxu0 %v553
      %v1210 = vpop.f32.mrb[0].mxu0
      %v1211 = vadd.f32 0.0, %v1210
      %v1212 = vpop.f32.mrb[0].mxu0
      %v1213 = vadd.f32 0.0, %v1212
      %v1214 = vpop.f32.mrb[0].mxu0
      %v1215 = vadd.f32 0.0, %v1214
      %v1216 = vpop.f32.mrb[0].mxu0
      %v1217 = vadd.f32 0.0, %v1216
      %1218 = vmatprep.mubr.bf16.mxu0 0
      %1219 = vmatmul.mubr.bf16.gmra.mrb[0].mxu0 %v554
      %v1220 = vpop.f32.mrb[0].mxu0
      %v1221 = vadd.f32 0.0, %v1220
      %v1222 = vpop.f32.mrb[0].mxu0
      %v1223 = vadd.f32 0.0, %v1222
      %v1224 = vpop.f32.mrb[0].mxu0
      %v1225 = vadd.f32 0.0, %v1224
      %v1226 = vpop.f32.mrb[0].mxu0
      %v1227 = vadd.f32 0.0, %v1226
      %1228 = vmatprep.mubr.bf16.mxu0 0
      %1229 = vmatmul.mubr.bf16.gmra.mrb[0].mxu0 %v555
      %v1230 = vpop.f32.mrb[0].mxu0
      %v1231 = vadd.f32 0.0, %v1230
      %v1232 = vpop.f32.mrb[0].mxu0
      %v1233 = vadd.f32 0.0, %v1232
      %v1234 = vpop.f32.mrb[0].mxu0
      %v1235 = vadd.f32 0.0, %v1234
      %v1236 = vpop.f32.mrb[0].mxu0
      %v1237 = vadd.f32 0.0, %v1236
      %1238 = vmatprep.mubr.bf16.mxu0 0
      %1239 = vmatmul.mubr.bf16.gmra.mrb[0].mxu0 %v556
      %v1240 = vpop.f32.mrb[0].mxu0
      %v1241 = vadd.f32 0.0, %v1240
      %v1242 = vpop.f32.mrb[0].mxu0
      %v1243 = vadd.f32 0.0, %v1242
      %v1244 = vpop.f32.mrb[0].mxu0
      %v1245 = vadd.f32 0.0, %v1244
      %v1246 = vpop.f32.mrb[0].mxu0
      %v1247 = vadd.f32 0.0, %v1246
      %1248 = vmatprep.mubr.bf16.mxu0 0
      %1249 = vmatmul.mubr.bf16.gmra.mrb[0].mxu0 %v557
      %v1250 = vpop.f32.mrb[0].mxu0
      %v1251 = vadd.f32 0.0, %v1250
      %v1252 = vpop.f32.mrb[0].mxu0
      %v1253 = vadd.f32 0.0, %v1252
      %v1254 = vpop.f32.mrb[0].mxu0
      %v1255 = vadd.f32 0.0, %v1254
      %v1256 = vpop.f32.mrb[0].mxu0
      %v1257 = vadd.f32 0.0, %v1256
      %1258 = vmatprep.mubr.bf16.mxu0 0
      %1259 = vmatmul.mubr.bf16.gmra.mrb[0].mxu0 %v558
      %v1260 = vpop.f32.mrb[0].mxu0
      %v1261 = vadd.f32 0.0, %v1260
      %v1262 = vpop.f32.mrb[0].mxu0
      %v1263 = vadd.f32 0.0, %v1262
      %v1264 = vpop.f32.mrb[0].mxu0
      %v1265 = vadd.f32 0.0, %v1264
      %v1266 = vpop.f32.mrb[0].mxu0
      %v1267 = vadd.f32 0.0, %v1266
      %1268 = vmatprep.mubr.bf16.mxu0 0
      %1269 = vmatmul.mubr.bf16.gmra.mrb[0].mxu0 %v559
      %v1270 = vpop.f32.mrb[0].mxu0
      %v1271 = vadd.f32 0.0, %v1270
      %v1272 = vpop.f32.mrb[0].mxu0
      %v1273 = vadd.f32 0.0, %v1272
      %v1274 = vpop.f32.mrb[0].mxu0
      %v1275 = vadd.f32 0.0, %v1274
      %v1276 = vpop.f32.mrb[0].mxu0
      %v1277 = vadd.f32 0.0, %v1276
      %1278 = vmatprep.mubr.bf16.mxu0 0
      %1279 = vmatmul.mubr.bf16.gmra.mrb[0].mxu0 %v560
      %v1280 = vpop.f32.mrb[0].mxu0
      %v1281 = vadd.f32 0.0, %v1280
      %v1282 = vpop.f32.mrb[0].mxu0
      %v1283 = vadd.f32 0.0, %v1282
      %v1284 = vpop.f32.mrb[0].mxu0
      %v1285 = vadd.f32 0.0, %v1284
      %v1286 = vpop.f32.mrb[0].mxu0
      %v1287 = vadd.f32 0.0, %v1286
      %1288 = vmatprep.mubr.bf16.mxu0 0
      %1289 = vmatmul.mubr.bf16.gmra.mrb[0].mxu0 %v561
      %v1290 = vpop.f32.mrb[0].mxu0
      %v1291 = vadd.f32 0.0, %v1290
      %v1292 = vpop.f32.mrb[0].mxu0
      %v1293 = vadd.f32 0.0, %v1292
      %v1294 = vpop.f32.mrb[0].mxu0
      %v1295 = vadd.f32 0.0, %v1294
      %v1296 = vpop.f32.mrb[0].mxu0
      %v1297 = vadd.f32 0.0, %v1296
      %1298 = vdwg.mxu0
      %1299 = vmatprep.subr.bf16.mxu0 %v821
      %1300 = vmatpush1.bf16.msra.mxu0 %v820
      %1301 = vmatprep.subr.bf16.mxu0 %v829
      %1302 = vmatpush1.bf16.msra.mxu0 %v828
      %1303 = vmatprep.subr.bf16.mxu0 %v837
      %1304 = vmatpush1.bf16.msra.mxu0 %v836
      %1305 = vmatprep.subr.bf16.mxu0 %v845
      %1306 = vmatpush1.bf16.msra.mxu0 %v844
      %1307 = vmatprep.subr.bf16.mxu0 %v853
      %1308 = vmatpush1.bf16.msra.mxu0 %v852
      %1309 = vmatprep.subr.bf16.mxu0 %v861
      %1310 = vmatpush1.bf16.msra.mxu0 %v860
      %1311 = vmatprep.subr.bf16.mxu0 %v869
      %1312 = vmatpush1.bf16.msra.mxu0 %v868
      %1313 = vmatprep.subr.bf16.mxu0 %v877
      %1314 = vmatpush1.bf16.msra.mxu0 %v876
      %1315 = vmatprep.subr.bf16.mxu0 0
      %1316 = vmatpush1.bf16.msra.mxu0 0
      %1317 = vmatprep.subr.bf16.mxu0 0
      %1318 = vmatpush1.bf16.msra.mxu0 0
      %1319 = vmatprep.subr.bf16.mxu0 0
      %1320 = vmatpush1.bf16.msra.mxu0 0
      %1321 = vmatprep.subr.bf16.mxu0 0
      %1322 = vmatpush1.bf16.msra.mxu0 0
      %1323 = vmatprep.subr.bf16.mxu0 0
      %1324 = vmatpush1.bf16.msra.mxu0 0
      %1325 = vmatprep.subr.bf16.mxu0 0
      %1326 = vmatpush1.bf16.msra.mxu0 0
      %1327 = vmatprep.subr.bf16.mxu0 0
      %1328 = vmatpush1.bf16.msra.mxu0 0
      %1329 = vmatprep.subr.bf16.mxu0 0
      %1330 = vmatpush1.bf16.msra.mxu0 0
      %1331 = vmatprep.mubr.bf16.mxu0 0
      %1332 = vmatmul.mubr.bf16.gmra.mrb[0].mxu0 %v530
      %v1333 = vpop.f32.mrb[0].mxu0
      %v1334 = vadd.f32 0.0, %v1333
      %v1335 = vpop.f32.mrb[0].mxu0
      %v1336 = vadd.f32 0.0, %v1335
      %v1337 = vpop.f32.mrb[0].mxu0
      %v1338 = vadd.f32 0.0, %v1337
      %v1339 = vpop.f32.mrb[0].mxu0
      %v1340 = vadd.f32 0.0, %v1339
      %1341 = vmatprep.mubr.bf16.mxu0 0
      %1342 = vmatmul.mubr.bf16.gmra.mrb[0].mxu0 %v531
      %v1343 = vpop.f32.mrb[0].mxu0
      %v1344 = vadd.f32 0.0, %v1343
      %v1345 = vpop.f32.mrb[0].mxu0
      %v1346 = vadd.f32 0.0, %v1345
      %v1347 = vpop.f32.mrb[0].mxu0
      %v1348 = vadd.f32 0.0, %v1347
      %v1349 = vpop.f32.mrb[0].mxu0
      %v1350 = vadd.f32 0.0, %v1349
      %1351 = vmatprep.mubr.bf16.mxu0 0
      %1352 = vmatmul.mubr.bf16.gmra.mrb[0].mxu0 %v532
      %v1353 = vpop.f32.mrb[0].mxu0
      %v1354 = vadd.f32 0.0, %v1353
      %v1355 = vpop.f32.mrb[0].mxu0
      %v1356 = vadd.f32 0.0, %v1355
      %v1357 = vpop.f32.mrb[0].mxu0
      %v1358 = vadd.f32 0.0, %v1357
      %v1359 = vpop.f32.mrb[0].mxu0
      %v1360 = vadd.f32 0.0, %v1359
      %1361 = vmatprep.mubr.bf16.mxu0 0
      %1362 = vmatmul.mubr.bf16.gmra.mrb[0].mxu0 %v533
      %v1363 = vpop.f32.mrb[0].mxu0
      %v1364 = vadd.f32 0.0, %v1363
      %v1365 = vpop.f32.mrb[0].mxu0
      %v1366 = vadd.f32 0.0, %v1365
      %v1367 = vpop.f32.mrb[0].mxu0
      %v1368 = vadd.f32 0.0, %v1367
      %v1369 = vpop.f32.mrb[0].mxu0
      %v1370 = vadd.f32 0.0, %v1369
      %1371 = vmatprep.mubr.bf16.mxu0 0
      %1372 = vmatmul.mubr.bf16.gmra.mrb[0].mxu0 %v534
      %v1373 = vpop.f32.mrb[0].mxu0
      %v1374 = vadd.f32 0.0, %v1373
      %v1375 = vpop.f32.mrb[0].mxu0
      %v1376 = vadd.f32 0.0, %v1375
      %v1377 = vpop.f32.mrb[0].mxu0
      %v1378 = vadd.f32 0.0, %v1377
      %v1379 = vpop.f32.mrb[0].mxu0
      %v1380 = vadd.f32 0.0, %v1379
      %1381 = vmatprep.mubr.bf16.mxu0 0
      %1382 = vmatmul.mubr.bf16.gmra.mrb[0].mxu0 %v535
      %v1383 = vpop.f32.mrb[0].mxu0
      %v1384 = vadd.f32 0.0, %v1383
      %v1385 = vpop.f32.mrb[0].mxu0
      %v1386 = vadd.f32 0.0, %v1385
      %v1387 = vpop.f32.mrb[0].mxu0
      %v1388 = vadd.f32 0.0, %v1387
      %v1389 = vpop.f32.mrb[0].mxu0
      %v1390 = vadd.f32 0.0, %v1389
      %1391 = vmatprep.mubr.bf16.mxu0 0
      %1392 = vmatmul.mubr.bf16.gmra.mrb[0].mxu0 %v536
      %v1393 = vpop.f32.mrb[0].mxu0
      %v1394 = vadd.f32 0.0, %v1393
      %v1395 = vpop.f32.mrb[0].mxu0
      %v1396 = vadd.f32 0.0, %v1395
      %v1397 = vpop.f32.mrb[0].mxu0
      %v1398 = vadd.f32 0.0, %v1397
      %v1399 = vpop.f32.mrb[0].mxu0
      %v1400 = vadd.f32 0.0, %v1399
      %1401 = vmatprep.mubr.bf16.mxu0 0
      %1402 = vmatmul.mubr.bf16.gmra.mrb[0].mxu0 %v537
      %v1403 = vpop.f32.mrb[0].mxu0
      %v1404 = vadd.f32 0.0, %v1403
      %v1405 = vpop.f32.mrb[0].mxu0
      %v1406 = vadd.f32 0.0, %v1405
      %v1407 = vpop.f32.mrb[0].mxu0
      %v1408 = vadd.f32 0.0, %v1407
      %v1409 = vpop.f32.mrb[0].mxu0
      %v1410 = vadd.f32 0.0, %v1409
      %1411 = vmatprep.mubr.bf16.mxu0 0
      %1412 = vmatmul.mubr.bf16.gmra.mrb[0].mxu0 %v538
      %v1413 = vpop.f32.mrb[0].mxu0
      %v1414 = vadd.f32 0.0, %v1413
      %v1415 = vpop.f32.mrb[0].mxu0
      %v1416 = vadd.f32 0.0, %v1415
      %v1417 = vpop.f32.mrb[0].mxu0
      %v1418 = vadd.f32 0.0, %v1417
      %v1419 = vpop.f32.mrb[0].mxu0
      %v1420 = vadd.f32 0.0, %v1419
      %1421 = vmatprep.mubr.bf16.mxu0 0
      %1422 = vmatmul.mubr.bf16.gmra.mrb[0].mxu0 %v539
      %v1423 = vpop.f32.mrb[0].mxu0
      %v1424 = vadd.f32 0.0, %v1423
      %v1425 = vpop.f32.mrb[0].mxu0
      %v1426 = vadd.f32 0.0, %v1425
      %v1427 = vpop.f32.mrb[0].mxu0
      %v1428 = vadd.f32 0.0, %v1427
      %v1429 = vpop.f32.mrb[0].mxu0
      %v1430 = vadd.f32 0.0, %v1429
      %1431 = vmatprep.mubr.bf16.mxu0 0
      %1432 = vmatmul.mubr.bf16.gmra.mrb[0].mxu0 %v540
      %v1433 = vpop.f32.mrb[0].mxu0
      %v1434 = vadd.f32 0.0, %v1433
      %v1435 = vpop.f32.mrb[0].mxu0
      %v1436 = vadd.f32 0.0, %v1435
      %v1437 = vpop.f32.mrb[0].mxu0
      %v1438 = vadd.f32 0.0, %v1437
      %v1439 = vpop.f32.mrb[0].mxu0
      %v1440 = vadd.f32 0.0, %v1439
      %1441 = vmatprep.mubr.bf16.mxu0 0
      %1442 = vmatmul.mubr.bf16.gmra.mrb[0].mxu0 %v541
      %v1443 = vpop.f32.mrb[0].mxu0
      %v1444 = vadd.f32 0.0, %v1443
      %v1445 = vpop.f32.mrb[0].mxu0
      %v1446 = vadd.f32 0.0, %v1445
      %v1447 = vpop.f32.mrb[0].mxu0
      %v1448 = vadd.f32 0.0, %v1447
      %v1449 = vpop.f32.mrb[0].mxu0
      %v1450 = vadd.f32 0.0, %v1449
      %1451 = vmatprep.mubr.bf16.mxu0 0
      %1452 = vmatmul.mubr.bf16.gmra.mrb[0].mxu0 %v542
      %v1453 = vpop.f32.mrb[0].mxu0
      %v1454 = vadd.f32 0.0, %v1453
      %v1455 = vpop.f32.mrb[0].mxu0
      %v1456 = vadd.f32 0.0, %v1455
      %v1457 = vpop.f32.mrb[0].mxu0
      %v1458 = vadd.f32 0.0, %v1457
      %v1459 = vpop.f32.mrb[0].mxu0
      %v1460 = vadd.f32 0.0, %v1459
      %1461 = vmatprep.mubr.bf16.mxu0 0
      %1462 = vmatmul.mubr.bf16.gmra.mrb[0].mxu0 %v543
      %v1463 = vpop.f32.mrb[0].mxu0
      %v1464 = vadd.f32 0.0, %v1463
      %v1465 = vpop.f32.mrb[0].mxu0
      %v1466 = vadd.f32 0.0, %v1465
      %v1467 = vpop.f32.mrb[0].mxu0
      %v1468 = vadd.f32 0.0, %v1467
      %v1469 = vpop.f32.mrb[0].mxu0
      %v1470 = vadd.f32 0.0, %v1469
      %1471 = vmatprep.mubr.bf16.mxu0 0
      %1472 = vmatmul.mubr.bf16.gmra.mrb[0].mxu0 %v544
      %v1473 = vpop.f32.mrb[0].mxu0
      %v1474 = vadd.f32 0.0, %v1473
      %v1475 = vpop.f32.mrb[0].mxu0
      %v1476 = vadd.f32 0.0, %v1475
      %v1477 = vpop.f32.mrb[0].mxu0
      %v1478 = vadd.f32 0.0, %v1477
      %v1479 = vpop.f32.mrb[0].mxu0
      %v1480 = vadd.f32 0.0, %v1479
      %1481 = vmatprep.mubr.bf16.mxu0 0
      %1482 = vmatmul.mubr.bf16.gmra.mrb[0].mxu0 %v545
      %v1483 = vpop.f32.mrb[0].mxu0
      %v1484 = vadd.f32 0.0, %v1483
      %v1485 = vpop.f32.mrb[0].mxu0
      %v1486 = vadd.f32 0.0, %v1485
      %v1487 = vpop.f32.mrb[0].mxu0
      %v1488 = vadd.f32 0.0, %v1487
      %v1489 = vpop.f32.mrb[0].mxu0
      %v1490 = vadd.f32 0.0, %v1489
      %1491 = vmatprep.mubr.bf16.mxu0 0
      %1492 = vmatmul.mubr.bf16.gmra.mrb[0].mxu0 %v546
      %v1493 = vpop.f32.mrb[0].mxu0
      %v1494 = vadd.f32 0.0, %v1493
      %v1495 = vpop.f32.mrb[0].mxu0
      %v1496 = vadd.f32 0.0, %v1495
      %v1497 = vpop.f32.mrb[0].mxu0
      %v1498 = vadd.f32 0.0, %v1497
      %v1499 = vpop.f32.mrb[0].mxu0
      %v1500 = vadd.f32 0.0, %v1499
      %1501 = vmatprep.mubr.bf16.mxu0 0
      %1502 = vmatmul.mubr.bf16.gmra.mrb[0].mxu0 %v547
      %v1503 = vpop.f32.mrb[0].mxu0
      %v1504 = vadd.f32 0.0, %v1503
      %v1505 = vpop.f32.mrb[0].mxu0
      %v1506 = vadd.f32 0.0, %v1505
      %v1507 = vpop.f32.mrb[0].mxu0
      %v1508 = vadd.f32 0.0, %v1507
      %v1509 = vpop.f32.mrb[0].mxu0
      %v1510 = vadd.f32 0.0, %v1509
      %1511 = vmatprep.mubr.bf16.mxu0 0
      %1512 = vmatmul.mubr.bf16.gmra.mrb[0].mxu0 %v548
      %v1513 = vpop.f32.mrb[0].mxu0
      %v1514 = vadd.f32 0.0, %v1513
      %v1515 = vpop.f32.mrb[0].mxu0
      %v1516 = vadd.f32 0.0, %v1515
      %v1517 = vpop.f32.mrb[0].mxu0
      %v1518 = vadd.f32 0.0, %v1517
      %v1519 = vpop.f32.mrb[0].mxu0
      %v1520 = vadd.f32 0.0, %v1519
      %1521 = vmatprep.mubr.bf16.mxu0 0
      %1522 = vmatmul.mubr.bf16.gmra.mrb[0].mxu0 %v549
      %v1523 = vpop.f32.mrb[0].mxu0
      %v1524 = vadd.f32 0.0, %v1523
      %v1525 = vpop.f32.mrb[0].mxu0
      %v1526 = vadd.f32 0.0, %v1525
      %v1527 = vpop.f32.mrb[0].mxu0
      %v1528 = vadd.f32 0.0, %v1527
      %v1529 = vpop.f32.mrb[0].mxu0
      %v1530 = vadd.f32 0.0, %v1529
      %1531 = vmatprep.mubr.bf16.mxu0 0
      %1532 = vmatmul.mubr.bf16.gmra.mrb[0].mxu0 %v550
      %v1533 = vpop.f32.mrb[0].mxu0
      %v1534 = vadd.f32 0.0, %v1533
      %v1535 = vpop.f32.mrb[0].mxu0
      %v1536 = vadd.f32 0.0, %v1535
      %v1537 = vpop.f32.mrb[0].mxu0
      %v1538 = vadd.f32 0.0, %v1537
      %v1539 = vpop.f32.mrb[0].mxu0
      %v1540 = vadd.f32 0.0, %v1539
      %1541 = vmatprep.mubr.bf16.mxu0 0
      %1542 = vmatmul.mubr.bf16.gmra.mrb[0].mxu0 %v551
      %v1543 = vpop.f32.mrb[0].mxu0
      %v1544 = vadd.f32 0.0, %v1543
      %v1545 = vpop.f32.mrb[0].mxu0
      %v1546 = vadd.f32 0.0, %v1545
      %v1547 = vpop.f32.mrb[0].mxu0
      %v1548 = vadd.f32 0.0, %v1547
      %v1549 = vpop.f32.mrb[0].mxu0
      %v1550 = vadd.f32 0.0, %v1549
      %1551 = vmatprep.mubr.bf16.mxu0 0
      %1552 = vmatmul.mubr.bf16.gmra.mrb[0].mxu0 %v552
      %v1553 = vpop.f32.mrb[0].mxu0
      %v1554 = vadd.f32 0.0, %v1553
      %v1555 = vpop.f32.mrb[0].mxu0
      %v1556 = vadd.f32 0.0, %v1555
      %v1557 = vpop.f32.mrb[0].mxu0
      %v1558 = vadd.f32 0.0, %v1557
      %v1559 = vpop.f32.mrb[0].mxu0
      %v1560 = vadd.f32 0.0, %v1559
      %1561 = vmatprep.mubr.bf16.mxu0 0
      %1562 = vmatmul.mubr.bf16.gmra.mrb[0].mxu0 %v553
      %v1563 = vpop.f32.mrb[0].mxu0
      %v1564 = vadd.f32 0.0, %v1563
      %v1565 = vpop.f32.mrb[0].mxu0
      %v1566 = vadd.f32 0.0, %v1565
      %v1567 = vpop.f32.mrb[0].mxu0
      %v1568 = vadd.f32 0.0, %v1567
      %v1569 = vpop.f32.mrb[0].mxu0
      %v1570 = vadd.f32 0.0, %v1569
      %1571 = vmatprep.mubr.bf16.mxu0 0
      %1572 = vmatmul.mubr.bf16.gmra.mrb[0].mxu0 %v554
      %v1573 = vpop.f32.mrb[0].mxu0
      %v1574 = vadd.f32 0.0, %v1573
      %v1575 = vpop.f32.mrb[0].mxu0
      %v1576 = vadd.f32 0.0, %v1575
      %v1577 = vpop.f32.mrb[0].mxu0
      %v1578 = vadd.f32 0.0, %v1577
      %v1579 = vpop.f32.mrb[0].mxu0
      %v1580 = vadd.f32 0.0, %v1579
      %1581 = vmatprep.mubr.bf16.mxu0 0
      %1582 = vmatmul.mubr.bf16.gmra.mrb[0].mxu0 %v555
      %v1583 = vpop.f32.mrb[0].mxu0
      %v1584 = vadd.f32 0.0, %v1583
      %v1585 = vpop.f32.mrb[0].mxu0
      %v1586 = vadd.f32 0.0, %v1585
      %v1587 = vpop.f32.mrb[0].mxu0
      %v1588 = vadd.f32 0.0, %v1587
      %v1589 = vpop.f32.mrb[0].mxu0
      %v1590 = vadd.f32 0.0, %v1589
      %1591 = vmatprep.mubr.bf16.mxu0 0
      %1592 = vmatmul.mubr.bf16.gmra.mrb[0].mxu0 %v556
      %v1593 = vpop.f32.mrb[0].mxu0
      %v1594 = vadd.f32 0.0, %v1593
      %v1595 = vpop.f32.mrb[0].mxu0
      %v1596 = vadd.f32 0.0, %v1595
      %v1597 = vpop.f32.mrb[0].mxu0
      %v1598 = vadd.f32 0.0, %v1597
      %v1599 = vpop.f32.mrb[0].mxu0
      %v1600 = vadd.f32 0.0, %v1599
      %1601 = vmatprep.mubr.bf16.mxu0 0
      %1602 = vmatmul.mubr.bf16.gmra.mrb[0].mxu0 %v557
      %v1603 = vpop.f32.mrb[0].mxu0
      %v1604 = vadd.f32 0.0, %v1603
      %v1605 = vpop.f32.mrb[0].mxu0
      %v1606 = vadd.f32 0.0, %v1605
      %v1607 = vpop.f32.mrb[0].mxu0
      %v1608 = vadd.f32 0.0, %v1607
      %v1609 = vpop.f32.mrb[0].mxu0
      %v1610 = vadd.f32 0.0, %v1609
      %1611 = vmatprep.mubr.bf16.mxu0 0
      %1612 = vmatmul.mubr.bf16.gmra.mrb[0].mxu0 %v558
      %v1613 = vpop.f32.mrb[0].mxu0
      %v1614 = vadd.f32 0.0, %v1613
      %v1615 = vpop.f32.mrb[0].mxu0
      %v1616 = vadd.f32 0.0, %v1615
      %v1617 = vpop.f32.mrb[0].mxu0
      %v1618 = vadd.f32 0.0, %v1617
      %v1619 = vpop.f32.mrb[0].mxu0
      %v1620 = vadd.f32 0.0, %v1619
      %1621 = vmatprep.mubr.bf16.mxu0 0
      %1622 = vmatmul.mubr.bf16.gmra.mrb[0].mxu0 %v559
      %v1623 = vpop.f32.mrb[0].mxu0
      %v1624 = vadd.f32 0.0, %v1623
      %v1625 = vpop.f32.mrb[0].mxu0
      %v1626 = vadd.f32 0.0, %v1625
      %v1627 = vpop.f32.mrb[0].mxu0
      %v1628 = vadd.f32 0.0, %v1627
      %v1629 = vpop.f32.mrb[0].mxu0
      %v1630 = vadd.f32 0.0, %v1629
      %1631 = vmatprep.mubr.bf16.mxu0 0
      %1632 = vmatmul.mubr.bf16.gmra.mrb[0].mxu0 %v560
      %v1633 = vpop.f32.mrb[0].mxu0
      %v1634 = vadd.f32 0.0, %v1633
      %v1635 = vpop.f32.mrb[0].mxu0
      %v1636 = vadd.f32 0.0, %v1635
      %v1637 = vpop.f32.mrb[0].mxu0
      %v1638 = vadd.f32 0.0, %v1637
      %v1639 = vpop.f32.mrb[0].mxu0
      %v1640 = vadd.f32 0.0, %v1639
      %1641 = vmatprep.mubr.bf16.mxu0 0
      %1642 = vmatmul.mubr.bf16.gmra.mrb[0].mxu0 %v561
      %v1643 = vpop.f32.mrb[0].mxu0
      %v1644 = vadd.f32 0.0, %v1643
      %v1645 = vpop.f32.mrb[0].mxu0
      %v1646 = vadd.f32 0.0, %v1645
      %v1647 = vpop.f32.mrb[0].mxu0
      %v1648 = vadd.f32 0.0, %v1647
      %v1649 = vpop.f32.mrb[0].mxu0
      %v1650 = vadd.f32 0.0, %v1649
      %1651 = vdwg.mxu0
      %1652 = vmatprep.subr.bf16.mxu0 %v823
      %1653 = vmatpush1.bf16.msra.mxu0 %v822
      %1654 = vmatprep.subr.bf16.mxu0 %v831
      %1655 = vmatpush1.bf16.msra.mxu0 %v830
      %1656 = vmatprep.subr.bf16.mxu0 %v839
      %1657 = vmatpush1.bf16.msra.mxu0 %v838
      %1658 = vmatprep.subr.bf16.mxu0 %v847
      %1659 = vmatpush1.bf16.msra.mxu0 %v846
      %1660 = vmatprep.subr.bf16.mxu0 %v855
      %1661 = vmatpush1.bf16.msra.mxu0 %v854
      %1662 = vmatprep.subr.bf16.mxu0 %v863
      %1663 = vmatpush1.bf16.msra.mxu0 %v862
      %1664 = vmatprep.subr.bf16.mxu0 %v871
      %1665 = vmatpush1.bf16.msra.mxu0 %v870
      %1666 = vmatprep.subr.bf16.mxu0 %v879
      %1667 = vmatpush1.bf16.msra.mxu0 %v878
      %1668 = vmatprep.subr.bf16.mxu0 0
      %1669 = vmatpush1.bf16.msra.mxu0 0
      %1670 = vmatprep.subr.bf16.mxu0 0
      %1671 = vmatpush1.bf16.msra.mxu0 0
      %1672 = vmatprep.subr.bf16.mxu0 0
      %1673 = vmatpush1.bf16.msra.mxu0 0
      %1674 = vmatprep.subr.bf16.mxu0 0
      %1675 = vmatpush1.bf16.msra.mxu0 0
      %1676 = vmatprep.subr.bf16.mxu0 0
      %1677 = vmatpush1.bf16.msra.mxu0 0
      %1678 = vmatprep.subr.bf16.mxu0 0
      %1679 = vmatpush1.bf16.msra.mxu0 0
      %1680 = vmatprep.subr.bf16.mxu0 0
      %1681 = vmatpush1.bf16.msra.mxu0 0
      %1682 = vmatprep.subr.bf16.mxu0 0
      %1683 = vmatpush1.bf16.msra.mxu0 0
      %1684 = vmatprep.mubr.bf16.mxu0 0
      %1685 = vmatmul.mubr.bf16.gmra.mrb[0].mxu0 %v530
      %v1686 = vpop.f32.mrb[0].mxu0
      %v1687 = vadd.f32 0.0, %v1686
      %v1688 = vpop.f32.mrb[0].mxu0
      %v1689 = vadd.f32 0.0, %v1688
      %v1690 = vpop.f32.mrb[0].mxu0
      %v1691 = vadd.f32 0.0, %v1690
      %v1692 = vpop.f32.mrb[0].mxu0
      %v1693 = vadd.f32 0.0, %v1692
      %1694 = vmatprep.mubr.bf16.mxu0 0
      %1695 = vmatmul.mubr.bf16.gmra.mrb[0].mxu0 %v531
      %v1696 = vpop.f32.mrb[0].mxu0
      %v1697 = vadd.f32 0.0, %v1696
      %v1698 = vpop.f32.mrb[0].mxu0
      %v1699 = vadd.f32 0.0, %v1698
      %v1700 = vpop.f32.mrb[0].mxu0
      %v1701 = vadd.f32 0.0, %v1700
      %v1702 = vpop.f32.mrb[0].mxu0
      %v1703 = vadd.f32 0.0, %v1702
      %1704 = vmatprep.mubr.bf16.mxu0 0
      %1705 = vmatmul.mubr.bf16.gmra.mrb[0].mxu0 %v532
      %v1706 = vpop.f32.mrb[0].mxu0
      %v1707 = vadd.f32 0.0, %v1706
      %v1708 = vpop.f32.mrb[0].mxu0
      %v1709 = vadd.f32 0.0, %v1708
      %v1710 = vpop.f32.mrb[0].mxu0
      %v1711 = vadd.f32 0.0, %v1710
      %v1712 = vpop.f32.mrb[0].mxu0
      %v1713 = vadd.f32 0.0, %v1712
      %1714 = vmatprep.mubr.bf16.mxu0 0
      %1715 = vmatmul.mubr.bf16.gmra.mrb[0].mxu0 %v533
      %v1716 = vpop.f32.mrb[0].mxu0
      %v1717 = vadd.f32 0.0, %v1716
      %v1718 = vpop.f32.mrb[0].mxu0
      %v1719 = vadd.f32 0.0, %v1718
      %v1720 = vpop.f32.mrb[0].mxu0
      %v1721 = vadd.f32 0.0, %v1720
      %v1722 = vpop.f32.mrb[0].mxu0
      %v1723 = vadd.f32 0.0, %v1722
      %1724 = vmatprep.mubr.bf16.mxu0 0
      %1725 = vmatmul.mubr.bf16.gmra.mrb[0].mxu0 %v534
      %v1726 = vpop.f32.mrb[0].mxu0
      %v1727 = vadd.f32 0.0, %v1726
      %v1728 = vpop.f32.mrb[0].mxu0
      %v1729 = vadd.f32 0.0, %v1728
      %v1730 = vpop.f32.mrb[0].mxu0
      %v1731 = vadd.f32 0.0, %v1730
      %v1732 = vpop.f32.mrb[0].mxu0
      %v1733 = vadd.f32 0.0, %v1732
      %1734 = vmatprep.mubr.bf16.mxu0 0
      %1735 = vmatmul.mubr.bf16.gmra.mrb[0].mxu0 %v535
      %v1736 = vpop.f32.mrb[0].mxu0
      %v1737 = vadd.f32 0.0, %v1736
      %v1738 = vpop.f32.mrb[0].mxu0
      %v1739 = vadd.f32 0.0, %v1738
      %v1740 = vpop.f32.mrb[0].mxu0
      %v1741 = vadd.f32 0.0, %v1740
      %v1742 = vpop.f32.mrb[0].mxu0
      %v1743 = vadd.f32 0.0, %v1742
      %1744 = vmatprep.mubr.bf16.mxu0 0
      %1745 = vmatmul.mubr.bf16.gmra.mrb[0].mxu0 %v536
      %v1746 = vpop.f32.mrb[0].mxu0
      %v1747 = vadd.f32 0.0, %v1746
      %v1748 = vpop.f32.mrb[0].mxu0
      %v1749 = vadd.f32 0.0, %v1748
      %v1750 = vpop.f32.mrb[0].mxu0
      %v1751 = vadd.f32 0.0, %v1750
      %v1752 = vpop.f32.mrb[0].mxu0
      %v1753 = vadd.f32 0.0, %v1752
      %1754 = vmatprep.mubr.bf16.mxu0 0
      %1755 = vmatmul.mubr.bf16.gmra.mrb[0].mxu0 %v537
      %v1756 = vpop.f32.mrb[0].mxu0
      %v1757 = vadd.f32 0.0, %v1756
      %v1758 = vpop.f32.mrb[0].mxu0
      %v1759 = vadd.f32 0.0, %v1758
      %v1760 = vpop.f32.mrb[0].mxu0
      %v1761 = vadd.f32 0.0, %v1760
      %v1762 = vpop.f32.mrb[0].mxu0
      %v1763 = vadd.f32 0.0, %v1762
      %1764 = vmatprep.mubr.bf16.mxu0 0
      %1765 = vmatmul.mubr.bf16.gmra.mrb[0].mxu0 %v538
      %v1766 = vpop.f32.mrb[0].mxu0
      %v1767 = vadd.f32 0.0, %v1766
      %v1768 = vpop.f32.mrb[0].mxu0
      %v1769 = vadd.f32 0.0, %v1768
      %v1770 = vpop.f32.mrb[0].mxu0
      %v1771 = vadd.f32 0.0, %v1770
      %v1772 = vpop.f32.mrb[0].mxu0
      %v1773 = vadd.f32 0.0, %v1772
      %1774 = vmatprep.mubr.bf16.mxu0 0
      %1775 = vmatmul.mubr.bf16.gmra.mrb[0].mxu0 %v539
      %v1776 = vpop.f32.mrb[0].mxu0
      %v1777 = vadd.f32 0.0, %v1776
      %v1778 = vpop.f32.mrb[0].mxu0
      %v1779 = vadd.f32 0.0, %v1778
      %v1780 = vpop.f32.mrb[0].mxu0
      %v1781 = vadd.f32 0.0, %v1780
      %v1782 = vpop.f32.mrb[0].mxu0
      %v1783 = vadd.f32 0.0, %v1782
      %1784 = vmatprep.mubr.bf16.mxu0 0
      %1785 = vmatmul.mubr.bf16.gmra.mrb[0].mxu0 %v540
      %v1786 = vpop.f32.mrb[0].mxu0
      %v1787 = vadd.f32 0.0, %v1786
      %v1788 = vpop.f32.mrb[0].mxu0
      %v1789 = vadd.f32 0.0, %v1788
      %v1790 = vpop.f32.mrb[0].mxu0
      %v1791 = vadd.f32 0.0, %v1790
      %v1792 = vpop.f32.mrb[0].mxu0
      %v1793 = vadd.f32 0.0, %v1792
      %1794 = vmatprep.mubr.bf16.mxu0 0
      %1795 = vmatmul.mubr.bf16.gmra.mrb[0].mxu0 %v541
      %v1796 = vpop.f32.mrb[0].mxu0
      %v1797 = vadd.f32 0.0, %v1796
      %v1798 = vpop.f32.mrb[0].mxu0
      %v1799 = vadd.f32 0.0, %v1798
      %v1800 = vpop.f32.mrb[0].mxu0
      %v1801 = vadd.f32 0.0, %v1800
      %v1802 = vpop.f32.mrb[0].mxu0
      %v1803 = vadd.f32 0.0, %v1802
      %1804 = vmatprep.mubr.bf16.mxu0 0
      %1805 = vmatmul.mubr.bf16.gmra.mrb[0].mxu0 %v542
      %v1806 = vpop.f32.mrb[0].mxu0
      %v1807 = vadd.f32 0.0, %v1806
      %v1808 = vpop.f32.mrb[0].mxu0
      %v1809 = vadd.f32 0.0, %v1808
      %v1810 = vpop.f32.mrb[0].mxu0
      %v1811 = vadd.f32 0.0, %v1810
      %v1812 = vpop.f32.mrb[0].mxu0
      %v1813 = vadd.f32 0.0, %v1812
      %1814 = vmatprep.mubr.bf16.mxu0 0
      %1815 = vmatmul.mubr.bf16.gmra.mrb[0].mxu0 %v543
      %v1816 = vpop.f32.mrb[0].mxu0
      %v1817 = vadd.f32 0.0, %v1816
      %v1818 = vpop.f32.mrb[0].mxu0
      %v1819 = vadd.f32 0.0, %v1818
      %v1820 = vpop.f32.mrb[0].mxu0
      %v1821 = vadd.f32 0.0, %v1820
      %v1822 = vpop.f32.mrb[0].mxu0
      %v1823 = vadd.f32 0.0, %v1822
      %1824 = vmatprep.mubr.bf16.mxu0 0
      %1825 = vmatmul.mubr.bf16.gmra.mrb[0].mxu0 %v544
      %v1826 = vpop.f32.mrb[0].mxu0
      %v1827 = vadd.f32 0.0, %v1826
      %v1828 = vpop.f32.mrb[0].mxu0
      %v1829 = vadd.f32 0.0, %v1828
      %v1830 = vpop.f32.mrb[0].mxu0
      %v1831 = vadd.f32 0.0, %v1830
      %v1832 = vpop.f32.mrb[0].mxu0
      %v1833 = vadd.f32 0.0, %v1832
      %1834 = vmatprep.mubr.bf16.mxu0 0
      %1835 = vmatmul.mubr.bf16.gmra.mrb[0].mxu0 %v545
      %v1836 = vpop.f32.mrb[0].mxu0
      %v1837 = vadd.f32 0.0, %v1836
      %v1838 = vpop.f32.mrb[0].mxu0
      %v1839 = vadd.f32 0.0, %v1838
      %v1840 = vpop.f32.mrb[0].mxu0
      %v1841 = vadd.f32 0.0, %v1840
      %v1842 = vpop.f32.mrb[0].mxu0
      %v1843 = vadd.f32 0.0, %v1842
      %1844 = vmatprep.mubr.bf16.mxu0 0
      %1845 = vmatmul.mubr.bf16.gmra.mrb[0].mxu0 %v546
      %v1846 = vpop.f32.mrb[0].mxu0
      %v1847 = vadd.f32 0.0, %v1846
      %v1848 = vpop.f32.mrb[0].mxu0
      %v1849 = vadd.f32 0.0, %v1848
      %v1850 = vpop.f32.mrb[0].mxu0
      %v1851 = vadd.f32 0.0, %v1850
      %v1852 = vpop.f32.mrb[0].mxu0
      %v1853 = vadd.f32 0.0, %v1852
      %1854 = vmatprep.mubr.bf16.mxu0 0
      %1855 = vmatmul.mubr.bf16.gmra.mrb[0].mxu0 %v547
      %v1856 = vpop.f32.mrb[0].mxu0
      %v1857 = vadd.f32 0.0, %v1856
      %v1858 = vpop.f32.mrb[0].mxu0
      %v1859 = vadd.f32 0.0, %v1858
      %v1860 = vpop.f32.mrb[0].mxu0
      %v1861 = vadd.f32 0.0, %v1860
      %v1862 = vpop.f32.mrb[0].mxu0
      %v1863 = vadd.f32 0.0, %v1862
      %1864 = vmatprep.mubr.bf16.mxu0 0
      %1865 = vmatmul.mubr.bf16.gmra.mrb[0].mxu0 %v548
      %v1866 = vpop.f32.mrb[0].mxu0
      %v1867 = vadd.f32 0.0, %v1866
      %v1868 = vpop.f32.mrb[0].mxu0
      %v1869 = vadd.f32 0.0, %v1868
      %v1870 = vpop.f32.mrb[0].mxu0
      %v1871 = vadd.f32 0.0, %v1870
      %v1872 = vpop.f32.mrb[0].mxu0
      %v1873 = vadd.f32 0.0, %v1872
      %1874 = vmatprep.mubr.bf16.mxu0 0
      %1875 = vmatmul.mubr.bf16.gmra.mrb[0].mxu0 %v549
      %v1876 = vpop.f32.mrb[0].mxu0
      %v1877 = vadd.f32 0.0, %v1876
      %v1878 = vpop.f32.mrb[0].mxu0
      %v1879 = vadd.f32 0.0, %v1878
      %v1880 = vpop.f32.mrb[0].mxu0
      %v1881 = vadd.f32 0.0, %v1880
      %v1882 = vpop.f32.mrb[0].mxu0
      %v1883 = vadd.f32 0.0, %v1882
      %1884 = vmatprep.mubr.bf16.mxu0 0
      %1885 = vmatmul.mubr.bf16.gmra.mrb[0].mxu0 %v550
      %v1886 = vpop.f32.mrb[0].mxu0
      %v1887 = vadd.f32 0.0, %v1886
      %v1888 = vpop.f32.mrb[0].mxu0
      %v1889 = vadd.f32 0.0, %v1888
      %v1890 = vpop.f32.mrb[0].mxu0
      %v1891 = vadd.f32 0.0, %v1890
      %v1892 = vpop.f32.mrb[0].mxu0
      %v1893 = vadd.f32 0.0, %v1892
      %1894 = vmatprep.mubr.bf16.mxu0 0
      %1895 = vmatmul.mubr.bf16.gmra.mrb[0].mxu0 %v551
      %v1896 = vpop.f32.mrb[0].mxu0
      %v1897 = vadd.f32 0.0, %v1896
      %v1898 = vpop.f32.mrb[0].mxu0
      %v1899 = vadd.f32 0.0, %v1898
      %v1900 = vpop.f32.mrb[0].mxu0
      %v1901 = vadd.f32 0.0, %v1900
      %v1902 = vpop.f32.mrb[0].mxu0
      %v1903 = vadd.f32 0.0, %v1902
      %1904 = vmatprep.mubr.bf16.mxu0 0
      %1905 = vmatmul.mubr.bf16.gmra.mrb[0].mxu0 %v552
      %v1906 = vpop.f32.mrb[0].mxu0
      %v1907 = vadd.f32 0.0, %v1906
      %v1908 = vpop.f32.mrb[0].mxu0
      %v1909 = vadd.f32 0.0, %v1908
      %v1910 = vpop.f32.mrb[0].mxu0
      %v1911 = vadd.f32 0.0, %v1910
      %v1912 = vpop.f32.mrb[0].mxu0
      %v1913 = vadd.f32 0.0, %v1912
      %1914 = vmatprep.mubr.bf16.mxu0 0
      %1915 = vmatmul.mubr.bf16.gmra.mrb[0].mxu0 %v553
      %v1916 = vpop.f32.mrb[0].mxu0
      %v1917 = vadd.f32 0.0, %v1916
      %v1918 = vpop.f32.mrb[0].mxu0
      %v1919 = vadd.f32 0.0, %v1918
      %v1920 = vpop.f32.mrb[0].mxu0
      %v1921 = vadd.f32 0.0, %v1920
      %v1922 = vpop.f32.mrb[0].mxu0
      %v1923 = vadd.f32 0.0, %v1922
      %1924 = vmatprep.mubr.bf16.mxu0 0
      %1925 = vmatmul.mubr.bf16.gmra.mrb[0].mxu0 %v554
      %v1926 = vpop.f32.mrb[0].mxu0
      %v1927 = vadd.f32 0.0, %v1926
      %v1928 = vpop.f32.mrb[0].mxu0
      %v1929 = vadd.f32 0.0, %v1928
      %v1930 = vpop.f32.mrb[0].mxu0
      %v1931 = vadd.f32 0.0, %v1930
      %v1932 = vpop.f32.mrb[0].mxu0
      %v1933 = vadd.f32 0.0, %v1932
      %1934 = vmatprep.mubr.bf16.mxu0 0
      %1935 = vmatmul.mubr.bf16.gmra.mrb[0].mxu0 %v555
      %v1936 = vpop.f32.mrb[0].mxu0
      %v1937 = vadd.f32 0.0, %v1936
      %v1938 = vpop.f32.mrb[0].mxu0
      %v1939 = vadd.f32 0.0, %v1938
      %v1940 = vpop.f32.mrb[0].mxu0
      %v1941 = vadd.f32 0.0, %v1940
      %v1942 = vpop.f32.mrb[0].mxu0
      %v1943 = vadd.f32 0.0, %v1942
      %1944 = vmatprep.mubr.bf16.mxu0 0
      %1945 = vmatmul.mubr.bf16.gmra.mrb[0].mxu0 %v556
      %v1946 = vpop.f32.mrb[0].mxu0
      %v1947 = vadd.f32 0.0, %v1946
      %v1948 = vpop.f32.mrb[0].mxu0
      %v1949 = vadd.f32 0.0, %v1948
      %v1950 = vpop.f32.mrb[0].mxu0
      %v1951 = vadd.f32 0.0, %v1950
      %v1952 = vpop.f32.mrb[0].mxu0
      %v1953 = vadd.f32 0.0, %v1952
      %1954 = vmatprep.mubr.bf16.mxu0 0
      %1955 = vmatmul.mubr.bf16.gmra.mrb[0].mxu0 %v557
      %v1956 = vpop.f32.mrb[0].mxu0
      %v1957 = vadd.f32 0.0, %v1956
      %v1958 = vpop.f32.mrb[0].mxu0
      %v1959 = vadd.f32 0.0, %v1958
      %v1960 = vpop.f32.mrb[0].mxu0
      %v1961 = vadd.f32 0.0, %v1960
      %v1962 = vpop.f32.mrb[0].mxu0
      %v1963 = vadd.f32 0.0, %v1962
      %1964 = vmatprep.mubr.bf16.mxu0 0
      %1965 = vmatmul.mubr.bf16.gmra.mrb[0].mxu0 %v558
      %v1966 = vpop.f32.mrb[0].mxu0
      %v1967 = vadd.f32 0.0, %v1966
      %v1968 = vpop.f32.mrb[0].mxu0
      %v1969 = vadd.f32 0.0, %v1968
      %v1970 = vpop.f32.mrb[0].mxu0
      %v1971 = vadd.f32 0.0, %v1970
      %v1972 = vpop.f32.mrb[0].mxu0
      %v1973 = vadd.f32 0.0, %v1972
      %1974 = vmatprep.mubr.bf16.mxu0 0
      %1975 = vmatmul.mubr.bf16.gmra.mrb[0].mxu0 %v559
      %v1976 = vpop.f32.mrb[0].mxu0
      %v1977 = vadd.f32 0.0, %v1976
      %v1978 = vpop.f32.mrb[0].mxu0
      %v1979 = vadd.f32 0.0, %v1978
      %v1980 = vpop.f32.mrb[0].mxu0
      %v1981 = vadd.f32 0.0, %v1980
      %v1982 = vpop.f32.mrb[0].mxu0
      %v1983 = vadd.f32 0.0, %v1982
      %1984 = vmatprep.mubr.bf16.mxu0 0
      %1985 = vmatmul.mubr.bf16.gmra.mrb[0].mxu0 %v560
      %v1986 = vpop.f32.mrb[0].mxu0
      %v1987 = vadd.f32 0.0, %v1986
      %v1988 = vpop.f32.mrb[0].mxu0
      %v1989 = vadd.f32 0.0, %v1988
      %v1990 = vpop.f32.mrb[0].mxu0
      %v1991 = vadd.f32 0.0, %v1990
      %v1992 = vpop.f32.mrb[0].mxu0
      %v1993 = vadd.f32 0.0, %v1992
      %1994 = vmatprep.mubr.bf16.mxu0 0
      %1995 = vmatmul.mubr.bf16.gmra.mrb[0].mxu0 %v561
      %v1996 = vpop.f32.mrb[0].mxu0
      %v1997 = vadd.f32 0.0, %v1996
      %v1998 = vpop.f32.mrb[0].mxu0
      %v1999 = vadd.f32 0.0, %v1998
      %v2000 = vpop.f32.mrb[0].mxu0
      %v2001 = vadd.f32 0.0, %v2000
      %v2002 = vpop.f32.mrb[0].mxu0
      %v2003 = vadd.f32 0.0, %v2002
      %2004 = vdwg.mxu0
      %2005 = vmatprep.subr.bf16.mxu0 %v825
      %2006 = vmatpush1.bf16.msra.mxu0 %v824
      %2007 = vmatprep.subr.bf16.mxu0 %v833
      %2008 = vmatpush1.bf16.msra.mxu0 %v832
      %2009 = vmatprep.subr.bf16.mxu0 %v841
      %2010 = vmatpush1.bf16.msra.mxu0 %v840
      %2011 = vmatprep.subr.bf16.mxu0 %v849
      %2012 = vmatpush1.bf16.msra.mxu0 %v848
      %2013 = vmatprep.subr.bf16.mxu0 %v857
      %2014 = vmatpush1.bf16.msra.mxu0 %v856
      %2015 = vmatprep.subr.bf16.mxu0 %v865
      %2016 = vmatpush1.bf16.msra.mxu0 %v864
      %2017 = vmatprep.subr.bf16.mxu0 %v873
      %2018 = vmatpush1.bf16.msra.mxu0 %v872
      %2019 = vmatprep.subr.bf16.mxu0 %v881
      %2020 = vmatpush1.bf16.msra.mxu0 %v880
      %2021 = vmatprep.subr.bf16.mxu0 0
      %2022 = vmatpush1.bf16.msra.mxu0 0
      %2023 = vmatprep.subr.bf16.mxu0 0
      %2024 = vmatpush1.bf16.msra.mxu0 0
      %2025 = vmatprep.subr.bf16.mxu0 0
      %2026 = vmatpush1.bf16.msra.mxu0 0
      %2027 = vmatprep.subr.bf16.mxu0 0
      %2028 = vmatpush1.bf16.msra.mxu0 0
      %2029 = vmatprep.subr.bf16.mxu0 0
      %2030 = vmatpush1.bf16.msra.mxu0 0
      %2031 = vmatprep.subr.bf16.mxu0 0
      %2032 = vmatpush1.bf16.msra.mxu0 0
      %2033 = vmatprep.subr.bf16.mxu0 0
      %2034 = vmatpush1.bf16.msra.mxu0 0
      %2035 = vmatprep.subr.bf16.mxu0 0
      %2036 = vmatpush1.bf16.msra.mxu0 0
      %2037 = vmatprep.mubr.bf16.mxu0 0
      %2038 = vmatmul.mubr.bf16.gmra.mrb[0].mxu0 %v530
      %v2039 = vpop.f32.mrb[0].mxu0
      %v2040 = vadd.f32 0.0, %v2039
      %v2041 = vpop.f32.mrb[0].mxu0
      %v2042 = vadd.f32 0.0, %v2041
      %v2043 = vpop.f32.mrb[0].mxu0
      %v2044 = vadd.f32 0.0, %v2043
      %v2045 = vpop.f32.mrb[0].mxu0
      %v2046 = vadd.f32 0.0, %v2045
      %2047 = vmatprep.mubr.bf16.mxu0 0
      %2048 = vmatmul.mubr.bf16.gmra.mrb[0].mxu0 %v531
      %v2049 = vpop.f32.mrb[0].mxu0
      %v2050 = vadd.f32 0.0, %v2049
      %v2051 = vpop.f32.mrb[0].mxu0
      %v2052 = vadd.f32 0.0, %v2051
      %v2053 = vpop.f32.mrb[0].mxu0
      %v2054 = vadd.f32 0.0, %v2053
      %v2055 = vpop.f32.mrb[0].mxu0
      %v2056 = vadd.f32 0.0, %v2055
      %2057 = vmatprep.mubr.bf16.mxu0 0
      %2058 = vmatmul.mubr.bf16.gmra.mrb[0].mxu0 %v532
      %v2059 = vpop.f32.mrb[0].mxu0
      %v2060 = vadd.f32 0.0, %v2059
      %v2061 = vpop.f32.mrb[0].mxu0
      %v2062 = vadd.f32 0.0, %v2061
      %v2063 = vpop.f32.mrb[0].mxu0
      %v2064 = vadd.f32 0.0, %v2063
      %v2065 = vpop.f32.mrb[0].mxu0
      %v2066 = vadd.f32 0.0, %v2065
      %2067 = vmatprep.mubr.bf16.mxu0 0
      %2068 = vmatmul.mubr.bf16.gmra.mrb[0].mxu0 %v533
      %v2069 = vpop.f32.mrb[0].mxu0
      %v2070 = vadd.f32 0.0, %v2069
      %v2071 = vpop.f32.mrb[0].mxu0
      %v2072 = vadd.f32 0.0, %v2071
      %v2073 = vpop.f32.mrb[0].mxu0
      %v2074 = vadd.f32 0.0, %v2073
      %v2075 = vpop.f32.mrb[0].mxu0
      %v2076 = vadd.f32 0.0, %v2075
      %2077 = vmatprep.mubr.bf16.mxu0 0
      %2078 = vmatmul.mubr.bf16.gmra.mrb[0].mxu0 %v534
      %v2079 = vpop.f32.mrb[0].mxu0
      %v2080 = vadd.f32 0.0, %v2079
      %v2081 = vpop.f32.mrb[0].mxu0
      %v2082 = vadd.f32 0.0, %v2081
      %v2083 = vpop.f32.mrb[0].mxu0
      %v2084 = vadd.f32 0.0, %v2083
      %v2085 = vpop.f32.mrb[0].mxu0
      %v2086 = vadd.f32 0.0, %v2085
      %2087 = vmatprep.mubr.bf16.mxu0 0
      %2088 = vmatmul.mubr.bf16.gmra.mrb[0].mxu0 %v535
      %v2089 = vpop.f32.mrb[0].mxu0
      %v2090 = vadd.f32 0.0, %v2089
      %v2091 = vpop.f32.mrb[0].mxu0
      %v2092 = vadd.f32 0.0, %v2091
      %v2093 = vpop.f32.mrb[0].mxu0
      %v2094 = vadd.f32 0.0, %v2093
      %v2095 = vpop.f32.mrb[0].mxu0
      %v2096 = vadd.f32 0.0, %v2095
      %2097 = vmatprep.mubr.bf16.mxu0 0
      %2098 = vmatmul.mubr.bf16.gmra.mrb[0].mxu0 %v536
      %v2099 = vpop.f32.mrb[0].mxu0
      %v2100 = vadd.f32 0.0, %v2099
      %v2101 = vpop.f32.mrb[0].mxu0
      %v2102 = vadd.f32 0.0, %v2101
      %v2103 = vpop.f32.mrb[0].mxu0
      %v2104 = vadd.f32 0.0, %v2103
      %v2105 = vpop.f32.mrb[0].mxu0
      %v2106 = vadd.f32 0.0, %v2105
      %2107 = vmatprep.mubr.bf16.mxu0 0
      %2108 = vmatmul.mubr.bf16.gmra.mrb[0].mxu0 %v537
      %v2109 = vpop.f32.mrb[0].mxu0
      %v2110 = vadd.f32 0.0, %v2109
      %v2111 = vpop.f32.mrb[0].mxu0
      %v2112 = vadd.f32 0.0, %v2111
      %v2113 = vpop.f32.mrb[0].mxu0
      %v2114 = vadd.f32 0.0, %v2113
      %v2115 = vpop.f32.mrb[0].mxu0
      %v2116 = vadd.f32 0.0, %v2115
      %2117 = vmatprep.mubr.bf16.mxu0 0
      %2118 = vmatmul.mubr.bf16.gmra.mrb[0].mxu0 %v538
      %v2119 = vpop.f32.mrb[0].mxu0
      %v2120 = vadd.f32 0.0, %v2119
      %v2121 = vpop.f32.mrb[0].mxu0
      %v2122 = vadd.f32 0.0, %v2121
      %v2123 = vpop.f32.mrb[0].mxu0
      %v2124 = vadd.f32 0.0, %v2123
      %v2125 = vpop.f32.mrb[0].mxu0
      %v2126 = vadd.f32 0.0, %v2125
      %2127 = vmatprep.mubr.bf16.mxu0 0
      %2128 = vmatmul.mubr.bf16.gmra.mrb[0].mxu0 %v539
      %v2129 = vpop.f32.mrb[0].mxu0
      %v2130 = vadd.f32 0.0, %v2129
      %v2131 = vpop.f32.mrb[0].mxu0
      %v2132 = vadd.f32 0.0, %v2131
      %v2133 = vpop.f32.mrb[0].mxu0
      %v2134 = vadd.f32 0.0, %v2133
      %v2135 = vpop.f32.mrb[0].mxu0
      %v2136 = vadd.f32 0.0, %v2135
      %2137 = vmatprep.mubr.bf16.mxu0 0
      %2138 = vmatmul.mubr.bf16.gmra.mrb[0].mxu0 %v540
      %v2139 = vpop.f32.mrb[0].mxu0
      %v2140 = vadd.f32 0.0, %v2139
      %v2141 = vpop.f32.mrb[0].mxu0
      %v2142 = vadd.f32 0.0, %v2141
      %v2143 = vpop.f32.mrb[0].mxu0
      %v2144 = vadd.f32 0.0, %v2143
      %v2145 = vpop.f32.mrb[0].mxu0
      %v2146 = vadd.f32 0.0, %v2145
      %2147 = vmatprep.mubr.bf16.mxu0 0
      %2148 = vmatmul.mubr.bf16.gmra.mrb[0].mxu0 %v541
      %v2149 = vpop.f32.mrb[0].mxu0
      %v2150 = vadd.f32 0.0, %v2149
      %v2151 = vpop.f32.mrb[0].mxu0
      %v2152 = vadd.f32 0.0, %v2151
      %v2153 = vpop.f32.mrb[0].mxu0
      %v2154 = vadd.f32 0.0, %v2153
      %v2155 = vpop.f32.mrb[0].mxu0
      %v2156 = vadd.f32 0.0, %v2155
      %2157 = vmatprep.mubr.bf16.mxu0 0
      %2158 = vmatmul.mubr.bf16.gmra.mrb[0].mxu0 %v542
      %v2159 = vpop.f32.mrb[0].mxu0
      %v2160 = vadd.f32 0.0, %v2159
      %v2161 = vpop.f32.mrb[0].mxu0
      %v2162 = vadd.f32 0.0, %v2161
      %v2163 = vpop.f32.mrb[0].mxu0
      %v2164 = vadd.f32 0.0, %v2163
      %v2165 = vpop.f32.mrb[0].mxu0
      %v2166 = vadd.f32 0.0, %v2165
      %2167 = vmatprep.mubr.bf16.mxu0 0
      %2168 = vmatmul.mubr.bf16.gmra.mrb[0].mxu0 %v543
      %v2169 = vpop.f32.mrb[0].mxu0
      %v2170 = vadd.f32 0.0, %v2169
      %v2171 = vpop.f32.mrb[0].mxu0
      %v2172 = vadd.f32 0.0, %v2171
      %v2173 = vpop.f32.mrb[0].mxu0
      %v2174 = vadd.f32 0.0, %v2173
      %v2175 = vpop.f32.mrb[0].mxu0
      %v2176 = vadd.f32 0.0, %v2175
      %2177 = vmatprep.mubr.bf16.mxu0 0
      %2178 = vmatmul.mubr.bf16.gmra.mrb[0].mxu0 %v544
      %v2179 = vpop.f32.mrb[0].mxu0
      %v2180 = vadd.f32 0.0, %v2179
      %v2181 = vpop.f32.mrb[0].mxu0
      %v2182 = vadd.f32 0.0, %v2181
      %v2183 = vpop.f32.mrb[0].mxu0
      %v2184 = vadd.f32 0.0, %v2183
      %v2185 = vpop.f32.mrb[0].mxu0
      %v2186 = vadd.f32 0.0, %v2185
      %2187 = vmatprep.mubr.bf16.mxu0 0
      %2188 = vmatmul.mubr.bf16.gmra.mrb[0].mxu0 %v545
      %v2189 = vpop.f32.mrb[0].mxu0
      %v2190 = vadd.f32 0.0, %v2189
      %v2191 = vpop.f32.mrb[0].mxu0
      %v2192 = vadd.f32 0.0, %v2191
      %v2193 = vpop.f32.mrb[0].mxu0
      %v2194 = vadd.f32 0.0, %v2193
      %v2195 = vpop.f32.mrb[0].mxu0
      %v2196 = vadd.f32 0.0, %v2195
      %2197 = vmatprep.mubr.bf16.mxu0 0
      %2198 = vmatmul.mubr.bf16.gmra.mrb[0].mxu0 %v546
      %v2199 = vpop.f32.mrb[0].mxu0
      %v2200 = vadd.f32 0.0, %v2199
      %v2201 = vpop.f32.mrb[0].mxu0
      %v2202 = vadd.f32 0.0, %v2201
      %v2203 = vpop.f32.mrb[0].mxu0
      %v2204 = vadd.f32 0.0, %v2203
      %v2205 = vpop.f32.mrb[0].mxu0
      %v2206 = vadd.f32 0.0, %v2205
      %2207 = vmatprep.mubr.bf16.mxu0 0
      %2208 = vmatmul.mubr.bf16.gmra.mrb[0].mxu0 %v547
      %v2209 = vpop.f32.mrb[0].mxu0
      %v2210 = vadd.f32 0.0, %v2209
      %v2211 = vpop.f32.mrb[0].mxu0
      %v2212 = vadd.f32 0.0, %v2211
      %v2213 = vpop.f32.mrb[0].mxu0
      %v2214 = vadd.f32 0.0, %v2213
      %v2215 = vpop.f32.mrb[0].mxu0
      %v2216 = vadd.f32 0.0, %v2215
      %2217 = vmatprep.mubr.bf16.mxu0 0
      %2218 = vmatmul.mubr.bf16.gmra.mrb[0].mxu0 %v548
      %v2219 = vpop.f32.mrb[0].mxu0
      %v2220 = vadd.f32 0.0, %v2219
      %v2221 = vpop.f32.mrb[0].mxu0
      %v2222 = vadd.f32 0.0, %v2221
      %v2223 = vpop.f32.mrb[0].mxu0
      %v2224 = vadd.f32 0.0, %v2223
      %v2225 = vpop.f32.mrb[0].mxu0
      %v2226 = vadd.f32 0.0, %v2225
      %2227 = vmatprep.mubr.bf16.mxu0 0
      %2228 = vmatmul.mubr.bf16.gmra.mrb[0].mxu0 %v549
      %v2229 = vpop.f32.mrb[0].mxu0
      %v2230 = vadd.f32 0.0, %v2229
      %v2231 = vpop.f32.mrb[0].mxu0
      %v2232 = vadd.f32 0.0, %v2231
      %v2233 = vpop.f32.mrb[0].mxu0
      %v2234 = vadd.f32 0.0, %v2233
      %v2235 = vpop.f32.mrb[0].mxu0
      %v2236 = vadd.f32 0.0, %v2235
      %2237 = vmatprep.mubr.bf16.mxu0 0
      %2238 = vmatmul.mubr.bf16.gmra.mrb[0].mxu0 %v550
      %v2239 = vpop.f32.mrb[0].mxu0
      %v2240 = vadd.f32 0.0, %v2239
      %v2241 = vpop.f32.mrb[0].mxu0
      %v2242 = vadd.f32 0.0, %v2241
      %v2243 = vpop.f32.mrb[0].mxu0
      %v2244 = vadd.f32 0.0, %v2243
      %v2245 = vpop.f32.mrb[0].mxu0
      %v2246 = vadd.f32 0.0, %v2245
      %2247 = vmatprep.mubr.bf16.mxu0 0
      %2248 = vmatmul.mubr.bf16.gmra.mrb[0].mxu0 %v551
      %v2249 = vpop.f32.mrb[0].mxu0
      %v2250 = vadd.f32 0.0, %v2249
      %v2251 = vpop.f32.mrb[0].mxu0
      %v2252 = vadd.f32 0.0, %v2251
      %v2253 = vpop.f32.mrb[0].mxu0
      %v2254 = vadd.f32 0.0, %v2253
      %v2255 = vpop.f32.mrb[0].mxu0
      %v2256 = vadd.f32 0.0, %v2255
      %2257 = vmatprep.mubr.bf16.mxu0 0
      %2258 = vmatmul.mubr.bf16.gmra.mrb[0].mxu0 %v552
      %v2259 = vpop.f32.mrb[0].mxu0
      %v2260 = vadd.f32 0.0, %v2259
      %v2261 = vpop.f32.mrb[0].mxu0
      %v2262 = vadd.f32 0.0, %v2261
      %v2263 = vpop.f32.mrb[0].mxu0
      %v2264 = vadd.f32 0.0, %v2263
      %v2265 = vpop.f32.mrb[0].mxu0
      %v2266 = vadd.f32 0.0, %v2265
      %2267 = vmatprep.mubr.bf16.mxu0 0
      %2268 = vmatmul.mubr.bf16.gmra.mrb[0].mxu0 %v553
      %v2269 = vpop.f32.mrb[0].mxu0
      %v2270 = vadd.f32 0.0, %v2269
      %v2271 = vpop.f32.mrb[0].mxu0
      %v2272 = vadd.f32 0.0, %v2271
      %v2273 = vpop.f32.mrb[0].mxu0
      %v2274 = vadd.f32 0.0, %v2273
      %v2275 = vpop.f32.mrb[0].mxu0
      %v2276 = vadd.f32 0.0, %v2275
      %2277 = vmatprep.mubr.bf16.mxu0 0
      %2278 = vmatmul.mubr.bf16.gmra.mrb[0].mxu0 %v554
      %v2279 = vpop.f32.mrb[0].mxu0
      %v2280 = vadd.f32 0.0, %v2279
      %v2281 = vpop.f32.mrb[0].mxu0
      %v2282 = vadd.f32 0.0, %v2281
      %v2283 = vpop.f32.mrb[0].mxu0
      %v2284 = vadd.f32 0.0, %v2283
      %v2285 = vpop.f32.mrb[0].mxu0
      %v2286 = vadd.f32 0.0, %v2285
      %2287 = vmatprep.mubr.bf16.mxu0 0
      %2288 = vmatmul.mubr.bf16.gmra.mrb[0].mxu0 %v555
      %v2289 = vpop.f32.mrb[0].mxu0
      %v2290 = vadd.f32 0.0, %v2289
      %v2291 = vpop.f32.mrb[0].mxu0
      %v2292 = vadd.f32 0.0, %v2291
      %v2293 = vpop.f32.mrb[0].mxu0
      %v2294 = vadd.f32 0.0, %v2293
      %v2295 = vpop.f32.mrb[0].mxu0
      %v2296 = vadd.f32 0.0, %v2295
      %2297 = vmatprep.mubr.bf16.mxu0 0
      %2298 = vmatmul.mubr.bf16.gmra.mrb[0].mxu0 %v556
      %v2299 = vpop.f32.mrb[0].mxu0
      %v2300 = vadd.f32 0.0, %v2299
      %v2301 = vpop.f32.mrb[0].mxu0
      %v2302 = vadd.f32 0.0, %v2301
      %v2303 = vpop.f32.mrb[0].mxu0
      %v2304 = vadd.f32 0.0, %v2303
      %v2305 = vpop.f32.mrb[0].mxu0
      %v2306 = vadd.f32 0.0, %v2305
      %2307 = vmatprep.mubr.bf16.mxu0 0
      %2308 = vmatmul.mubr.bf16.gmra.mrb[0].mxu0 %v557
      %v2309 = vpop.f32.mrb[0].mxu0
      %v2310 = vadd.f32 0.0, %v2309
      %v2311 = vpop.f32.mrb[0].mxu0
      %v2312 = vadd.f32 0.0, %v2311
      %v2313 = vpop.f32.mrb[0].mxu0
      %v2314 = vadd.f32 0.0, %v2313
      %v2315 = vpop.f32.mrb[0].mxu0
      %v2316 = vadd.f32 0.0, %v2315
      %2317 = vmatprep.mubr.bf16.mxu0 0
      %2318 = vmatmul.mubr.bf16.gmra.mrb[0].mxu0 %v558
      %v2319 = vpop.f32.mrb[0].mxu0
      %v2320 = vadd.f32 0.0, %v2319
      %v2321 = vpop.f32.mrb[0].mxu0
      %v2322 = vadd.f32 0.0, %v2321
      %v2323 = vpop.f32.mrb[0].mxu0
      %v2324 = vadd.f32 0.0, %v2323
      %v2325 = vpop.f32.mrb[0].mxu0
      %v2326 = vadd.f32 0.0, %v2325
      %2327 = vmatprep.mubr.bf16.mxu0 0
      %2328 = vmatmul.mubr.bf16.gmra.mrb[0].mxu0 %v559
      %v2329 = vpop.f32.mrb[0].mxu0
      %v2330 = vadd.f32 0.0, %v2329
      %v2331 = vpop.f32.mrb[0].mxu0
      %v2332 = vadd.f32 0.0, %v2331
      %v2333 = vpop.f32.mrb[0].mxu0
      %v2334 = vadd.f32 0.0, %v2333
      %v2335 = vpop.f32.mrb[0].mxu0
      %v2336 = vadd.f32 0.0, %v2335
      %2337 = vmatprep.mubr.bf16.mxu0 0
      %2338 = vmatmul.mubr.bf16.gmra.mrb[0].mxu0 %v560
      %v2339 = vpop.f32.mrb[0].mxu0
      %v2340 = vadd.f32 0.0, %v2339
      %v2341 = vpop.f32.mrb[0].mxu0
      %v2342 = vadd.f32 0.0, %v2341
      %v2343 = vpop.f32.mrb[0].mxu0
      %v2344 = vadd.f32 0.0, %v2343
      %v2345 = vpop.f32.mrb[0].mxu0
      %v2346 = vadd.f32 0.0, %v2345
      %2347 = vmatprep.mubr.bf16.mxu0 0
      %2348 = vmatmul.mubr.bf16.gmra.mrb[0].mxu0 %v561
      %v2349 = vpop.f32.mrb[0].mxu0
      %v2350 = vadd.f32 0.0, %v2349
      %v2351 = vpop.f32.mrb[0].mxu0
      %v2352 = vadd.f32 0.0, %v2351
      %v2353 = vpop.f32.mrb[0].mxu0
      %v2354 = vadd.f32 0.0, %v2353
      %v2355 = vpop.f32.mrb[0].mxu0
      %v2356 = vadd.f32 0.0, %v2355
      %2357 = vdwg.mxu0
      %v2358 = vmax.f32 %v981, %v985
      %v2359 = vmax.f32 %v2358, %v991
      %v2360 = vmax.f32 %v2359, %v995
      %v2361 = vmax.f32 %v2360, %v1001
      %v2362 = vmax.f32 %v2361, %v1005
      %v2363 = vmax.f32 %v2362, %v1011
      %v2364 = vmax.f32 %v2363, %v1015
      %v2365 = vmax.f32 %v2364, %v1021
      %v2366 = vmax.f32 %v2365, %v1025
      %v2367 = vmax.f32 %v2366, %v1031
      %v2368 = vmax.f32 %v2367, %v1035
      %v2369 = vmax.f32 %v2368, %v1041
      %v2370 = vmax.f32 %v2369, %v1045
      %v2371 = vmax.f32 %v2370, %v1051
      %v2372 = vmax.f32 %v2371, %v1055
      %v2373 = vmax.f32 %v2372, %v1061
      %v2374 = vmax.f32 %v2373, %v1065
      %v2375 = vmax.f32 %v2374, %v1071
      %v2376 = vmax.f32 %v2375, %v1075
      %v2377 = vmax.f32 %v2376, %v1081
      %v2378 = vmax.f32 %v2377, %v1085
      %v2379 = vmax.f32 %v2378, %v1091
      %v2380 = vmax.f32 %v2379, %v1095
      %v2381 = vmax.f32 %v2380, %v1101
      %v2382 = vmax.f32 %v2381, %v1105
      %v2383 = vmax.f32 %v2382, %v1111
      %v2384 = vmax.f32 %v2383, %v1115
      %v2385 = vmax.f32 %v2384, %v1121
      %v2386 = vmax.f32 %v2385, %v1125
      %v2387 = vmax.f32 %v2386, %v1131
      %v2388 = vmax.f32 %v2387, %v1135
      %v2389 = vmax.f32 %v2388, %v1141
      %v2390 = vmax.f32 %v2389, %v1145
      %v2391 = vmax.f32 %v2390, %v1151
      %v2392 = vmax.f32 %v2391, %v1155
      %v2393 = vmax.f32 %v2392, %v1161
      %v2394 = vmax.f32 %v2393, %v1165
      %v2395 = vmax.f32 %v2394, %v1171
      %v2396 = vmax.f32 %v2395, %v1175
      %v2397 = vmax.f32 %v2396, %v1181
      %v2398 = vmax.f32 %v2397, %v1185
      %v2399 = vmax.f32 %v2398, %v1191
      %v2400 = vmax.f32 %v2399, %v1195
      %v2401 = vmax.f32 %v2400, %v1201
      %v2402 = vmax.f32 %v2401, %v1205
      %v2403 = vmax.f32 %v2402, %v1211
      %v2404 = vmax.f32 %v2403, %v1215
      %v2405 = vmax.f32 %v2404, %v1221
      %v2406 = vmax.f32 %v2405, %v1225
      %v2407 = vmax.f32 %v2406, %v1231
      %v2408 = vmax.f32 %v2407, %v1235
      %v2409 = vmax.f32 %v2408, %v1241
      %v2410 = vmax.f32 %v2409, %v1245
      %v2411 = vmax.f32 %v2410, %v1251
      %v2412 = vmax.f32 %v2411, %v1255
      %v2413 = vmax.f32 %v2412, %v1261
      %v2414 = vmax.f32 %v2413, %v1265
      %v2415 = vmax.f32 %v2414, %v1271
      %v2416 = vmax.f32 %v2415, %v1275
      %v2417 = vmax.f32 %v2416, %v1281
      %v2418 = vmax.f32 %v2417, %v1285
      %v2419 = vmax.f32 %v2418, %v1291
      %v2420 = vmax.f32 %v2419, %v1295
      %v2421 = vrot.slane %v2420, 4
      %v2422 = vmax.f32 %v2420, %v2421
      %v2423 = vrot.slane %v2422, 2
      %v2424 = vmax.f32 %v2422, %v2423
      %v2425 = vrot.slane %v2424, 1
      %v2426 = vmax.f32 %v2424, %v2425
      %v2427 = vmax.f32 %v983, %v987
      %v2428 = vmax.f32 %v2427, %v993
      %v2429 = vmax.f32 %v2428, %v997
      %v2430 = vmax.f32 %v2429, %v1003
      %v2431 = vmax.f32 %v2430, %v1007
      %v2432 = vmax.f32 %v2431, %v1013
      %v2433 = vmax.f32 %v2432, %v1017
      %v2434 = vmax.f32 %v2433, %v1023
      %v2435 = vmax.f32 %v2434, %v1027
      %v2436 = vmax.f32 %v2435, %v1033
      %v2437 = vmax.f32 %v2436, %v1037
      %v2438 = vmax.f32 %v2437, %v1043
      %v2439 = vmax.f32 %v2438, %v1047
      %v2440 = vmax.f32 %v2439, %v1053
      %v2441 = vmax.f32 %v2440, %v1057
      %v2442 = vmax.f32 %v2441, %v1063
      %v2443 = vmax.f32 %v2442, %v1067
      %v2444 = vmax.f32 %v2443, %v1073
      %v2445 = vmax.f32 %v2444, %v1077
      %v2446 = vmax.f32 %v2445, %v1083
      %v2447 = vmax.f32 %v2446, %v1087
      %v2448 = vmax.f32 %v2447, %v1093
      %v2449 = vmax.f32 %v2448, %v1097
      %v2450 = vmax.f32 %v2449, %v1103
      %v2451 = vmax.f32 %v2450, %v1107
      %v2452 = vmax.f32 %v2451, %v1113
      %v2453 = vmax.f32 %v2452, %v1117
      %v2454 = vmax.f32 %v2453, %v1123
      %v2455 = vmax.f32 %v2454, %v1127
      %v2456 = vmax.f32 %v2455, %v1133
      %v2457 = vmax.f32 %v2456, %v1137
      %v2458 = vmax.f32 %v2457, %v1143
      %v2459 = vmax.f32 %v2458, %v1147
      %v2460 = vmax.f32 %v2459, %v1153
      %v2461 = vmax.f32 %v2460, %v1157
      %v2462 = vmax.f32 %v2461, %v1163
      %v2463 = vmax.f32 %v2462, %v1167
      %v2464 = vmax.f32 %v2463, %v1173
      %v2465 = vmax.f32 %v2464, %v1177
      %v2466 = vmax.f32 %v2465, %v1183
      %v2467 = vmax.f32 %v2466, %v1187
      %v2468 = vmax.f32 %v2467, %v1193
      %v2469 = vmax.f32 %v2468, %v1197
      %v2470 = vmax.f32 %v2469, %v1203
      %v2471 = vmax.f32 %v2470, %v1207
      %v2472 = vmax.f32 %v2471, %v1213
      %v2473 = vmax.f32 %v2472, %v1217
      %v2474 = vmax.f32 %v2473, %v1223
      %v2475 = vmax.f32 %v2474, %v1227
      %v2476 = vmax.f32 %v2475, %v1233
      %v2477 = vmax.f32 %v2476, %v1237
      %v2478 = vmax.f32 %v2477, %v1243
      %v2479 = vmax.f32 %v2478, %v1247
      %v2480 = vmax.f32 %v2479, %v1253
      %v2481 = vmax.f32 %v2480, %v1257
      %v2482 = vmax.f32 %v2481, %v1263
      %v2483 = vmax.f32 %v2482, %v1267
      %v2484 = vmax.f32 %v2483, %v1273
      %v2485 = vmax.f32 %v2484, %v1277
      %v2486 = vmax.f32 %v2485, %v1283
      %v2487 = vmax.f32 %v2486, %v1287
      %v2488 = vmax.f32 %v2487, %v1293
      %v2489 = vmax.f32 %v2488, %v1297
      %v2490 = vrot.slane %v2489, 4
      %v2491 = vmax.f32 %v2489, %v2490
      %v2492 = vrot.slane %v2491, 2
      %v2493 = vmax.f32 %v2491, %v2492
      %v2494 = vrot.slane %v2493, 1
      %v2495 = vmax.f32 %v2493, %v2494
      %v2496 = vmax.f32 %v1334, %v1338
      %v2497 = vmax.f32 %v2496, %v1344
      %v2498 = vmax.f32 %v2497, %v1348
      %v2499 = vmax.f32 %v2498, %v1354
      %v2500 = vmax.f32 %v2499, %v1358
      %v2501 = vmax.f32 %v2500, %v1364
      %v2502 = vmax.f32 %v2501, %v1368
      %v2503 = vmax.f32 %v2502, %v1374
      %v2504 = vmax.f32 %v2503, %v1378
      %v2505 = vmax.f32 %v2504, %v1384
      %v2506 = vmax.f32 %v2505, %v1388
      %v2507 = vmax.f32 %v2506, %v1394
      %v2508 = vmax.f32 %v2507, %v1398
      %v2509 = vmax.f32 %v2508, %v1404
      %v2510 = vmax.f32 %v2509, %v1408
      %v2511 = vmax.f32 %v2510, %v1414
      %v2512 = vmax.f32 %v2511, %v1418
      %v2513 = vmax.f32 %v2512, %v1424
      %v2514 = vmax.f32 %v2513, %v1428
      %v2515 = vmax.f32 %v2514, %v1434
      %v2516 = vmax.f32 %v2515, %v1438
      %v2517 = vmax.f32 %v2516, %v1444
      %v2518 = vmax.f32 %v2517, %v1448
      %v2519 = vmax.f32 %v2518, %v1454
      %v2520 = vmax.f32 %v2519, %v1458
      %v2521 = vmax.f32 %v2520, %v1464
      %v2522 = vmax.f32 %v2521, %v1468
      %v2523 = vmax.f32 %v2522, %v1474
      %v2524 = vmax.f32 %v2523, %v1478
      %v2525 = vmax.f32 %v2524, %v1484
      %v2526 = vmax.f32 %v2525, %v1488
      %v2527 = vmax.f32 %v2526, %v1494
      %v2528 = vmax.f32 %v2527, %v1498
      %v2529 = vmax.f32 %v2528, %v1504
      %v2530 = vmax.f32 %v2529, %v1508
      %v2531 = vmax.f32 %v2530, %v1514
      %v2532 = vmax.f32 %v2531, %v1518
      %v2533 = vmax.f32 %v2532, %v1524
      %v2534 = vmax.f32 %v2533, %v1528
      %v2535 = vmax.f32 %v2534, %v1534
      %v2536 = vmax.f32 %v2535, %v1538
      %v2537 = vmax.f32 %v2536, %v1544
      %v2538 = vmax.f32 %v2537, %v1548
      %v2539 = vmax.f32 %v2538, %v1554
      %v2540 = vmax.f32 %v2539, %v1558
      %v2541 = vmax.f32 %v2540, %v1564
      %v2542 = vmax.f32 %v2541, %v1568
      %v2543 = vmax.f32 %v2542, %v1574
      %v2544 = vmax.f32 %v2543, %v1578
      %v2545 = vmax.f32 %v2544, %v1584
      %v2546 = vmax.f32 %v2545, %v1588
      %v2547 = vmax.f32 %v2546, %v1594
      %v2548 = vmax.f32 %v2547, %v1598
      %v2549 = vmax.f32 %v2548, %v1604
      %v2550 = vmax.f32 %v2549, %v1608
      %v2551 = vmax.f32 %v2550, %v1614
      %v2552 = vmax.f32 %v2551, %v1618
      %v2553 = vmax.f32 %v2552, %v1624
      %v2554 = vmax.f32 %v2553, %v1628
      %v2555 = vmax.f32 %v2554, %v1634
      %v2556 = vmax.f32 %v2555, %v1638
      %v2557 = vmax.f32 %v2556, %v1644
      %v2558 = vmax.f32 %v2557, %v1648
      %v2559 = vrot.slane %v2558, 4
      %v2560 = vmax.f32 %v2558, %v2559
      %v2561 = vrot.slane %v2560, 2
      %v2562 = vmax.f32 %v2560, %v2561
      %v2563 = vrot.slane %v2562, 1
      %v2564 = vmax.f32 %v2562, %v2563
      %v2565 = vmax.f32 %v1336, %v1340
      %v2566 = vmax.f32 %v2565, %v1346
      %v2567 = vmax.f32 %v2566, %v1350
      %v2568 = vmax.f32 %v2567, %v1356
      %v2569 = vmax.f32 %v2568, %v1360
      %v2570 = vmax.f32 %v2569, %v1366
      %v2571 = vmax.f32 %v2570, %v1370
      %v2572 = vmax.f32 %v2571, %v1376
      %v2573 = vmax.f32 %v2572, %v1380
      %v2574 = vmax.f32 %v2573, %v1386
      %v2575 = vmax.f32 %v2574, %v1390
      %v2576 = vmax.f32 %v2575, %v1396
      %v2577 = vmax.f32 %v2576, %v1400
      %v2578 = vmax.f32 %v2577, %v1406
      %v2579 = vmax.f32 %v2578, %v1410
      %v2580 = vmax.f32 %v2579, %v1416
      %v2581 = vmax.f32 %v2580, %v1420
      %v2582 = vmax.f32 %v2581, %v1426
      %v2583 = vmax.f32 %v2582, %v1430
      %v2584 = vmax.f32 %v2583, %v1436
      %v2585 = vmax.f32 %v2584, %v1440
      %v2586 = vmax.f32 %v2585, %v1446
      %v2587 = vmax.f32 %v2586, %v1450
      %v2588 = vmax.f32 %v2587, %v1456
      %v2589 = vmax.f32 %v2588, %v1460
      %v2590 = vmax.f32 %v2589, %v1466
      %v2591 = vmax.f32 %v2590, %v1470
      %v2592 = vmax.f32 %v2591, %v1476
      %v2593 = vmax.f32 %v2592, %v1480
      %v2594 = vmax.f32 %v2593, %v1486
      %v2595 = vmax.f32 %v2594, %v1490
      %v2596 = vmax.f32 %v2595, %v1496
      %v2597 = vmax.f32 %v2596, %v1500
      %v2598 = vmax.f32 %v2597, %v1506
      %v2599 = vmax.f32 %v2598, %v1510
      %v2600 = vmax.f32 %v2599, %v1516
      %v2601 = vmax.f32 %v2600, %v1520
      %v2602 = vmax.f32 %v2601, %v1526
      %v2603 = vmax.f32 %v2602, %v1530
      %v2604 = vmax.f32 %v2603, %v1536
      %v2605 = vmax.f32 %v2604, %v1540
      %v2606 = vmax.f32 %v2605, %v1546
      %v2607 = vmax.f32 %v2606, %v1550
      %v2608 = vmax.f32 %v2607, %v1556
      %v2609 = vmax.f32 %v2608, %v1560
      %v2610 = vmax.f32 %v2609, %v1566
      %v2611 = vmax.f32 %v2610, %v1570
      %v2612 = vmax.f32 %v2611, %v1576
      %v2613 = vmax.f32 %v2612, %v1580
      %v2614 = vmax.f32 %v2613, %v1586
      %v2615 = vmax.f32 %v2614, %v1590
      %v2616 = vmax.f32 %v2615, %v1596
      %v2617 = vmax.f32 %v2616, %v1600
      %v2618 = vmax.f32 %v2617, %v1606
      %v2619 = vmax.f32 %v2618, %v1610
      %v2620 = vmax.f32 %v2619, %v1616
      %v2621 = vmax.f32 %v2620, %v1620
      %v2622 = vmax.f32 %v2621, %v1626
      %v2623 = vmax.f32 %v2622, %v1630
      %v2624 = vmax.f32 %v2623, %v1636
      %v2625 = vmax.f32 %v2624, %v1640
      %v2626 = vmax.f32 %v2625, %v1646
      %v2627 = vmax.f32 %v2626, %v1650
      %v2628 = vrot.slane %v2627, 4
      %v2629 = vmax.f32 %v2627, %v2628
      %v2630 = vrot.slane %v2629, 2
      %v2631 = vmax.f32 %v2629, %v2630
      %v2632 = vrot.slane %v2631, 1
      %v2633 = vmax.f32 %v2631, %v2632
      %v2634 = vmax.f32 %v1687, %v1691
      %v2635 = vmax.f32 %v2634, %v1697
      %v2636 = vmax.f32 %v2635, %v1701
      %v2637 = vmax.f32 %v2636, %v1707
      %v2638 = vmax.f32 %v2637, %v1711
      %v2639 = vmax.f32 %v2638, %v1717
      %v2640 = vmax.f32 %v2639, %v1721
      %v2641 = vmax.f32 %v2640, %v1727
      %v2642 = vmax.f32 %v2641, %v1731
      %v2643 = vmax.f32 %v2642, %v1737
      %v2644 = vmax.f32 %v2643, %v1741
      %v2645 = vmax.f32 %v2644, %v1747
      %v2646 = vmax.f32 %v2645, %v1751
      %v2647 = vmax.f32 %v2646, %v1757
      %v2648 = vmax.f32 %v2647, %v1761
      %v2649 = vmax.f32 %v2648, %v1767
      %v2650 = vmax.f32 %v2649, %v1771
      %v2651 = vmax.f32 %v2650, %v1777
      %v2652 = vmax.f32 %v2651, %v1781
      %v2653 = vmax.f32 %v2652, %v1787
      %v2654 = vmax.f32 %v2653, %v1791
      %v2655 = vmax.f32 %v2654, %v1797
      %v2656 = vmax.f32 %v2655, %v1801
      %v2657 = vmax.f32 %v2656, %v1807
      %v2658 = vmax.f32 %v2657, %v1811
      %v2659 = vmax.f32 %v2658, %v1817
      %v2660 = vmax.f32 %v2659, %v1821
      %v2661 = vmax.f32 %v2660, %v1827
      %v2662 = vmax.f32 %v2661, %v1831
      %v2663 = vmax.f32 %v2662, %v1837
      %v2664 = vmax.f32 %v2663, %v1841
      %v2665 = vmax.f32 %v2664, %v1847
      %v2666 = vmax.f32 %v2665, %v1851
      %v2667 = vmax.f32 %v2666, %v1857
      %v2668 = vmax.f32 %v2667, %v1861
      %v2669 = vmax.f32 %v2668, %v1867
      %v2670 = vmax.f32 %v2669, %v1871
      %v2671 = vmax.f32 %v2670, %v1877
      %v2672 = vmax.f32 %v2671, %v1881
      %v2673 = vmax.f32 %v2672, %v1887
      %v2674 = vmax.f32 %v2673, %v1891
      %v2675 = vmax.f32 %v2674, %v1897
      %v2676 = vmax.f32 %v2675, %v1901
      %v2677 = vmax.f32 %v2676, %v1907
      %v2678 = vmax.f32 %v2677, %v1911
      %v2679 = vmax.f32 %v2678, %v1917
      %v2680 = vmax.f32 %v2679, %v1921
      %v2681 = vmax.f32 %v2680, %v1927
      %v2682 = vmax.f32 %v2681, %v1931
      %v2683 = vmax.f32 %v2682, %v1937
      %v2684 = vmax.f32 %v2683, %v1941
      %v2685 = vmax.f32 %v2684, %v1947
      %v2686 = vmax.f32 %v2685, %v1951
      %v2687 = vmax.f32 %v2686, %v1957
      %v2688 = vmax.f32 %v2687, %v1961
      %v2689 = vmax.f32 %v2688, %v1967
      %v2690 = vmax.f32 %v2689, %v1971
      %v2691 = vmax.f32 %v2690, %v1977
      %v2692 = vmax.f32 %v2691, %v1981
      %v2693 = vmax.f32 %v2692, %v1987
      %v2694 = vmax.f32 %v2693, %v1991
      %v2695 = vmax.f32 %v2694, %v1997
      %v2696 = vmax.f32 %v2695, %v2001
      %v2697 = vrot.slane %v2696, 4
      %v2698 = vmax.f32 %v2696, %v2697
      %v2699 = vrot.slane %v2698, 2
      %v2700 = vmax.f32 %v2698, %v2699
      %v2701 = vrot.slane %v2700, 1
      %v2702 = vmax.f32 %v2700, %v2701
      %v2703 = vmax.f32 %v1689, %v1693
      %v2704 = vmax.f32 %v2703, %v1699
      %v2705 = vmax.f32 %v2704, %v1703
      %v2706 = vmax.f32 %v2705, %v1709
      %v2707 = vmax.f32 %v2706, %v1713
      %v2708 = vmax.f32 %v2707, %v1719
      %v2709 = vmax.f32 %v2708, %v1723
      %v2710 = vmax.f32 %v2709, %v1729
      %v2711 = vmax.f32 %v2710, %v1733
      %v2712 = vmax.f32 %v2711, %v1739
      %v2713 = vmax.f32 %v2712, %v1743
      %v2714 = vmax.f32 %v2713, %v1749
      %v2715 = vmax.f32 %v2714, %v1753
      %v2716 = vmax.f32 %v2715, %v1759
      %v2717 = vmax.f32 %v2716, %v1763
      %v2718 = vmax.f32 %v2717, %v1769
      %v2719 = vmax.f32 %v2718, %v1773
      %v2720 = vmax.f32 %v2719, %v1779
      %v2721 = vmax.f32 %v2720, %v1783
      %v2722 = vmax.f32 %v2721, %v1789
      %v2723 = vmax.f32 %v2722, %v1793
      %v2724 = vmax.f32 %v2723, %v1799
      %v2725 = vmax.f32 %v2724, %v1803
      %v2726 = vmax.f32 %v2725, %v1809
      %v2727 = vmax.f32 %v2726, %v1813
      %v2728 = vmax.f32 %v2727, %v1819
      %v2729 = vmax.f32 %v2728, %v1823
      %v2730 = vmax.f32 %v2729, %v1829
      %v2731 = vmax.f32 %v2730, %v1833
      %v2732 = vmax.f32 %v2731, %v1839
      %v2733 = vmax.f32 %v2732, %v1843
      %v2734 = vmax.f32 %v2733, %v1849
      %v2735 = vmax.f32 %v2734, %v1853
      %v2736 = vmax.f32 %v2735, %v1859
      %v2737 = vmax.f32 %v2736, %v1863
      %v2738 = vmax.f32 %v2737, %v1869
      %v2739 = vmax.f32 %v2738, %v1873
      %v2740 = vmax.f32 %v2739, %v1879
      %v2741 = vmax.f32 %v2740, %v1883
      %v2742 = vmax.f32 %v2741, %v1889
      %v2743 = vmax.f32 %v2742, %v1893
      %v2744 = vmax.f32 %v2743, %v1899
      %v2745 = vmax.f32 %v2744, %v1903
      %v2746 = vmax.f32 %v2745, %v1909
      %v2747 = vmax.f32 %v2746, %v1913
      %v2748 = vmax.f32 %v2747, %v1919
      %v2749 = vmax.f32 %v2748, %v1923
      %v2750 = vmax.f32 %v2749, %v1929
      %v2751 = vmax.f32 %v2750, %v1933
      %v2752 = vmax.f32 %v2751, %v1939
      %v2753 = vmax.f32 %v2752, %v1943
      %v2754 = vmax.f32 %v2753, %v1949
      %v2755 = vmax.f32 %v2754, %v1953
      %v2756 = vmax.f32 %v2755, %v1959
      %v2757 = vmax.f32 %v2756, %v1963
      %v2758 = vmax.f32 %v2757, %v1969
      %v2759 = vmax.f32 %v2758, %v1973
      %v2760 = vmax.f32 %v2759, %v1979
      %v2761 = vmax.f32 %v2760, %v1983
      %v2762 = vmax.f32 %v2761, %v1989
      %v2763 = vmax.f32 %v2762, %v1993
      %v2764 = vmax.f32 %v2763, %v1999
      %v2765 = vmax.f32 %v2764, %v2003
      %v2766 = vrot.slane %v2765, 4
      %v2767 = vmax.f32 %v2765, %v2766
      %v2768 = vrot.slane %v2767, 2
      %v2769 = vmax.f32 %v2767, %v2768
      %v2770 = vrot.slane %v2769, 1
      %v2771 = vmax.f32 %v2769, %v2770
      %v2772 = vmax.f32 %v2040, %v2044
      %v2773 = vmax.f32 %v2772, %v2050
      %v2774 = vmax.f32 %v2773, %v2054
      %v2775 = vmax.f32 %v2774, %v2060
      %v2776 = vmax.f32 %v2775, %v2064
      %v2777 = vmax.f32 %v2776, %v2070
      %v2778 = vmax.f32 %v2777, %v2074
      %v2779 = vmax.f32 %v2778, %v2080
      %v2780 = vmax.f32 %v2779, %v2084
      %v2781 = vmax.f32 %v2780, %v2090
      %v2782 = vmax.f32 %v2781, %v2094
      %v2783 = vmax.f32 %v2782, %v2100
      %v2784 = vmax.f32 %v2783, %v2104
      %v2785 = vmax.f32 %v2784, %v2110
      %v2786 = vmax.f32 %v2785, %v2114
      %v2787 = vmax.f32 %v2786, %v2120
      %v2788 = vmax.f32 %v2787, %v2124
      %v2789 = vmax.f32 %v2788, %v2130
      %v2790 = vmax.f32 %v2789, %v2134
      %v2791 = vmax.f32 %v2790, %v2140
      %v2792 = vmax.f32 %v2791, %v2144
      %v2793 = vmax.f32 %v2792, %v2150
      %v2794 = vmax.f32 %v2793, %v2154
      %v2795 = vmax.f32 %v2794, %v2160
      %v2796 = vmax.f32 %v2795, %v2164
      %v2797 = vmax.f32 %v2796, %v2170
      %v2798 = vmax.f32 %v2797, %v2174
      %v2799 = vmax.f32 %v2798, %v2180
      %v2800 = vmax.f32 %v2799, %v2184
      %v2801 = vmax.f32 %v2800, %v2190
      %v2802 = vmax.f32 %v2801, %v2194
      %v2803 = vmax.f32 %v2802, %v2200
      %v2804 = vmax.f32 %v2803, %v2204
      %v2805 = vmax.f32 %v2804, %v2210
      %v2806 = vmax.f32 %v2805, %v2214
      %v2807 = vmax.f32 %v2806, %v2220
      %v2808 = vmax.f32 %v2807, %v2224
      %v2809 = vmax.f32 %v2808, %v2230
      %v2810 = vmax.f32 %v2809, %v2234
      %v2811 = vmax.f32 %v2810, %v2240
      %v2812 = vmax.f32 %v2811, %v2244
      %v2813 = vmax.f32 %v2812, %v2250
      %v2814 = vmax.f32 %v2813, %v2254
      %v2815 = vmax.f32 %v2814, %v2260
      %v2816 = vmax.f32 %v2815, %v2264
      %v2817 = vmax.f32 %v2816, %v2270
      %v2818 = vmax.f32 %v2817, %v2274
      %v2819 = vmax.f32 %v2818, %v2280
      %v2820 = vmax.f32 %v2819, %v2284
      %v2821 = vmax.f32 %v2820, %v2290
      %v2822 = vmax.f32 %v2821, %v2294
      %v2823 = vmax.f32 %v2822, %v2300
      %v2824 = vmax.f32 %v2823, %v2304
      %v2825 = vmax.f32 %v2824, %v2310
      %v2826 = vmax.f32 %v2825, %v2314
      %v2827 = vmax.f32 %v2826, %v2320
      %v2828 = vmax.f32 %v2827, %v2324
      %v2829 = vmax.f32 %v2828, %v2330
      %v2830 = vmax.f32 %v2829, %v2334
      %v2831 = vmax.f32 %v2830, %v2340
      %v2832 = vmax.f32 %v2831, %v2344
      %v2833 = vmax.f32 %v2832, %v2350
      %v2834 = vmax.f32 %v2833, %v2354
      %v2835 = vrot.slane %v2834, 4
      %v2836 = vmax.f32 %v2834, %v2835
      %v2837 = vrot.slane %v2836, 2
      %v2838 = vmax.f32 %v2836, %v2837
      %v2839 = vrot.slane %v2838, 1
      %v2840 = vmax.f32 %v2838, %v2839
      %v2841 = vmax.f32 %v2042, %v2046
      %v2842 = vmax.f32 %v2841, %v2052
      %v2843 = vmax.f32 %v2842, %v2056
      %v2844 = vmax.f32 %v2843, %v2062
      %v2845 = vmax.f32 %v2844, %v2066
      %v2846 = vmax.f32 %v2845, %v2072
      %v2847 = vmax.f32 %v2846, %v2076
      %v2848 = vmax.f32 %v2847, %v2082
      %v2849 = vmax.f32 %v2848, %v2086
      %v2850 = vmax.f32 %v2849, %v2092
      %v2851 = vmax.f32 %v2850, %v2096
      %v2852 = vmax.f32 %v2851, %v2102
      %v2853 = vmax.f32 %v2852, %v2106
      %v2854 = vmax.f32 %v2853, %v2112
      %v2855 = vmax.f32 %v2854, %v2116
      %v2856 = vmax.f32 %v2855, %v2122
      %v2857 = vmax.f32 %v2856, %v2126
      %v2858 = vmax.f32 %v2857, %v2132
      %v2859 = vmax.f32 %v2858, %v2136
      %v2860 = vmax.f32 %v2859, %v2142
      %v2861 = vmax.f32 %v2860, %v2146
      %v2862 = vmax.f32 %v2861, %v2152
      %v2863 = vmax.f32 %v2862, %v2156
      %v2864 = vmax.f32 %v2863, %v2162
      %v2865 = vmax.f32 %v2864, %v2166
      %v2866 = vmax.f32 %v2865, %v2172
      %v2867 = vmax.f32 %v2866, %v2176
      %v2868 = vmax.f32 %v2867, %v2182
      %v2869 = vmax.f32 %v2868, %v2186
      %v2870 = vmax.f32 %v2869, %v2192
      %v2871 = vmax.f32 %v2870, %v2196
      %v2872 = vmax.f32 %v2871, %v2202
      %v2873 = vmax.f32 %v2872, %v2206
      %v2874 = vmax.f32 %v2873, %v2212
      %v2875 = vmax.f32 %v2874, %v2216
      %v2876 = vmax.f32 %v2875, %v2222
      %v2877 = vmax.f32 %v2876, %v2226
      %v2878 = vmax.f32 %v2877, %v2232
      %v2879 = vmax.f32 %v2878, %v2236
      %v2880 = vmax.f32 %v2879, %v2242
      %v2881 = vmax.f32 %v2880, %v2246
      %v2882 = vmax.f32 %v2881, %v2252
      %v2883 = vmax.f32 %v2882, %v2256
      %v2884 = vmax.f32 %v2883, %v2262
      %v2885 = vmax.f32 %v2884, %v2266
      %v2886 = vmax.f32 %v2885, %v2272
      %v2887 = vmax.f32 %v2886, %v2276
      %v2888 = vmax.f32 %v2887, %v2282
      %v2889 = vmax.f32 %v2888, %v2286
      %v2890 = vmax.f32 %v2889, %v2292
      %v2891 = vmax.f32 %v2890, %v2296
      %v2892 = vmax.f32 %v2891, %v2302
      %v2893 = vmax.f32 %v2892, %v2306
      %v2894 = vmax.f32 %v2893, %v2312
      %v2895 = vmax.f32 %v2894, %v2316
      %v2896 = vmax.f32 %v2895, %v2322
      %v2897 = vmax.f32 %v2896, %v2326
      %v2898 = vmax.f32 %v2897, %v2332
      %v2899 = vmax.f32 %v2898, %v2336
      %v2900 = vmax.f32 %v2899, %v2342
      %v2901 = vmax.f32 %v2900, %v2346
      %v2902 = vmax.f32 %v2901, %v2352
      %v2903 = vmax.f32 %v2902, %v2356
      %v2904 = vrot.slane %v2903, 4
      %v2905 = vmax.f32 %v2903, %v2904
      %v2906 = vrot.slane %v2905, 2
      %v2907 = vmax.f32 %v2905, %v2906
      %v2908 = vrot.slane %v2907, 1
      %v2909 = vmax.f32 %v2907, %v2908
      %v2910 = vmin.f32 %v981, %v985
      %v2911 = vmin.f32 %v2910, %v991
      %v2912 = vmin.f32 %v2911, %v995
      %v2913 = vmin.f32 %v2912, %v1001
      %v2914 = vmin.f32 %v2913, %v1005
      %v2915 = vmin.f32 %v2914, %v1011
      %v2916 = vmin.f32 %v2915, %v1015
      %v2917 = vmin.f32 %v2916, %v1021
      %v2918 = vmin.f32 %v2917, %v1025
      %v2919 = vmin.f32 %v2918, %v1031
      %v2920 = vmin.f32 %v2919, %v1035
      %v2921 = vmin.f32 %v2920, %v1041
      %v2922 = vmin.f32 %v2921, %v1045
      %v2923 = vmin.f32 %v2922, %v1051
      %v2924 = vmin.f32 %v2923, %v1055
      %v2925 = vmin.f32 %v2924, %v1061
      %v2926 = vmin.f32 %v2925, %v1065
      %v2927 = vmin.f32 %v2926, %v1071
      %v2928 = vmin.f32 %v2927, %v1075
      %v2929 = vmin.f32 %v2928, %v1081
      %v2930 = vmin.f32 %v2929, %v1085
      %v2931 = vmin.f32 %v2930, %v1091
      %v2932 = vmin.f32 %v2931, %v1095
      %v2933 = vmin.f32 %v2932, %v1101
      %v2934 = vmin.f32 %v2933, %v1105
      %v2935 = vmin.f32 %v2934, %v1111
      %v2936 = vmin.f32 %v2935, %v1115
      %v2937 = vmin.f32 %v2936, %v1121
      %v2938 = vmin.f32 %v2937, %v1125
      %v2939 = vmin.f32 %v2938, %v1131
      %v2940 = vmin.f32 %v2939, %v1135
      %v2941 = vmin.f32 %v2940, %v1141
      %v2942 = vmin.f32 %v2941, %v1145
      %v2943 = vmin.f32 %v2942, %v1151
      %v2944 = vmin.f32 %v2943, %v1155
      %v2945 = vmin.f32 %v2944, %v1161
      %v2946 = vmin.f32 %v2945, %v1165
      %v2947 = vmin.f32 %v2946, %v1171
      %v2948 = vmin.f32 %v2947, %v1175
      %v2949 = vmin.f32 %v2948, %v1181
      %v2950 = vmin.f32 %v2949, %v1185
      %v2951 = vmin.f32 %v2950, %v1191
      %v2952 = vmin.f32 %v2951, %v1195
      %v2953 = vmin.f32 %v2952, %v1201
      %v2954 = vmin.f32 %v2953, %v1205
      %v2955 = vmin.f32 %v2954, %v1211
      %v2956 = vmin.f32 %v2955, %v1215
      %v2957 = vmin.f32 %v2956, %v1221
      %v2958 = vmin.f32 %v2957, %v1225
      %v2959 = vmin.f32 %v2958, %v1231
      %v2960 = vmin.f32 %v2959, %v1235
      %v2961 = vmin.f32 %v2960, %v1241
      %v2962 = vmin.f32 %v2961, %v1245
      %v2963 = vmin.f32 %v2962, %v1251
      %v2964 = vmin.f32 %v2963, %v1255
      %v2965 = vmin.f32 %v2964, %v1261
      %v2966 = vmin.f32 %v2965, %v1265
      %v2967 = vmin.f32 %v2966, %v1271
      %v2968 = vmin.f32 %v2967, %v1275
      %v2969 = vmin.f32 %v2968, %v1281
      %v2970 = vmin.f32 %v2969, %v1285
      %v2971 = vmin.f32 %v2970, %v1291
      %v2972 = vmin.f32 %v2971, %v1295
      %v2973 = vrot.slane %v2972, 4
      %v2974 = vmin.f32 %v2972, %v2973
      %v2975 = vrot.slane %v2974, 2
      %v2976 = vmin.f32 %v2974, %v2975
      %v2977 = vrot.slane %v2976, 1
      %v2978 = vmin.f32 %v2976, %v2977
      %v2979 = vmin.f32 %v983, %v987
      %v2980 = vmin.f32 %v2979, %v993
      %v2981 = vmin.f32 %v2980, %v997
      %v2982 = vmin.f32 %v2981, %v1003
      %v2983 = vmin.f32 %v2982, %v1007
      %v2984 = vmin.f32 %v2983, %v1013
      %v2985 = vmin.f32 %v2984, %v1017
      %v2986 = vmin.f32 %v2985, %v1023
      %v2987 = vmin.f32 %v2986, %v1027
      %v2988 = vmin.f32 %v2987, %v1033
      %v2989 = vmin.f32 %v2988, %v1037
      %v2990 = vmin.f32 %v2989, %v1043
      %v2991 = vmin.f32 %v2990, %v1047
      %v2992 = vmin.f32 %v2991, %v1053
      %v2993 = vmin.f32 %v2992, %v1057
      %v2994 = vmin.f32 %v2993, %v1063
      %v2995 = vmin.f32 %v2994, %v1067
      %v2996 = vmin.f32 %v2995, %v1073
      %v2997 = vmin.f32 %v2996, %v1077
      %v2998 = vmin.f32 %v2997, %v1083
      %v2999 = vmin.f32 %v2998, %v1087
      %v3000 = vmin.f32 %v2999, %v1093
      %v3001 = vmin.f32 %v3000, %v1097
      %v3002 = vmin.f32 %v3001, %v1103
      %v3003 = vmin.f32 %v3002, %v1107
      %v3004 = vmin.f32 %v3003, %v1113
      %v3005 = vmin.f32 %v3004, %v1117
      %v3006 = vmin.f32 %v3005, %v1123
      %v3007 = vmin.f32 %v3006, %v1127
      %v3008 = vmin.f32 %v3007, %v1133
      %v3009 = vmin.f32 %v3008, %v1137
      %v3010 = vmin.f32 %v3009, %v1143
      %v3011 = vmin.f32 %v3010, %v1147
      %v3012 = vmin.f32 %v3011, %v1153
      %v3013 = vmin.f32 %v3012, %v1157
      %v3014 = vmin.f32 %v3013, %v1163
      %v3015 = vmin.f32 %v3014, %v1167
      %v3016 = vmin.f32 %v3015, %v1173
      %v3017 = vmin.f32 %v3016, %v1177
      %v3018 = vmin.f32 %v3017, %v1183
      %v3019 = vmin.f32 %v3018, %v1187
      %v3020 = vmin.f32 %v3019, %v1193
      %v3021 = vmin.f32 %v3020, %v1197
      %v3022 = vmin.f32 %v3021, %v1203
      %v3023 = vmin.f32 %v3022, %v1207
      %v3024 = vmin.f32 %v3023, %v1213
      %v3025 = vmin.f32 %v3024, %v1217
      %v3026 = vmin.f32 %v3025, %v1223
      %v3027 = vmin.f32 %v3026, %v1227
      %v3028 = vmin.f32 %v3027, %v1233
      %v3029 = vmin.f32 %v3028, %v1237
      %v3030 = vmin.f32 %v3029, %v1243
      %v3031 = vmin.f32 %v3030, %v1247
      %v3032 = vmin.f32 %v3031, %v1253
      %v3033 = vmin.f32 %v3032, %v1257
      %v3034 = vmin.f32 %v3033, %v1263
      %v3035 = vmin.f32 %v3034, %v1267
      %v3036 = vmin.f32 %v3035, %v1273
      %v3037 = vmin.f32 %v3036, %v1277
      %v3038 = vmin.f32 %v3037, %v1283
      %v3039 = vmin.f32 %v3038, %v1287
      %v3040 = vmin.f32 %v3039, %v1293
      %v3041 = vmin.f32 %v3040, %v1297
      %v3042 = vrot.slane %v3041, 4
      %v3043 = vmin.f32 %v3041, %v3042
      %v3044 = vrot.slane %v3043, 2
      %v3045 = vmin.f32 %v3043, %v3044
      %v3046 = vrot.slane %v3045, 1
      %v3047 = vmin.f32 %v3045, %v3046
      %v3048 = vmin.f32 %v1334, %v1338
      %v3049 = vmin.f32 %v3048, %v1344
      %v3050 = vmin.f32 %v3049, %v1348
      %v3051 = vmin.f32 %v3050, %v1354
      %v3052 = vmin.f32 %v3051, %v1358
      %v3053 = vmin.f32 %v3052, %v1364
      %v3054 = vmin.f32 %v3053, %v1368
      %v3055 = vmin.f32 %v3054, %v1374
      %v3056 = vmin.f32 %v3055, %v1378
      %v3057 = vmin.f32 %v3056, %v1384
      %v3058 = vmin.f32 %v3057, %v1388
      %v3059 = vmin.f32 %v3058, %v1394
      %v3060 = vmin.f32 %v3059, %v1398
      %v3061 = vmin.f32 %v3060, %v1404
      %v3062 = vmin.f32 %v3061, %v1408
      %v3063 = vmin.f32 %v3062, %v1414
      %v3064 = vmin.f32 %v3063, %v1418
      %v3065 = vmin.f32 %v3064, %v1424
      %v3066 = vmin.f32 %v3065, %v1428
      %v3067 = vmin.f32 %v3066, %v1434
      %v3068 = vmin.f32 %v3067, %v1438
      %v3069 = vmin.f32 %v3068, %v1444
      %v3070 = vmin.f32 %v3069, %v1448
      %v3071 = vmin.f32 %v3070, %v1454
      %v3072 = vmin.f32 %v3071, %v1458
      %v3073 = vmin.f32 %v3072, %v1464
      %v3074 = vmin.f32 %v3073, %v1468
      %v3075 = vmin.f32 %v3074, %v1474
      %v3076 = vmin.f32 %v3075, %v1478
      %v3077 = vmin.f32 %v3076, %v1484
      %v3078 = vmin.f32 %v3077, %v1488
      %v3079 = vmin.f32 %v3078, %v1494
      %v3080 = vmin.f32 %v3079, %v1498
      %v3081 = vmin.f32 %v3080, %v1504
      %v3082 = vmin.f32 %v3081, %v1508
      %v3083 = vmin.f32 %v3082, %v1514
      %v3084 = vmin.f32 %v3083, %v1518
      %v3085 = vmin.f32 %v3084, %v1524
      %v3086 = vmin.f32 %v3085, %v1528
      %v3087 = vmin.f32 %v3086, %v1534
      %v3088 = vmin.f32 %v3087, %v1538
      %v3089 = vmin.f32 %v3088, %v1544
      %v3090 = vmin.f32 %v3089, %v1548
      %v3091 = vmin.f32 %v3090, %v1554
      %v3092 = vmin.f32 %v3091, %v1558
      %v3093 = vmin.f32 %v3092, %v1564
      %v3094 = vmin.f32 %v3093, %v1568
      %v3095 = vmin.f32 %v3094, %v1574
      %v3096 = vmin.f32 %v3095, %v1578
      %v3097 = vmin.f32 %v3096, %v1584
      %v3098 = vmin.f32 %v3097, %v1588
      %v3099 = vmin.f32 %v3098, %v1594
      %v3100 = vmin.f32 %v3099, %v1598
      %v3101 = vmin.f32 %v3100, %v1604
      %v3102 = vmin.f32 %v3101, %v1608
      %v3103 = vmin.f32 %v3102, %v1614
      %v3104 = vmin.f32 %v3103, %v1618
      %v3105 = vmin.f32 %v3104, %v1624
      %v3106 = vmin.f32 %v3105, %v1628
      %v3107 = vmin.f32 %v3106, %v1634
      %v3108 = vmin.f32 %v3107, %v1638
      %v3109 = vmin.f32 %v3108, %v1644
      %v3110 = vmin.f32 %v3109, %v1648
      %v3111 = vrot.slane %v3110, 4
      %v3112 = vmin.f32 %v3110, %v3111
      %v3113 = vrot.slane %v3112, 2
      %v3114 = vmin.f32 %v3112, %v3113
      %v3115 = vrot.slane %v3114, 1
      %v3116 = vmin.f32 %v3114, %v3115
      %v3117 = vmin.f32 %v1336, %v1340
      %v3118 = vmin.f32 %v3117, %v1346
      %v3119 = vmin.f32 %v3118, %v1350
      %v3120 = vmin.f32 %v3119, %v1356
      %v3121 = vmin.f32 %v3120, %v1360
      %v3122 = vmin.f32 %v3121, %v1366
      %v3123 = vmin.f32 %v3122, %v1370
      %v3124 = vmin.f32 %v3123, %v1376
      %v3125 = vmin.f32 %v3124, %v1380
      %v3126 = vmin.f32 %v3125, %v1386
      %v3127 = vmin.f32 %v3126, %v1390
      %v3128 = vmin.f32 %v3127, %v1396
      %v3129 = vmin.f32 %v3128, %v1400
      %v3130 = vmin.f32 %v3129, %v1406
      %v3131 = vmin.f32 %v3130, %v1410
      %v3132 = vmin.f32 %v3131, %v1416
      %v3133 = vmin.f32 %v3132, %v1420
      %v3134 = vmin.f32 %v3133, %v1426
      %v3135 = vmin.f32 %v3134, %v1430
      %v3136 = vmin.f32 %v3135, %v1436
      %v3137 = vmin.f32 %v3136, %v1440
      %v3138 = vmin.f32 %v3137, %v1446
      %v3139 = vmin.f32 %v3138, %v1450
      %v3140 = vmin.f32 %v3139, %v1456
      %v3141 = vmin.f32 %v3140, %v1460
      %v3142 = vmin.f32 %v3141, %v1466
      %v3143 = vmin.f32 %v3142, %v1470
      %v3144 = vmin.f32 %v3143, %v1476
      %v3145 = vmin.f32 %v3144, %v1480
      %v3146 = vmin.f32 %v3145, %v1486
      %v3147 = vmin.f32 %v3146, %v1490
      %v3148 = vmin.f32 %v3147, %v1496
      %v3149 = vmin.f32 %v3148, %v1500
      %v3150 = vmin.f32 %v3149, %v1506
      %v3151 = vmin.f32 %v3150, %v1510
      %v3152 = vmin.f32 %v3151, %v1516
      %v3153 = vmin.f32 %v3152, %v1520
      %v3154 = vmin.f32 %v3153, %v1526
      %v3155 = vmin.f32 %v3154, %v1530
      %v3156 = vmin.f32 %v3155, %v1536
      %v3157 = vmin.f32 %v3156, %v1540
      %v3158 = vmin.f32 %v3157, %v1546
      %v3159 = vmin.f32 %v3158, %v1550
      %v3160 = vmin.f32 %v3159, %v1556
      %v3161 = vmin.f32 %v3160, %v1560
      %v3162 = vmin.f32 %v3161, %v1566
      %v3163 = vmin.f32 %v3162, %v1570
      %v3164 = vmin.f32 %v3163, %v1576
      %v3165 = vmin.f32 %v3164, %v1580
      %v3166 = vmin.f32 %v3165, %v1586
      %v3167 = vmin.f32 %v3166, %v1590
      %v3168 = vmin.f32 %v3167, %v1596
      %v3169 = vmin.f32 %v3168, %v1600
      %v3170 = vmin.f32 %v3169, %v1606
      %v3171 = vmin.f32 %v3170, %v1610
      %v3172 = vmin.f32 %v3171, %v1616
      %v3173 = vmin.f32 %v3172, %v1620
      %v3174 = vmin.f32 %v3173, %v1626
      %v3175 = vmin.f32 %v3174, %v1630
      %v3176 = vmin.f32 %v3175, %v1636
      %v3177 = vmin.f32 %v3176, %v1640
      %v3178 = vmin.f32 %v3177, %v1646
      %v3179 = vmin.f32 %v3178, %v1650
      %v3180 = vrot.slane %v3179, 4
      %v3181 = vmin.f32 %v3179, %v3180
      %v3182 = vrot.slane %v3181, 2
      %v3183 = vmin.f32 %v3181, %v3182
      %v3184 = vrot.slane %v3183, 1
      %v3185 = vmin.f32 %v3183, %v3184
      %v3186 = vmin.f32 %v1687, %v1691
      %v3187 = vmin.f32 %v3186, %v1697
      %v3188 = vmin.f32 %v3187, %v1701
      %v3189 = vmin.f32 %v3188, %v1707
      %v3190 = vmin.f32 %v3189, %v1711
      %v3191 = vmin.f32 %v3190, %v1717
      %v3192 = vmin.f32 %v3191, %v1721
      %v3193 = vmin.f32 %v3192, %v1727
      %v3194 = vmin.f32 %v3193, %v1731
      %v3195 = vmin.f32 %v3194, %v1737
      %v3196 = vmin.f32 %v3195, %v1741
      %v3197 = vmin.f32 %v3196, %v1747
      %v3198 = vmin.f32 %v3197, %v1751
      %v3199 = vmin.f32 %v3198, %v1757
      %v3200 = vmin.f32 %v3199, %v1761
      %v3201 = vmin.f32 %v3200, %v1767
      %v3202 = vmin.f32 %v3201, %v1771
      %v3203 = vmin.f32 %v3202, %v1777
      %v3204 = vmin.f32 %v3203, %v1781
      %v3205 = vmin.f32 %v3204, %v1787
      %v3206 = vmin.f32 %v3205, %v1791
      %v3207 = vmin.f32 %v3206, %v1797
      %v3208 = vmin.f32 %v3207, %v1801
      %v3209 = vmin.f32 %v3208, %v1807
      %v3210 = vmin.f32 %v3209, %v1811
      %v3211 = vmin.f32 %v3210, %v1817
      %v3212 = vmin.f32 %v3211, %v1821
      %v3213 = vmin.f32 %v3212, %v1827
      %v3214 = vmin.f32 %v3213, %v1831
      %v3215 = vmin.f32 %v3214, %v1837
      %v3216 = vmin.f32 %v3215, %v1841
      %v3217 = vmin.f32 %v3216, %v1847
      %v3218 = vmin.f32 %v3217, %v1851
      %v3219 = vmin.f32 %v3218, %v1857
      %v3220 = vmin.f32 %v3219, %v1861
      %v3221 = vmin.f32 %v3220, %v1867
      %v3222 = vmin.f32 %v3221, %v1871
      %v3223 = vmin.f32 %v3222, %v1877
      %v3224 = vmin.f32 %v3223, %v1881
      %v3225 = vmin.f32 %v3224, %v1887
      %v3226 = vmin.f32 %v3225, %v1891
      %v3227 = vmin.f32 %v3226, %v1897
      %v3228 = vmin.f32 %v3227, %v1901
      %v3229 = vmin.f32 %v3228, %v1907
      %v3230 = vmin.f32 %v3229, %v1911
      %v3231 = vmin.f32 %v3230, %v1917
      %v3232 = vmin.f32 %v3231, %v1921
      %v3233 = vmin.f32 %v3232, %v1927
      %v3234 = vmin.f32 %v3233, %v1931
      %v3235 = vmin.f32 %v3234, %v1937
      %v3236 = vmin.f32 %v3235, %v1941
      %v3237 = vmin.f32 %v3236, %v1947
      %v3238 = vmin.f32 %v3237, %v1951
      %v3239 = vmin.f32 %v3238, %v1957
      %v3240 = vmin.f32 %v3239, %v1961
      %v3241 = vmin.f32 %v3240, %v1967
      %v3242 = vmin.f32 %v3241, %v1971
      %v3243 = vmin.f32 %v3242, %v1977
      %v3244 = vmin.f32 %v3243, %v1981
      %v3245 = vmin.f32 %v3244, %v1987
      %v3246 = vmin.f32 %v3245, %v1991
      %v3247 = vmin.f32 %v3246, %v1997
      %v3248 = vmin.f32 %v3247, %v2001
      %v3249 = vrot.slane %v3248, 4
      %v3250 = vmin.f32 %v3248, %v3249
      %v3251 = vrot.slane %v3250, 2
      %v3252 = vmin.f32 %v3250, %v3251
      %v3253 = vrot.slane %v3252, 1
      %v3254 = vmin.f32 %v3252, %v3253
      %v3255 = vmin.f32 %v1689, %v1693
      %v3256 = vmin.f32 %v3255, %v1699
      %v3257 = vmin.f32 %v3256, %v1703
      %v3258 = vmin.f32 %v3257, %v1709
      %v3259 = vmin.f32 %v3258, %v1713
      %v3260 = vmin.f32 %v3259, %v1719
      %v3261 = vmin.f32 %v3260, %v1723
      %v3262 = vmin.f32 %v3261, %v1729
      %v3263 = vmin.f32 %v3262, %v1733
      %v3264 = vmin.f32 %v3263, %v1739
      %v3265 = vmin.f32 %v3264, %v1743
      %v3266 = vmin.f32 %v3265, %v1749
      %v3267 = vmin.f32 %v3266, %v1753
      %v3268 = vmin.f32 %v3267, %v1759
      %v3269 = vmin.f32 %v3268, %v1763
      %v3270 = vmin.f32 %v3269, %v1769
      %v3271 = vmin.f32 %v3270, %v1773
      %v3272 = vmin.f32 %v3271, %v1779
      %v3273 = vmin.f32 %v3272, %v1783
      %v3274 = vmin.f32 %v3273, %v1789
      %v3275 = vmin.f32 %v3274, %v1793
      %v3276 = vmin.f32 %v3275, %v1799
      %v3277 = vmin.f32 %v3276, %v1803
      %v3278 = vmin.f32 %v3277, %v1809
      %v3279 = vmin.f32 %v3278, %v1813
      %v3280 = vmin.f32 %v3279, %v1819
      %v3281 = vmin.f32 %v3280, %v1823
      %v3282 = vmin.f32 %v3281, %v1829
      %v3283 = vmin.f32 %v3282, %v1833
      %v3284 = vmin.f32 %v3283, %v1839
      %v3285 = vmin.f32 %v3284, %v1843
      %v3286 = vmin.f32 %v3285, %v1849
      %v3287 = vmin.f32 %v3286, %v1853
      %v3288 = vmin.f32 %v3287, %v1859
      %v3289 = vmin.f32 %v3288, %v1863
      %v3290 = vmin.f32 %v3289, %v1869
      %v3291 = vmin.f32 %v3290, %v1873
      %v3292 = vmin.f32 %v3291, %v1879
      %v3293 = vmin.f32 %v3292, %v1883
      %v3294 = vmin.f32 %v3293, %v1889
      %v3295 = vmin.f32 %v3294, %v1893
      %v3296 = vmin.f32 %v3295, %v1899
      %v3297 = vmin.f32 %v3296, %v1903
      %v3298 = vmin.f32 %v3297, %v1909
      %v3299 = vmin.f32 %v3298, %v1913
      %v3300 = vmin.f32 %v3299, %v1919
      %v3301 = vmin.f32 %v3300, %v1923
      %v3302 = vmin.f32 %v3301, %v1929
      %v3303 = vmin.f32 %v3302, %v1933
      %v3304 = vmin.f32 %v3303, %v1939
      %v3305 = vmin.f32 %v3304, %v1943
      %v3306 = vmin.f32 %v3305, %v1949
      %v3307 = vmin.f32 %v3306, %v1953
      %v3308 = vmin.f32 %v3307, %v1959
      %v3309 = vmin.f32 %v3308, %v1963
      %v3310 = vmin.f32 %v3309, %v1969
      %v3311 = vmin.f32 %v3310, %v1973
      %v3312 = vmin.f32 %v3311, %v1979
      %v3313 = vmin.f32 %v3312, %v1983
      %v3314 = vmin.f32 %v3313, %v1989
      %v3315 = vmin.f32 %v3314, %v1993
      %v3316 = vmin.f32 %v3315, %v1999
      %v3317 = vmin.f32 %v3316, %v2003
      %v3318 = vrot.slane %v3317, 4
      %v3319 = vmin.f32 %v3317, %v3318
      %v3320 = vrot.slane %v3319, 2
      %v3321 = vmin.f32 %v3319, %v3320
      %v3322 = vrot.slane %v3321, 1
      %v3323 = vmin.f32 %v3321, %v3322
      %v3324 = vmin.f32 %v2040, %v2044
      %v3325 = vmin.f32 %v3324, %v2050
      %v3326 = vmin.f32 %v3325, %v2054
      %v3327 = vmin.f32 %v3326, %v2060
      %v3328 = vmin.f32 %v3327, %v2064
      %v3329 = vmin.f32 %v3328, %v2070
      %v3330 = vmin.f32 %v3329, %v2074
      %v3331 = vmin.f32 %v3330, %v2080
      %v3332 = vmin.f32 %v3331, %v2084
      %v3333 = vmin.f32 %v3332, %v2090
      %v3334 = vmin.f32 %v3333, %v2094
      %v3335 = vmin.f32 %v3334, %v2100
      %v3336 = vmin.f32 %v3335, %v2104
      %v3337 = vmin.f32 %v3336, %v2110
      %v3338 = vmin.f32 %v3337, %v2114
      %v3339 = vmin.f32 %v3338, %v2120
      %v3340 = vmin.f32 %v3339, %v2124
      %v3341 = vmin.f32 %v3340, %v2130
      %v3342 = vmin.f32 %v3341, %v2134
      %v3343 = vmin.f32 %v3342, %v2140
      %v3344 = vmin.f32 %v3343, %v2144
      %v3345 = vmin.f32 %v3344, %v2150
      %v3346 = vmin.f32 %v3345, %v2154
      %v3347 = vmin.f32 %v3346, %v2160
      %v3348 = vmin.f32 %v3347, %v2164
      %v3349 = vmin.f32 %v3348, %v2170
      %v3350 = vmin.f32 %v3349, %v2174
      %v3351 = vmin.f32 %v3350, %v2180
      %v3352 = vmin.f32 %v3351, %v2184
      %v3353 = vmin.f32 %v3352, %v2190
      %v3354 = vmin.f32 %v3353, %v2194
      %v3355 = vmin.f32 %v3354, %v2200
      %v3356 = vmin.f32 %v3355, %v2204
      %v3357 = vmin.f32 %v3356, %v2210
      %v3358 = vmin.f32 %v3357, %v2214
      %v3359 = vmin.f32 %v3358, %v2220
      %v3360 = vmin.f32 %v3359, %v2224
      %v3361 = vmin.f32 %v3360, %v2230
      %v3362 = vmin.f32 %v3361, %v2234
      %v3363 = vmin.f32 %v3362, %v2240
      %v3364 = vmin.f32 %v3363, %v2244
      %v3365 = vmin.f32 %v3364, %v2250
      %v3366 = vmin.f32 %v3365, %v2254
      %v3367 = vmin.f32 %v3366, %v2260
      %v3368 = vmin.f32 %v3367, %v2264
      %v3369 = vmin.f32 %v3368, %v2270
      %v3370 = vmin.f32 %v3369, %v2274
      %v3371 = vmin.f32 %v3370, %v2280
      %v3372 = vmin.f32 %v3371, %v2284
      %v3373 = vmin.f32 %v3372, %v2290
      %v3374 = vmin.f32 %v3373, %v2294
      %v3375 = vmin.f32 %v3374, %v2300
      %v3376 = vmin.f32 %v3375, %v2304
      %v3377 = vmin.f32 %v3376, %v2310
      %v3378 = vmin.f32 %v3377, %v2314
      %v3379 = vmin.f32 %v3378, %v2320
      %v3380 = vmin.f32 %v3379, %v2324
      %v3381 = vmin.f32 %v3380, %v2330
      %v3382 = vmin.f32 %v3381, %v2334
      %v3383 = vmin.f32 %v3382, %v2340
      %v3384 = vmin.f32 %v3383, %v2344
      %v3385 = vmin.f32 %v3384, %v2350
      %v3386 = vmin.f32 %v3385, %v2354
      %v3387 = vrot.slane %v3386, 4
      %v3388 = vmin.f32 %v3386, %v3387
      %v3389 = vrot.slane %v3388, 2
      %v3390 = vmin.f32 %v3388, %v3389
      %v3391 = vrot.slane %v3390, 1
      %v3392 = vmin.f32 %v3390, %v3391
      %v3393 = vmin.f32 %v2042, %v2046
      %v3394 = vmin.f32 %v3393, %v2052
      %v3395 = vmin.f32 %v3394, %v2056
      %v3396 = vmin.f32 %v3395, %v2062
      %v3397 = vmin.f32 %v3396, %v2066
      %v3398 = vmin.f32 %v3397, %v2072
      %v3399 = vmin.f32 %v3398, %v2076
      %v3400 = vmin.f32 %v3399, %v2082
      %v3401 = vmin.f32 %v3400, %v2086
      %v3402 = vmin.f32 %v3401, %v2092
      %v3403 = vmin.f32 %v3402, %v2096
      %v3404 = vmin.f32 %v3403, %v2102
      %v3405 = vmin.f32 %v3404, %v2106
      %v3406 = vmin.f32 %v3405, %v2112
      %v3407 = vmin.f32 %v3406, %v2116
      %v3408 = vmin.f32 %v3407, %v2122
      %v3409 = vmin.f32 %v3408, %v2126
      %v3410 = vmin.f32 %v3409, %v2132
      %v3411 = vmin.f32 %v3410, %v2136
      %v3412 = vmin.f32 %v3411, %v2142
      %v3413 = vmin.f32 %v3412, %v2146
      %v3414 = vmin.f32 %v3413, %v2152
      %v3415 = vmin.f32 %v3414, %v2156
      %v3416 = vmin.f32 %v3415, %v2162
      %v3417 = vmin.f32 %v3416, %v2166
      %v3418 = vmin.f32 %v3417, %v2172
      %v3419 = vmin.f32 %v3418, %v2176
      %v3420 = vmin.f32 %v3419, %v2182
      %v3421 = vmin.f32 %v3420, %v2186
      %v3422 = vmin.f32 %v3421, %v2192
      %v3423 = vmin.f32 %v3422, %v2196
      %v3424 = vmin.f32 %v3423, %v2202
      %v3425 = vmin.f32 %v3424, %v2206
      %v3426 = vmin.f32 %v3425, %v2212
      %v3427 = vmin.f32 %v3426, %v2216
      %v3428 = vmin.f32 %v3427, %v2222
      %v3429 = vmin.f32 %v3428, %v2226
      %v3430 = vmin.f32 %v3429, %v2232
      %v3431 = vmin.f32 %v3430, %v2236
      %v3432 = vmin.f32 %v3431, %v2242
      %v3433 = vmin.f32 %v3432, %v2246
      %v3434 = vmin.f32 %v3433, %v2252
      %v3435 = vmin.f32 %v3434, %v2256
      %v3436 = vmin.f32 %v3435, %v2262
      %v3437 = vmin.f32 %v3436, %v2266
      %v3438 = vmin.f32 %v3437, %v2272
      %v3439 = vmin.f32 %v3438, %v2276
      %v3440 = vmin.f32 %v3439, %v2282
      %v3441 = vmin.f32 %v3440, %v2286
      %v3442 = vmin.f32 %v3441, %v2292
      %v3443 = vmin.f32 %v3442, %v2296
      %v3444 = vmin.f32 %v3443, %v2302
      %v3445 = vmin.f32 %v3444, %v2306
      %v3446 = vmin.f32 %v3445, %v2312
      %v3447 = vmin.f32 %v3446, %v2316
      %v3448 = vmin.f32 %v3447, %v2322
      %v3449 = vmin.f32 %v3448, %v2326
      %v3450 = vmin.f32 %v3449, %v2332
      %v3451 = vmin.f32 %v3450, %v2336
      %v3452 = vmin.f32 %v3451, %v2342
      %v3453 = vmin.f32 %v3452, %v2346
      %v3454 = vmin.f32 %v3453, %v2352
      %v3455 = vmin.f32 %v3454, %v2356
      %v3456 = vrot.slane %v3455, 4
      %v3457 = vmin.f32 %v3455, %v3456
      %v3458 = vrot.slane %v3457, 2
      %v3459 = vmin.f32 %v3457, %v3458
      %v3460 = vrot.slane %v3459, 1
      %v3461 = vmin.f32 %v3459, %v3460
      %v3462 = vadd.f32 %v981, %v985
      %v3463 = vadd.f32 %v3462, %v991
      %v3464 = vadd.f32 %v3463, %v995
      %v3465 = vadd.f32 %v3464, %v1001
      %v3466 = vadd.f32 %v3465, %v1005
      %v3467 = vadd.f32 %v3466, %v1011
      %v3468 = vadd.f32 %v3467, %v1015
      %v3469 = vadd.f32 %v3468, %v1021
      %v3470 = vadd.f32 %v3469, %v1025
      %v3471 = vadd.f32 %v3470, %v1031
      %v3472 = vadd.f32 %v3471, %v1035
      %v3473 = vadd.f32 %v3472, %v1041
      %v3474 = vadd.f32 %v3473, %v1045
      %v3475 = vadd.f32 %v3474, %v1051
      %v3476 = vadd.f32 %v3475, %v1055
      %v3477 = vadd.f32 %v3476, %v1061
      %v3478 = vadd.f32 %v3477, %v1065
      %v3479 = vadd.f32 %v3478, %v1071
      %v3480 = vadd.f32 %v3479, %v1075
      %v3481 = vadd.f32 %v3480, %v1081
      %v3482 = vadd.f32 %v3481, %v1085
      %v3483 = vadd.f32 %v3482, %v1091
      %v3484 = vadd.f32 %v3483, %v1095
      %v3485 = vadd.f32 %v3484, %v1101
      %v3486 = vadd.f32 %v3485, %v1105
      %v3487 = vadd.f32 %v3486, %v1111
      %v3488 = vadd.f32 %v3487, %v1115
      %v3489 = vadd.f32 %v3488, %v1121
      %v3490 = vadd.f32 %v3489, %v1125
      %v3491 = vadd.f32 %v3490, %v1131
      %v3492 = vadd.f32 %v3491, %v1135
      %v3493 = vadd.f32 %v3492, %v1141
      %v3494 = vadd.f32 %v3493, %v1145
      %v3495 = vadd.f32 %v3494, %v1151
      %v3496 = vadd.f32 %v3495, %v1155
      %v3497 = vadd.f32 %v3496, %v1161
      %v3498 = vadd.f32 %v3497, %v1165
      %v3499 = vadd.f32 %v3498, %v1171
      %v3500 = vadd.f32 %v3499, %v1175
      %v3501 = vadd.f32 %v3500, %v1181
      %v3502 = vadd.f32 %v3501, %v1185
      %v3503 = vadd.f32 %v3502, %v1191
      %v3504 = vadd.f32 %v3503, %v1195
      %v3505 = vadd.f32 %v3504, %v1201
      %v3506 = vadd.f32 %v3505, %v1205
      %v3507 = vadd.f32 %v3506, %v1211
      %v3508 = vadd.f32 %v3507, %v1215
      %v3509 = vadd.f32 %v3508, %v1221
      %v3510 = vadd.f32 %v3509, %v1225
      %v3511 = vadd.f32 %v3510, %v1231
      %v3512 = vadd.f32 %v3511, %v1235
      %v3513 = vadd.f32 %v3512, %v1241
      %v3514 = vadd.f32 %v3513, %v1245
      %v3515 = vadd.f32 %v3514, %v1251
      %v3516 = vadd.f32 %v3515, %v1255
      %v3517 = vadd.f32 %v3516, %v1261
      %v3518 = vadd.f32 %v3517, %v1265
      %v3519 = vadd.f32 %v3518, %v1271
      %v3520 = vadd.f32 %v3519, %v1275
      %v3521 = vadd.f32 %v3520, %v1281
      %v3522 = vadd.f32 %v3521, %v1285
      %v3523 = vadd.f32 %v3522, %v1291
      %v3524 = vadd.f32 %v3523, %v1295
      %v3525 = vrot.slane %v3524, 4
      %v3526 = vadd.f32 %v3524, %v3525
      %v3527 = vrot.slane %v3526, 2
      %v3528 = vadd.f32 %v3526, %v3527
      %v3529 = vrot.slane %v3528, 1
      %v3530 = vadd.f32 %v3528, %v3529
      %v3531 = vadd.f32 %v983, %v987
      %v3532 = vadd.f32 %v3531, %v993
      %v3533 = vadd.f32 %v3532, %v997
      %v3534 = vadd.f32 %v3533, %v1003
      %v3535 = vadd.f32 %v3534, %v1007
      %v3536 = vadd.f32 %v3535, %v1013
      %v3537 = vadd.f32 %v3536, %v1017
      %v3538 = vadd.f32 %v3537, %v1023
      %v3539 = vadd.f32 %v3538, %v1027
      %v3540 = vadd.f32 %v3539, %v1033
      %v3541 = vadd.f32 %v3540, %v1037
      %v3542 = vadd.f32 %v3541, %v1043
      %v3543 = vadd.f32 %v3542, %v1047
      %v3544 = vadd.f32 %v3543, %v1053
      %v3545 = vadd.f32 %v3544, %v1057
      %v3546 = vadd.f32 %v3545, %v1063
      %v3547 = vadd.f32 %v3546, %v1067
      %v3548 = vadd.f32 %v3547, %v1073
      %v3549 = vadd.f32 %v3548, %v1077
      %v3550 = vadd.f32 %v3549, %v1083
      %v3551 = vadd.f32 %v3550, %v1087
      %v3552 = vadd.f32 %v3551, %v1093
      %v3553 = vadd.f32 %v3552, %v1097
      %v3554 = vadd.f32 %v3553, %v1103
      %v3555 = vadd.f32 %v3554, %v1107
      %v3556 = vadd.f32 %v3555, %v1113
      %v3557 = vadd.f32 %v3556, %v1117
      %v3558 = vadd.f32 %v3557, %v1123
      %v3559 = vadd.f32 %v3558, %v1127
      %v3560 = vadd.f32 %v3559, %v1133
      %v3561 = vadd.f32 %v3560, %v1137
      %v3562 = vadd.f32 %v3561, %v1143
      %v3563 = vadd.f32 %v3562, %v1147
      %v3564 = vadd.f32 %v3563, %v1153
      %v3565 = vadd.f32 %v3564, %v1157
      %v3566 = vadd.f32 %v3565, %v1163
      %v3567 = vadd.f32 %v3566, %v1167
      %v3568 = vadd.f32 %v3567, %v1173
      %v3569 = vadd.f32 %v3568, %v1177
      %v3570 = vadd.f32 %v3569, %v1183
      %v3571 = vadd.f32 %v3570, %v1187
      %v3572 = vadd.f32 %v3571, %v1193
      %v3573 = vadd.f32 %v3572, %v1197
      %v3574 = vadd.f32 %v3573, %v1203
      %v3575 = vadd.f32 %v3574, %v1207
      %v3576 = vadd.f32 %v3575, %v1213
      %v3577 = vadd.f32 %v3576, %v1217
      %v3578 = vadd.f32 %v3577, %v1223
      %v3579 = vadd.f32 %v3578, %v1227
      %v3580 = vadd.f32 %v3579, %v1233
      %v3581 = vadd.f32 %v3580, %v1237
      %v3582 = vadd.f32 %v3581, %v1243
      %v3583 = vadd.f32 %v3582, %v1247
      %v3584 = vadd.f32 %v3583, %v1253
      %v3585 = vadd.f32 %v3584, %v1257
      %v3586 = vadd.f32 %v3585, %v1263
      %v3587 = vadd.f32 %v3586, %v1267
      %v3588 = vadd.f32 %v3587, %v1273
      %v3589 = vadd.f32 %v3588, %v1277
      %v3590 = vadd.f32 %v3589, %v1283
      %v3591 = vadd.f32 %v3590, %v1287
      %v3592 = vadd.f32 %v3591, %v1293
      %v3593 = vadd.f32 %v3592, %v1297
      %v3594 = vrot.slane %v3593, 4
      %v3595 = vadd.f32 %v3593, %v3594
      %v3596 = vrot.slane %v3595, 2
      %v3597 = vadd.f32 %v3595, %v3596
      %v3598 = vrot.slane %v3597, 1
      %v3599 = vadd.f32 %v3597, %v3598
      %v3600 = vadd.f32 %v1334, %v1338
      %v3601 = vadd.f32 %v3600, %v1344
      %v3602 = vadd.f32 %v3601, %v1348
      %v3603 = vadd.f32 %v3602, %v1354
      %v3604 = vadd.f32 %v3603, %v1358
      %v3605 = vadd.f32 %v3604, %v1364
      %v3606 = vadd.f32 %v3605, %v1368
      %v3607 = vadd.f32 %v3606, %v1374
      %v3608 = vadd.f32 %v3607, %v1378
      %v3609 = vadd.f32 %v3608, %v1384
      %v3610 = vadd.f32 %v3609, %v1388
      %v3611 = vadd.f32 %v3610, %v1394
      %v3612 = vadd.f32 %v3611, %v1398
      %v3613 = vadd.f32 %v3612, %v1404
      %v3614 = vadd.f32 %v3613, %v1408
      %v3615 = vadd.f32 %v3614, %v1414
      %v3616 = vadd.f32 %v3615, %v1418
      %v3617 = vadd.f32 %v3616, %v1424
      %v3618 = vadd.f32 %v3617, %v1428
      %v3619 = vadd.f32 %v3618, %v1434
      %v3620 = vadd.f32 %v3619, %v1438
      %v3621 = vadd.f32 %v3620, %v1444
      %v3622 = vadd.f32 %v3621, %v1448
      %v3623 = vadd.f32 %v3622, %v1454
      %v3624 = vadd.f32 %v3623, %v1458
      %v3625 = vadd.f32 %v3624, %v1464
      %v3626 = vadd.f32 %v3625, %v1468
      %v3627 = vadd.f32 %v3626, %v1474
      %v3628 = vadd.f32 %v3627, %v1478
      %v3629 = vadd.f32 %v3628, %v1484
      %v3630 = vadd.f32 %v3629, %v1488
      %v3631 = vadd.f32 %v3630, %v1494
      %v3632 = vadd.f32 %v3631, %v1498
      %v3633 = vadd.f32 %v3632, %v1504
      %v3634 = vadd.f32 %v3633, %v1508
      %v3635 = vadd.f32 %v3634, %v1514
      %v3636 = vadd.f32 %v3635, %v1518
      %v3637 = vadd.f32 %v3636, %v1524
      %v3638 = vadd.f32 %v3637, %v1528
      %v3639 = vadd.f32 %v3638, %v1534
      %v3640 = vadd.f32 %v3639, %v1538
      %v3641 = vadd.f32 %v3640, %v1544
      %v3642 = vadd.f32 %v3641, %v1548
      %v3643 = vadd.f32 %v3642, %v1554
      %v3644 = vadd.f32 %v3643, %v1558
      %v3645 = vadd.f32 %v3644, %v1564
      %v3646 = vadd.f32 %v3645, %v1568
      %v3647 = vadd.f32 %v3646, %v1574
      %v3648 = vadd.f32 %v3647, %v1578
      %v3649 = vadd.f32 %v3648, %v1584
      %v3650 = vadd.f32 %v3649, %v1588
      %v3651 = vadd.f32 %v3650, %v1594
      %v3652 = vadd.f32 %v3651, %v1598
      %v3653 = vadd.f32 %v3652, %v1604
      %v3654 = vadd.f32 %v3653, %v1608
      %v3655 = vadd.f32 %v3654, %v1614
      %v3656 = vadd.f32 %v3655, %v1618
      %v3657 = vadd.f32 %v3656, %v1624
      %v3658 = vadd.f32 %v3657, %v1628
      %v3659 = vadd.f32 %v3658, %v1634
      %v3660 = vadd.f32 %v3659, %v1638
      %v3661 = vadd.f32 %v3660, %v1644
      %v3662 = vadd.f32 %v3661, %v1648
      %v3663 = vrot.slane %v3662, 4
      %v3664 = vadd.f32 %v3662, %v3663
      %v3665 = vrot.slane %v3664, 2
      %v3666 = vadd.f32 %v3664, %v3665
      %v3667 = vrot.slane %v3666, 1
      %v3668 = vadd.f32 %v3666, %v3667
      %v3669 = vadd.f32 %v1336, %v1340
      %v3670 = vadd.f32 %v3669, %v1346
      %v3671 = vadd.f32 %v3670, %v1350
      %v3672 = vadd.f32 %v3671, %v1356
      %v3673 = vadd.f32 %v3672, %v1360
      %v3674 = vadd.f32 %v3673, %v1366
      %v3675 = vadd.f32 %v3674, %v1370
      %v3676 = vadd.f32 %v3675, %v1376
      %v3677 = vadd.f32 %v3676, %v1380
      %v3678 = vadd.f32 %v3677, %v1386
      %v3679 = vadd.f32 %v3678, %v1390
      %v3680 = vadd.f32 %v3679, %v1396
      %v3681 = vadd.f32 %v3680, %v1400
      %v3682 = vadd.f32 %v3681, %v1406
      %v3683 = vadd.f32 %v3682, %v1410
      %v3684 = vadd.f32 %v3683, %v1416
      %v3685 = vadd.f32 %v3684, %v1420
      %v3686 = vadd.f32 %v3685, %v1426
      %v3687 = vadd.f32 %v3686, %v1430
      %v3688 = vadd.f32 %v3687, %v1436
      %v3689 = vadd.f32 %v3688, %v1440
      %v3690 = vadd.f32 %v3689, %v1446
      %v3691 = vadd.f32 %v3690, %v1450
      %v3692 = vadd.f32 %v3691, %v1456
      %v3693 = vadd.f32 %v3692, %v1460
      %v3694 = vadd.f32 %v3693, %v1466
      %v3695 = vadd.f32 %v3694, %v1470
      %v3696 = vadd.f32 %v3695, %v1476
      %v3697 = vadd.f32 %v3696, %v1480
      %v3698 = vadd.f32 %v3697, %v1486
      %v3699 = vadd.f32 %v3698, %v1490
      %v3700 = vadd.f32 %v3699, %v1496
      %v3701 = vadd.f32 %v3700, %v1500
      %v3702 = vadd.f32 %v3701, %v1506
      %v3703 = vadd.f32 %v3702, %v1510
      %v3704 = vadd.f32 %v3703, %v1516
      %v3705 = vadd.f32 %v3704, %v1520
      %v3706 = vadd.f32 %v3705, %v1526
      %v3707 = vadd.f32 %v3706, %v1530
      %v3708 = vadd.f32 %v3707, %v1536
      %v3709 = vadd.f32 %v3708, %v1540
      %v3710 = vadd.f32 %v3709, %v1546
      %v3711 = vadd.f32 %v3710, %v1550
      %v3712 = vadd.f32 %v3711, %v1556
      %v3713 = vadd.f32 %v3712, %v1560
      %v3714 = vadd.f32 %v3713, %v1566
      %v3715 = vadd.f32 %v3714, %v1570
      %v3716 = vadd.f32 %v3715, %v1576
      %v3717 = vadd.f32 %v3716, %v1580
      %v3718 = vadd.f32 %v3717, %v1586
      %v3719 = vadd.f32 %v3718, %v1590
      %v3720 = vadd.f32 %v3719, %v1596
      %v3721 = vadd.f32 %v3720, %v1600
      %v3722 = vadd.f32 %v3721, %v1606
      %v3723 = vadd.f32 %v3722, %v1610
      %v3724 = vadd.f32 %v3723, %v1616
      %v3725 = vadd.f32 %v3724, %v1620
      %v3726 = vadd.f32 %v3725, %v1626
      %v3727 = vadd.f32 %v3726, %v1630
      %v3728 = vadd.f32 %v3727, %v1636
      %v3729 = vadd.f32 %v3728, %v1640
      %v3730 = vadd.f32 %v3729, %v1646
      %v3731 = vadd.f32 %v3730, %v1650
      %v3732 = vrot.slane %v3731, 4
      %v3733 = vadd.f32 %v3731, %v3732
      %v3734 = vrot.slane %v3733, 2
      %v3735 = vadd.f32 %v3733, %v3734
      %v3736 = vrot.slane %v3735, 1
      %v3737 = vadd.f32 %v3735, %v3736
      %v3738 = vadd.f32 %v1687, %v1691
      %v3739 = vadd.f32 %v3738, %v1697
      %v3740 = vadd.f32 %v3739, %v1701
      %v3741 = vadd.f32 %v3740, %v1707
      %v3742 = vadd.f32 %v3741, %v1711
      %v3743 = vadd.f32 %v3742, %v1717
      %v3744 = vadd.f32 %v3743, %v1721
      %v3745 = vadd.f32 %v3744, %v1727
      %v3746 = vadd.f32 %v3745, %v1731
      %v3747 = vadd.f32 %v3746, %v1737
      %v3748 = vadd.f32 %v3747, %v1741
      %v3749 = vadd.f32 %v3748, %v1747
      %v3750 = vadd.f32 %v3749, %v1751
      %v3751 = vadd.f32 %v3750, %v1757
      %v3752 = vadd.f32 %v3751, %v1761
      %v3753 = vadd.f32 %v3752, %v1767
      %v3754 = vadd.f32 %v3753, %v1771
      %v3755 = vadd.f32 %v3754, %v1777
      %v3756 = vadd.f32 %v3755, %v1781
      %v3757 = vadd.f32 %v3756, %v1787
      %v3758 = vadd.f32 %v3757, %v1791
      %v3759 = vadd.f32 %v3758, %v1797
      %v3760 = vadd.f32 %v3759, %v1801
      %v3761 = vadd.f32 %v3760, %v1807
      %v3762 = vadd.f32 %v3761, %v1811
      %v3763 = vadd.f32 %v3762, %v1817
      %v3764 = vadd.f32 %v3763, %v1821
      %v3765 = vadd.f32 %v3764, %v1827
      %v3766 = vadd.f32 %v3765, %v1831
      %v3767 = vadd.f32 %v3766, %v1837
      %v3768 = vadd.f32 %v3767, %v1841
      %v3769 = vadd.f32 %v3768, %v1847
      %v3770 = vadd.f32 %v3769, %v1851
      %v3771 = vadd.f32 %v3770, %v1857
      %v3772 = vadd.f32 %v3771, %v1861
      %v3773 = vadd.f32 %v3772, %v1867
      %v3774 = vadd.f32 %v3773, %v1871
      %v3775 = vadd.f32 %v3774, %v1877
      %v3776 = vadd.f32 %v3775, %v1881
      %v3777 = vadd.f32 %v3776, %v1887
      %v3778 = vadd.f32 %v3777, %v1891
      %v3779 = vadd.f32 %v3778, %v1897
      %v3780 = vadd.f32 %v3779, %v1901
      %v3781 = vadd.f32 %v3780, %v1907
      %v3782 = vadd.f32 %v3781, %v1911
      %v3783 = vadd.f32 %v3782, %v1917
      %v3784 = vadd.f32 %v3783, %v1921
      %v3785 = vadd.f32 %v3784, %v1927
      %v3786 = vadd.f32 %v3785, %v1931
      %v3787 = vadd.f32 %v3786, %v1937
      %v3788 = vadd.f32 %v3787, %v1941
      %v3789 = vadd.f32 %v3788, %v1947
      %v3790 = vadd.f32 %v3789, %v1951
      %v3791 = vadd.f32 %v3790, %v1957
      %v3792 = vadd.f32 %v3791, %v1961
      %v3793 = vadd.f32 %v3792, %v1967
      %v3794 = vadd.f32 %v3793, %v1971
      %v3795 = vadd.f32 %v3794, %v1977
      %v3796 = vadd.f32 %v3795, %v1981
      %v3797 = vadd.f32 %v3796, %v1987
      %v3798 = vadd.f32 %v3797, %v1991
      %v3799 = vadd.f32 %v3798, %v1997
      %v3800 = vadd.f32 %v3799, %v2001
      %v3801 = vrot.slane %v3800, 4
      %v3802 = vadd.f32 %v3800, %v3801
      %v3803 = vrot.slane %v3802, 2
      %v3804 = vadd.f32 %v3802, %v3803
      %v3805 = vrot.slane %v3804, 1
      %v3806 = vadd.f32 %v3804, %v3805
      %v3807 = vadd.f32 %v1689, %v1693
      %v3808 = vadd.f32 %v3807, %v1699
      %v3809 = vadd.f32 %v3808, %v1703
      %v3810 = vadd.f32 %v3809, %v1709
      %v3811 = vadd.f32 %v3810, %v1713
      %v3812 = vadd.f32 %v3811, %v1719
      %v3813 = vadd.f32 %v3812, %v1723
      %v3814 = vadd.f32 %v3813, %v1729
      %v3815 = vadd.f32 %v3814, %v1733
      %v3816 = vadd.f32 %v3815, %v1739
      %v3817 = vadd.f32 %v3816, %v1743
      %v3818 = vadd.f32 %v3817, %v1749
      %v3819 = vadd.f32 %v3818, %v1753
      %v3820 = vadd.f32 %v3819, %v1759
      %v3821 = vadd.f32 %v3820, %v1763
      %v3822 = vadd.f32 %v3821, %v1769
      %v3823 = vadd.f32 %v3822, %v1773
      %v3824 = vadd.f32 %v3823, %v1779
      %v3825 = vadd.f32 %v3824, %v1783
      %v3826 = vadd.f32 %v3825, %v1789
      %v3827 = vadd.f32 %v3826, %v1793
      %v3828 = vadd.f32 %v3827, %v1799
      %v3829 = vadd.f32 %v3828, %v1803
      %v3830 = vadd.f32 %v3829, %v1809
      %v3831 = vadd.f32 %v3830, %v1813
      %v3832 = vadd.f32 %v3831, %v1819
      %v3833 = vadd.f32 %v3832, %v1823
      %v3834 = vadd.f32 %v3833, %v1829
      %v3835 = vadd.f32 %v3834, %v1833
      %v3836 = vadd.f32 %v3835, %v1839
      %v3837 = vadd.f32 %v3836, %v1843
      %v3838 = vadd.f32 %v3837, %v1849
      %v3839 = vadd.f32 %v3838, %v1853
      %v3840 = vadd.f32 %v3839, %v1859
      %v3841 = vadd.f32 %v3840, %v1863
      %v3842 = vadd.f32 %v3841, %v1869
      %v3843 = vadd.f32 %v3842, %v1873
      %v3844 = vadd.f32 %v3843, %v1879
      %v3845 = vadd.f32 %v3844, %v1883
      %v3846 = vadd.f32 %v3845, %v1889
      %v3847 = vadd.f32 %v3846, %v1893
      %v3848 = vadd.f32 %v3847, %v1899
      %v3849 = vadd.f32 %v3848, %v1903
      %v3850 = vadd.f32 %v3849, %v1909
      %v3851 = vadd.f32 %v3850, %v1913
      %v3852 = vadd.f32 %v3851, %v1919
      %v3853 = vadd.f32 %v3852, %v1923
      %v3854 = vadd.f32 %v3853, %v1929
      %v3855 = vadd.f32 %v3854, %v1933
      %v3856 = vadd.f32 %v3855, %v1939
      %v3857 = vadd.f32 %v3856, %v1943
      %v3858 = vadd.f32 %v3857, %v1949
      %v3859 = vadd.f32 %v3858, %v1953
      %v3860 = vadd.f32 %v3859, %v1959
      %v3861 = vadd.f32 %v3860, %v1963
      %v3862 = vadd.f32 %v3861, %v1969
      %v3863 = vadd.f32 %v3862, %v1973
      %v3864 = vadd.f32 %v3863, %v1979
      %v3865 = vadd.f32 %v3864, %v1983
      %v3866 = vadd.f32 %v3865, %v1989
      %v3867 = vadd.f32 %v3866, %v1993
      %v3868 = vadd.f32 %v3867, %v1999
      %v3869 = vadd.f32 %v3868, %v2003
      %v3870 = vrot.slane %v3869, 4
      %v3871 = vadd.f32 %v3869, %v3870
      %v3872 = vrot.slane %v3871, 2
      %v3873 = vadd.f32 %v3871, %v3872
      %v3874 = vrot.slane %v3873, 1
      %v3875 = vadd.f32 %v3873, %v3874
      %v3876 = vadd.f32 %v2040, %v2044
      %v3877 = vadd.f32 %v3876, %v2050
      %v3878 = vadd.f32 %v3877, %v2054
      %v3879 = vadd.f32 %v3878, %v2060
      %v3880 = vadd.f32 %v3879, %v2064
      %v3881 = vadd.f32 %v3880, %v2070
      %v3882 = vadd.f32 %v3881, %v2074
      %v3883 = vadd.f32 %v3882, %v2080
      %v3884 = vadd.f32 %v3883, %v2084
      %v3885 = vadd.f32 %v3884, %v2090
      %v3886 = vadd.f32 %v3885, %v2094
      %v3887 = vadd.f32 %v3886, %v2100
      %v3888 = vadd.f32 %v3887, %v2104
      %v3889 = vadd.f32 %v3888, %v2110
      %v3890 = vadd.f32 %v3889, %v2114
      %v3891 = vadd.f32 %v3890, %v2120
      %v3892 = vadd.f32 %v3891, %v2124
      %v3893 = vadd.f32 %v3892, %v2130
      %v3894 = vadd.f32 %v3893, %v2134
      %v3895 = vadd.f32 %v3894, %v2140
      %v3896 = vadd.f32 %v3895, %v2144
      %v3897 = vadd.f32 %v3896, %v2150
      %v3898 = vadd.f32 %v3897, %v2154
      %v3899 = vadd.f32 %v3898, %v2160
      %v3900 = vadd.f32 %v3899, %v2164
      %v3901 = vadd.f32 %v3900, %v2170
      %v3902 = vadd.f32 %v3901, %v2174
      %v3903 = vadd.f32 %v3902, %v2180
      %v3904 = vadd.f32 %v3903, %v2184
      %v3905 = vadd.f32 %v3904, %v2190
      %v3906 = vadd.f32 %v3905, %v2194
      %v3907 = vadd.f32 %v3906, %v2200
      %v3908 = vadd.f32 %v3907, %v2204
      %v3909 = vadd.f32 %v3908, %v2210
      %v3910 = vadd.f32 %v3909, %v2214
      %v3911 = vadd.f32 %v3910, %v2220
      %v3912 = vadd.f32 %v3911, %v2224
      %v3913 = vadd.f32 %v3912, %v2230
      %v3914 = vadd.f32 %v3913, %v2234
      %v3915 = vadd.f32 %v3914, %v2240
      %v3916 = vadd.f32 %v3915, %v2244
      %v3917 = vadd.f32 %v3916, %v2250
      %v3918 = vadd.f32 %v3917, %v2254
      %v3919 = vadd.f32 %v3918, %v2260
      %v3920 = vadd.f32 %v3919, %v2264
      %v3921 = vadd.f32 %v3920, %v2270
      %v3922 = vadd.f32 %v3921, %v2274
      %v3923 = vadd.f32 %v3922, %v2280
      %v3924 = vadd.f32 %v3923, %v2284
      %v3925 = vadd.f32 %v3924, %v2290
      %v3926 = vadd.f32 %v3925, %v2294
      %v3927 = vadd.f32 %v3926, %v2300
      %v3928 = vadd.f32 %v3927, %v2304
      %v3929 = vadd.f32 %v3928, %v2310
      %v3930 = vadd.f32 %v3929, %v2314
      %v3931 = vadd.f32 %v3930, %v2320
      %v3932 = vadd.f32 %v3931, %v2324
      %v3933 = vadd.f32 %v3932, %v2330
      %v3934 = vadd.f32 %v3933, %v2334
      %v3935 = vadd.f32 %v3934, %v2340
      %v3936 = vadd.f32 %v3935, %v2344
      %v3937 = vadd.f32 %v3936, %v2350
      %v3938 = vadd.f32 %v3937, %v2354
      %v3939 = vrot.slane %v3938, 4
      %v3940 = vadd.f32 %v3938, %v3939
      %v3941 = vrot.slane %v3940, 2
      %v3942 = vadd.f32 %v3940, %v3941
      %v3943 = vrot.slane %v3942, 1
      %v3944 = vadd.f32 %v3942, %v3943
      %v3945 = vadd.f32 %v2042, %v2046
      %v3946 = vadd.f32 %v3945, %v2052
      %v3947 = vadd.f32 %v3946, %v2056
      %v3948 = vadd.f32 %v3947, %v2062
      %v3949 = vadd.f32 %v3948, %v2066
      %v3950 = vadd.f32 %v3949, %v2072
      %v3951 = vadd.f32 %v3950, %v2076
      %v3952 = vadd.f32 %v3951, %v2082
      %v3953 = vadd.f32 %v3952, %v2086
      %v3954 = vadd.f32 %v3953, %v2092
      %v3955 = vadd.f32 %v3954, %v2096
      %v3956 = vadd.f32 %v3955, %v2102
      %v3957 = vadd.f32 %v3956, %v2106
      %v3958 = vadd.f32 %v3957, %v2112
      %v3959 = vadd.f32 %v3958, %v2116
      %v3960 = vadd.f32 %v3959, %v2122
      %v3961 = vadd.f32 %v3960, %v2126
      %v3962 = vadd.f32 %v3961, %v2132
      %v3963 = vadd.f32 %v3962, %v2136
      %v3964 = vadd.f32 %v3963, %v2142
      %v3965 = vadd.f32 %v3964, %v2146
      %v3966 = vadd.f32 %v3965, %v2152
      %v3967 = vadd.f32 %v3966, %v2156
      %v3968 = vadd.f32 %v3967, %v2162
      %v3969 = vadd.f32 %v3968, %v2166
      %v3970 = vadd.f32 %v3969, %v2172
      %v3971 = vadd.f32 %v3970, %v2176
      %v3972 = vadd.f32 %v3971, %v2182
      %v3973 = vadd.f32 %v3972, %v2186
      %v3974 = vadd.f32 %v3973, %v2192
      %v3975 = vadd.f32 %v3974, %v2196
      %v3976 = vadd.f32 %v3975, %v2202
      %v3977 = vadd.f32 %v3976, %v2206
      %v3978 = vadd.f32 %v3977, %v2212
      %v3979 = vadd.f32 %v3978, %v2216
      %v3980 = vadd.f32 %v3979, %v2222
      %v3981 = vadd.f32 %v3980, %v2226
      %v3982 = vadd.f32 %v3981, %v2232
      %v3983 = vadd.f32 %v3982, %v2236
      %v3984 = vadd.f32 %v3983, %v2242
      %v3985 = vadd.f32 %v3984, %v2246
      %v3986 = vadd.f32 %v3985, %v2252
      %v3987 = vadd.f32 %v3986, %v2256
      %v3988 = vadd.f32 %v3987, %v2262
      %v3989 = vadd.f32 %v3988, %v2266
      %v3990 = vadd.f32 %v3989, %v2272
      %v3991 = vadd.f32 %v3990, %v2276
      %v3992 = vadd.f32 %v3991, %v2282
      %v3993 = vadd.f32 %v3992, %v2286
      %v3994 = vadd.f32 %v3993, %v2292
      %v3995 = vadd.f32 %v3994, %v2296
      %v3996 = vadd.f32 %v3995, %v2302
      %v3997 = vadd.f32 %v3996, %v2306
      %v3998 = vadd.f32 %v3997, %v2312
      %v3999 = vadd.f32 %v3998, %v2316
      %v4000 = vadd.f32 %v3999, %v2322
      %v4001 = vadd.f32 %v4000, %v2326
      %v4002 = vadd.f32 %v4001, %v2332
      %v4003 = vadd.f32 %v4002, %v2336
      %v4004 = vadd.f32 %v4003, %v2342
      %v4005 = vadd.f32 %v4004, %v2346
      %v4006 = vadd.f32 %v4005, %v2352
      %v4007 = vadd.f32 %v4006, %v2356
      %v4008 = vrot.slane %v4007, 4
      %v4009 = vadd.f32 %v4007, %v4008
      %v4010 = vrot.slane %v4009, 2
      %v4011 = vadd.f32 %v4009, %v4010
      %v4012 = vrot.slane %v4011, 1
      %v4013 = vadd.f32 %v4011, %v4012
      %v4014 = vmul.f32 %v981, %v981
      %v4015 = vmul.f32 %v983, %v983
      %v4016 = vmul.f32 %v1334, %v1334
      %v4017 = vmul.f32 %v1336, %v1336
      %v4018 = vmul.f32 %v1687, %v1687
      %v4019 = vmul.f32 %v1689, %v1689
      %v4020 = vmul.f32 %v2040, %v2040
      %v4021 = vmul.f32 %v2042, %v2042
      %v4022 = vmul.f32 %v985, %v985
      %v4023 = vmul.f32 %v987, %v987
      %v4024 = vmul.f32 %v1338, %v1338
      %v4025 = vmul.f32 %v1340, %v1340
      %v4026 = vmul.f32 %v1691, %v1691
      %v4027 = vmul.f32 %v1693, %v1693
      %v4028 = vmul.f32 %v2044, %v2044
      %v4029 = vmul.f32 %v2046, %v2046
      %v4030 = vmul.f32 %v991, %v991
      %v4031 = vmul.f32 %v993, %v993
      %v4032 = vmul.f32 %v1344, %v1344
      %v4033 = vmul.f32 %v1346, %v1346
      %v4034 = vmul.f32 %v1697, %v1697
      %v4035 = vmul.f32 %v1699, %v1699
      %v4036 = vmul.f32 %v2050, %v2050
      %v4037 = vmul.f32 %v2052, %v2052
      %v4038 = vmul.f32 %v995, %v995
      %v4039 = vmul.f32 %v997, %v997
      %v4040 = vmul.f32 %v1348, %v1348
      %v4041 = vmul.f32 %v1350, %v1350
      %v4042 = vmul.f32 %v1701, %v1701
      %v4043 = vmul.f32 %v1703, %v1703
      %v4044 = vmul.f32 %v2054, %v2054
      %v4045 = vmul.f32 %v2056, %v2056
      %v4046 = vmul.f32 %v1001, %v1001
      %v4047 = vmul.f32 %v1003, %v1003
      %v4048 = vmul.f32 %v1354, %v1354
      %v4049 = vmul.f32 %v1356, %v1356
      %v4050 = vmul.f32 %v1707, %v1707
      %v4051 = vmul.f32 %v1709, %v1709
      %v4052 = vmul.f32 %v2060, %v2060
      %v4053 = vmul.f32 %v2062, %v2062
      %v4054 = vmul.f32 %v1005, %v1005
      %v4055 = vmul.f32 %v1007, %v1007
      %v4056 = vmul.f32 %v1358, %v1358
      %v4057 = vmul.f32 %v1360, %v1360
      %v4058 = vmul.f32 %v1711, %v1711
      %v4059 = vmul.f32 %v1713, %v1713
      %v4060 = vmul.f32 %v2064, %v2064
      %v4061 = vmul.f32 %v2066, %v2066
      %v4062 = vmul.f32 %v1011, %v1011
      %v4063 = vmul.f32 %v1013, %v1013
      %v4064 = vmul.f32 %v1364, %v1364
      %v4065 = vmul.f32 %v1366, %v1366
      %v4066 = vmul.f32 %v1717, %v1717
      %v4067 = vmul.f32 %v1719, %v1719
      %v4068 = vmul.f32 %v2070, %v2070
      %v4069 = vmul.f32 %v2072, %v2072
      %v4070 = vmul.f32 %v1015, %v1015
      %v4071 = vmul.f32 %v1017, %v1017
      %v4072 = vmul.f32 %v1368, %v1368
      %v4073 = vmul.f32 %v1370, %v1370
      %v4074 = vmul.f32 %v1721, %v1721
      %v4075 = vmul.f32 %v1723, %v1723
      %v4076 = vmul.f32 %v2074, %v2074
      %v4077 = vmul.f32 %v2076, %v2076
      %v4078 = vmul.f32 %v1021, %v1021
      %v4079 = vmul.f32 %v1023, %v1023
      %v4080 = vmul.f32 %v1374, %v1374
      %v4081 = vmul.f32 %v1376, %v1376
      %v4082 = vmul.f32 %v1727, %v1727
      %v4083 = vmul.f32 %v1729, %v1729
      %v4084 = vmul.f32 %v2080, %v2080
      %v4085 = vmul.f32 %v2082, %v2082
      %v4086 = vmul.f32 %v1025, %v1025
      %v4087 = vmul.f32 %v1027, %v1027
      %v4088 = vmul.f32 %v1378, %v1378
      %v4089 = vmul.f32 %v1380, %v1380
      %v4090 = vmul.f32 %v1731, %v1731
      %v4091 = vmul.f32 %v1733, %v1733
      %v4092 = vmul.f32 %v2084, %v2084
      %v4093 = vmul.f32 %v2086, %v2086
      %v4094 = vmul.f32 %v1031, %v1031
      %v4095 = vmul.f32 %v1033, %v1033
      %v4096 = vmul.f32 %v1384, %v1384
      %v4097 = vmul.f32 %v1386, %v1386
      %v4098 = vmul.f32 %v1737, %v1737
      %v4099 = vmul.f32 %v1739, %v1739
      %v4100 = vmul.f32 %v2090, %v2090
      %v4101 = vmul.f32 %v2092, %v2092
      %v4102 = vmul.f32 %v1035, %v1035
      %v4103 = vmul.f32 %v1037, %v1037
      %v4104 = vmul.f32 %v1388, %v1388
      %v4105 = vmul.f32 %v1390, %v1390
      %v4106 = vmul.f32 %v1741, %v1741
      %v4107 = vmul.f32 %v1743, %v1743
      %v4108 = vmul.f32 %v2094, %v2094
      %v4109 = vmul.f32 %v2096, %v2096
      %v4110 = vmul.f32 %v1041, %v1041
      %v4111 = vmul.f32 %v1043, %v1043
      %v4112 = vmul.f32 %v1394, %v1394
      %v4113 = vmul.f32 %v1396, %v1396
      %v4114 = vmul.f32 %v1747, %v1747
      %v4115 = vmul.f32 %v1749, %v1749
      %v4116 = vmul.f32 %v2100, %v2100
      %v4117 = vmul.f32 %v2102, %v2102
      %v4118 = vmul.f32 %v1045, %v1045
      %v4119 = vmul.f32 %v1047, %v1047
      %v4120 = vmul.f32 %v1398, %v1398
      %v4121 = vmul.f32 %v1400, %v1400
      %v4122 = vmul.f32 %v1751, %v1751
      %v4123 = vmul.f32 %v1753, %v1753
      %v4124 = vmul.f32 %v2104, %v2104
      %v4125 = vmul.f32 %v2106, %v2106
      %v4126 = vmul.f32 %v1051, %v1051
      %v4127 = vmul.f32 %v1053, %v1053
      %v4128 = vmul.f32 %v1404, %v1404
      %v4129 = vmul.f32 %v1406, %v1406
      %v4130 = vmul.f32 %v1757, %v1757
      %v4131 = vmul.f32 %v1759, %v1759
      %v4132 = vmul.f32 %v2110, %v2110
      %v4133 = vmul.f32 %v2112, %v2112
      %v4134 = vmul.f32 %v1055, %v1055
      %v4135 = vmul.f32 %v1057, %v1057
      %v4136 = vmul.f32 %v1408, %v1408
      %v4137 = vmul.f32 %v1410, %v1410
      %v4138 = vmul.f32 %v1761, %v1761
      %v4139 = vmul.f32 %v1763, %v1763
      %v4140 = vmul.f32 %v2114, %v2114
      %v4141 = vmul.f32 %v2116, %v2116
      %v4142 = vmul.f32 %v1061, %v1061
      %v4143 = vmul.f32 %v1063, %v1063
      %v4144 = vmul.f32 %v1414, %v1414
      %v4145 = vmul.f32 %v1416, %v1416
      %v4146 = vmul.f32 %v1767, %v1767
      %v4147 = vmul.f32 %v1769, %v1769
      %v4148 = vmul.f32 %v2120, %v2120
      %v4149 = vmul.f32 %v2122, %v2122
      %v4150 = vmul.f32 %v1065, %v1065
      %v4151 = vmul.f32 %v1067, %v1067
      %v4152 = vmul.f32 %v1418, %v1418
      %v4153 = vmul.f32 %v1420, %v1420
      %v4154 = vmul.f32 %v1771, %v1771
      %v4155 = vmul.f32 %v1773, %v1773
      %v4156 = vmul.f32 %v2124, %v2124
      %v4157 = vmul.f32 %v2126, %v2126
      %v4158 = vmul.f32 %v1071, %v1071
      %v4159 = vmul.f32 %v1073, %v1073
      %v4160 = vmul.f32 %v1424, %v1424
      %v4161 = vmul.f32 %v1426, %v1426
      %v4162 = vmul.f32 %v1777, %v1777
      %v4163 = vmul.f32 %v1779, %v1779
      %v4164 = vmul.f32 %v2130, %v2130
      %v4165 = vmul.f32 %v2132, %v2132
      %v4166 = vmul.f32 %v1075, %v1075
      %v4167 = vmul.f32 %v1077, %v1077
      %v4168 = vmul.f32 %v1428, %v1428
      %v4169 = vmul.f32 %v1430, %v1430
      %v4170 = vmul.f32 %v1781, %v1781
      %v4171 = vmul.f32 %v1783, %v1783
      %v4172 = vmul.f32 %v2134, %v2134
      %v4173 = vmul.f32 %v2136, %v2136
      %v4174 = vmul.f32 %v1081, %v1081
      %v4175 = vmul.f32 %v1083, %v1083
      %v4176 = vmul.f32 %v1434, %v1434
      %v4177 = vmul.f32 %v1436, %v1436
      %v4178 = vmul.f32 %v1787, %v1787
      %v4179 = vmul.f32 %v1789, %v1789
      %v4180 = vmul.f32 %v2140, %v2140
      %v4181 = vmul.f32 %v2142, %v2142
      %v4182 = vmul.f32 %v1085, %v1085
      %v4183 = vmul.f32 %v1087, %v1087
      %v4184 = vmul.f32 %v1438, %v1438
      %v4185 = vmul.f32 %v1440, %v1440
      %v4186 = vmul.f32 %v1791, %v1791
      %v4187 = vmul.f32 %v1793, %v1793
      %v4188 = vmul.f32 %v2144, %v2144
      %v4189 = vmul.f32 %v2146, %v2146
      %v4190 = vmul.f32 %v1091, %v1091
      %v4191 = vmul.f32 %v1093, %v1093
      %v4192 = vmul.f32 %v1444, %v1444
      %v4193 = vmul.f32 %v1446, %v1446
      %v4194 = vmul.f32 %v1797, %v1797
      %v4195 = vmul.f32 %v1799, %v1799
      %v4196 = vmul.f32 %v2150, %v2150
      %v4197 = vmul.f32 %v2152, %v2152
      %v4198 = vmul.f32 %v1095, %v1095
      %v4199 = vmul.f32 %v1097, %v1097
      %v4200 = vmul.f32 %v1448, %v1448
      %v4201 = vmul.f32 %v1450, %v1450
      %v4202 = vmul.f32 %v1801, %v1801
      %v4203 = vmul.f32 %v1803, %v1803
      %v4204 = vmul.f32 %v2154, %v2154
      %v4205 = vmul.f32 %v2156, %v2156
      %v4206 = vmul.f32 %v1101, %v1101
      %v4207 = vmul.f32 %v1103, %v1103
      %v4208 = vmul.f32 %v1454, %v1454
      %v4209 = vmul.f32 %v1456, %v1456
      %v4210 = vmul.f32 %v1807, %v1807
      %v4211 = vmul.f32 %v1809, %v1809
      %v4212 = vmul.f32 %v2160, %v2160
      %v4213 = vmul.f32 %v2162, %v2162
      %v4214 = vmul.f32 %v1105, %v1105
      %v4215 = vmul.f32 %v1107, %v1107
      %v4216 = vmul.f32 %v1458, %v1458
      %v4217 = vmul.f32 %v1460, %v1460
      %v4218 = vmul.f32 %v1811, %v1811
      %v4219 = vmul.f32 %v1813, %v1813
      %v4220 = vmul.f32 %v2164, %v2164
      %v4221 = vmul.f32 %v2166, %v2166
      %v4222 = vmul.f32 %v1111, %v1111
      %v4223 = vmul.f32 %v1113, %v1113
      %v4224 = vmul.f32 %v1464, %v1464
      %v4225 = vmul.f32 %v1466, %v1466
      %v4226 = vmul.f32 %v1817, %v1817
      %v4227 = vmul.f32 %v1819, %v1819
      %v4228 = vmul.f32 %v2170, %v2170
      %v4229 = vmul.f32 %v2172, %v2172
      %v4230 = vmul.f32 %v1115, %v1115
      %v4231 = vmul.f32 %v1117, %v1117
      %v4232 = vmul.f32 %v1468, %v1468
      %v4233 = vmul.f32 %v1470, %v1470
      %v4234 = vmul.f32 %v1821, %v1821
      %v4235 = vmul.f32 %v1823, %v1823
      %v4236 = vmul.f32 %v2174, %v2174
      %v4237 = vmul.f32 %v2176, %v2176
      %v4238 = vmul.f32 %v1121, %v1121
      %v4239 = vmul.f32 %v1123, %v1123
      %v4240 = vmul.f32 %v1474, %v1474
      %v4241 = vmul.f32 %v1476, %v1476
      %v4242 = vmul.f32 %v1827, %v1827
      %v4243 = vmul.f32 %v1829, %v1829
      %v4244 = vmul.f32 %v2180, %v2180
      %v4245 = vmul.f32 %v2182, %v2182
      %v4246 = vmul.f32 %v1125, %v1125
      %v4247 = vmul.f32 %v1127, %v1127
      %v4248 = vmul.f32 %v1478, %v1478
      %v4249 = vmul.f32 %v1480, %v1480
      %v4250 = vmul.f32 %v1831, %v1831
      %v4251 = vmul.f32 %v1833, %v1833
      %v4252 = vmul.f32 %v2184, %v2184
      %v4253 = vmul.f32 %v2186, %v2186
      %v4254 = vmul.f32 %v1131, %v1131
      %v4255 = vmul.f32 %v1133, %v1133
      %v4256 = vmul.f32 %v1484, %v1484
      %v4257 = vmul.f32 %v1486, %v1486
      %v4258 = vmul.f32 %v1837, %v1837
      %v4259 = vmul.f32 %v1839, %v1839
      %v4260 = vmul.f32 %v2190, %v2190
      %v4261 = vmul.f32 %v2192, %v2192
      %v4262 = vmul.f32 %v1135, %v1135
      %v4263 = vmul.f32 %v1137, %v1137
      %v4264 = vmul.f32 %v1488, %v1488
      %v4265 = vmul.f32 %v1490, %v1490
      %v4266 = vmul.f32 %v1841, %v1841
      %v4267 = vmul.f32 %v1843, %v1843
      %v4268 = vmul.f32 %v2194, %v2194
      %v4269 = vmul.f32 %v2196, %v2196
      %v4270 = vmul.f32 %v1141, %v1141
      %v4271 = vmul.f32 %v1143, %v1143
      %v4272 = vmul.f32 %v1494, %v1494
      %v4273 = vmul.f32 %v1496, %v1496
      %v4274 = vmul.f32 %v1847, %v1847
      %v4275 = vmul.f32 %v1849, %v1849
      %v4276 = vmul.f32 %v2200, %v2200
      %v4277 = vmul.f32 %v2202, %v2202
      %v4278 = vmul.f32 %v1145, %v1145
      %v4279 = vmul.f32 %v1147, %v1147
      %v4280 = vmul.f32 %v1498, %v1498
      %v4281 = vmul.f32 %v1500, %v1500
      %v4282 = vmul.f32 %v1851, %v1851
      %v4283 = vmul.f32 %v1853, %v1853
      %v4284 = vmul.f32 %v2204, %v2204
      %v4285 = vmul.f32 %v2206, %v2206
      %v4286 = vmul.f32 %v1151, %v1151
      %v4287 = vmul.f32 %v1153, %v1153
      %v4288 = vmul.f32 %v1504, %v1504
      %v4289 = vmul.f32 %v1506, %v1506
      %v4290 = vmul.f32 %v1857, %v1857
      %v4291 = vmul.f32 %v1859, %v1859
      %v4292 = vmul.f32 %v2210, %v2210
      %v4293 = vmul.f32 %v2212, %v2212
      %v4294 = vmul.f32 %v1155, %v1155
      %v4295 = vmul.f32 %v1157, %v1157
      %v4296 = vmul.f32 %v1508, %v1508
      %v4297 = vmul.f32 %v1510, %v1510
      %v4298 = vmul.f32 %v1861, %v1861
      %v4299 = vmul.f32 %v1863, %v1863
      %v4300 = vmul.f32 %v2214, %v2214
      %v4301 = vmul.f32 %v2216, %v2216
      %v4302 = vmul.f32 %v1161, %v1161
      %v4303 = vmul.f32 %v1163, %v1163
      %v4304 = vmul.f32 %v1514, %v1514
      %v4305 = vmul.f32 %v1516, %v1516
      %v4306 = vmul.f32 %v1867, %v1867
      %v4307 = vmul.f32 %v1869, %v1869
      %v4308 = vmul.f32 %v2220, %v2220
      %v4309 = vmul.f32 %v2222, %v2222
      %v4310 = vmul.f32 %v1165, %v1165
      %v4311 = vmul.f32 %v1167, %v1167
      %v4312 = vmul.f32 %v1518, %v1518
      %v4313 = vmul.f32 %v1520, %v1520
      %v4314 = vmul.f32 %v1871, %v1871
      %v4315 = vmul.f32 %v1873, %v1873
      %v4316 = vmul.f32 %v2224, %v2224
      %v4317 = vmul.f32 %v2226, %v2226
      %v4318 = vmul.f32 %v1171, %v1171
      %v4319 = vmul.f32 %v1173, %v1173
      %v4320 = vmul.f32 %v1524, %v1524
      %v4321 = vmul.f32 %v1526, %v1526
      %v4322 = vmul.f32 %v1877, %v1877
      %v4323 = vmul.f32 %v1879, %v1879
      %v4324 = vmul.f32 %v2230, %v2230
      %v4325 = vmul.f32 %v2232, %v2232
      %v4326 = vmul.f32 %v1175, %v1175
      %v4327 = vmul.f32 %v1177, %v1177
      %v4328 = vmul.f32 %v1528, %v1528
      %v4329 = vmul.f32 %v1530, %v1530
      %v4330 = vmul.f32 %v1881, %v1881
      %v4331 = vmul.f32 %v1883, %v1883
      %v4332 = vmul.f32 %v2234, %v2234
      %v4333 = vmul.f32 %v2236, %v2236
      %v4334 = vmul.f32 %v1181, %v1181
      %v4335 = vmul.f32 %v1183, %v1183
      %v4336 = vmul.f32 %v1534, %v1534
      %v4337 = vmul.f32 %v1536, %v1536
      %v4338 = vmul.f32 %v1887, %v1887
      %v4339 = vmul.f32 %v1889, %v1889
      %v4340 = vmul.f32 %v2240, %v2240
      %v4341 = vmul.f32 %v2242, %v2242
      %v4342 = vmul.f32 %v1185, %v1185
      %v4343 = vmul.f32 %v1187, %v1187
      %v4344 = vmul.f32 %v1538, %v1538
      %v4345 = vmul.f32 %v1540, %v1540
      %v4346 = vmul.f32 %v1891, %v1891
      %v4347 = vmul.f32 %v1893, %v1893
      %v4348 = vmul.f32 %v2244, %v2244
      %v4349 = vmul.f32 %v2246, %v2246
      %v4350 = vmul.f32 %v1191, %v1191
      %v4351 = vmul.f32 %v1193, %v1193
      %v4352 = vmul.f32 %v1544, %v1544
      %v4353 = vmul.f32 %v1546, %v1546
      %v4354 = vmul.f32 %v1897, %v1897
      %v4355 = vmul.f32 %v1899, %v1899
      %v4356 = vmul.f32 %v2250, %v2250
      %v4357 = vmul.f32 %v2252, %v2252
      %v4358 = vmul.f32 %v1195, %v1195
      %v4359 = vmul.f32 %v1197, %v1197
      %v4360 = vmul.f32 %v1548, %v1548
      %v4361 = vmul.f32 %v1550, %v1550
      %v4362 = vmul.f32 %v1901, %v1901
      %v4363 = vmul.f32 %v1903, %v1903
      %v4364 = vmul.f32 %v2254, %v2254
      %v4365 = vmul.f32 %v2256, %v2256
      %v4366 = vmul.f32 %v1201, %v1201
      %v4367 = vmul.f32 %v1203, %v1203
      %v4368 = vmul.f32 %v1554, %v1554
      %v4369 = vmul.f32 %v1556, %v1556
      %v4370 = vmul.f32 %v1907, %v1907
      %v4371 = vmul.f32 %v1909, %v1909
      %v4372 = vmul.f32 %v2260, %v2260
      %v4373 = vmul.f32 %v2262, %v2262
      %v4374 = vmul.f32 %v1205, %v1205
      %v4375 = vmul.f32 %v1207, %v1207
      %v4376 = vmul.f32 %v1558, %v1558
      %v4377 = vmul.f32 %v1560, %v1560
      %v4378 = vmul.f32 %v1911, %v1911
      %v4379 = vmul.f32 %v1913, %v1913
      %v4380 = vmul.f32 %v2264, %v2264
      %v4381 = vmul.f32 %v2266, %v2266
      %v4382 = vmul.f32 %v1211, %v1211
      %v4383 = vmul.f32 %v1213, %v1213
      %v4384 = vmul.f32 %v1564, %v1564
      %v4385 = vmul.f32 %v1566, %v1566
      %v4386 = vmul.f32 %v1917, %v1917
      %v4387 = vmul.f32 %v1919, %v1919
      %v4388 = vmul.f32 %v2270, %v2270
      %v4389 = vmul.f32 %v2272, %v2272
      %v4390 = vmul.f32 %v1215, %v1215
      %v4391 = vmul.f32 %v1217, %v1217
      %v4392 = vmul.f32 %v1568, %v1568
      %v4393 = vmul.f32 %v1570, %v1570
      %v4394 = vmul.f32 %v1921, %v1921
      %v4395 = vmul.f32 %v1923, %v1923
      %v4396 = vmul.f32 %v2274, %v2274
      %v4397 = vmul.f32 %v2276, %v2276
      %v4398 = vmul.f32 %v1221, %v1221
      %v4399 = vmul.f32 %v1223, %v1223
      %v4400 = vmul.f32 %v1574, %v1574
      %v4401 = vmul.f32 %v1576, %v1576
      %v4402 = vmul.f32 %v1927, %v1927
      %v4403 = vmul.f32 %v1929, %v1929
      %v4404 = vmul.f32 %v2280, %v2280
      %v4405 = vmul.f32 %v2282, %v2282
      %v4406 = vmul.f32 %v1225, %v1225
      %v4407 = vmul.f32 %v1227, %v1227
      %v4408 = vmul.f32 %v1578, %v1578
      %v4409 = vmul.f32 %v1580, %v1580
      %v4410 = vmul.f32 %v1931, %v1931
      %v4411 = vmul.f32 %v1933, %v1933
      %v4412 = vmul.f32 %v2284, %v2284
      %v4413 = vmul.f32 %v2286, %v2286
      %v4414 = vmul.f32 %v1231, %v1231
      %v4415 = vmul.f32 %v1233, %v1233
      %v4416 = vmul.f32 %v1584, %v1584
      %v4417 = vmul.f32 %v1586, %v1586
      %v4418 = vmul.f32 %v1937, %v1937
      %v4419 = vmul.f32 %v1939, %v1939
      %v4420 = vmul.f32 %v2290, %v2290
      %v4421 = vmul.f32 %v2292, %v2292
      %v4422 = vmul.f32 %v1235, %v1235
      %v4423 = vmul.f32 %v1237, %v1237
      %v4424 = vmul.f32 %v1588, %v1588
      %v4425 = vmul.f32 %v1590, %v1590
      %v4426 = vmul.f32 %v1941, %v1941
      %v4427 = vmul.f32 %v1943, %v1943
      %v4428 = vmul.f32 %v2294, %v2294
      %v4429 = vmul.f32 %v2296, %v2296
      %v4430 = vmul.f32 %v1241, %v1241
      %v4431 = vmul.f32 %v1243, %v1243
      %v4432 = vmul.f32 %v1594, %v1594
      %v4433 = vmul.f32 %v1596, %v1596
      %v4434 = vmul.f32 %v1947, %v1947
      %v4435 = vmul.f32 %v1949, %v1949
      %v4436 = vmul.f32 %v2300, %v2300
      %v4437 = vmul.f32 %v2302, %v2302
      %v4438 = vmul.f32 %v1245, %v1245
      %v4439 = vmul.f32 %v1247, %v1247
      %v4440 = vmul.f32 %v1598, %v1598
      %v4441 = vmul.f32 %v1600, %v1600
      %v4442 = vmul.f32 %v1951, %v1951
      %v4443 = vmul.f32 %v1953, %v1953
      %v4444 = vmul.f32 %v2304, %v2304
      %v4445 = vmul.f32 %v2306, %v2306
      %v4446 = vmul.f32 %v1251, %v1251
      %v4447 = vmul.f32 %v1253, %v1253
      %v4448 = vmul.f32 %v1604, %v1604
      %v4449 = vmul.f32 %v1606, %v1606
      %v4450 = vmul.f32 %v1957, %v1957
      %v4451 = vmul.f32 %v1959, %v1959
      %v4452 = vmul.f32 %v2310, %v2310
      %v4453 = vmul.f32 %v2312, %v2312
      %v4454 = vmul.f32 %v1255, %v1255
      %v4455 = vmul.f32 %v1257, %v1257
      %v4456 = vmul.f32 %v1608, %v1608
      %v4457 = vmul.f32 %v1610, %v1610
      %v4458 = vmul.f32 %v1961, %v1961
      %v4459 = vmul.f32 %v1963, %v1963
      %v4460 = vmul.f32 %v2314, %v2314
      %v4461 = vmul.f32 %v2316, %v2316
      %v4462 = vmul.f32 %v1261, %v1261
      %v4463 = vmul.f32 %v1263, %v1263
      %v4464 = vmul.f32 %v1614, %v1614
      %v4465 = vmul.f32 %v1616, %v1616
      %v4466 = vmul.f32 %v1967, %v1967
      %v4467 = vmul.f32 %v1969, %v1969
      %v4468 = vmul.f32 %v2320, %v2320
      %v4469 = vmul.f32 %v2322, %v2322
      %v4470 = vmul.f32 %v1265, %v1265
      %v4471 = vmul.f32 %v1267, %v1267
      %v4472 = vmul.f32 %v1618, %v1618
      %v4473 = vmul.f32 %v1620, %v1620
      %v4474 = vmul.f32 %v1971, %v1971
      %v4475 = vmul.f32 %v1973, %v1973
      %v4476 = vmul.f32 %v2324, %v2324
      %v4477 = vmul.f32 %v2326, %v2326
      %v4478 = vmul.f32 %v1271, %v1271
      %v4479 = vmul.f32 %v1273, %v1273
      %v4480 = vmul.f32 %v1624, %v1624
      %v4481 = vmul.f32 %v1626, %v1626
      %v4482 = vmul.f32 %v1977, %v1977
      %v4483 = vmul.f32 %v1979, %v1979
      %v4484 = vmul.f32 %v2330, %v2330
      %v4485 = vmul.f32 %v2332, %v2332
      %v4486 = vmul.f32 %v1275, %v1275
      %v4487 = vmul.f32 %v1277, %v1277
      %v4488 = vmul.f32 %v1628, %v1628
      %v4489 = vmul.f32 %v1630, %v1630
      %v4490 = vmul.f32 %v1981, %v1981
      %v4491 = vmul.f32 %v1983, %v1983
      %v4492 = vmul.f32 %v2334, %v2334
      %v4493 = vmul.f32 %v2336, %v2336
      %v4494 = vmul.f32 %v1281, %v1281
      %v4495 = vmul.f32 %v1283, %v1283
      %v4496 = vmul.f32 %v1634, %v1634
      %v4497 = vmul.f32 %v1636, %v1636
      %v4498 = vmul.f32 %v1987, %v1987
      %v4499 = vmul.f32 %v1989, %v1989
      %v4500 = vmul.f32 %v2340, %v2340
      %v4501 = vmul.f32 %v2342, %v2342
      %v4502 = vmul.f32 %v1285, %v1285
      %v4503 = vmul.f32 %v1287, %v1287
      %v4504 = vmul.f32 %v1638, %v1638
      %v4505 = vmul.f32 %v1640, %v1640
      %v4506 = vmul.f32 %v1991, %v1991
      %v4507 = vmul.f32 %v1993, %v1993
      %v4508 = vmul.f32 %v2344, %v2344
      %v4509 = vmul.f32 %v2346, %v2346
      %v4510 = vmul.f32 %v1291, %v1291
      %v4511 = vmul.f32 %v1293, %v1293
      %v4512 = vmul.f32 %v1644, %v1644
      %v4513 = vmul.f32 %v1646, %v1646
      %v4514 = vmul.f32 %v1997, %v1997
      %v4515 = vmul.f32 %v1999, %v1999
      %v4516 = vmul.f32 %v2350, %v2350
      %v4517 = vmul.f32 %v2352, %v2352
      %v4518 = vmul.f32 %v1295, %v1295
      %v4519 = vmul.f32 %v1297, %v1297
      %v4520 = vmul.f32 %v1648, %v1648
      %v4521 = vmul.f32 %v1650, %v1650
      %v4522 = vmul.f32 %v2001, %v2001
      %v4523 = vmul.f32 %v2003, %v2003
      %v4524 = vmul.f32 %v2354, %v2354
      %v4525 = vmul.f32 %v2356, %v2356
      %v4526 = vadd.f32 %v4014, %v4022
      %v4527 = vadd.f32 %v4526, %v4030
      %v4528 = vadd.f32 %v4527, %v4038
      %v4529 = vadd.f32 %v4528, %v4046
      %v4530 = vadd.f32 %v4529, %v4054
      %v4531 = vadd.f32 %v4530, %v4062
      %v4532 = vadd.f32 %v4531, %v4070
      %v4533 = vadd.f32 %v4532, %v4078
      %v4534 = vadd.f32 %v4533, %v4086
      %v4535 = vadd.f32 %v4534, %v4094
      %v4536 = vadd.f32 %v4535, %v4102
      %v4537 = vadd.f32 %v4536, %v4110
      %v4538 = vadd.f32 %v4537, %v4118
      %v4539 = vadd.f32 %v4538, %v4126
      %v4540 = vadd.f32 %v4539, %v4134
      %v4541 = vadd.f32 %v4540, %v4142
      %v4542 = vadd.f32 %v4541, %v4150
      %v4543 = vadd.f32 %v4542, %v4158
      %v4544 = vadd.f32 %v4543, %v4166
      %v4545 = vadd.f32 %v4544, %v4174
      %v4546 = vadd.f32 %v4545, %v4182
      %v4547 = vadd.f32 %v4546, %v4190
      %v4548 = vadd.f32 %v4547, %v4198
      %v4549 = vadd.f32 %v4548, %v4206
      %v4550 = vadd.f32 %v4549, %v4214
      %v4551 = vadd.f32 %v4550, %v4222
      %v4552 = vadd.f32 %v4551, %v4230
      %v4553 = vadd.f32 %v4552, %v4238
      %v4554 = vadd.f32 %v4553, %v4246
      %v4555 = vadd.f32 %v4554, %v4254
      %v4556 = vadd.f32 %v4555, %v4262
      %v4557 = vadd.f32 %v4556, %v4270
      %v4558 = vadd.f32 %v4557, %v4278
      %v4559 = vadd.f32 %v4558, %v4286
      %v4560 = vadd.f32 %v4559, %v4294
      %v4561 = vadd.f32 %v4560, %v4302
      %v4562 = vadd.f32 %v4561, %v4310
      %v4563 = vadd.f32 %v4562, %v4318
      %v4564 = vadd.f32 %v4563, %v4326
      %v4565 = vadd.f32 %v4564, %v4334
      %v4566 = vadd.f32 %v4565, %v4342
      %v4567 = vadd.f32 %v4566, %v4350
      %v4568 = vadd.f32 %v4567, %v4358
      %v4569 = vadd.f32 %v4568, %v4366
      %v4570 = vadd.f32 %v4569, %v4374
      %v4571 = vadd.f32 %v4570, %v4382
      %v4572 = vadd.f32 %v4571, %v4390
      %v4573 = vadd.f32 %v4572, %v4398
      %v4574 = vadd.f32 %v4573, %v4406
      %v4575 = vadd.f32 %v4574, %v4414
      %v4576 = vadd.f32 %v4575, %v4422
      %v4577 = vadd.f32 %v4576, %v4430
      %v4578 = vadd.f32 %v4577, %v4438
      %v4579 = vadd.f32 %v4578, %v4446
      %v4580 = vadd.f32 %v4579, %v4454
      %v4581 = vadd.f32 %v4580, %v4462
      %v4582 = vadd.f32 %v4581, %v4470
      %v4583 = vadd.f32 %v4582, %v4478
      %v4584 = vadd.f32 %v4583, %v4486
      %v4585 = vadd.f32 %v4584, %v4494
      %v4586 = vadd.f32 %v4585, %v4502
      %v4587 = vadd.f32 %v4586, %v4510
      %v4588 = vadd.f32 %v4587, %v4518
      %v4589 = vrot.slane %v4588, 4
      %v4590 = vadd.f32 %v4588, %v4589
      %v4591 = vrot.slane %v4590, 2
      %v4592 = vadd.f32 %v4590, %v4591
      %v4593 = vrot.slane %v4592, 1
      %v4594 = vadd.f32 %v4592, %v4593
      %v4595 = vadd.f32 %v4015, %v4023
      %v4596 = vadd.f32 %v4595, %v4031
      %v4597 = vadd.f32 %v4596, %v4039
      %v4598 = vadd.f32 %v4597, %v4047
      %v4599 = vadd.f32 %v4598, %v4055
      %v4600 = vadd.f32 %v4599, %v4063
      %v4601 = vadd.f32 %v4600, %v4071
      %v4602 = vadd.f32 %v4601, %v4079
      %v4603 = vadd.f32 %v4602, %v4087
      %v4604 = vadd.f32 %v4603, %v4095
      %v4605 = vadd.f32 %v4604, %v4103
      %v4606 = vadd.f32 %v4605, %v4111
      %v4607 = vadd.f32 %v4606, %v4119
      %v4608 = vadd.f32 %v4607, %v4127
      %v4609 = vadd.f32 %v4608, %v4135
      %v4610 = vadd.f32 %v4609, %v4143
      %v4611 = vadd.f32 %v4610, %v4151
      %v4612 = vadd.f32 %v4611, %v4159
      %v4613 = vadd.f32 %v4612, %v4167
      %v4614 = vadd.f32 %v4613, %v4175
      %v4615 = vadd.f32 %v4614, %v4183
      %v4616 = vadd.f32 %v4615, %v4191
      %v4617 = vadd.f32 %v4616, %v4199
      %v4618 = vadd.f32 %v4617, %v4207
      %v4619 = vadd.f32 %v4618, %v4215
      %v4620 = vadd.f32 %v4619, %v4223
      %v4621 = vadd.f32 %v4620, %v4231
      %v4622 = vadd.f32 %v4621, %v4239
      %v4623 = vadd.f32 %v4622, %v4247
      %v4624 = vadd.f32 %v4623, %v4255
      %v4625 = vadd.f32 %v4624, %v4263
      %v4626 = vadd.f32 %v4625, %v4271
      %v4627 = vadd.f32 %v4626, %v4279
      %v4628 = vadd.f32 %v4627, %v4287
      %v4629 = vadd.f32 %v4628, %v4295
      %v4630 = vadd.f32 %v4629, %v4303
      %v4631 = vadd.f32 %v4630, %v4311
      %v4632 = vadd.f32 %v4631, %v4319
      %v4633 = vadd.f32 %v4632, %v4327
      %v4634 = vadd.f32 %v4633, %v4335
      %v4635 = vadd.f32 %v4634, %v4343
      %v4636 = vadd.f32 %v4635, %v4351
      %v4637 = vadd.f32 %v4636, %v4359
      %v4638 = vadd.f32 %v4637, %v4367
      %v4639 = vadd.f32 %v4638, %v4375
      %v4640 = vadd.f32 %v4639, %v4383
      %v4641 = vadd.f32 %v4640, %v4391
      %v4642 = vadd.f32 %v4641, %v4399
      %v4643 = vadd.f32 %v4642, %v4407
      %v4644 = vadd.f32 %v4643, %v4415
      %v4645 = vadd.f32 %v4644, %v4423
      %v4646 = vadd.f32 %v4645, %v4431
      %v4647 = vadd.f32 %v4646, %v4439
      %v4648 = vadd.f32 %v4647, %v4447
      %v4649 = vadd.f32 %v4648, %v4455
      %v4650 = vadd.f32 %v4649, %v4463
      %v4651 = vadd.f32 %v4650, %v4471
      %v4652 = vadd.f32 %v4651, %v4479
      %v4653 = vadd.f32 %v4652, %v4487
      %v4654 = vadd.f32 %v4653, %v4495
      %v4655 = vadd.f32 %v4654, %v4503
      %v4656 = vadd.f32 %v4655, %v4511
      %v4657 = vadd.f32 %v4656, %v4519
      %v4658 = vrot.slane %v4657, 4
      %v4659 = vadd.f32 %v4657, %v4658
      %v4660 = vrot.slane %v4659, 2
      %v4661 = vadd.f32 %v4659, %v4660
      %v4662 = vrot.slane %v4661, 1
      %v4663 = vadd.f32 %v4661, %v4662
      %v4664 = vadd.f32 %v4016, %v4024
      %v4665 = vadd.f32 %v4664, %v4032
      %v4666 = vadd.f32 %v4665, %v4040
      %v4667 = vadd.f32 %v4666, %v4048
      %v4668 = vadd.f32 %v4667, %v4056
      %v4669 = vadd.f32 %v4668, %v4064
      %v4670 = vadd.f32 %v4669, %v4072
      %v4671 = vadd.f32 %v4670, %v4080
      %v4672 = vadd.f32 %v4671, %v4088
      %v4673 = vadd.f32 %v4672, %v4096
      %v4674 = vadd.f32 %v4673, %v4104
      %v4675 = vadd.f32 %v4674, %v4112
      %v4676 = vadd.f32 %v4675, %v4120
      %v4677 = vadd.f32 %v4676, %v4128
      %v4678 = vadd.f32 %v4677, %v4136
      %v4679 = vadd.f32 %v4678, %v4144
      %v4680 = vadd.f32 %v4679, %v4152
      %v4681 = vadd.f32 %v4680, %v4160
      %v4682 = vadd.f32 %v4681, %v4168
      %v4683 = vadd.f32 %v4682, %v4176
      %v4684 = vadd.f32 %v4683, %v4184
      %v4685 = vadd.f32 %v4684, %v4192
      %v4686 = vadd.f32 %v4685, %v4200
      %v4687 = vadd.f32 %v4686, %v4208
      %v4688 = vadd.f32 %v4687, %v4216
      %v4689 = vadd.f32 %v4688, %v4224
      %v4690 = vadd.f32 %v4689, %v4232
      %v4691 = vadd.f32 %v4690, %v4240
      %v4692 = vadd.f32 %v4691, %v4248
      %v4693 = vadd.f32 %v4692, %v4256
      %v4694 = vadd.f32 %v4693, %v4264
      %v4695 = vadd.f32 %v4694, %v4272
      %v4696 = vadd.f32 %v4695, %v4280
      %v4697 = vadd.f32 %v4696, %v4288
      %v4698 = vadd.f32 %v4697, %v4296
      %v4699 = vadd.f32 %v4698, %v4304
      %v4700 = vadd.f32 %v4699, %v4312
      %v4701 = vadd.f32 %v4700, %v4320
      %v4702 = vadd.f32 %v4701, %v4328
      %v4703 = vadd.f32 %v4702, %v4336
      %v4704 = vadd.f32 %v4703, %v4344
      %v4705 = vadd.f32 %v4704, %v4352
      %v4706 = vadd.f32 %v4705, %v4360
      %v4707 = vadd.f32 %v4706, %v4368
      %v4708 = vadd.f32 %v4707, %v4376
      %v4709 = vadd.f32 %v4708, %v4384
      %v4710 = vadd.f32 %v4709, %v4392
      %v4711 = vadd.f32 %v4710, %v4400
      %v4712 = vadd.f32 %v4711, %v4408
      %v4713 = vadd.f32 %v4712, %v4416
      %v4714 = vadd.f32 %v4713, %v4424
      %v4715 = vadd.f32 %v4714, %v4432
      %v4716 = vadd.f32 %v4715, %v4440
      %v4717 = vadd.f32 %v4716, %v4448
      %v4718 = vadd.f32 %v4717, %v4456
      %v4719 = vadd.f32 %v4718, %v4464
      %v4720 = vadd.f32 %v4719, %v4472
      %v4721 = vadd.f32 %v4720, %v4480
      %v4722 = vadd.f32 %v4721, %v4488
      %v4723 = vadd.f32 %v4722, %v4496
      %v4724 = vadd.f32 %v4723, %v4504
      %v4725 = vadd.f32 %v4724, %v4512
      %v4726 = vadd.f32 %v4725, %v4520
      %v4727 = vrot.slane %v4726, 4
      %v4728 = vadd.f32 %v4726, %v4727
      %v4729 = vrot.slane %v4728, 2
      %v4730 = vadd.f32 %v4728, %v4729
      %v4731 = vrot.slane %v4730, 1
      %v4732 = vadd.f32 %v4730, %v4731
      %v4733 = vadd.f32 %v4017, %v4025
      %v4734 = vadd.f32 %v4733, %v4033
      %v4735 = vadd.f32 %v4734, %v4041
      %v4736 = vadd.f32 %v4735, %v4049
      %v4737 = vadd.f32 %v4736, %v4057
      %v4738 = vadd.f32 %v4737, %v4065
      %v4739 = vadd.f32 %v4738, %v4073
      %v4740 = vadd.f32 %v4739, %v4081
      %v4741 = vadd.f32 %v4740, %v4089
      %v4742 = vadd.f32 %v4741, %v4097
      %v4743 = vadd.f32 %v4742, %v4105
      %v4744 = vadd.f32 %v4743, %v4113
      %v4745 = vadd.f32 %v4744, %v4121
      %v4746 = vadd.f32 %v4745, %v4129
      %v4747 = vadd.f32 %v4746, %v4137
      %v4748 = vadd.f32 %v4747, %v4145
      %v4749 = vadd.f32 %v4748, %v4153
      %v4750 = vadd.f32 %v4749, %v4161
      %v4751 = vadd.f32 %v4750, %v4169
      %v4752 = vadd.f32 %v4751, %v4177
      %v4753 = vadd.f32 %v4752, %v4185
      %v4754 = vadd.f32 %v4753, %v4193
      %v4755 = vadd.f32 %v4754, %v4201
      %v4756 = vadd.f32 %v4755, %v4209
      %v4757 = vadd.f32 %v4756, %v4217
      %v4758 = vadd.f32 %v4757, %v4225
      %v4759 = vadd.f32 %v4758, %v4233
      %v4760 = vadd.f32 %v4759, %v4241
      %v4761 = vadd.f32 %v4760, %v4249
      %v4762 = vadd.f32 %v4761, %v4257
      %v4763 = vadd.f32 %v4762, %v4265
      %v4764 = vadd.f32 %v4763, %v4273
      %v4765 = vadd.f32 %v4764, %v4281
      %v4766 = vadd.f32 %v4765, %v4289
      %v4767 = vadd.f32 %v4766, %v4297
      %v4768 = vadd.f32 %v4767, %v4305
      %v4769 = vadd.f32 %v4768, %v4313
      %v4770 = vadd.f32 %v4769, %v4321
      %v4771 = vadd.f32 %v4770, %v4329
      %v4772 = vadd.f32 %v4771, %v4337
      %v4773 = vadd.f32 %v4772, %v4345
      %v4774 = vadd.f32 %v4773, %v4353
      %v4775 = vadd.f32 %v4774, %v4361
      %v4776 = vadd.f32 %v4775, %v4369
      %v4777 = vadd.f32 %v4776, %v4377
      %v4778 = vadd.f32 %v4777, %v4385
      %v4779 = vadd.f32 %v4778, %v4393
      %v4780 = vadd.f32 %v4779, %v4401
      %v4781 = vadd.f32 %v4780, %v4409
      %v4782 = vadd.f32 %v4781, %v4417
      %v4783 = vadd.f32 %v4782, %v4425
      %v4784 = vadd.f32 %v4783, %v4433
      %v4785 = vadd.f32 %v4784, %v4441
      %v4786 = vadd.f32 %v4785, %v4449
      %v4787 = vadd.f32 %v4786, %v4457
      %v4788 = vadd.f32 %v4787, %v4465
      %v4789 = vadd.f32 %v4788, %v4473
      %v4790 = vadd.f32 %v4789, %v4481
      %v4791 = vadd.f32 %v4790, %v4489
      %v4792 = vadd.f32 %v4791, %v4497
      %v4793 = vadd.f32 %v4792, %v4505
      %v4794 = vadd.f32 %v4793, %v4513
      %v4795 = vadd.f32 %v4794, %v4521
      %v4796 = vrot.slane %v4795, 4
      %v4797 = vadd.f32 %v4795, %v4796
      %v4798 = vrot.slane %v4797, 2
      %v4799 = vadd.f32 %v4797, %v4798
      %v4800 = vrot.slane %v4799, 1
      %v4801 = vadd.f32 %v4799, %v4800
      %v4802 = vadd.f32 %v4018, %v4026
      %v4803 = vadd.f32 %v4802, %v4034
      %v4804 = vadd.f32 %v4803, %v4042
      %v4805 = vadd.f32 %v4804, %v4050
      %v4806 = vadd.f32 %v4805, %v4058
      %v4807 = vadd.f32 %v4806, %v4066
      %v4808 = vadd.f32 %v4807, %v4074
      %v4809 = vadd.f32 %v4808, %v4082
      %v4810 = vadd.f32 %v4809, %v4090
      %v4811 = vadd.f32 %v4810, %v4098
      %v4812 = vadd.f32 %v4811, %v4106
      %v4813 = vadd.f32 %v4812, %v4114
      %v4814 = vadd.f32 %v4813, %v4122
      %v4815 = vadd.f32 %v4814, %v4130
      %v4816 = vadd.f32 %v4815, %v4138
      %v4817 = vadd.f32 %v4816, %v4146
      %v4818 = vadd.f32 %v4817, %v4154
      %v4819 = vadd.f32 %v4818, %v4162
      %v4820 = vadd.f32 %v4819, %v4170
      %v4821 = vadd.f32 %v4820, %v4178
      %v4822 = vadd.f32 %v4821, %v4186
      %v4823 = vadd.f32 %v4822, %v4194
      %v4824 = vadd.f32 %v4823, %v4202
      %v4825 = vadd.f32 %v4824, %v4210
      %v4826 = vadd.f32 %v4825, %v4218
      %v4827 = vadd.f32 %v4826, %v4226
      %v4828 = vadd.f32 %v4827, %v4234
      %v4829 = vadd.f32 %v4828, %v4242
      %v4830 = vadd.f32 %v4829, %v4250
      %v4831 = vadd.f32 %v4830, %v4258
      %v4832 = vadd.f32 %v4831, %v4266
      %v4833 = vadd.f32 %v4832, %v4274
      %v4834 = vadd.f32 %v4833, %v4282
      %v4835 = vadd.f32 %v4834, %v4290
      %v4836 = vadd.f32 %v4835, %v4298
      %v4837 = vadd.f32 %v4836, %v4306
      %v4838 = vadd.f32 %v4837, %v4314
      %v4839 = vadd.f32 %v4838, %v4322
      %v4840 = vadd.f32 %v4839, %v4330
      %v4841 = vadd.f32 %v4840, %v4338
      %v4842 = vadd.f32 %v4841, %v4346
      %v4843 = vadd.f32 %v4842, %v4354
      %v4844 = vadd.f32 %v4843, %v4362
      %v4845 = vadd.f32 %v4844, %v4370
      %v4846 = vadd.f32 %v4845, %v4378
      %v4847 = vadd.f32 %v4846, %v4386
      %v4848 = vadd.f32 %v4847, %v4394
      %v4849 = vadd.f32 %v4848, %v4402
      %v4850 = vadd.f32 %v4849, %v4410
      %v4851 = vadd.f32 %v4850, %v4418
      %v4852 = vadd.f32 %v4851, %v4426
      %v4853 = vadd.f32 %v4852, %v4434
      %v4854 = vadd.f32 %v4853, %v4442
      %v4855 = vadd.f32 %v4854, %v4450
      %v4856 = vadd.f32 %v4855, %v4458
      %v4857 = vadd.f32 %v4856, %v4466
      %v4858 = vadd.f32 %v4857, %v4474
      %v4859 = vadd.f32 %v4858, %v4482
      %v4860 = vadd.f32 %v4859, %v4490
      %v4861 = vadd.f32 %v4860, %v4498
      %v4862 = vadd.f32 %v4861, %v4506
      %v4863 = vadd.f32 %v4862, %v4514
      %v4864 = vadd.f32 %v4863, %v4522
      %v4865 = vrot.slane %v4864, 4
      %v4866 = vadd.f32 %v4864, %v4865
      %v4867 = vrot.slane %v4866, 2
      %v4868 = vadd.f32 %v4866, %v4867
      %v4869 = vrot.slane %v4868, 1
      %v4870 = vadd.f32 %v4868, %v4869
      %v4871 = vadd.f32 %v4019, %v4027
      %v4872 = vadd.f32 %v4871, %v4035
      %v4873 = vadd.f32 %v4872, %v4043
      %v4874 = vadd.f32 %v4873, %v4051
      %v4875 = vadd.f32 %v4874, %v4059
      %v4876 = vadd.f32 %v4875, %v4067
      %v4877 = vadd.f32 %v4876, %v4075
      %v4878 = vadd.f32 %v4877, %v4083
      %v4879 = vadd.f32 %v4878, %v4091
      %v4880 = vadd.f32 %v4879, %v4099
      %v4881 = vadd.f32 %v4880, %v4107
      %v4882 = vadd.f32 %v4881, %v4115
      %v4883 = vadd.f32 %v4882, %v4123
      %v4884 = vadd.f32 %v4883, %v4131
      %v4885 = vadd.f32 %v4884, %v4139
      %v4886 = vadd.f32 %v4885, %v4147
      %v4887 = vadd.f32 %v4886, %v4155
      %v4888 = vadd.f32 %v4887, %v4163
      %v4889 = vadd.f32 %v4888, %v4171
      %v4890 = vadd.f32 %v4889, %v4179
      %v4891 = vadd.f32 %v4890, %v4187
      %v4892 = vadd.f32 %v4891, %v4195
      %v4893 = vadd.f32 %v4892, %v4203
      %v4894 = vadd.f32 %v4893, %v4211
      %v4895 = vadd.f32 %v4894, %v4219
      %v4896 = vadd.f32 %v4895, %v4227
      %v4897 = vadd.f32 %v4896, %v4235
      %v4898 = vadd.f32 %v4897, %v4243
      %v4899 = vadd.f32 %v4898, %v4251
      %v4900 = vadd.f32 %v4899, %v4259
      %v4901 = vadd.f32 %v4900, %v4267
      %v4902 = vadd.f32 %v4901, %v4275
      %v4903 = vadd.f32 %v4902, %v4283
      %v4904 = vadd.f32 %v4903, %v4291
      %v4905 = vadd.f32 %v4904, %v4299
      %v4906 = vadd.f32 %v4905, %v4307
      %v4907 = vadd.f32 %v4906, %v4315
      %v4908 = vadd.f32 %v4907, %v4323
      %v4909 = vadd.f32 %v4908, %v4331
      %v4910 = vadd.f32 %v4909, %v4339
      %v4911 = vadd.f32 %v4910, %v4347
      %v4912 = vadd.f32 %v4911, %v4355
      %v4913 = vadd.f32 %v4912, %v4363
      %v4914 = vadd.f32 %v4913, %v4371
      %v4915 = vadd.f32 %v4914, %v4379
      %v4916 = vadd.f32 %v4915, %v4387
      %v4917 = vadd.f32 %v4916, %v4395
      %v4918 = vadd.f32 %v4917, %v4403
      %v4919 = vadd.f32 %v4918, %v4411
      %v4920 = vadd.f32 %v4919, %v4419
      %v4921 = vadd.f32 %v4920, %v4427
      %v4922 = vadd.f32 %v4921, %v4435
      %v4923 = vadd.f32 %v4922, %v4443
      %v4924 = vadd.f32 %v4923, %v4451
      %v4925 = vadd.f32 %v4924, %v4459
      %v4926 = vadd.f32 %v4925, %v4467
      %v4927 = vadd.f32 %v4926, %v4475
      %v4928 = vadd.f32 %v4927, %v4483
      %v4929 = vadd.f32 %v4928, %v4491
      %v4930 = vadd.f32 %v4929, %v4499
      %v4931 = vadd.f32 %v4930, %v4507
      %v4932 = vadd.f32 %v4931, %v4515
      %v4933 = vadd.f32 %v4932, %v4523
      %v4934 = vrot.slane %v4933, 4
      %v4935 = vadd.f32 %v4933, %v4934
      %v4936 = vrot.slane %v4935, 2
      %v4937 = vadd.f32 %v4935, %v4936
      %v4938 = vrot.slane %v4937, 1
      %v4939 = vadd.f32 %v4937, %v4938
      %v4940 = vadd.f32 %v4020, %v4028
      %v4941 = vadd.f32 %v4940, %v4036
      %v4942 = vadd.f32 %v4941, %v4044
      %v4943 = vadd.f32 %v4942, %v4052
      %v4944 = vadd.f32 %v4943, %v4060
      %v4945 = vadd.f32 %v4944, %v4068
      %v4946 = vadd.f32 %v4945, %v4076
      %v4947 = vadd.f32 %v4946, %v4084
      %v4948 = vadd.f32 %v4947, %v4092
      %v4949 = vadd.f32 %v4948, %v4100
      %v4950 = vadd.f32 %v4949, %v4108
      %v4951 = vadd.f32 %v4950, %v4116
      %v4952 = vadd.f32 %v4951, %v4124
      %v4953 = vadd.f32 %v4952, %v4132
      %v4954 = vadd.f32 %v4953, %v4140
      %v4955 = vadd.f32 %v4954, %v4148
      %v4956 = vadd.f32 %v4955, %v4156
      %v4957 = vadd.f32 %v4956, %v4164
      %v4958 = vadd.f32 %v4957, %v4172
      %v4959 = vadd.f32 %v4958, %v4180
      %v4960 = vadd.f32 %v4959, %v4188
      %v4961 = vadd.f32 %v4960, %v4196
      %v4962 = vadd.f32 %v4961, %v4204
      %v4963 = vadd.f32 %v4962, %v4212
      %v4964 = vadd.f32 %v4963, %v4220
      %v4965 = vadd.f32 %v4964, %v4228
      %v4966 = vadd.f32 %v4965, %v4236
      %v4967 = vadd.f32 %v4966, %v4244
      %v4968 = vadd.f32 %v4967, %v4252
      %v4969 = vadd.f32 %v4968, %v4260
      %v4970 = vadd.f32 %v4969, %v4268
      %v4971 = vadd.f32 %v4970, %v4276
      %v4972 = vadd.f32 %v4971, %v4284
      %v4973 = vadd.f32 %v4972, %v4292
      %v4974 = vadd.f32 %v4973, %v4300
      %v4975 = vadd.f32 %v4974, %v4308
      %v4976 = vadd.f32 %v4975, %v4316
      %v4977 = vadd.f32 %v4976, %v4324
      %v4978 = vadd.f32 %v4977, %v4332
      %v4979 = vadd.f32 %v4978, %v4340
      %v4980 = vadd.f32 %v4979, %v4348
      %v4981 = vadd.f32 %v4980, %v4356
      %v4982 = vadd.f32 %v4981, %v4364
      %v4983 = vadd.f32 %v4982, %v4372
      %v4984 = vadd.f32 %v4983, %v4380
      %v4985 = vadd.f32 %v4984, %v4388
      %v4986 = vadd.f32 %v4985, %v4396
      %v4987 = vadd.f32 %v4986, %v4404
      %v4988 = vadd.f32 %v4987, %v4412
      %v4989 = vadd.f32 %v4988, %v4420
      %v4990 = vadd.f32 %v4989, %v4428
      %v4991 = vadd.f32 %v4990, %v4436
      %v4992 = vadd.f32 %v4991, %v4444
      %v4993 = vadd.f32 %v4992, %v4452
      %v4994 = vadd.f32 %v4993, %v4460
      %v4995 = vadd.f32 %v4994, %v4468
      %v4996 = vadd.f32 %v4995, %v4476
      %v4997 = vadd.f32 %v4996, %v4484
      %v4998 = vadd.f32 %v4997, %v4492
      %v4999 = vadd.f32 %v4998, %v4500
      %v5000 = vadd.f32 %v4999, %v4508
      %v5001 = vadd.f32 %v5000, %v4516
      %v5002 = vadd.f32 %v5001, %v4524
      %v5003 = vrot.slane %v5002, 4
      %v5004 = vadd.f32 %v5002, %v5003
      %v5005 = vrot.slane %v5004, 2
      %v5006 = vadd.f32 %v5004, %v5005
      %v5007 = vrot.slane %v5006, 1
      %v5008 = vadd.f32 %v5006, %v5007
      %v5009 = vadd.f32 %v4021, %v4029
      %v5010 = vadd.f32 %v5009, %v4037
      %v5011 = vadd.f32 %v5010, %v4045
      %v5012 = vadd.f32 %v5011, %v4053
      %v5013 = vadd.f32 %v5012, %v4061
      %v5014 = vadd.f32 %v5013, %v4069
      %v5015 = vadd.f32 %v5014, %v4077
      %v5016 = vadd.f32 %v5015, %v4085
      %v5017 = vadd.f32 %v5016, %v4093
      %v5018 = vadd.f32 %v5017, %v4101
      %v5019 = vadd.f32 %v5018, %v4109
      %v5020 = vadd.f32 %v5019, %v4117
      %v5021 = vadd.f32 %v5020, %v4125
      %v5022 = vadd.f32 %v5021, %v4133
      %v5023 = vadd.f32 %v5022, %v4141
      %v5024 = vadd.f32 %v5023, %v4149
      %v5025 = vadd.f32 %v5024, %v4157
      %v5026 = vadd.f32 %v5025, %v4165
      %v5027 = vadd.f32 %v5026, %v4173
      %v5028 = vadd.f32 %v5027, %v4181
      %v5029 = vadd.f32 %v5028, %v4189
      %v5030 = vadd.f32 %v5029, %v4197
      %v5031 = vadd.f32 %v5030, %v4205
      %v5032 = vadd.f32 %v5031, %v4213
      %v5033 = vadd.f32 %v5032, %v4221
      %v5034 = vadd.f32 %v5033, %v4229
      %v5035 = vadd.f32 %v5034, %v4237
      %v5036 = vadd.f32 %v5035, %v4245
      %v5037 = vadd.f32 %v5036, %v4253
      %v5038 = vadd.f32 %v5037, %v4261
      %v5039 = vadd.f32 %v5038, %v4269
      %v5040 = vadd.f32 %v5039, %v4277
      %v5041 = vadd.f32 %v5040, %v4285
      %v5042 = vadd.f32 %v5041, %v4293
      %v5043 = vadd.f32 %v5042, %v4301
      %v5044 = vadd.f32 %v5043, %v4309
      %v5045 = vadd.f32 %v5044, %v4317
      %v5046 = vadd.f32 %v5045, %v4325
      %v5047 = vadd.f32 %v5046, %v4333
      %v5048 = vadd.f32 %v5047, %v4341
      %v5049 = vadd.f32 %v5048, %v4349
      %v5050 = vadd.f32 %v5049, %v4357
      %v5051 = vadd.f32 %v5050, %v4365
      %v5052 = vadd.f32 %v5051, %v4373
      %v5053 = vadd.f32 %v5052, %v4381
      %v5054 = vadd.f32 %v5053, %v4389
      %v5055 = vadd.f32 %v5054, %v4397
      %v5056 = vadd.f32 %v5055, %v4405
      %v5057 = vadd.f32 %v5056, %v4413
      %v5058 = vadd.f32 %v5057, %v4421
      %v5059 = vadd.f32 %v5058, %v4429
      %v5060 = vadd.f32 %v5059, %v4437
      %v5061 = vadd.f32 %v5060, %v4445
      %v5062 = vadd.f32 %v5061, %v4453
      %v5063 = vadd.f32 %v5062, %v4461
      %v5064 = vadd.f32 %v5063, %v4469
      %v5065 = vadd.f32 %v5064, %v4477
      %v5066 = vadd.f32 %v5065, %v4485
      %v5067 = vadd.f32 %v5066, %v4493
      %v5068 = vadd.f32 %v5067, %v4501
      %v5069 = vadd.f32 %v5068, %v4509
      %v5070 = vadd.f32 %v5069, %v4517
      %v5071 = vadd.f32 %v5070, %v4525
      %v5072 = vrot.slane %v5071, 4
      %v5073 = vadd.f32 %v5071, %v5072
      %v5074 = vrot.slane %v5073, 2
      %v5075 = vadd.f32 %v5073, %v5074
      %v5076 = vrot.slane %v5075, 1
      %v5077 = vadd.f32 %v5075, %v5076
      %p5078 = scmp.eq.s32.totalorder %s19, 0
      // Predicated region
      $region33: #{pointnet_encoder_forward.8} parent=31 // pred_check
        %p5079 = pneg %p5078
      $region34: #{pointnet_encoder_forward.8} parent=31 // pred_check_branch
        %5081 = sbr.rel (%p5079) target = $region36
      $region35: #{pointnet_encoder_forward.8} parent=31 // pred_region
        %v5090 = vcombine.low %v2426, %v2495
        %v5091 = vcombine.low %v2564, %v2633
        %v5092 = vcombine.low %v2702, %v2771
        %v5093 = vcombine.low %v2840, %v2909
        %v5095 = vunpack.c.l.s4 1966171168
        %v5096 = vunpack.c.0.s8 %v5095
        %v5097 = vlaneseq
        %v5098 = vshrl.u32 %v5097, 7
        %v5099 = vsub.s32 %v5096, %v5098
        %v5100 = vrot.slane %v5090, %v5099
        %v5102 = vunpack.c.l.s4 1966171168
        %v5103 = vunpack.c.0.s8 %v5102
        %v5104 = vlaneseq
        %v5105 = vshrl.u32 %v5104, 7
        %v5106 = vsub.s32 %v5103, %v5105
        %v5107 = vrot.slane %v5091, %v5106
        %v5109 = vunpack.c.l.s4 1966171168
        %v5110 = vunpack.c.0.s8 %v5109
        %v5111 = vlaneseq
        %v5112 = vshrl.u32 %v5111, 7
        %v5113 = vsub.s32 %v5110, %v5112
        %v5114 = vrot.slane %v5092, %v5113
        %v5116 = vunpack.c.l.s4 1966171168
        %v5117 = vunpack.c.0.s8 %v5116
        %v5118 = vlaneseq
        %v5119 = vshrl.u32 %v5118, 7
        %v5120 = vsub.s32 %v5117, %v5119
        %v5121 = vrot.slane %v5093, %v5120
        %v5122 = vcombine.low %v5100, %v5107
        %v5123 = vcombine.low %v5114, %v5121
        %v5125 = vunpack.c.l.s4 1966171168
        %v5126 = vunpack.c.0.s8 %v5125
        %v5127 = vlaneseq
        %v5128 = vshrl.u32 %v5127, 7
        %v5129 = vsub.s32 %v5126, %v5128
        %v5130 = vrot.slane %v5122, %v5129
        %v5132 = vunpack.c.l.s4 1966171168
        %v5133 = vunpack.c.0.s8 %v5132
        %v5134 = vlaneseq
        %v5135 = vshrl.u32 %v5134, 7
        %v5136 = vsub.s32 %v5133, %v5135
        %v5137 = vrot.slane %v5123, %v5136
        %v5138 = vcombine.low %v5130, %v5137
        %5140 = vst [vmem:[%s198] ss:$4 sm:$0xff] %v5138
        %v5149 = vcombine.low %v2978, %v3047
        %v5150 = vcombine.low %v3116, %v3185
        %v5151 = vcombine.low %v3254, %v3323
        %v5152 = vcombine.low %v3392, %v3461
        %v5154 = vunpack.c.l.s4 1966171168
        %v5155 = vunpack.c.0.s8 %v5154
        %v5156 = vlaneseq
        %v5157 = vshrl.u32 %v5156, 7
        %v5158 = vsub.s32 %v5155, %v5157
        %v5159 = vrot.slane %v5149, %v5158
        %v5161 = vunpack.c.l.s4 1966171168
        %v5162 = vunpack.c.0.s8 %v5161
        %v5163 = vlaneseq
        %v5164 = vshrl.u32 %v5163, 7
        %v5165 = vsub.s32 %v5162, %v5164
        %v5166 = vrot.slane %v5150, %v5165
        %v5168 = vunpack.c.l.s4 1966171168
        %v5169 = vunpack.c.0.s8 %v5168
        %v5170 = vlaneseq
        %v5171 = vshrl.u32 %v5170, 7
        %v5172 = vsub.s32 %v5169, %v5171
        %v5173 = vrot.slane %v5151, %v5172
        %v5175 = vunpack.c.l.s4 1966171168
        %v5176 = vunpack.c.0.s8 %v5175
        %v5177 = vlaneseq
        %v5178 = vshrl.u32 %v5177, 7
        %v5179 = vsub.s32 %v5176, %v5178
        %v5180 = vrot.slane %v5152, %v5179
        %v5181 = vcombine.low %v5159, %v5166
        %v5182 = vcombine.low %v5173, %v5180
        %v5184 = vunpack.c.l.s4 1966171168
        %v5185 = vunpack.c.0.s8 %v5184
        %v5186 = vlaneseq
        %v5187 = vshrl.u32 %v5186, 7
        %v5188 = vsub.s32 %v5185, %v5187
        %v5189 = vrot.slane %v5181, %v5188
        %v5191 = vunpack.c.l.s4 1966171168
        %v5192 = vunpack.c.0.s8 %v5191
        %v5193 = vlaneseq
        %v5194 = vshrl.u32 %v5193, 7
        %v5195 = vsub.s32 %v5192, %v5194
        %v5196 = vrot.slane %v5182, %v5195
        %v5197 = vcombine.low %v5189, %v5196
        %s5199 = scalar_lea.vmem %s198, 1
        %5200 = vst [vmem:[%s5199] ss:$4 sm:$0xff] %v5197
        %v5209 = vcombine.low %v3530, %v3599
        %v5210 = vcombine.low %v3668, %v3737
        %v5211 = vcombine.low %v3806, %v3875
        %v5212 = vcombine.low %v3944, %v4013
        %v5214 = vunpack.c.l.s4 1966171168
        %v5215 = vunpack.c.0.s8 %v5214
        %v5216 = vlaneseq
        %v5217 = vshrl.u32 %v5216, 7
        %v5218 = vsub.s32 %v5215, %v5217
        %v5219 = vrot.slane %v5209, %v5218
        %v5221 = vunpack.c.l.s4 1966171168
        %v5222 = vunpack.c.0.s8 %v5221
        %v5223 = vlaneseq
        %v5224 = vshrl.u32 %v5223, 7
        %v5225 = vsub.s32 %v5222, %v5224
        %v5226 = vrot.slane %v5210, %v5225
        %v5228 = vunpack.c.l.s4 1966171168
        %v5229 = vunpack.c.0.s8 %v5228
        %v5230 = vlaneseq
        %v5231 = vshrl.u32 %v5230, 7
        %v5232 = vsub.s32 %v5229, %v5231
        %v5233 = vrot.slane %v5211, %v5232
        %v5235 = vunpack.c.l.s4 1966171168
        %v5236 = vunpack.c.0.s8 %v5235
        %v5237 = vlaneseq
        %v5238 = vshrl.u32 %v5237, 7
        %v5239 = vsub.s32 %v5236, %v5238
        %v5240 = vrot.slane %v5212, %v5239
        %v5241 = vcombine.low %v5219, %v5226
        %v5242 = vcombine.low %v5233, %v5240
        %v5244 = vunpack.c.l.s4 1966171168
        %v5245 = vunpack.c.0.s8 %v5244
        %v5246 = vlaneseq
        %v5247 = vshrl.u32 %v5246, 7
        %v5248 = vsub.s32 %v5245, %v5247
        %v5249 = vrot.slane %v5241, %v5248
        %v5251 = vunpack.c.l.s4 1966171168
        %v5252 = vunpack.c.0.s8 %v5251
        %v5253 = vlaneseq
        %v5254 = vshrl.u32 %v5253, 7
        %v5255 = vsub.s32 %v5252, %v5254
        %v5256 = vrot.slane %v5242, %v5255
        %v5257 = vcombine.low %v5249, %v5256
        %s5259 = scalar_lea.vmem %s198, 2
        %5260 = vst [vmem:[%s5259] ss:$4 sm:$0xff] %v5257
        %v5269 = vcombine.low %v4594, %v4663
        %v5270 = vcombine.low %v4732, %v4801
        %v5271 = vcombine.low %v4870, %v4939
        %v5272 = vcombine.low %v5008, %v5077
        %v5274 = vunpack.c.l.s4 1966171168
        %v5275 = vunpack.c.0.s8 %v5274
        %v5276 = vlaneseq
        %v5277 = vshrl.u32 %v5276, 7
        %v5278 = vsub.s32 %v5275, %v5277
        %v5279 = vrot.slane %v5269, %v5278
        %v5281 = vunpack.c.l.s4 1966171168
        %v5282 = vunpack.c.0.s8 %v5281
        %v5283 = vlaneseq
        %v5284 = vshrl.u32 %v5283, 7
        %v5285 = vsub.s32 %v5282, %v5284
        %v5286 = vrot.slane %v5270, %v5285
        %v5288 = vunpack.c.l.s4 1966171168
        %v5289 = vunpack.c.0.s8 %v5288
        %v5290 = vlaneseq
        %v5291 = vshrl.u32 %v5290, 7
        %v5292 = vsub.s32 %v5289, %v5291
        %v5293 = vrot.slane %v5271, %v5292
        %v5295 = vunpack.c.l.s4 1966171168
        %v5296 = vunpack.c.0.s8 %v5295
        %v5297 = vlaneseq
        %v5298 = vshrl.u32 %v5297, 7
        %v5299 = vsub.s32 %v5296, %v5298
        %v5300 = vrot.slane %v5272, %v5299
        %v5301 = vcombine.low %v5279, %v5286
        %v5302 = vcombine.low %v5293, %v5300
        %v5304 = vunpack.c.l.s4 1966171168
        %v5305 = vunpack.c.0.s8 %v5304
        %v5306 = vlaneseq
        %v5307 = vshrl.u32 %v5306, 7
        %v5308 = vsub.s32 %v5305, %v5307
        %v5309 = vrot.slane %v5301, %v5308
        %v5311 = vunpack.c.l.s4 1966171168
        %v5312 = vunpack.c.0.s8 %v5311
        %v5313 = vlaneseq
        %v5314 = vshrl.u32 %v5313, 7
        %v5315 = vsub.s32 %v5312, %v5314
        %v5316 = vrot.slane %v5302, %v5315
        %v5317 = vcombine.low %v5309, %v5316
        %s5319 = scalar_lea.vmem %s198, 3
        %5320 = vst [vmem:[%s5319] ss:$4 sm:$0xff] %v5317
      $region36: #{pointnet_encoder_forward.8} parent=31 // pred_fallthru
        _
      %p5321 = scmp.gt.s32.totalorder %s19, 0
      // Predicated region
      $region37: #{pointnet_encoder_forward.8} parent=31 // pred_check
        %p5322 = pneg %p5321
      $region38: #{pointnet_encoder_forward.8} parent=31 // pred_check_branch
        %5324 = sbr.rel (%p5322) target = $region40
      $region39: #{pointnet_encoder_forward.8} parent=31 // pred_region
        %v5325 = vld [vmem:[%s198] ss:$4 sm:$0xff]
        %v5334 = vcombine.low %v2426, %v2495
        %v5335 = vcombine.low %v2564, %v2633
        %v5336 = vcombine.low %v2702, %v2771
        %v5337 = vcombine.low %v2840, %v2909
        %v5339 = vunpack.c.l.s4 1966171168
        %v5340 = vunpack.c.0.s8 %v5339
        %v5341 = vlaneseq
        %v5342 = vshrl.u32 %v5341, 7
        %v5343 = vsub.s32 %v5340, %v5342
        %v5344 = vrot.slane %v5334, %v5343
        %v5346 = vunpack.c.l.s4 1966171168
        %v5347 = vunpack.c.0.s8 %v5346
        %v5348 = vlaneseq
        %v5349 = vshrl.u32 %v5348, 7
        %v5350 = vsub.s32 %v5347, %v5349
        %v5351 = vrot.slane %v5335, %v5350
        %v5353 = vunpack.c.l.s4 1966171168
        %v5354 = vunpack.c.0.s8 %v5353
        %v5355 = vlaneseq
        %v5356 = vshrl.u32 %v5355, 7
        %v5357 = vsub.s32 %v5354, %v5356
        %v5358 = vrot.slane %v5336, %v5357
        %v5360 = vunpack.c.l.s4 1966171168
        %v5361 = vunpack.c.0.s8 %v5360
        %v5362 = vlaneseq
        %v5363 = vshrl.u32 %v5362, 7
        %v5364 = vsub.s32 %v5361, %v5363
        %v5365 = vrot.slane %v5337, %v5364
        %v5366 = vcombine.low %v5344, %v5351
        %v5367 = vcombine.low %v5358, %v5365
        %v5369 = vunpack.c.l.s4 1966171168
        %v5370 = vunpack.c.0.s8 %v5369
        %v5371 = vlaneseq
        %v5372 = vshrl.u32 %v5371, 7
        %v5373 = vsub.s32 %v5370, %v5372
        %v5374 = vrot.slane %v5366, %v5373
        %v5376 = vunpack.c.l.s4 1966171168
        %v5377 = vunpack.c.0.s8 %v5376
        %v5378 = vlaneseq
        %v5379 = vshrl.u32 %v5378, 7
        %v5380 = vsub.s32 %v5377, %v5379
        %v5381 = vrot.slane %v5367, %v5380
        %v5382 = vcombine.low %v5374, %v5381
        %v5384 = vmax.f32 %v5325, %v5382
        %5385 = vst [vmem:[%s198] ss:$4 sm:$0xff] %v5384
        %s5386 = scalar_lea.vmem %s198, 1
        %v5387 = vld [vmem:[%s5386] ss:$4 sm:$0xff]
        %v5396 = vcombine.low %v2978, %v3047
        %v5397 = vcombine.low %v3116, %v3185
        %v5398 = vcombine.low %v3254, %v3323
        %v5399 = vcombine.low %v3392, %v3461
        %v5401 = vunpack.c.l.s4 1966171168
        %v5402 = vunpack.c.0.s8 %v5401
        %v5403 = vlaneseq
        %v5404 = vshrl.u32 %v5403, 7
        %v5405 = vsub.s32 %v5402, %v5404
        %v5406 = vrot.slane %v5396, %v5405
        %v5408 = vunpack.c.l.s4 1966171168
        %v5409 = vunpack.c.0.s8 %v5408
        %v5410 = vlaneseq
        %v5411 = vshrl.u32 %v5410, 7
        %v5412 = vsub.s32 %v5409, %v5411
        %v5413 = vrot.slane %v5397, %v5412
        %v5415 = vunpack.c.l.s4 1966171168
        %v5416 = vunpack.c.0.s8 %v5415
        %v5417 = vlaneseq
        %v5418 = vshrl.u32 %v5417, 7
        %v5419 = vsub.s32 %v5416, %v5418
        %v5420 = vrot.slane %v5398, %v5419
        %v5422 = vunpack.c.l.s4 1966171168
        %v5423 = vunpack.c.0.s8 %v5422
        %v5424 = vlaneseq
        %v5425 = vshrl.u32 %v5424, 7
        %v5426 = vsub.s32 %v5423, %v5425
        %v5427 = vrot.slane %v5399, %v5426
        %v5428 = vcombine.low %v5406, %v5413
        %v5429 = vcombine.low %v5420, %v5427
        %v5431 = vunpack.c.l.s4 1966171168
        %v5432 = vunpack.c.0.s8 %v5431
        %v5433 = vlaneseq
        %v5434 = vshrl.u32 %v5433, 7
        %v5435 = vsub.s32 %v5432, %v5434
        %v5436 = vrot.slane %v5428, %v5435
        %v5438 = vunpack.c.l.s4 1966171168
        %v5439 = vunpack.c.0.s8 %v5438
        %v5440 = vlaneseq
        %v5441 = vshrl.u32 %v5440, 7
        %v5442 = vsub.s32 %v5439, %v5441
        %v5443 = vrot.slane %v5429, %v5442
        %v5444 = vcombine.low %v5436, %v5443
        %v5446 = vmin.f32 %v5387, %v5444
        %5447 = vst [vmem:[%s5386] ss:$4 sm:$0xff] %v5446
        %s5448 = scalar_lea.vmem %s198, 2
        %v5449 = vld [vmem:[%s5448] ss:$4 sm:$0xff]
        %v5458 = vcombine.low %v3530, %v3599
        %v5459 = vcombine.low %v3668, %v3737
        %v5460 = vcombine.low %v3806, %v3875
        %v5461 = vcombine.low %v3944, %v4013
        %v5463 = vunpack.c.l.s4 1966171168
        %v5464 = vunpack.c.0.s8 %v5463
        %v5465 = vlaneseq
        %v5466 = vshrl.u32 %v5465, 7
        %v5467 = vsub.s32 %v5464, %v5466
        %v5468 = vrot.slane %v5458, %v5467
        %v5470 = vunpack.c.l.s4 1966171168
        %v5471 = vunpack.c.0.s8 %v5470
        %v5472 = vlaneseq
        %v5473 = vshrl.u32 %v5472, 7
        %v5474 = vsub.s32 %v5471, %v5473
        %v5475 = vrot.slane %v5459, %v5474
        %v5477 = vunpack.c.l.s4 1966171168
        %v5478 = vunpack.c.0.s8 %v5477
        %v5479 = vlaneseq
        %v5480 = vshrl.u32 %v5479, 7
        %v5481 = vsub.s32 %v5478, %v5480
        %v5482 = vrot.slane %v5460, %v5481
        %v5484 = vunpack.c.l.s4 1966171168
        %v5485 = vunpack.c.0.s8 %v5484
        %v5486 = vlaneseq
        %v5487 = vshrl.u32 %v5486, 7
        %v5488 = vsub.s32 %v5485, %v5487
        %v5489 = vrot.slane %v5461, %v5488
        %v5490 = vcombine.low %v5468, %v5475
        %v5491 = vcombine.low %v5482, %v5489
        %v5493 = vunpack.c.l.s4 1966171168
        %v5494 = vunpack.c.0.s8 %v5493
        %v5495 = vlaneseq
        %v5496 = vshrl.u32 %v5495, 7
        %v5497 = vsub.s32 %v5494, %v5496
        %v5498 = vrot.slane %v5490, %v5497
        %v5500 = vunpack.c.l.s4 1966171168
        %v5501 = vunpack.c.0.s8 %v5500
        %v5502 = vlaneseq
        %v5503 = vshrl.u32 %v5502, 7
        %v5504 = vsub.s32 %v5501, %v5503
        %v5505 = vrot.slane %v5491, %v5504
        %v5506 = vcombine.low %v5498, %v5505
        %v5508 = vadd.f32 %v5449, %v5506
        %5509 = vst [vmem:[%s5448] ss:$4 sm:$0xff] %v5508
        %s5510 = scalar_lea.vmem %s198, 3
        %v5511 = vld [vmem:[%s5510] ss:$4 sm:$0xff]
        %v5520 = vcombine.low %v4594, %v4663
        %v5521 = vcombine.low %v4732, %v4801
        %v5522 = vcombine.low %v4870, %v4939
        %v5523 = vcombine.low %v5008, %v5077
        %v5525 = vunpack.c.l.s4 1966171168
        %v5526 = vunpack.c.0.s8 %v5525
        %v5527 = vlaneseq
        %v5528 = vshrl.u32 %v5527, 7
        %v5529 = vsub.s32 %v5526, %v5528
        %v5530 = vrot.slane %v5520, %v5529
        %v5532 = vunpack.c.l.s4 1966171168
        %v5533 = vunpack.c.0.s8 %v5532
        %v5534 = vlaneseq
        %v5535 = vshrl.u32 %v5534, 7
        %v5536 = vsub.s32 %v5533, %v5535
        %v5537 = vrot.slane %v5521, %v5536
        %v5539 = vunpack.c.l.s4 1966171168
        %v5540 = vunpack.c.0.s8 %v5539
        %v5541 = vlaneseq
        %v5542 = vshrl.u32 %v5541, 7
        %v5543 = vsub.s32 %v5540, %v5542
        %v5544 = vrot.slane %v5522, %v5543
        %v5546 = vunpack.c.l.s4 1966171168
        %v5547 = vunpack.c.0.s8 %v5546
        %v5548 = vlaneseq
        %v5549 = vshrl.u32 %v5548, 7
        %v5550 = vsub.s32 %v5547, %v5549
        %v5551 = vrot.slane %v5523, %v5550
        %v5552 = vcombine.low %v5530, %v5537
        %v5553 = vcombine.low %v5544, %v5551
        %v5555 = vunpack.c.l.s4 1966171168
        %v5556 = vunpack.c.0.s8 %v5555
        %v5557 = vlaneseq
        %v5558 = vshrl.u32 %v5557, 7
        %v5559 = vsub.s32 %v5556, %v5558
        %v5560 = vrot.slane %v5552, %v5559
        %v5562 = vunpack.c.l.s4 1966171168
        %v5563 = vunpack.c.0.s8 %v5562
        %v5564 = vlaneseq
        %v5565 = vshrl.u32 %v5564, 7
        %v5566 = vsub.s32 %v5563, %v5565
        %v5567 = vrot.slane %v5553, %v5566
        %v5568 = vcombine.low %v5560, %v5567
        %v5570 = vadd.f32 %v5511, %v5568
        %5571 = vst [vmem:[%s5510] ss:$4 sm:$0xff] %v5570
      $region40: #{pointnet_encoder_forward.8} parent=31 // pred_fallthru
        _
      %p5572 = scmp.lt.s32.totalorder %s18, 3
      %s5573 = scalar_select %p5572, %s18, 3
      %s5574 = smul.addr %s5573, 8
      %s5575 = smul.addr %s5574, 4
      %s5576 = scalar_lea.vmem %s3, %s5575
      // Predicated region
      $region41: #{pointnet_encoder_forward.8} parent=31 // pred_check
        %p5577 = pneg %p116
      $region42: #{pointnet_encoder_forward.8} parent=31 // pred_check_branch
        %5579 = sbr.rel (%p5577) target = $region44
      $region43: #{pointnet_encoder_forward.8} parent=31 // pred_region
        _
      $region44: #{pointnet_encoder_forward.8} parent=31 // pred_fallthru
        _
    $region32: #{pointnet_encoder_forward.8} parent=5 // pred_fallthru
      _
    %p5580 = scmp.le.s32.totalorder 2, %s9
    // Predicated region
    $region45: #{pointnet_encoder_forward.8} parent=5 // pred_check
      %p5581 = pneg %p5580
    $region46: #{pointnet_encoder_forward.8} parent=5 // pred_check_branch
      %5583 = sbr.rel (%p5581) target = $region48
    $region47: #{pointnet_encoder_forward.8} parent=5 // pred_region
      %s5584 = ssub.s32 %s9, 2
      // Predicated region
      $region49: #{pointnet_encoder_forward.8} parent=47 // pred_check
        %p5585 = pneg %p122
      $region50: #{pointnet_encoder_forward.8} parent=47 // pred_check_branch
        %5587 = sbr.rel (%p5585) target = $region52
      $region51: #{pointnet_encoder_forward.8} parent=47 // pred_region
        %p5588 = scmp.lt.s32.totalorder %s20, 3
        %s5589 = scalar_select %p5588, %s20, 3
        %s5590 = smul.addr %s5589, 8
        %s5591 = smul.addr %s5590, 4
        %s5592 = scalar_lea.vmem %s3, %s5591
      $region52: #{pointnet_encoder_forward.8} parent=47 // pred_fallthru
        _
    $region48: #{pointnet_encoder_forward.8} parent=5 // pred_fallthru
      _
  $region6: #{pointnet_encoder_forward.8} parent=0 // loop_footer
    %s13 = sadd.s32 1, %s9
  $region7: #{pointnet_encoder_forward.8} parent=0 // loop_footer_branch
    %8 = sbr.rel target = $region3
  $region8: #{pointnet_encoder_forward.8} parent=0 // loop_exit
    _

</llo_original>
